<compile_context>
chip_gen: v7x
topology: tpu7x:2x2x1
jax: 0.10.0
libtpu: 0.0.40
codegen_flags: <defaults>
</compile_context>

<pallas_src>
import functools

import numpy as np
import jax
import jax.numpy as jnp
from jax import lax
from jax.experimental import pallas as pl
from jax.experimental.pallas import tpu as pltpu  # noqa: F401  (kept for TPU-specific tuning hooks)

_N_LAYERS = 7


# ----------------------------------------------------------------------------
# Single fused kernel: 7 x (conv -> BN -> ReLU -> pool) + mask-mul + fc1 ->
# ReLU -> (dropout = identity) -> fc2.  Everything lives in VMEM.
# ----------------------------------------------------------------------------
def _fused_kernel(*refs):
    e_ref, o_ref, mask_ref = refs[0], refs[1], refs[2]
    idx = 3
    conv_refs = []
    for _ in range(_N_LAYERS):
        conv_refs.append((refs[idx], refs[idx + 1], refs[idx + 2]))
        idx += 3
    sel_refs = []
    for _ in range(_N_LAYERS - 1):
        sel_refs.append((refs[idx], refs[idx + 1]))
        idx += 2
    w1e_ref, w1o_ref, b1_ref, w2_ref, b2_ref, out_ref = refs[idx:idx + 6]

    dot = functools.partial(jnp.dot, preferred_element_type=jnp.float32)

    e = e_ref[...]          # (B*Cin, J+1) even samples, right zero-padded
    o = o_ref[...]          # (B*Cin, J+1) odd  samples, left  zero-padded
    pooled = None
    for i in range(_N_LAYERS):
        w_ref, scale_ref, shift_ref = conv_refs[i]
        w0, w1, w2 = w_ref[0], w_ref[1], w_ref[2]     # block-diag (B*Cout, B*Cin)
        scale = scale_ref[...]                        # (B*Cout, 1)
        shift = shift_ref[...]                        # (B*Cout, 1)

        J = e.shape[-1] - 1
        e_cur, e_next = e[:, :J], e[:, 1:]            # x[2j],   x[2j+2]
        o_prev, o_cur = o[:, :J], o[:, 1:]            # x[2j-1], x[2j+1]

        # Polyphase conv(k=3, pad=1) evaluated at even / odd output positions.
        y_even = dot(w0, o_prev) + dot(w1, e_cur) + dot(w2, o_cur)
        y_odd = dot(w0, e_cur) + dot(w1, o_cur) + dot(w2, e_next)

        # Fused BatchNorm(eval) + conv bias + ReLU.
        y_even = jnp.maximum(y_even * scale + shift, 0.0)
        y_odd = jnp.maximum(y_odd * scale + shift, 0.0)

        # MaxPool(kernel=2, stride=2).
        pooled = jnp.maximum(y_even, y_odd)           # (B*Cout, J)

        if i < _N_LAYERS - 1:
            # Re-split into the next layer's padded even/odd slabs via exact
            # 0/1 selection matmuls (zero-pad columns are built into them).
            se_ref, so_ref = sel_refs[i]
            e = dot(pooled, se_ref[...])              # (B*Cout, J//2 + 1)
            o = dot(pooled, so_ref[...])

    # Classifier head: flatten(x * mask) -> fc1 -> ReLU -> (dropout) -> fc2.
    xm = pooled * mask_ref[...]                       # (B*64, 2)
    fc1_e = dot(w1e_ref[...], xm)                     # (B*128, 2)
    fc1_o = dot(w1o_ref[...], xm)                     # (B*128, 2)
    h = jnp.maximum(fc1_e[:, 0:1] + fc1_o[:, 1:2] + b1_ref[...], 0.0)
    # TODO(synk): Dropout(p=0.5) has no deterministic forward equivalent; eval-mode identity used.
    out_ref[...] = dot(w2_ref[...], h) + b2_ref[...]  # (B*num_classes, 1)


# ----------------------------------------------------------------------------
# One-time parameter packing (hoisted out of the forward pass).
# ----------------------------------------------------------------------------
def pack_params(params, batch_size, seq_len=256, eps=1e-5):
    B = batch_size
    eye = jnp.eye(B, dtype=jnp.float32)
    flat = []

    for i in range(_N_LAYERS):
        cp, bn = params["convs"][i], params["bns"][i]
        w = cp["w"].astype(jnp.float32)                      # (Cout, Cin, 3)
        c_out, c_in, _ = w.shape
        if c_in < 8:                                         # sublane-friendly pad (zeros)
            w = jnp.pad(w, ((0, 0), (0, 8 - c_in), (0, 0)))
        w_taps = jnp.transpose(w, (2, 0, 1))                 # (3, Cout, Cin_pad)
        w_bd = jnp.stack([jnp.kron(eye, w_taps[t]) for t in range(3)])
        inv_std = bn["gamma"] / jnp.sqrt(bn["var"] + eps)
        scale = inv_std.reshape(c_out, 1).astype(jnp.float32)
        shift = (bn["beta"] + (cp["b"] - bn["mean"]) * inv_std).reshape(c_out, 1)
        flat += [w_bd, jnp.tile(scale, (B, 1)),
                 jnp.tile(shift.astype(jnp.float32), (B, 1))]

    # Even/odd re-split selectors (with the conv zero-padding columns folded in).
    for i in range(_N_LAYERS - 1):
        j = seq_len // (2 ** (i + 1))                        # pooled length after layer i
        half = j // 2
        se = np.zeros((j, half + 1), np.float32)
        so = np.zeros((j, half + 1), np.float32)
        r = np.arange(half)
        se[2 * r, r] = 1.0                                   # even cols, right zero pad
        so[2 * r + 1, r + 1] = 1.0                           # odd cols, left zero pad
        flat += [jnp.asarray(se), jnp.asarray(so)]

    # Head: flatten index is 2*c + l, so split fc1 columns by l and block-diag over batch.
    w1 = params["fc1_w"].astype(jnp.float32)                 # (128, 128)
    flat += [
        jnp.kron(eye, w1[:, 0::2]),
        jnp.kron(eye, w1[:, 1::2]),
        jnp.tile(params["fc1_b"].reshape(-1, 1).astype(jnp.float32), (B, 1)),
        jnp.kron(eye, params["fc2_w"].astype(jnp.float32)),
        jnp.tile(params["fc2_b"].reshape(-1, 1).astype(jnp.float32), (B, 1)),
    ]
    return flat


# ----------------------------------------------------------------------------
# Forward pass: tiny input prep (once) + ONE pallas_call.
# ----------------------------------------------------------------------------
@jax.jit
def forward(x, mask, packed):
    B, c0, L = x.shape
    x = x.astype(jnp.float32)
    if c0 < 8:
        x = jnp.pad(x, ((0, 0), (0, 8 - c0), (0, 0)))
    cp = x.shape[1]

    # One-time polyphase split of the raw input into padded even/odd slabs,
    # with batch folded into the sublane (channel) dimension.
    e = x[:, :, 0::2]
    o = x[:, :, 1::2]
    z = jnp.zeros((B, cp, 1), jnp.float32)
    e0 = jnp.concatenate([e, z], axis=-1).reshape(B * cp, L // 2 + 1)
    o0 = jnp.concatenate([z, o], axis=-1).reshape(B * cp, L // 2 + 1)

    # Faithful mask down-sampling (matches the PyTorch per-layer slicing).
    m = mask.astype(jnp.float32)
    for _ in range(_N_LAYERS):
        out_len = (m.shape[-1] - 2) // 2 + 1
        m = m[:, :, : out_len * 2 : 2]

    c_last = packed[3 * (_N_LAYERS - 1)].shape[1] // B       # 64
    mask_sub = jnp.broadcast_to(m, (B, c_last, m.shape[-1])).reshape(B * c_last, -1)

    out_flat = pl.pallas_call(
        _fused_kernel,
        out_shape=jax.ShapeDtypeStruct((packed[-1].shape[0], 1), jnp.float32),
    )(e0, o0, mask_sub, *packed)
    return out_flat.reshape(B, -1)


# ----------------------------------------------------------------------------
# Pure-JAX reference (same math) for validation.
# ----------------------------------------------------------------------------
def ref_forward(x, mask, params, eps=1e-5):
    for i in range(_N_LAYERS):
        cp = params["convs"][i]
        bn = params["bns"][i]
        y = lax.conv_general_dilated(
            x, cp["w"], window_strides=(1,), padding=((1, 1),),
            dimension_numbers=("NCH", "OIH", "NCH")) + cp["b"][None, :, None]
        y = (y - bn["mean"][None, :, None]) * (bn["gamma"][None, :, None]
            / jnp.sqrt(bn["var"][None, :, None] + eps)) + bn["beta"][None, :, None]
        y = jnp.maximum(y, 0.0)
        B, C, L = y.shape
        x = jnp.max(y.reshape(B, C, L // 2, 2), axis=-1)
        in_len = mask.shape[-1]
        out_len = (in_len - 2) // 2 + 1
        mask = mask[:, :, : out_len * 2 : 2]
    B, C, L = x.shape
    xf = (x * mask).reshape(B, C * L)
    h = jnp.maximum(xf @ params["fc1_w"].T + params["fc1_b"], 0.0)
    return h @ params["fc2_w"].T + params["fc2_b"]


# ----------------------------------------------------------------------------
# Deterministic parameter construction (shapes from the nn.Module __init__).
# ----------------------------------------------------------------------------
def init_params(key, num_classes=2):
    cfg = [(1, 8), (8, 8), (8, 8), (8, 8), (8, 16), (16, 32), (32, 64)]
    bn_share = [0, 0, 0, 0, 1, 2, 3]            # bn8 shared by the first four layers
    bn_sizes = [8, 16, 32, 64]
    keys = jax.random.split(key, 40)
    ki = iter(range(40))

    convs = []
    for cin, cout in cfg:
        bound = 1.0 / (cin * 3) ** 0.5
        w = jax.random.uniform(keys[next(ki)], (cout, cin, 3), jnp.float32, -bound, bound)
        b = jax.random.uniform(keys[next(ki)], (cout,), jnp.float32, -bound, bound)
        convs.append({"w": w, "b": b})

    bn_banks = []
    for c in bn_sizes:
        g = 1.0 + 0.1 * jax.random.normal(keys[next(ki)], (c,), jnp.float32)
        be = 0.1 * jax.random.normal(keys[next(ki)], (c,), jnp.float32)
        mu = 0.1 * jax.random.normal(keys[next(ki)], (c,), jnp.float32)
        var = 0.5 + 0.5 * jnp.abs(jax.random.normal(keys[next(ki)], (c,), jnp.float32))
        bn_banks.append({"gamma": g, "beta": be, "mean": mu, "var": var})
    bns = [bn_banks[i] for i in bn_share]

    bnd = 1.0 / 128.0 ** 0.5
    fc1_w = jax.random.uniform(keys[next(ki)], (128, 128), jnp.float32, -bnd, bnd)
    fc1_b = jax.random.uniform(keys[next(ki)], (128,), jnp.float32, -bnd, bnd)
    fc2_w = jax.random.uniform(keys[next(ki)], (num_classes, 128), jnp.float32, -bnd, bnd)
    fc2_b = jax.random.uniform(keys[next(ki)], (num_classes,), jnp.float32, -bnd, bnd)

    return {"convs": convs, "bns": bns,
            "fc1_w": fc1_w, "fc1_b": fc1_b, "fc2_w": fc2_w, "fc2_b": fc2_b}


if __name__ == "__main__":
    key = jax.random.PRNGKey(0)
    k_in, k_mask, k_param = jax.random.split(key, 3)

    # fc1 expects 64 * 2 features -> input length must be 2 * 2**7 = 256.
    B, L = 2, 256
    x = jax.random.normal(k_in, (B, 1, L), jnp.float32)
    mask = jax.random.bernoulli(k_mask, 0.8, (B, 1, L)).astype(jnp.float32)
    params = init_params(k_param, num_classes=2)

    packed = pack_params(params, batch_size=B, seq_len=L)   # one-time packing

    out = jax.block_until_ready(forward(x, mask, packed))
    ref = jax.block_until_ready(ref_forward(x, mask, params))

    assert out.shape == (B, 2), out.shape
    if not jnp.allclose(out, ref, atol=5e-3, rtol=5e-3):
        raise AssertionError(f"Pallas/reference mismatch:\n{out}\nvs\n{ref}")
    print("KERNEL_OK")
</pallas_src>

<mosaic_0001>
module attributes {stable_mosaic.version = 11 : i64} {
  func.func @_fused_kernel(%arg0: memref<16x129xf32, #tpu.memory_space<vmem>>, %arg1: memref<16x129xf32, #tpu.memory_space<vmem>>, %arg2: memref<128x2xf32, #tpu.memory_space<vmem>>, %arg3: memref<3x16x16xf32, #tpu.memory_space<vmem>>, %arg4: memref<16x1xf32, #tpu.memory_space<vmem>>, %arg5: memref<16x1xf32, #tpu.memory_space<vmem>>, %arg6: memref<3x16x16xf32, #tpu.memory_space<vmem>>, %arg7: memref<16x1xf32, #tpu.memory_space<vmem>>, %arg8: memref<16x1xf32, #tpu.memory_space<vmem>>, %arg9: memref<3x16x16xf32, #tpu.memory_space<vmem>>, %arg10: memref<16x1xf32, #tpu.memory_space<vmem>>, %arg11: memref<16x1xf32, #tpu.memory_space<vmem>>, %arg12: memref<3x16x16xf32, #tpu.memory_space<vmem>>, %arg13: memref<16x1xf32, #tpu.memory_space<vmem>>, %arg14: memref<16x1xf32, #tpu.memory_space<vmem>>, %arg15: memref<3x32x16xf32, #tpu.memory_space<vmem>>, %arg16: memref<32x1xf32, #tpu.memory_space<vmem>>, %arg17: memref<32x1xf32, #tpu.memory_space<vmem>>, %arg18: memref<3x64x32xf32, #tpu.memory_space<vmem>>, %arg19: memref<64x1xf32, #tpu.memory_space<vmem>>, %arg20: memref<64x1xf32, #tpu.memory_space<vmem>>, %arg21: memref<3x128x64xf32, #tpu.memory_space<vmem>>, %arg22: memref<128x1xf32, #tpu.memory_space<vmem>>, %arg23: memref<128x1xf32, #tpu.memory_space<vmem>>, %arg24: memref<128x65xf32, #tpu.memory_space<vmem>>, %arg25: memref<128x65xf32, #tpu.memory_space<vmem>>, %arg26: memref<64x33xf32, #tpu.memory_space<vmem>>, %arg27: memref<64x33xf32, #tpu.memory_space<vmem>>, %arg28: memref<32x17xf32, #tpu.memory_space<vmem>>, %arg29: memref<32x17xf32, #tpu.memory_space<vmem>>, %arg30: memref<16x9xf32, #tpu.memory_space<vmem>>, %arg31: memref<16x9xf32, #tpu.memory_space<vmem>>, %arg32: memref<8x5xf32, #tpu.memory_space<vmem>>, %arg33: memref<8x5xf32, #tpu.memory_space<vmem>>, %arg34: memref<4x3xf32, #tpu.memory_space<vmem>>, %arg35: memref<4x3xf32, #tpu.memory_space<vmem>>, %arg36: memref<256x128xf32, #tpu.memory_space<vmem>>, %arg37: memref<256x128xf32, #tpu.memory_space<vmem>>, %arg38: memref<256x1xf32, #tpu.memory_space<vmem>>, %arg39: memref<4x256xf32, #tpu.memory_space<vmem>>, %arg40: memref<4x1xf32, #tpu.memory_space<vmem>>, %arg41: memref<4x1xf32, #tpu.memory_space<vmem>>) attributes {dimension_semantics = [], scalar_prefetch = 0 : i64, scratch_operands = 0 : i64, tpu.core_type = #tpu.core_type<tc>} {
    %c0 = arith.constant 0 : index
    %c0_0 = arith.constant 0 : index
    %0 = vector.load %arg0[%c0, %c0_0] : memref<16x129xf32, #tpu.memory_space<vmem>>, vector<16x129xf32>
    %c0_1 = arith.constant 0 : index
    %c0_2 = arith.constant 0 : index
    %1 = vector.load %arg1[%c0_1, %c0_2] : memref<16x129xf32, #tpu.memory_space<vmem>>, vector<16x129xf32>
    %c0_3 = arith.constant 0 : index
    %c0_4 = arith.constant 0 : index
    %c0_5 = arith.constant 0 : index
    %2 = vector.load %arg3[%c0_3, %c0_4, %c0_5] : memref<3x16x16xf32, #tpu.memory_space<vmem>>, vector<1x16x16xf32>
    %3 = vector.shape_cast %2 : vector<1x16x16xf32> to vector<16x16xf32>
    %c1 = arith.constant 1 : index
    %c0_6 = arith.constant 0 : index
    %c0_7 = arith.constant 0 : index
    %4 = vector.load %arg3[%c1, %c0_6, %c0_7] : memref<3x16x16xf32, #tpu.memory_space<vmem>>, vector<1x16x16xf32>
    %5 = vector.shape_cast %4 : vector<1x16x16xf32> to vector<16x16xf32>
    %c2 = arith.constant 2 : index
    %c0_8 = arith.constant 0 : index
    %c0_9 = arith.constant 0 : index
    %6 = vector.load %arg3[%c2, %c0_8, %c0_9] : memref<3x16x16xf32, #tpu.memory_space<vmem>>, vector<1x16x16xf32>
    %7 = vector.shape_cast %6 : vector<1x16x16xf32> to vector<16x16xf32>
    %c0_10 = arith.constant 0 : index
    %c0_11 = arith.constant 0 : index
    %8 = vector.load %arg4[%c0_10, %c0_11] : memref<16x1xf32, #tpu.memory_space<vmem>>, vector<16x1xf32>
    %c0_12 = arith.constant 0 : index
    %c0_13 = arith.constant 0 : index
    %9 = vector.load %arg5[%c0_12, %c0_13] : memref<16x1xf32, #tpu.memory_space<vmem>>, vector<16x1xf32>
    %10 = vector.extract_strided_slice %0 {offsets = [0, 0], sizes = [16, 128], strides = [1, 1]} : vector<16x129xf32> to vector<16x128xf32>
    %11 = vector.extract_strided_slice %0 {offsets = [0, 1], sizes = [16, 128], strides = [1, 1]} : vector<16x129xf32> to vector<16x128xf32>
    %12 = vector.extract_strided_slice %1 {offsets = [0, 0], sizes = [16, 128], strides = [1, 1]} : vector<16x129xf32> to vector<16x128xf32>
    %13 = vector.extract_strided_slice %1 {offsets = [0, 1], sizes = [16, 128], strides = [1, 1]} : vector<16x129xf32> to vector<16x128xf32>
    %cst = arith.constant dense<0.000000e+00> : vector<16x128xf32>
    %14 = tpu.matmul %3, %12, %cst {dimension_numbers = #tpu.dot_dimension_numbers<[1], [0], [0], [1], [0, 0, 1, 1], [], []>} : vector<16x16xf32>, vector<16x128xf32>, vector<16x128xf32> -> vector<16x128xf32>
    %cst_14 = arith.constant dense<0.000000e+00> : vector<16x128xf32>
    %15 = tpu.matmul %5, %10, %cst_14 {dimension_numbers = #tpu.dot_dimension_numbers<[1], [0], [0], [1], [0, 0, 1, 1], [], []>} : vector<16x16xf32>, vector<16x128xf32>, vector<16x128xf32> -> vector<16x128xf32>
    %16 = arith.addf %14, %15 : vector<16x128xf32>
    %cst_15 = arith.constant dense<0.000000e+00> : vector<16x128xf32>
    %17 = tpu.matmul %7, %13, %cst_15 {dimension_numbers = #tpu.dot_dimension_numbers<[1], [0], [0], [1], [0, 0, 1, 1], [], []>} : vector<16x16xf32>, vector<16x128xf32>, vector<16x128xf32> -> vector<16x128xf32>
    %18 = arith.addf %16, %17 : vector<16x128xf32>
    %cst_16 = arith.constant dense<0.000000e+00> : vector<16x128xf32>
    %19 = tpu.matmul %3, %10, %cst_16 {dimension_numbers = #tpu.dot_dimension_numbers<[1], [0], [0], [1], [0, 0, 1, 1], [], []>} : vector<16x16xf32>, vector<16x128xf32>, vector<16x128xf32> -> vector<16x128xf32>
    %cst_17 = arith.constant dense<0.000000e+00> : vector<16x128xf32>
    %20 = tpu.matmul %5, %13, %cst_17 {dimension_numbers = #tpu.dot_dimension_numbers<[1], [0], [0], [1], [0, 0, 1, 1], [], []>} : vector<16x16xf32>, vector<16x128xf32>, vector<16x128xf32> -> vector<16x128xf32>
    %21 = arith.addf %19, %20 : vector<16x128xf32>
    %cst_18 = arith.constant dense<0.000000e+00> : vector<16x128xf32>
    %22 = tpu.matmul %7, %11, %cst_18 {dimension_numbers = #tpu.dot_dimension_numbers<[1], [0], [0], [1], [0, 0, 1, 1], [], []>} : vector<16x16xf32>, vector<16x128xf32>, vector<16x128xf32> -> vector<16x128xf32>
    %23 = arith.addf %21, %22 : vector<16x128xf32>
    %24 = vector.broadcast %8 : vector<16x1xf32> to vector<16x128xf32>
    %25 = arith.mulf %18, %24 : vector<16x128xf32>
    %26 = vector.broadcast %9 : vector<16x1xf32> to vector<16x128xf32>
    %27 = arith.addf %25, %26 : vector<16x128xf32>
    %cst_19 = arith.constant 0.000000e+00 : f32
    %28 = vector.broadcast %cst_19 : f32 to vector<16x128xf32>
    %29 = arith.maximumf %27, %28 : vector<16x128xf32>
    %30 = vector.broadcast %8 : vector<16x1xf32> to vector<16x128xf32>
    %31 = arith.mulf %23, %30 : vector<16x128xf32>
    %32 = vector.broadcast %9 : vector<16x1xf32> to vector<16x128xf32>
    %33 = arith.addf %31, %32 : vector<16x128xf32>
    %cst_20 = arith.constant 0.000000e+00 : f32
    %34 = vector.broadcast %cst_20 : f32 to vector<16x128xf32>
    %35 = arith.maximumf %33, %34 : vector<16x128xf32>
    %36 = arith.maximumf %29, %35 : vector<16x128xf32>
    %c0_21 = arith.constant 0 : index
    %c0_22 = arith.constant 0 : index
    %37 = vector.load %arg24[%c0_21, %c0_22] : memref<128x65xf32, #tpu.memory_space<vmem>>, vector<128x65xf32>
    %cst_23 = arith.constant dense<0.000000e+00> : vector<16x65xf32>
    %38 = tpu.matmul %36, %37, %cst_23 {dimension_numbers = #tpu.dot_dimension_numbers<[1], [0], [0], [1], [0, 0, 1, 1], [], []>} : vector<16x128xf32>, vector<128x65xf32>, vector<16x65xf32> -> vector<16x65xf32>
    %c0_24 = arith.constant 0 : index
    %c0_25 = arith.constant 0 : index
    %39 = vector.load %arg25[%c0_24, %c0_25] : memref<128x65xf32, #tpu.memory_space<vmem>>, vector<128x65xf32>
    %cst_26 = arith.constant dense<0.000000e+00> : vector<16x65xf32>
    %40 = tpu.matmul %36, %39, %cst_26 {dimension_numbers = #tpu.dot_dimension_numbers<[1], [0], [0], [1], [0, 0, 1, 1], [], []>} : vector<16x128xf32>, vector<128x65xf32>, vector<16x65xf32> -> vector<16x65xf32>
    %c0_27 = arith.constant 0 : index
    %c0_28 = arith.constant 0 : index
    %c0_29 = arith.constant 0 : index
    %41 = vector.load %arg6[%c0_27, %c0_28, %c0_29] : memref<3x16x16xf32, #tpu.memory_space<vmem>>, vector<1x16x16xf32>
    %42 = vector.shape_cast %41 : vector<1x16x16xf32> to vector<16x16xf32>
    %c1_30 = arith.constant 1 : index
    %c0_31 = arith.constant 0 : index
    %c0_32 = arith.constant 0 : index
    %43 = vector.load %arg6[%c1_30, %c0_31, %c0_32] : memref<3x16x16xf32, #tpu.memory_space<vmem>>, vector<1x16x16xf32>
    %44 = vector.shape_cast %43 : vector<1x16x16xf32> to vector<16x16xf32>
    %c2_33 = arith.constant 2 : index
    %c0_34 = arith.constant 0 : index
    %c0_35 = arith.constant 0 : index
    %45 = vector.load %arg6[%c2_33, %c0_34, %c0_35] : memref<3x16x16xf32, #tpu.memory_space<vmem>>, vector<1x16x16xf32>
    %46 = vector.shape_cast %45 : vector<1x16x16xf32> to vector<16x16xf32>
    %c0_36 = arith.constant 0 : index
    %c0_37 = arith.constant 0 : index
    %47 = vector.load %arg7[%c0_36, %c0_37] : memref<16x1xf32, #tpu.memory_space<vmem>>, vector<16x1xf32>
    %c0_38 = arith.constant 0 : index
    %c0_39 = arith.constant 0 : index
    %48 = vector.load %arg8[%c0_38, %c0_39] : memref<16x1xf32, #tpu.memory_space<vmem>>, vector<16x1xf32>
    %49 = vector.extract_strided_slice %38 {offsets = [0, 0], sizes = [16, 64], strides = [1, 1]} : vector<16x65xf32> to vector<16x64xf32>
    %50 = vector.extract_strided_slice %38 {offsets = [0, 1], sizes = [16, 64], strides = [1, 1]} : vector<16x65xf32> to vector<16x64xf32>
    %51 = vector.extract_strided_slice %40 {offsets = [0, 0], sizes = [16, 64], strides = [1, 1]} : vector<16x65xf32> to vector<16x64xf32>
    %52 = vector.extract_strided_slice %40 {offsets = [0, 1], sizes = [16, 64], strides = [1, 1]} : vector<16x65xf32> to vector<16x64xf32>
    %cst_40 = arith.constant dense<0.000000e+00> : vector<16x64xf32>
    %53 = tpu.matmul %42, %51, %cst_40 {dimension_numbers = #tpu.dot_dimension_numbers<[1], [0], [0], [1], [0, 0, 1, 1], [], []>} : vector<16x16xf32>, vector<16x64xf32>, vector<16x64xf32> -> vector<16x64xf32>
    %cst_41 = arith.constant dense<0.000000e+00> : vector<16x64xf32>
    %54 = tpu.matmul %44, %49, %cst_41 {dimension_numbers = #tpu.dot_dimension_numbers<[1], [0], [0], [1], [0, 0, 1, 1], [], []>} : vector<16x16xf32>, vector<16x64xf32>, vector<16x64xf32> -> vector<16x64xf32>
    %55 = arith.addf %53, %54 : vector<16x64xf32>
    %cst_42 = arith.constant dense<0.000000e+00> : vector<16x64xf32>
    %56 = tpu.matmul %46, %52, %cst_42 {dimension_numbers = #tpu.dot_dimension_numbers<[1], [0], [0], [1], [0, 0, 1, 1], [], []>} : vector<16x16xf32>, vector<16x64xf32>, vector<16x64xf32> -> vector<16x64xf32>
    %57 = arith.addf %55, %56 : vector<16x64xf32>
    %cst_43 = arith.constant dense<0.000000e+00> : vector<16x64xf32>
    %58 = tpu.matmul %42, %49, %cst_43 {dimension_numbers = #tpu.dot_dimension_numbers<[1], [0], [0], [1], [0, 0, 1, 1], [], []>} : vector<16x16xf32>, vector<16x64xf32>, vector<16x64xf32> -> vector<16x64xf32>
    %cst_44 = arith.constant dense<0.000000e+00> : vector<16x64xf32>
    %59 = tpu.matmul %44, %52, %cst_44 {dimension_numbers = #tpu.dot_dimension_numbers<[1], [0], [0], [1], [0, 0, 1, 1], [], []>} : vector<16x16xf32>, vector<16x64xf32>, vector<16x64xf32> -> vector<16x64xf32>
    %60 = arith.addf %58, %59 : vector<16x64xf32>
    %cst_45 = arith.constant dense<0.000000e+00> : vector<16x64xf32>
    %61 = tpu.matmul %46, %50, %cst_45 {dimension_numbers = #tpu.dot_dimension_numbers<[1], [0], [0], [1], [0, 0, 1, 1], [], []>} : vector<16x16xf32>, vector<16x64xf32>, vector<16x64xf32> -> vector<16x64xf32>
    %62 = arith.addf %60, %61 : vector<16x64xf32>
    %63 = vector.broadcast %47 : vector<16x1xf32> to vector<16x64xf32>
    %64 = arith.mulf %57, %63 : vector<16x64xf32>
    %65 = vector.broadcast %48 : vector<16x1xf32> to vector<16x64xf32>
    %66 = arith.addf %64, %65 : vector<16x64xf32>
    %cst_46 = arith.constant 0.000000e+00 : f32
    %67 = vector.broadcast %cst_46 : f32 to vector<16x64xf32>
    %68 = arith.maximumf %66, %67 : vector<16x64xf32>
    %69 = vector.broadcast %47 : vector<16x1xf32> to vector<16x64xf32>
    %70 = arith.mulf %62, %69 : vector<16x64xf32>
    %71 = vector.broadcast %48 : vector<16x1xf32> to vector<16x64xf32>
    %72 = arith.addf %70, %71 : vector<16x64xf32>
    %cst_47 = arith.constant 0.000000e+00 : f32
    %73 = vector.broadcast %cst_47 : f32 to vector<16x64xf32>
    %74 = arith.maximumf %72, %73 : vector<16x64xf32>
    %75 = arith.maximumf %68, %74 : vector<16x64xf32>
    %c0_48 = arith.constant 0 : index
    %c0_49 = arith.constant 0 : index
    %76 = vector.load %arg26[%c0_48, %c0_49] : memref<64x33xf32, #tpu.memory_space<vmem>>, vector<64x33xf32>
    %cst_50 = arith.constant dense<0.000000e+00> : vector<16x33xf32>
    %77 = tpu.matmul %75, %76, %cst_50 {dimension_numbers = #tpu.dot_dimension_numbers<[1], [0], [0], [1], [0, 0, 1, 1], [], []>} : vector<16x64xf32>, vector<64x33xf32>, vector<16x33xf32> -> vector<16x33xf32>
    %c0_51 = arith.constant 0 : index
    %c0_52 = arith.constant 0 : index
    %78 = vector.load %arg27[%c0_51, %c0_52] : memref<64x33xf32, #tpu.memory_space<vmem>>, vector<64x33xf32>
    %cst_53 = arith.constant dense<0.000000e+00> : vector<16x33xf32>
    %79 = tpu.matmul %75, %78, %cst_53 {dimension_numbers = #tpu.dot_dimension_numbers<[1], [0], [0], [1], [0, 0, 1, 1], [], []>} : vector<16x64xf32>, vector<64x33xf32>, vector<16x33xf32> -> vector<16x33xf32>
    %c0_54 = arith.constant 0 : index
    %c0_55 = arith.constant 0 : index
    %c0_56 = arith.constant 0 : index
    %80 = vector.load %arg9[%c0_54, %c0_55, %c0_56] : memref<3x16x16xf32, #tpu.memory_space<vmem>>, vector<1x16x16xf32>
    %81 = vector.shape_cast %80 : vector<1x16x16xf32> to vector<16x16xf32>
    %c1_57 = arith.constant 1 : index
    %c0_58 = arith.constant 0 : index
    %c0_59 = arith.constant 0 : index
    %82 = vector.load %arg9[%c1_57, %c0_58, %c0_59] : memref<3x16x16xf32, #tpu.memory_space<vmem>>, vector<1x16x16xf32>
    %83 = vector.shape_cast %82 : vector<1x16x16xf32> to vector<16x16xf32>
    %c2_60 = arith.constant 2 : index
    %c0_61 = arith.constant 0 : index
    %c0_62 = arith.constant 0 : index
    %84 = vector.load %arg9[%c2_60, %c0_61, %c0_62] : memref<3x16x16xf32, #tpu.memory_space<vmem>>, vector<1x16x16xf32>
    %85 = vector.shape_cast %84 : vector<1x16x16xf32> to vector<16x16xf32>
    %c0_63 = arith.constant 0 : index
    %c0_64 = arith.constant 0 : index
    %86 = vector.load %arg10[%c0_63, %c0_64] : memref<16x1xf32, #tpu.memory_space<vmem>>, vector<16x1xf32>
    %c0_65 = arith.constant 0 : index
    %c0_66 = arith.constant 0 : index
    %87 = vector.load %arg11[%c0_65, %c0_66] : memref<16x1xf32, #tpu.memory_space<vmem>>, vector<16x1xf32>
    %88 = vector.extract_strided_slice %77 {offsets = [0, 0], sizes = [16, 32], strides = [1, 1]} : vector<16x33xf32> to vector<16x32xf32>
    %89 = vector.extract_strided_slice %77 {offsets = [0, 1], sizes = [16, 32], strides = [1, 1]} : vector<16x33xf32> to vector<16x32xf32>
    %90 = vector.extract_strided_slice %79 {offsets = [0, 0], sizes = [16, 32], strides = [1, 1]} : vector<16x33xf32> to vector<16x32xf32>
    %91 = vector.extract_strided_slice %79 {offsets = [0, 1], sizes = [16, 32], strides = [1, 1]} : vector<16x33xf32> to vector<16x32xf32>
    %cst_67 = arith.constant dense<0.000000e+00> : vector<16x32xf32>
    %92 = tpu.matmul %81, %90, %cst_67 {dimension_numbers = #tpu.dot_dimension_numbers<[1], [0], [0], [1], [0, 0, 1, 1], [], []>} : vector<16x16xf32>, vector<16x32xf32>, vector<16x32xf32> -> vector<16x32xf32>
    %cst_68 = arith.constant dense<0.000000e+00> : vector<16x32xf32>
    %93 = tpu.matmul %83, %88, %cst_68 {dimension_numbers = #tpu.dot_dimension_numbers<[1], [0], [0], [1], [0, 0, 1, 1], [], []>} : vector<16x16xf32>, vector<16x32xf32>, vector<16x32xf32> -> vector<16x32xf32>
    %94 = arith.addf %92, %93 : vector<16x32xf32>
    %cst_69 = arith.constant dense<0.000000e+00> : vector<16x32xf32>
    %95 = tpu.matmul %85, %91, %cst_69 {dimension_numbers = #tpu.dot_dimension_numbers<[1], [0], [0], [1], [0, 0, 1, 1], [], []>} : vector<16x16xf32>, vector<16x32xf32>, vector<16x32xf32> -> vector<16x32xf32>
    %96 = arith.addf %94, %95 : vector<16x32xf32>
    %cst_70 = arith.constant dense<0.000000e+00> : vector<16x32xf32>
    %97 = tpu.matmul %81, %88, %cst_70 {dimension_numbers = #tpu.dot_dimension_numbers<[1], [0], [0], [1], [0, 0, 1, 1], [], []>} : vector<16x16xf32>, vector<16x32xf32>, vector<16x32xf32> -> vector<16x32xf32>
    %cst_71 = arith.constant dense<0.000000e+00> : vector<16x32xf32>
    %98 = tpu.matmul %83, %91, %cst_71 {dimension_numbers = #tpu.dot_dimension_numbers<[1], [0], [0], [1], [0, 0, 1, 1], [], []>} : vector<16x16xf32>, vector<16x32xf32>, vector<16x32xf32> -> vector<16x32xf32>
    %99 = arith.addf %97, %98 : vector<16x32xf32>
    %cst_72 = arith.constant dense<0.000000e+00> : vector<16x32xf32>
    %100 = tpu.matmul %85, %89, %cst_72 {dimension_numbers = #tpu.dot_dimension_numbers<[1], [0], [0], [1], [0, 0, 1, 1], [], []>} : vector<16x16xf32>, vector<16x32xf32>, vector<16x32xf32> -> vector<16x32xf32>
    %101 = arith.addf %99, %100 : vector<16x32xf32>
    %102 = vector.broadcast %86 : vector<16x1xf32> to vector<16x32xf32>
    %103 = arith.mulf %96, %102 : vector<16x32xf32>
    %104 = vector.broadcast %87 : vector<16x1xf32> to vector<16x32xf32>
    %105 = arith.addf %103, %104 : vector<16x32xf32>
    %cst_73 = arith.constant 0.000000e+00 : f32
    %106 = vector.broadcast %cst_73 : f32 to vector<16x32xf32>
    %107 = arith.maximumf %105, %106 : vector<16x32xf32>
    %108 = vector.broadcast %86 : vector<16x1xf32> to vector<16x32xf32>
    %109 = arith.mulf %101, %108 : vector<16x32xf32>
    %110 = vector.broadcast %87 : vector<16x1xf32> to vector<16x32xf32>
    %111 = arith.addf %109, %110 : vector<16x32xf32>
    %cst_74 = arith.constant 0.000000e+00 : f32
    %112 = vector.broadcast %cst_74 : f32 to vector<16x32xf32>
    %113 = arith.maximumf %111, %112 : vector<16x32xf32>
    %114 = arith.maximumf %107, %113 : vector<16x32xf32>
    %c0_75 = arith.constant 0 : index
    %c0_76 = arith.constant 0 : index
    %115 = vector.load %arg28[%c0_75, %c0_76] : memref<32x17xf32, #tpu.memory_space<vmem>>, vector<32x17xf32>
    %cst_77 = arith.constant dense<0.000000e+00> : vector<16x17xf32>
    %116 = tpu.matmul %114, %115, %cst_77 {dimension_numbers = #tpu.dot_dimension_numbers<[1], [0], [0], [1], [0, 0, 1, 1], [], []>} : vector<16x32xf32>, vector<32x17xf32>, vector<16x17xf32> -> vector<16x17xf32>
    %c0_78 = arith.constant 0 : index
    %c0_79 = arith.constant 0 : index
    %117 = vector.load %arg29[%c0_78, %c0_79] : memref<32x17xf32, #tpu.memory_space<vmem>>, vector<32x17xf32>
    %cst_80 = arith.constant dense<0.000000e+00> : vector<16x17xf32>
    %118 = tpu.matmul %114, %117, %cst_80 {dimension_numbers = #tpu.dot_dimension_numbers<[1], [0], [0], [1], [0, 0, 1, 1], [], []>} : vector<16x32xf32>, vector<32x17xf32>, vector<16x17xf32> -> vector<16x17xf32>
    %c0_81 = arith.constant 0 : index
    %c0_82 = arith.constant 0 : index
    %c0_83 = arith.constant 0 : index
    %119 = vector.load %arg12[%c0_81, %c0_82, %c0_83] : memref<3x16x16xf32, #tpu.memory_space<vmem>>, vector<1x16x16xf32>
    %120 = vector.shape_cast %119 : vector<1x16x16xf32> to vector<16x16xf32>
    %c1_84 = arith.constant 1 : index
    %c0_85 = arith.constant 0 : index
    %c0_86 = arith.constant 0 : index
    %121 = vector.load %arg12[%c1_84, %c0_85, %c0_86] : memref<3x16x16xf32, #tpu.memory_space<vmem>>, vector<1x16x16xf32>
    %122 = vector.shape_cast %121 : vector<1x16x16xf32> to vector<16x16xf32>
    %c2_87 = arith.constant 2 : index
    %c0_88 = arith.constant 0 : index
    %c0_89 = arith.constant 0 : index
    %123 = vector.load %arg12[%c2_87, %c0_88, %c0_89] : memref<3x16x16xf32, #tpu.memory_space<vmem>>, vector<1x16x16xf32>
    %124 = vector.shape_cast %123 : vector<1x16x16xf32> to vector<16x16xf32>
    %c0_90 = arith.constant 0 : index
    %c0_91 = arith.constant 0 : index
    %125 = vector.load %arg13[%c0_90, %c0_91] : memref<16x1xf32, #tpu.memory_space<vmem>>, vector<16x1xf32>
    %c0_92 = arith.constant 0 : index
    %c0_93 = arith.constant 0 : index
    %126 = vector.load %arg14[%c0_92, %c0_93] : memref<16x1xf32, #tpu.memory_space<vmem>>, vector<16x1xf32>
    %127 = vector.extract_strided_slice %116 {offsets = [0, 0], sizes = [16, 16], strides = [1, 1]} : vector<16x17xf32> to vector<16x16xf32>
    %128 = vector.extract_strided_slice %116 {offsets = [0, 1], sizes = [16, 16], strides = [1, 1]} : vector<16x17xf32> to vector<16x16xf32>
    %129 = vector.extract_strided_slice %118 {offsets = [0, 0], sizes = [16, 16], strides = [1, 1]} : vector<16x17xf32> to vector<16x16xf32>
    %130 = vector.extract_strided_slice %118 {offsets = [0, 1], sizes = [16, 16], strides = [1, 1]} : vector<16x17xf32> to vector<16x16xf32>
    %cst_94 = arith.constant dense<0.000000e+00> : vector<16x16xf32>
    %131 = tpu.matmul %120, %129, %cst_94 {dimension_numbers = #tpu.dot_dimension_numbers<[1], [0], [0], [1], [0, 0, 1, 1], [], []>} : vector<16x16xf32>, vector<16x16xf32>, vector<16x16xf32> -> vector<16x16xf32>
    %cst_95 = arith.constant dense<0.000000e+00> : vector<16x16xf32>
    %132 = tpu.matmul %122, %127, %cst_95 {dimension_numbers = #tpu.dot_dimension_numbers<[1], [0], [0], [1], [0, 0, 1, 1], [], []>} : vector<16x16xf32>, vector<16x16xf32>, vector<16x16xf32> -> vector<16x16xf32>
    %133 = arith.addf %131, %132 : vector<16x16xf32>
    %cst_96 = arith.constant dense<0.000000e+00> : vector<16x16xf32>
    %134 = tpu.matmul %124, %130, %cst_96 {dimension_numbers = #tpu.dot_dimension_numbers<[1], [0], [0], [1], [0, 0, 1, 1], [], []>} : vector<16x16xf32>, vector<16x16xf32>, vector<16x16xf32> -> vector<16x16xf32>
    %135 = arith.addf %133, %134 : vector<16x16xf32>
    %cst_97 = arith.constant dense<0.000000e+00> : vector<16x16xf32>
    %136 = tpu.matmul %120, %127, %cst_97 {dimension_numbers = #tpu.dot_dimension_numbers<[1], [0], [0], [1], [0, 0, 1, 1], [], []>} : vector<16x16xf32>, vector<16x16xf32>, vector<16x16xf32> -> vector<16x16xf32>
    %cst_98 = arith.constant dense<0.000000e+00> : vector<16x16xf32>
    %137 = tpu.matmul %122, %130, %cst_98 {dimension_numbers = #tpu.dot_dimension_numbers<[1], [0], [0], [1], [0, 0, 1, 1], [], []>} : vector<16x16xf32>, vector<16x16xf32>, vector<16x16xf32> -> vector<16x16xf32>
    %138 = arith.addf %136, %137 : vector<16x16xf32>
    %cst_99 = arith.constant dense<0.000000e+00> : vector<16x16xf32>
    %139 = tpu.matmul %124, %128, %cst_99 {dimension_numbers = #tpu.dot_dimension_numbers<[1], [0], [0], [1], [0, 0, 1, 1], [], []>} : vector<16x16xf32>, vector<16x16xf32>, vector<16x16xf32> -> vector<16x16xf32>
    %140 = arith.addf %138, %139 : vector<16x16xf32>
    %141 = vector.broadcast %125 : vector<16x1xf32> to vector<16x16xf32>
    %142 = arith.mulf %135, %141 : vector<16x16xf32>
    %143 = vector.broadcast %126 : vector<16x1xf32> to vector<16x16xf32>
    %144 = arith.addf %142, %143 : vector<16x16xf32>
    %cst_100 = arith.constant 0.000000e+00 : f32
    %145 = vector.broadcast %cst_100 : f32 to vector<16x16xf32>
    %146 = arith.maximumf %144, %145 : vector<16x16xf32>
    %147 = vector.broadcast %125 : vector<16x1xf32> to vector<16x16xf32>
    %148 = arith.mulf %140, %147 : vector<16x16xf32>
    %149 = vector.broadcast %126 : vector<16x1xf32> to vector<16x16xf32>
    %150 = arith.addf %148, %149 : vector<16x16xf32>
    %cst_101 = arith.constant 0.000000e+00 : f32
    %151 = vector.broadcast %cst_101 : f32 to vector<16x16xf32>
    %152 = arith.maximumf %150, %151 : vector<16x16xf32>
    %153 = arith.maximumf %146, %152 : vector<16x16xf32>
    %c0_102 = arith.constant 0 : index
    %c0_103 = arith.constant 0 : index
    %154 = vector.load %arg30[%c0_102, %c0_103] : memref<16x9xf32, #tpu.memory_space<vmem>>, vector<16x9xf32>
    %cst_104 = arith.constant dense<0.000000e+00> : vector<16x9xf32>
    %155 = tpu.matmul %153, %154, %cst_104 {dimension_numbers = #tpu.dot_dimension_numbers<[1], [0], [0], [1], [0, 0, 1, 1], [], []>} : vector<16x16xf32>, vector<16x9xf32>, vector<16x9xf32> -> vector<16x9xf32>
    %c0_105 = arith.constant 0 : index
    %c0_106 = arith.constant 0 : index
    %156 = vector.load %arg31[%c0_105, %c0_106] : memref<16x9xf32, #tpu.memory_space<vmem>>, vector<16x9xf32>
    %cst_107 = arith.constant dense<0.000000e+00> : vector<16x9xf32>
    %157 = tpu.matmul %153, %156, %cst_107 {dimension_numbers = #tpu.dot_dimension_numbers<[1], [0], [0], [1], [0, 0, 1, 1], [], []>} : vector<16x16xf32>, vector<16x9xf32>, vector<16x9xf32> -> vector<16x9xf32>
    %c0_108 = arith.constant 0 : index
    %c0_109 = arith.constant 0 : index
    %c0_110 = arith.constant 0 : index
    %158 = vector.load %arg15[%c0_108, %c0_109, %c0_110] : memref<3x32x16xf32, #tpu.memory_space<vmem>>, vector<1x32x16xf32>
    %159 = vector.shape_cast %158 : vector<1x32x16xf32> to vector<32x16xf32>
    %c1_111 = arith.constant 1 : index
    %c0_112 = arith.constant 0 : index
    %c0_113 = arith.constant 0 : index
    %160 = vector.load %arg15[%c1_111, %c0_112, %c0_113] : memref<3x32x16xf32, #tpu.memory_space<vmem>>, vector<1x32x16xf32>
    %161 = vector.shape_cast %160 : vector<1x32x16xf32> to vector<32x16xf32>
    %c2_114 = arith.constant 2 : index
    %c0_115 = arith.constant 0 : index
    %c0_116 = arith.constant 0 : index
    %162 = vector.load %arg15[%c2_114, %c0_115, %c0_116] : memref<3x32x16xf32, #tpu.memory_space<vmem>>, vector<1x32x16xf32>
    %163 = vector.shape_cast %162 : vector<1x32x16xf32> to vector<32x16xf32>
    %c0_117 = arith.constant 0 : index
    %c0_118 = arith.constant 0 : index
    %164 = vector.load %arg16[%c0_117, %c0_118] : memref<32x1xf32, #tpu.memory_space<vmem>>, vector<32x1xf32>
    %c0_119 = arith.constant 0 : index
    %c0_120 = arith.constant 0 : index
    %165 = vector.load %arg17[%c0_119, %c0_120] : memref<32x1xf32, #tpu.memory_space<vmem>>, vector<32x1xf32>
    %166 = vector.extract_strided_slice %155 {offsets = [0, 0], sizes = [16, 8], strides = [1, 1]} : vector<16x9xf32> to vector<16x8xf32>
    %167 = vector.extract_strided_slice %155 {offsets = [0, 1], sizes = [16, 8], strides = [1, 1]} : vector<16x9xf32> to vector<16x8xf32>
    %168 = vector.extract_strided_slice %157 {offsets = [0, 0], sizes = [16, 8], strides = [1, 1]} : vector<16x9xf32> to vector<16x8xf32>
    %169 = vector.extract_strided_slice %157 {offsets = [0, 1], sizes = [16, 8], strides = [1, 1]} : vector<16x9xf32> to vector<16x8xf32>
    %cst_121 = arith.constant dense<0.000000e+00> : vector<32x8xf32>
    %170 = tpu.matmul %159, %168, %cst_121 {dimension_numbers = #tpu.dot_dimension_numbers<[1], [0], [0], [1], [0, 0, 1, 1], [], []>} : vector<32x16xf32>, vector<16x8xf32>, vector<32x8xf32> -> vector<32x8xf32>
    %cst_122 = arith.constant dense<0.000000e+00> : vector<32x8xf32>
    %171 = tpu.matmul %161, %166, %cst_122 {dimension_numbers = #tpu.dot_dimension_numbers<[1], [0], [0], [1], [0, 0, 1, 1], [], []>} : vector<32x16xf32>, vector<16x8xf32>, vector<32x8xf32> -> vector<32x8xf32>
    %172 = arith.addf %170, %171 : vector<32x8xf32>
    %cst_123 = arith.constant dense<0.000000e+00> : vector<32x8xf32>
    %173 = tpu.matmul %163, %169, %cst_123 {dimension_numbers = #tpu.dot_dimension_numbers<[1], [0], [0], [1], [0, 0, 1, 1], [], []>} : vector<32x16xf32>, vector<16x8xf32>, vector<32x8xf32> -> vector<32x8xf32>
    %174 = arith.addf %172, %173 : vector<32x8xf32>
    %cst_124 = arith.constant dense<0.000000e+00> : vector<32x8xf32>
    %175 = tpu.matmul %159, %166, %cst_124 {dimension_numbers = #tpu.dot_dimension_numbers<[1], [0], [0], [1], [0, 0, 1, 1], [], []>} : vector<32x16xf32>, vector<16x8xf32>, vector<32x8xf32> -> vector<32x8xf32>
    %cst_125 = arith.constant dense<0.000000e+00> : vector<32x8xf32>
    %176 = tpu.matmul %161, %169, %cst_125 {dimension_numbers = #tpu.dot_dimension_numbers<[1], [0], [0], [1], [0, 0, 1, 1], [], []>} : vector<32x16xf32>, vector<16x8xf32>, vector<32x8xf32> -> vector<32x8xf32>
    %177 = arith.addf %175, %176 : vector<32x8xf32>
    %cst_126 = arith.constant dense<0.000000e+00> : vector<32x8xf32>
    %178 = tpu.matmul %163, %167, %cst_126 {dimension_numbers = #tpu.dot_dimension_numbers<[1], [0], [0], [1], [0, 0, 1, 1], [], []>} : vector<32x16xf32>, vector<16x8xf32>, vector<32x8xf32> -> vector<32x8xf32>
    %179 = arith.addf %177, %178 : vector<32x8xf32>
    %180 = vector.broadcast %164 : vector<32x1xf32> to vector<32x8xf32>
    %181 = arith.mulf %174, %180 : vector<32x8xf32>
    %182 = vector.broadcast %165 : vector<32x1xf32> to vector<32x8xf32>
    %183 = arith.addf %181, %182 : vector<32x8xf32>
    %cst_127 = arith.constant 0.000000e+00 : f32
    %184 = vector.broadcast %cst_127 : f32 to vector<32x8xf32>
    %185 = arith.maximumf %183, %184 : vector<32x8xf32>
    %186 = vector.broadcast %164 : vector<32x1xf32> to vector<32x8xf32>
    %187 = arith.mulf %179, %186 : vector<32x8xf32>
    %188 = vector.broadcast %165 : vector<32x1xf32> to vector<32x8xf32>
    %189 = arith.addf %187, %188 : vector<32x8xf32>
    %cst_128 = arith.constant 0.000000e+00 : f32
    %190 = vector.broadcast %cst_128 : f32 to vector<32x8xf32>
    %191 = arith.maximumf %189, %190 : vector<32x8xf32>
    %192 = arith.maximumf %185, %191 : vector<32x8xf32>
    %c0_129 = arith.constant 0 : index
    %c0_130 = arith.constant 0 : index
    %193 = vector.load %arg32[%c0_129, %c0_130] : memref<8x5xf32, #tpu.memory_space<vmem>>, vector<8x5xf32>
    %cst_131 = arith.constant dense<0.000000e+00> : vector<32x5xf32>
    %194 = tpu.matmul %192, %193, %cst_131 {dimension_numbers = #tpu.dot_dimension_numbers<[1], [0], [0], [1], [0, 0, 1, 1], [], []>} : vector<32x8xf32>, vector<8x5xf32>, vector<32x5xf32> -> vector<32x5xf32>
    %c0_132 = arith.constant 0 : index
    %c0_133 = arith.constant 0 : index
    %195 = vector.load %arg33[%c0_132, %c0_133] : memref<8x5xf32, #tpu.memory_space<vmem>>, vector<8x5xf32>
    %cst_134 = arith.constant dense<0.000000e+00> : vector<32x5xf32>
    %196 = tpu.matmul %192, %195, %cst_134 {dimension_numbers = #tpu.dot_dimension_numbers<[1], [0], [0], [1], [0, 0, 1, 1], [], []>} : vector<32x8xf32>, vector<8x5xf32>, vector<32x5xf32> -> vector<32x5xf32>
    %c0_135 = arith.constant 0 : index
    %c0_136 = arith.constant 0 : index
    %c0_137 = arith.constant 0 : index
    %197 = vector.load %arg18[%c0_135, %c0_136, %c0_137] : memref<3x64x32xf32, #tpu.memory_space<vmem>>, vector<1x64x32xf32>
    %198 = vector.shape_cast %197 : vector<1x64x32xf32> to vector<64x32xf32>
    %c1_138 = arith.constant 1 : index
    %c0_139 = arith.constant 0 : index
    %c0_140 = arith.constant 0 : index
    %199 = vector.load %arg18[%c1_138, %c0_139, %c0_140] : memref<3x64x32xf32, #tpu.memory_space<vmem>>, vector<1x64x32xf32>
    %200 = vector.shape_cast %199 : vector<1x64x32xf32> to vector<64x32xf32>
    %c2_141 = arith.constant 2 : index
    %c0_142 = arith.constant 0 : index
    %c0_143 = arith.constant 0 : index
    %201 = vector.load %arg18[%c2_141, %c0_142, %c0_143] : memref<3x64x32xf32, #tpu.memory_space<vmem>>, vector<1x64x32xf32>
    %202 = vector.shape_cast %201 : vector<1x64x32xf32> to vector<64x32xf32>
    %c0_144 = arith.constant 0 : index
    %c0_145 = arith.constant 0 : index
    %203 = vector.load %arg19[%c0_144, %c0_145] : memref<64x1xf32, #tpu.memory_space<vmem>>, vector<64x1xf32>
    %c0_146 = arith.constant 0 : index
    %c0_147 = arith.constant 0 : index
    %204 = vector.load %arg20[%c0_146, %c0_147] : memref<64x1xf32, #tpu.memory_space<vmem>>, vector<64x1xf32>
    %205 = vector.extract_strided_slice %194 {offsets = [0, 0], sizes = [32, 4], strides = [1, 1]} : vector<32x5xf32> to vector<32x4xf32>
    %206 = vector.extract_strided_slice %194 {offsets = [0, 1], sizes = [32, 4], strides = [1, 1]} : vector<32x5xf32> to vector<32x4xf32>
    %207 = vector.extract_strided_slice %196 {offsets = [0, 0], sizes = [32, 4], strides = [1, 1]} : vector<32x5xf32> to vector<32x4xf32>
    %208 = vector.extract_strided_slice %196 {offsets = [0, 1], sizes = [32, 4], strides = [1, 1]} : vector<32x5xf32> to vector<32x4xf32>
    %cst_148 = arith.constant dense<0.000000e+00> : vector<64x4xf32>
    %209 = tpu.matmul %198, %207, %cst_148 {dimension_numbers = #tpu.dot_dimension_numbers<[1], [0], [0], [1], [0, 0, 1, 1], [], []>} : vector<64x32xf32>, vector<32x4xf32>, vector<64x4xf32> -> vector<64x4xf32>
    %cst_149 = arith.constant dense<0.000000e+00> : vector<64x4xf32>
    %210 = tpu.matmul %200, %205, %cst_149 {dimension_numbers = #tpu.dot_dimension_numbers<[1], [0], [0], [1], [0, 0, 1, 1], [], []>} : vector<64x32xf32>, vector<32x4xf32>, vector<64x4xf32> -> vector<64x4xf32>
    %211 = arith.addf %209, %210 : vector<64x4xf32>
    %cst_150 = arith.constant dense<0.000000e+00> : vector<64x4xf32>
    %212 = tpu.matmul %202, %208, %cst_150 {dimension_numbers = #tpu.dot_dimension_numbers<[1], [0], [0], [1], [0, 0, 1, 1], [], []>} : vector<64x32xf32>, vector<32x4xf32>, vector<64x4xf32> -> vector<64x4xf32>
    %213 = arith.addf %211, %212 : vector<64x4xf32>
    %cst_151 = arith.constant dense<0.000000e+00> : vector<64x4xf32>
    %214 = tpu.matmul %198, %205, %cst_151 {dimension_numbers = #tpu.dot_dimension_numbers<[1], [0], [0], [1], [0, 0, 1, 1], [], []>} : vector<64x32xf32>, vector<32x4xf32>, vector<64x4xf32> -> vector<64x4xf32>
    %cst_152 = arith.constant dense<0.000000e+00> : vector<64x4xf32>
    %215 = tpu.matmul %200, %208, %cst_152 {dimension_numbers = #tpu.dot_dimension_numbers<[1], [0], [0], [1], [0, 0, 1, 1], [], []>} : vector<64x32xf32>, vector<32x4xf32>, vector<64x4xf32> -> vector<64x4xf32>
    %216 = arith.addf %214, %215 : vector<64x4xf32>
    %cst_153 = arith.constant dense<0.000000e+00> : vector<64x4xf32>
    %217 = tpu.matmul %202, %206, %cst_153 {dimension_numbers = #tpu.dot_dimension_numbers<[1], [0], [0], [1], [0, 0, 1, 1], [], []>} : vector<64x32xf32>, vector<32x4xf32>, vector<64x4xf32> -> vector<64x4xf32>
    %218 = arith.addf %216, %217 : vector<64x4xf32>
    %219 = vector.broadcast %203 : vector<64x1xf32> to vector<64x4xf32>
    %220 = arith.mulf %213, %219 : vector<64x4xf32>
    %221 = vector.broadcast %204 : vector<64x1xf32> to vector<64x4xf32>
    %222 = arith.addf %220, %221 : vector<64x4xf32>
    %cst_154 = arith.constant 0.000000e+00 : f32
    %223 = vector.broadcast %cst_154 : f32 to vector<64x4xf32>
    %224 = arith.maximumf %222, %223 : vector<64x4xf32>
    %225 = vector.broadcast %203 : vector<64x1xf32> to vector<64x4xf32>
    %226 = arith.mulf %218, %225 : vector<64x4xf32>
    %227 = vector.broadcast %204 : vector<64x1xf32> to vector<64x4xf32>
    %228 = arith.addf %226, %227 : vector<64x4xf32>
    %cst_155 = arith.constant 0.000000e+00 : f32
    %229 = vector.broadcast %cst_155 : f32 to vector<64x4xf32>
    %230 = arith.maximumf %228, %229 : vector<64x4xf32>
    %231 = arith.maximumf %224, %230 : vector<64x4xf32>
    %c0_156 = arith.constant 0 : index
    %c0_157 = arith.constant 0 : index
    %232 = vector.load %arg34[%c0_156, %c0_157] : memref<4x3xf32, #tpu.memory_space<vmem>>, vector<4x3xf32>
    %cst_158 = arith.constant dense<0.000000e+00> : vector<64x3xf32>
    %233 = tpu.matmul %231, %232, %cst_158 {dimension_numbers = #tpu.dot_dimension_numbers<[1], [0], [0], [1], [0, 0, 1, 1], [], []>} : vector<64x4xf32>, vector<4x3xf32>, vector<64x3xf32> -> vector<64x3xf32>
    %c0_159 = arith.constant 0 : index
    %c0_160 = arith.constant 0 : index
    %234 = vector.load %arg35[%c0_159, %c0_160] : memref<4x3xf32, #tpu.memory_space<vmem>>, vector<4x3xf32>
    %cst_161 = arith.constant dense<0.000000e+00> : vector<64x3xf32>
    %235 = tpu.matmul %231, %234, %cst_161 {dimension_numbers = #tpu.dot_dimension_numbers<[1], [0], [0], [1], [0, 0, 1, 1], [], []>} : vector<64x4xf32>, vector<4x3xf32>, vector<64x3xf32> -> vector<64x3xf32>
    %c0_162 = arith.constant 0 : index
    %c0_163 = arith.constant 0 : index
    %c0_164 = arith.constant 0 : index
    %236 = vector.load %arg21[%c0_162, %c0_163, %c0_164] : memref<3x128x64xf32, #tpu.memory_space<vmem>>, vector<1x128x64xf32>
    %237 = vector.shape_cast %236 : vector<1x128x64xf32> to vector<128x64xf32>
    %c1_165 = arith.constant 1 : index
    %c0_166 = arith.constant 0 : index
    %c0_167 = arith.constant 0 : index
    %238 = vector.load %arg21[%c1_165, %c0_166, %c0_167] : memref<3x128x64xf32, #tpu.memory_space<vmem>>, vector<1x128x64xf32>
    %239 = vector.shape_cast %238 : vector<1x128x64xf32> to vector<128x64xf32>
    %c2_168 = arith.constant 2 : index
    %c0_169 = arith.constant 0 : index
    %c0_170 = arith.constant 0 : index
    %240 = vector.load %arg21[%c2_168, %c0_169, %c0_170] : memref<3x128x64xf32, #tpu.memory_space<vmem>>, vector<1x128x64xf32>
    %241 = vector.shape_cast %240 : vector<1x128x64xf32> to vector<128x64xf32>
    %c0_171 = arith.constant 0 : index
    %c0_172 = arith.constant 0 : index
    %242 = vector.load %arg22[%c0_171, %c0_172] : memref<128x1xf32, #tpu.memory_space<vmem>>, vector<128x1xf32>
    %c0_173 = arith.constant 0 : index
    %c0_174 = arith.constant 0 : index
    %243 = vector.load %arg23[%c0_173, %c0_174] : memref<128x1xf32, #tpu.memory_space<vmem>>, vector<128x1xf32>
    %244 = vector.extract_strided_slice %233 {offsets = [0, 0], sizes = [64, 2], strides = [1, 1]} : vector<64x3xf32> to vector<64x2xf32>
    %245 = vector.extract_strided_slice %233 {offsets = [0, 1], sizes = [64, 2], strides = [1, 1]} : vector<64x3xf32> to vector<64x2xf32>
    %246 = vector.extract_strided_slice %235 {offsets = [0, 0], sizes = [64, 2], strides = [1, 1]} : vector<64x3xf32> to vector<64x2xf32>
    %247 = vector.extract_strided_slice %235 {offsets = [0, 1], sizes = [64, 2], strides = [1, 1]} : vector<64x3xf32> to vector<64x2xf32>
    %cst_175 = arith.constant dense<0.000000e+00> : vector<128x2xf32>
    %248 = tpu.matmul %237, %246, %cst_175 {dimension_numbers = #tpu.dot_dimension_numbers<[1], [0], [0], [1], [0, 0, 1, 1], [], []>} : vector<128x64xf32>, vector<64x2xf32>, vector<128x2xf32> -> vector<128x2xf32>
    %cst_176 = arith.constant dense<0.000000e+00> : vector<128x2xf32>
    %249 = tpu.matmul %239, %244, %cst_176 {dimension_numbers = #tpu.dot_dimension_numbers<[1], [0], [0], [1], [0, 0, 1, 1], [], []>} : vector<128x64xf32>, vector<64x2xf32>, vector<128x2xf32> -> vector<128x2xf32>
    %250 = arith.addf %248, %249 : vector<128x2xf32>
    %cst_177 = arith.constant dense<0.000000e+00> : vector<128x2xf32>
    %251 = tpu.matmul %241, %247, %cst_177 {dimension_numbers = #tpu.dot_dimension_numbers<[1], [0], [0], [1], [0, 0, 1, 1], [], []>} : vector<128x64xf32>, vector<64x2xf32>, vector<128x2xf32> -> vector<128x2xf32>
    %252 = arith.addf %250, %251 : vector<128x2xf32>
    %cst_178 = arith.constant dense<0.000000e+00> : vector<128x2xf32>
    %253 = tpu.matmul %237, %244, %cst_178 {dimension_numbers = #tpu.dot_dimension_numbers<[1], [0], [0], [1], [0, 0, 1, 1], [], []>} : vector<128x64xf32>, vector<64x2xf32>, vector<128x2xf32> -> vector<128x2xf32>
    %cst_179 = arith.constant dense<0.000000e+00> : vector<128x2xf32>
    %254 = tpu.matmul %239, %247, %cst_179 {dimension_numbers = #tpu.dot_dimension_numbers<[1], [0], [0], [1], [0, 0, 1, 1], [], []>} : vector<128x64xf32>, vector<64x2xf32>, vector<128x2xf32> -> vector<128x2xf32>
    %255 = arith.addf %253, %254 : vector<128x2xf32>
    %cst_180 = arith.constant dense<0.000000e+00> : vector<128x2xf32>
    %256 = tpu.matmul %241, %245, %cst_180 {dimension_numbers = #tpu.dot_dimension_numbers<[1], [0], [0], [1], [0, 0, 1, 1], [], []>} : vector<128x64xf32>, vector<64x2xf32>, vector<128x2xf32> -> vector<128x2xf32>
    %257 = arith.addf %255, %256 : vector<128x2xf32>
    %258 = vector.broadcast %242 : vector<128x1xf32> to vector<128x2xf32>
    %259 = arith.mulf %252, %258 : vector<128x2xf32>
    %260 = vector.broadcast %243 : vector<128x1xf32> to vector<128x2xf32>
    %261 = arith.addf %259, %260 : vector<128x2xf32>
    %cst_181 = arith.constant 0.000000e+00 : f32
    %262 = vector.broadcast %cst_181 : f32 to vector<128x2xf32>
    %263 = arith.maximumf %261, %262 : vector<128x2xf32>
    %264 = vector.broadcast %242 : vector<128x1xf32> to vector<128x2xf32>
    %265 = arith.mulf %257, %264 : vector<128x2xf32>
    %266 = vector.broadcast %243 : vector<128x1xf32> to vector<128x2xf32>
    %267 = arith.addf %265, %266 : vector<128x2xf32>
    %cst_182 = arith.constant 0.000000e+00 : f32
    %268 = vector.broadcast %cst_182 : f32 to vector<128x2xf32>
    %269 = arith.maximumf %267, %268 : vector<128x2xf32>
    %270 = arith.maximumf %263, %269 : vector<128x2xf32>
    %c0_183 = arith.constant 0 : index
    %c0_184 = arith.constant 0 : index
    %271 = vector.load %arg2[%c0_183, %c0_184] : memref<128x2xf32, #tpu.memory_space<vmem>>, vector<128x2xf32>
    %272 = arith.mulf %270, %271 : vector<128x2xf32>
    %c0_185 = arith.constant 0 : index
    %c0_186 = arith.constant 0 : index
    %273 = vector.load %arg36[%c0_185, %c0_186] : memref<256x128xf32, #tpu.memory_space<vmem>>, vector<256x128xf32>
    %cst_187 = arith.constant dense<0.000000e+00> : vector<256x2xf32>
    %274 = tpu.matmul %273, %272, %cst_187 {dimension_numbers = #tpu.dot_dimension_numbers<[1], [0], [0], [1], [0, 0, 1, 1], [], []>} : vector<256x128xf32>, vector<128x2xf32>, vector<256x2xf32> -> vector<256x2xf32>
    %c0_188 = arith.constant 0 : index
    %c0_189 = arith.constant 0 : index
    %275 = vector.load %arg37[%c0_188, %c0_189] : memref<256x128xf32, #tpu.memory_space<vmem>>, vector<256x128xf32>
    %cst_190 = arith.constant dense<0.000000e+00> : vector<256x2xf32>
    %276 = tpu.matmul %275, %272, %cst_190 {dimension_numbers = #tpu.dot_dimension_numbers<[1], [0], [0], [1], [0, 0, 1, 1], [], []>} : vector<256x128xf32>, vector<128x2xf32>, vector<256x2xf32> -> vector<256x2xf32>
    %277 = vector.extract_strided_slice %274 {offsets = [0, 0], sizes = [256, 1], strides = [1, 1]} : vector<256x2xf32> to vector<256x1xf32>
    %278 = vector.extract_strided_slice %276 {offsets = [0, 1], sizes = [256, 1], strides = [1, 1]} : vector<256x2xf32> to vector<256x1xf32>
    %279 = arith.addf %277, %278 : vector<256x1xf32>
    %c0_191 = arith.constant 0 : index
    %c0_192 = arith.constant 0 : index
    %280 = vector.load %arg38[%c0_191, %c0_192] : memref<256x1xf32, #tpu.memory_space<vmem>>, vector<256x1xf32>
    %281 = arith.addf %279, %280 : vector<256x1xf32>
    %cst_193 = arith.constant 0.000000e+00 : f32
    %282 = vector.broadcast %cst_193 : f32 to vector<256x1xf32>
    %283 = arith.maximumf %281, %282 : vector<256x1xf32>
    %c0_194 = arith.constant 0 : index
    %c0_195 = arith.constant 0 : index
    %284 = vector.load %arg39[%c0_194, %c0_195] : memref<4x256xf32, #tpu.memory_space<vmem>>, vector<4x256xf32>
    %cst_196 = arith.constant dense<0.000000e+00> : vector<4x1xf32>
    %285 = tpu.matmul %284, %283, %cst_196 {dimension_numbers = #tpu.dot_dimension_numbers<[1], [0], [0], [1], [0, 0, 1, 1], [], []>} : vector<4x256xf32>, vector<256x1xf32>, vector<4x1xf32> -> vector<4x1xf32>
    %c0_197 = arith.constant 0 : index
    %c0_198 = arith.constant 0 : index
    %286 = vector.load %arg40[%c0_197, %c0_198] : memref<4x1xf32, #tpu.memory_space<vmem>>, vector<4x1xf32>
    %287 = arith.addf %285, %286 : vector<4x1xf32>
    %c0_199 = arith.constant 0 : index
    %c0_200 = arith.constant 0 : index
    %288 = vector.load %arg41[%c0_199, %c0_200] : memref<4x1xf32, #tpu.memory_space<vmem>>, vector<4x1xf32>
    tpu.vector_store %arg41[%c0_199, %c0_200], %287 {strides = array<i32>} : memref<4x1xf32, #tpu.memory_space<vmem>>, vector<4x1xf32>,
    return
  }
}

</mosaic_0001>

<llo_original>
// kernel: forward.1
$region0: #{forward.1}
  #allocation0 [shape = 'u32[]', space=smem, size = 0x4, offset = 0x4, fixed_abs, tag = 'smem constant byte address 0x4 - core index']
  #allocation1 [shape = 'u32[144,128]{1,0:T(1,128)}', space=vmem, size = 0x12000, scoped, tag = 'internal scratch']
  %s0 = inlined_call_operand.smem [shape: u32[42], index: -1, kind: input, shape index: {}]
  %s1 = sld [smem:[%s0]]
  %s2 = scalar_lea.smem %s0, 1
  %s3 = sld [smem:[%s2]]
  %s4 = scalar_lea.smem %s0, 2
  %s5 = sld [smem:[%s4]]
  %s6 = scalar_lea.smem %s0, 3
  %s7 = sld [smem:[%s6]]
  %s8 = scalar_lea.smem %s0, 4
  %s9 = sld [smem:[%s8]]
  %s10 = scalar_lea.smem %s0, 5
  %s11 = sld [smem:[%s10]]
  %s12 = scalar_lea.smem %s0, 6
  %s13 = sld [smem:[%s12]]
  %s14 = scalar_lea.smem %s0, 7
  %s15 = sld [smem:[%s14]]
  %s16 = scalar_lea.smem %s0, 8
  %s17 = sld [smem:[%s16]]
  %s18 = scalar_lea.smem %s0, 9
  %s19 = sld [smem:[%s18]]
  %s20 = scalar_lea.smem %s0, 10
  %s21 = sld [smem:[%s20]]
  %s22 = scalar_lea.smem %s0, 11
  %s23 = sld [smem:[%s22]]
  %s24 = scalar_lea.smem %s0, 12
  %s25 = sld [smem:[%s24]]
  %s26 = scalar_lea.smem %s0, 13
  %s27 = sld [smem:[%s26]]
  %s28 = scalar_lea.smem %s0, 14
  %s29 = sld [smem:[%s28]]
  %s30 = scalar_lea.smem %s0, 15
  %s31 = sld [smem:[%s30]]
  %s32 = scalar_lea.smem %s0, 16
  %s33 = sld [smem:[%s32]]
  %s34 = scalar_lea.smem %s0, 17
  %s35 = sld [smem:[%s34]]
  %s36 = scalar_lea.smem %s0, 18
  %s37 = sld [smem:[%s36]]
  %s38 = scalar_lea.smem %s0, 19
  %s39 = sld [smem:[%s38]]
  %s40 = scalar_lea.smem %s0, 20
  %s41 = sld [smem:[%s40]]
  %s42 = scalar_lea.smem %s0, 21
  %s43 = sld [smem:[%s42]]
  %s44 = scalar_lea.smem %s0, 22
  %s45 = sld [smem:[%s44]]
  %s46 = scalar_lea.smem %s0, 23
  %s47 = sld [smem:[%s46]]
  %s48 = scalar_lea.smem %s0, 24
  %s49 = sld [smem:[%s48]]
  %s50 = scalar_lea.smem %s0, 25
  %s51 = sld [smem:[%s50]]
  %s52 = scalar_lea.smem %s0, 26
  %s53 = sld [smem:[%s52]]
  %s54 = scalar_lea.smem %s0, 27
  %s55 = sld [smem:[%s54]]
  %s56 = scalar_lea.smem %s0, 28
  %s57 = sld [smem:[%s56]]
  %s58 = scalar_lea.smem %s0, 29
  %s59 = sld [smem:[%s58]]
  %s60 = scalar_lea.smem %s0, 30
  %s61 = sld [smem:[%s60]]
  %s62 = scalar_lea.smem %s0, 31
  %s63 = sld [smem:[%s62]]
  %s64 = scalar_lea.smem %s0, 32
  %s65 = sld [smem:[%s64]]
  %s66 = scalar_lea.smem %s0, 33
  %s67 = sld [smem:[%s66]]
  %s68 = scalar_lea.smem %s0, 34
  %s69 = sld [smem:[%s68]]
  %s70 = scalar_lea.smem %s0, 35
  %s71 = sld [smem:[%s70]]
  %s72 = scalar_lea.smem %s0, 36
  %s73 = sld [smem:[%s72]]
  %s74 = scalar_lea.smem %s0, 37
  %s75 = sld [smem:[%s74]]
  %s76 = scalar_lea.smem %s0, 38
  %s77 = sld [smem:[%s76]]
  %s78 = scalar_lea.smem %s0, 39
  %s79 = sld [smem:[%s78]]
  %s80 = scalar_lea.smem %s0, 40
  %s81 = sld [smem:[%s80]]
  %s82 = scalar_lea.smem %s0, 41
  %s83 = sld [smem:[%s82]]
  %s84 = sld [smem:[#allocation0]]
  $region174: #{forward.1} parent=0
    _
  %s86 = ssub.s32 1, %s84
  %s87 = scalar_select 0, %s86, %s84
  // Predicated region
  $region2: #{forward.1} parent=0 // pred_check
    _
  $region3: #{forward.1} parent=0 // pred_check_branch
    %89 = sbr.rel (0) target = $region5
  $region4: #{forward.1} parent=0 // pred_region
    _
  $region5: #{forward.1} parent=0 // pred_fallthru
    _
  // Predicated region
  $region6: #{forward.1} parent=0 // pred_check
    _
  $region7: #{forward.1} parent=0 // pred_check_branch
    %91 = sbr.rel (0) target = $region9
  $region8: #{forward.1} parent=0 // pred_region
    _
  $region9: #{forward.1} parent=0 // pred_fallthru
    _
  // Predicated region
  $region10: #{forward.1} parent=0 // pred_check
    _
  $region11: #{forward.1} parent=0 // pred_check_branch
    %93 = sbr.rel (0) target = $region13
  $region12: #{forward.1} parent=0 // pred_region
    _
  $region13: #{forward.1} parent=0 // pred_fallthru
    _
  // Predicated region
  $region14: #{forward.1} parent=0 // pred_check
    _
  $region15: #{forward.1} parent=0 // pred_check_branch
    %95 = sbr.rel (0) target = $region17
  $region16: #{forward.1} parent=0 // pred_region
    _
  $region17: #{forward.1} parent=0 // pred_fallthru
    _
  // Predicated region
  $region18: #{forward.1} parent=0 // pred_check
    _
  $region19: #{forward.1} parent=0 // pred_check_branch
    %97 = sbr.rel (0) target = $region21
  $region20: #{forward.1} parent=0 // pred_region
    _
  $region21: #{forward.1} parent=0 // pred_fallthru
    _
  // Predicated region
  $region22: #{forward.1} parent=0 // pred_check
    _
  $region23: #{forward.1} parent=0 // pred_check_branch
    %99 = sbr.rel (0) target = $region25
  $region24: #{forward.1} parent=0 // pred_region
    _
  $region25: #{forward.1} parent=0 // pred_fallthru
    _
  // Predicated region
  $region26: #{forward.1} parent=0 // pred_check
    _
  $region27: #{forward.1} parent=0 // pred_check_branch
    %101 = sbr.rel (0) target = $region29
  $region28: #{forward.1} parent=0 // pred_region
    _
  $region29: #{forward.1} parent=0 // pred_fallthru
    _
  // Predicated region
  $region30: #{forward.1} parent=0 // pred_check
    _
  $region31: #{forward.1} parent=0 // pred_check_branch
    %103 = sbr.rel (0) target = $region33
  $region32: #{forward.1} parent=0 // pred_region
    _
  $region33: #{forward.1} parent=0 // pred_fallthru
    _
  // Predicated region
  $region34: #{forward.1} parent=0 // pred_check
    _
  $region35: #{forward.1} parent=0 // pred_check_branch
    %105 = sbr.rel (0) target = $region37
  $region36: #{forward.1} parent=0 // pred_region
    _
  $region37: #{forward.1} parent=0 // pred_fallthru
    _
  // Predicated region
  $region38: #{forward.1} parent=0 // pred_check
    _
  $region39: #{forward.1} parent=0 // pred_check_branch
    %107 = sbr.rel (0) target = $region41
  $region40: #{forward.1} parent=0 // pred_region
    _
  $region41: #{forward.1} parent=0 // pred_fallthru
    _
  // Predicated region
  $region42: #{forward.1} parent=0 // pred_check
    _
  $region43: #{forward.1} parent=0 // pred_check_branch
    %109 = sbr.rel (0) target = $region45
  $region44: #{forward.1} parent=0 // pred_region
    _
  $region45: #{forward.1} parent=0 // pred_fallthru
    _
  // Predicated region
  $region46: #{forward.1} parent=0 // pred_check
    _
  $region47: #{forward.1} parent=0 // pred_check_branch
    %111 = sbr.rel (0) target = $region49
  $region48: #{forward.1} parent=0 // pred_region
    _
  $region49: #{forward.1} parent=0 // pred_fallthru
    _
  // Predicated region
  $region50: #{forward.1} parent=0 // pred_check
    _
  $region51: #{forward.1} parent=0 // pred_check_branch
    %113 = sbr.rel (0) target = $region53
  $region52: #{forward.1} parent=0 // pred_region
    _
  $region53: #{forward.1} parent=0 // pred_fallthru
    _
  // Predicated region
  $region54: #{forward.1} parent=0 // pred_check
    _
  $region55: #{forward.1} parent=0 // pred_check_branch
    %115 = sbr.rel (0) target = $region57
  $region56: #{forward.1} parent=0 // pred_region
    _
  $region57: #{forward.1} parent=0 // pred_fallthru
    _
  // Predicated region
  $region58: #{forward.1} parent=0 // pred_check
    _
  $region59: #{forward.1} parent=0 // pred_check_branch
    %117 = sbr.rel (0) target = $region61
  $region60: #{forward.1} parent=0 // pred_region
    _
  $region61: #{forward.1} parent=0 // pred_fallthru
    _
  // Predicated region
  $region62: #{forward.1} parent=0 // pred_check
    _
  $region63: #{forward.1} parent=0 // pred_check_branch
    %119 = sbr.rel (0) target = $region65
  $region64: #{forward.1} parent=0 // pred_region
    _
  $region65: #{forward.1} parent=0 // pred_fallthru
    _
  // Predicated region
  $region66: #{forward.1} parent=0 // pred_check
    _
  $region67: #{forward.1} parent=0 // pred_check_branch
    %121 = sbr.rel (0) target = $region69
  $region68: #{forward.1} parent=0 // pred_region
    _
  $region69: #{forward.1} parent=0 // pred_fallthru
    _
  // Predicated region
  $region70: #{forward.1} parent=0 // pred_check
    _
  $region71: #{forward.1} parent=0 // pred_check_branch
    %123 = sbr.rel (0) target = $region73
  $region72: #{forward.1} parent=0 // pred_region
    _
  $region73: #{forward.1} parent=0 // pred_fallthru
    _
  // Predicated region
  $region74: #{forward.1} parent=0 // pred_check
    _
  $region75: #{forward.1} parent=0 // pred_check_branch
    %125 = sbr.rel (0) target = $region77
  $region76: #{forward.1} parent=0 // pred_region
    _
  $region77: #{forward.1} parent=0 // pred_fallthru
    _
  // Predicated region
  $region78: #{forward.1} parent=0 // pred_check
    _
  $region79: #{forward.1} parent=0 // pred_check_branch
    %127 = sbr.rel (0) target = $region81
  $region80: #{forward.1} parent=0 // pred_region
    _
  $region81: #{forward.1} parent=0 // pred_fallthru
    _
  // Predicated region
  $region82: #{forward.1} parent=0 // pred_check
    _
  $region83: #{forward.1} parent=0 // pred_check_branch
    %129 = sbr.rel (0) target = $region85
  $region84: #{forward.1} parent=0 // pred_region
    _
  $region85: #{forward.1} parent=0 // pred_fallthru
    _
  // Predicated region
  $region86: #{forward.1} parent=0 // pred_check
    _
  $region87: #{forward.1} parent=0 // pred_check_branch
    %131 = sbr.rel (0) target = $region89
  $region88: #{forward.1} parent=0 // pred_region
    _
  $region89: #{forward.1} parent=0 // pred_fallthru
    _
  // Predicated region
  $region90: #{forward.1} parent=0 // pred_check
    _
  $region91: #{forward.1} parent=0 // pred_check_branch
    %133 = sbr.rel (0) target = $region93
  $region92: #{forward.1} parent=0 // pred_region
    _
  $region93: #{forward.1} parent=0 // pred_fallthru
    _
  // Predicated region
  $region94: #{forward.1} parent=0 // pred_check
    _
  $region95: #{forward.1} parent=0 // pred_check_branch
    %135 = sbr.rel (0) target = $region97
  $region96: #{forward.1} parent=0 // pred_region
    _
  $region97: #{forward.1} parent=0 // pred_fallthru
    _
  // Predicated region
  $region98: #{forward.1} parent=0 // pred_check
    _
  $region99: #{forward.1} parent=0 // pred_check_branch
    %137 = sbr.rel (0) target = $region101
  $region100: #{forward.1} parent=0 // pred_region
    _
  $region101: #{forward.1} parent=0 // pred_fallthru
    _
  // Predicated region
  $region102: #{forward.1} parent=0 // pred_check
    _
  $region103: #{forward.1} parent=0 // pred_check_branch
    %139 = sbr.rel (0) target = $region105
  $region104: #{forward.1} parent=0 // pred_region
    _
  $region105: #{forward.1} parent=0 // pred_fallthru
    _
  // Predicated region
  $region106: #{forward.1} parent=0 // pred_check
    _
  $region107: #{forward.1} parent=0 // pred_check_branch
    %141 = sbr.rel (0) target = $region109
  $region108: #{forward.1} parent=0 // pred_region
    _
  $region109: #{forward.1} parent=0 // pred_fallthru
    _
  // Predicated region
  $region110: #{forward.1} parent=0 // pred_check
    _
  $region111: #{forward.1} parent=0 // pred_check_branch
    %143 = sbr.rel (0) target = $region113
  $region112: #{forward.1} parent=0 // pred_region
    _
  $region113: #{forward.1} parent=0 // pred_fallthru
    _
  // Predicated region
  $region114: #{forward.1} parent=0 // pred_check
    _
  $region115: #{forward.1} parent=0 // pred_check_branch
    %145 = sbr.rel (0) target = $region117
  $region116: #{forward.1} parent=0 // pred_region
    _
  $region117: #{forward.1} parent=0 // pred_fallthru
    _
  // Predicated region
  $region118: #{forward.1} parent=0 // pred_check
    _
  $region119: #{forward.1} parent=0 // pred_check_branch
    %147 = sbr.rel (0) target = $region121
  $region120: #{forward.1} parent=0 // pred_region
    _
  $region121: #{forward.1} parent=0 // pred_fallthru
    _
  // Predicated region
  $region122: #{forward.1} parent=0 // pred_check
    _
  $region123: #{forward.1} parent=0 // pred_check_branch
    %149 = sbr.rel (0) target = $region125
  $region124: #{forward.1} parent=0 // pred_region
    _
  $region125: #{forward.1} parent=0 // pred_fallthru
    _
  // Predicated region
  $region126: #{forward.1} parent=0 // pred_check
    _
  $region127: #{forward.1} parent=0 // pred_check_branch
    %151 = sbr.rel (0) target = $region129
  $region128: #{forward.1} parent=0 // pred_region
    _
  $region129: #{forward.1} parent=0 // pred_fallthru
    _
  // Predicated region
  $region130: #{forward.1} parent=0 // pred_check
    _
  $region131: #{forward.1} parent=0 // pred_check_branch
    %153 = sbr.rel (0) target = $region133
  $region132: #{forward.1} parent=0 // pred_region
    _
  $region133: #{forward.1} parent=0 // pred_fallthru
    _
  // Predicated region
  $region134: #{forward.1} parent=0 // pred_check
    _
  $region135: #{forward.1} parent=0 // pred_check_branch
    %155 = sbr.rel (0) target = $region137
  $region136: #{forward.1} parent=0 // pred_region
    _
  $region137: #{forward.1} parent=0 // pred_fallthru
    _
  // Predicated region
  $region138: #{forward.1} parent=0 // pred_check
    _
  $region139: #{forward.1} parent=0 // pred_check_branch
    %157 = sbr.rel (0) target = $region141
  $region140: #{forward.1} parent=0 // pred_region
    _
  $region141: #{forward.1} parent=0 // pred_fallthru
    _
  // Predicated region
  $region142: #{forward.1} parent=0 // pred_check
    _
  $region143: #{forward.1} parent=0 // pred_check_branch
    %159 = sbr.rel (0) target = $region145
  $region144: #{forward.1} parent=0 // pred_region
    _
  $region145: #{forward.1} parent=0 // pred_fallthru
    _
  // Predicated region
  $region146: #{forward.1} parent=0 // pred_check
    _
  $region147: #{forward.1} parent=0 // pred_check_branch
    %161 = sbr.rel (0) target = $region149
  $region148: #{forward.1} parent=0 // pred_region
    _
  $region149: #{forward.1} parent=0 // pred_fallthru
    _
  // Predicated region
  $region150: #{forward.1} parent=0 // pred_check
    _
  $region151: #{forward.1} parent=0 // pred_check_branch
    %163 = sbr.rel (0) target = $region153
  $region152: #{forward.1} parent=0 // pred_region
    _
  $region153: #{forward.1} parent=0 // pred_fallthru
    _
  // Predicated region
  $region154: #{forward.1} parent=0 // pred_check
    _
  $region155: #{forward.1} parent=0 // pred_check_branch
    %165 = sbr.rel (0) target = $region157
  $region156: #{forward.1} parent=0 // pred_region
    _
  $region157: #{forward.1} parent=0 // pred_fallthru
    _
  // Predicated region
  $region158: #{forward.1} parent=0 // pred_check
    _
  $region159: #{forward.1} parent=0 // pred_check_branch
    %167 = sbr.rel (0) target = $region161
  $region160: #{forward.1} parent=0 // pred_region
    _
  $region161: #{forward.1} parent=0 // pred_fallthru
    _
  // Predicated region
  $region162: #{forward.1} parent=0 // pred_check
    _
  $region163: #{forward.1} parent=0 // pred_check_branch
    %169 = sbr.rel (0) target = $region165
  $region164: #{forward.1} parent=0 // pred_region
    _
  $region165: #{forward.1} parent=0 // pred_fallthru
    _
  %v170 = vld [vmem:[%s1] sm:$0xff]
  %v171 = vld [vmem:[%s1 + $0x8] sm:$0xff]
  %v172 = vld [vmem:[%s1 + $0x10] sm:$0xff]
  %v173 = vld [vmem:[%s1 + $0x18] sm:$0xff]
  %v174 = vld [vmem:[%s3] sm:$0xff]
  %v175 = vld [vmem:[%s3 + $0x8] sm:$0xff]
  %v176 = vld [vmem:[%s3 + $0x10] sm:$0xff]
  %v177 = vld [vmem:[%s3 + $0x18] sm:$0xff]
  %v178 = vld [vmem:[%s7] sm:$0xff]
  %v179 = vld [vmem:[%s7 + $0x8] sm:$0xff]
  %s180 = scalar_lea.vmem %s7, 16
  %v181 = vld [vmem:[%s180] sm:$0xff]
  %v182 = vld [vmem:[%s180 + $0x8] sm:$0xff]
  %s183 = scalar_lea.vmem %s7, 32
  %v184 = vld [vmem:[%s183] sm:$0xff]
  %v185 = vld [vmem:[%s183 + $0x8] sm:$0xff]
  %v186 = vld [vmem:[%s9] sm:$0xff]
  %v187 = vld [vmem:[%s9 + $0x8] sm:$0xff]
  %v188 = vld [vmem:[%s11] sm:$0xff]
  %v189 = vld [vmem:[%s11 + $0x8] sm:$0xff]
  %vm190 = vcmask 130048
  %v192 = vsel %vm190, %v181, 0
  %v195 = vsel %vm190, %v182, 0
  %197 = vmatprep.subr.mxu0 0.0
  %198 = vmatpush1.msra.mxu0 %v170
  %199 = vmatprep.subr.mxu0 0.0
  %200 = vmatpush1.msra.mxu0 %v172
  %201 = vmatprep.subr.mxu0 0.0
  %202 = vmatpush1.msra.mxu0 0.0
  %203 = vmatprep.subr.mxu0 0.0
  %204 = vmatpush1.msra.mxu0 0.0
  %205 = vmatprep.subr.mxu0 0.0
  %206 = vmatpush1.msra.mxu0 0.0
  %207 = vmatprep.subr.mxu0 0.0
  %208 = vmatpush1.msra.mxu0 0.0
  %209 = vmatprep.subr.mxu0 0.0
  %210 = vmatpush1.msra.mxu0 0.0
  %211 = vmatprep.subr.mxu0 0.0
  %212 = vmatpush1.msra.mxu0 0.0
  %213 = vmatprep.subr.mxu0 0.0
  %214 = vmatpush1.msra.mxu0 0.0
  %215 = vmatprep.subr.mxu0 0.0
  %216 = vmatpush1.msra.mxu0 0.0
  %217 = vmatprep.subr.mxu0 0.0
  %218 = vmatpush1.msra.mxu0 0.0
  %219 = vmatprep.subr.mxu0 0.0
  %220 = vmatpush1.msra.mxu0 0.0
  %221 = vmatprep.subr.mxu0 0.0
  %222 = vmatpush1.msra.mxu0 0.0
  %223 = vmatprep.subr.mxu0 0.0
  %224 = vmatpush1.msra.mxu0 0.0
  %225 = vmatprep.subr.mxu0 0.0
  %226 = vmatpush1.msra.mxu0 0.0
  %227 = vmatprep.subr.mxu0 0.0
  %228 = vmatpush1.msra.mxu0 0.0
  %229 = vmatprep.subr.mxu0 0.0
  %230 = vmatpush1.msra.mxu0 0.0
  %231 = vmatprep.subr.mxu0 0.0
  %232 = vmatpush1.msra.mxu0 0.0
  %233 = vmatprep.subr.mxu0 0.0
  %234 = vmatpush1.msra.mxu0 0.0
  %235 = vmatprep.subr.mxu0 0.0
  %236 = vmatpush1.msra.mxu0 0.0
  %237 = vmatprep.subr.mxu0 0.0
  %238 = vmatpush1.msra.mxu0 0.0
  %239 = vmatprep.subr.mxu0 0.0
  %240 = vmatpush1.msra.mxu0 0.0
  %241 = vmatprep.subr.mxu0 0.0
  %242 = vmatpush1.msra.mxu0 0.0
  %243 = vmatprep.subr.mxu0 0.0
  %244 = vmatpush1.msra.mxu0 0.0
  %245 = vmatprep.subr.mxu0 0.0
  %246 = vmatpush1.msra.mxu0 0.0
  %247 = vmatprep.subr.mxu0 0.0
  %248 = vmatpush1.msra.mxu0 0.0
  %249 = vmatprep.subr.mxu0 0.0
  %250 = vmatpush1.msra.mxu0 0.0
  %251 = vmatprep.subr.mxu0 0.0
  %252 = vmatpush1.msra.mxu0 0.0
  %253 = vmatprep.subr.mxu0 0.0
  %254 = vmatpush1.msra.mxu0 0.0
  %255 = vmatprep.subr.mxu0 0.0
  %256 = vmatpush1.msra.mxu0 0.0
  %257 = vmatprep.subr.mxu0 0.0
  %258 = vmatpush1.msra.mxu0 0.0
  %259 = vmatprep.subr.mxu0 0.0
  %260 = vmatpush1.msra.mxu0 0.0
  %261 = vmatprep.mubr.f32.mxu0 0.0
  %262 = vmatmul.mubr.f32.gmra.mrb[0].mxu0 %v192
  %v263 = vpop.f32.mrb[0].mxu0
  %v264 = vadd.f32 0.0, %v263
  %v265 = vpop.f32.mrb[0].mxu0
  %266 = vmatprep.mubr.f32.mxu0 0.0
  %267 = vmatmul.mubr.f32.gmra.mrb[0].mxu0 %v195
  %v268 = vpop.f32.mrb[0].mxu0
  %v269 = vadd.f32 0.0, %v268
  %v270 = vpop.f32.mrb[0].mxu0
  %271 = vdwg.mxu0
  %v273 = vsel %vm190, %v178, 0
  %v276 = vsel %vm190, %v179, 0
  %278 = vmatprep.subr.mxu0 0.0
  %279 = vmatpush1.msra.mxu0 %v174
  %280 = vmatprep.subr.mxu0 0.0
  %281 = vmatpush1.msra.mxu0 %v176
  %282 = vmatprep.subr.mxu0 0.0
  %283 = vmatpush1.msra.mxu0 0.0
  %284 = vmatprep.subr.mxu0 0.0
  %285 = vmatpush1.msra.mxu0 0.0
  %286 = vmatprep.subr.mxu0 0.0
  %287 = vmatpush1.msra.mxu0 0.0
  %288 = vmatprep.subr.mxu0 0.0
  %289 = vmatpush1.msra.mxu0 0.0
  %290 = vmatprep.subr.mxu0 0.0
  %291 = vmatpush1.msra.mxu0 0.0
  %292 = vmatprep.subr.mxu0 0.0
  %293 = vmatpush1.msra.mxu0 0.0
  %294 = vmatprep.subr.mxu0 0.0
  %295 = vmatpush1.msra.mxu0 0.0
  %296 = vmatprep.subr.mxu0 0.0
  %297 = vmatpush1.msra.mxu0 0.0
  %298 = vmatprep.subr.mxu0 0.0
  %299 = vmatpush1.msra.mxu0 0.0
  %300 = vmatprep.subr.mxu0 0.0
  %301 = vmatpush1.msra.mxu0 0.0
  %302 = vmatprep.subr.mxu0 0.0
  %303 = vmatpush1.msra.mxu0 0.0
  %304 = vmatprep.subr.mxu0 0.0
  %305 = vmatpush1.msra.mxu0 0.0
  %306 = vmatprep.subr.mxu0 0.0
  %307 = vmatpush1.msra.mxu0 0.0
  %308 = vmatprep.subr.mxu0 0.0
  %309 = vmatpush1.msra.mxu0 0.0
  %310 = vmatprep.subr.mxu0 0.0
  %311 = vmatpush1.msra.mxu0 0.0
  %312 = vmatprep.subr.mxu0 0.0
  %313 = vmatpush1.msra.mxu0 0.0
  %314 = vmatprep.subr.mxu0 0.0
  %315 = vmatpush1.msra.mxu0 0.0
  %316 = vmatprep.subr.mxu0 0.0
  %317 = vmatpush1.msra.mxu0 0.0
  %318 = vmatprep.subr.mxu0 0.0
  %319 = vmatpush1.msra.mxu0 0.0
  %320 = vmatprep.subr.mxu0 0.0
  %321 = vmatpush1.msra.mxu0 0.0
  %322 = vmatprep.subr.mxu0 0.0
  %323 = vmatpush1.msra.mxu0 0.0
  %324 = vmatprep.subr.mxu0 0.0
  %325 = vmatpush1.msra.mxu0 0.0
  %326 = vmatprep.subr.mxu0 0.0
  %327 = vmatpush1.msra.mxu0 0.0
  %328 = vmatprep.subr.mxu0 0.0
  %329 = vmatpush1.msra.mxu0 0.0
  %330 = vmatprep.subr.mxu0 0.0
  %331 = vmatpush1.msra.mxu0 0.0
  %332 = vmatprep.subr.mxu0 0.0
  %333 = vmatpush1.msra.mxu0 0.0
  %334 = vmatprep.subr.mxu0 0.0
  %335 = vmatpush1.msra.mxu0 0.0
  %336 = vmatprep.subr.mxu0 0.0
  %337 = vmatpush1.msra.mxu0 0.0
  %338 = vmatprep.subr.mxu0 0.0
  %339 = vmatpush1.msra.mxu0 0.0
  %340 = vmatprep.subr.mxu0 0.0
  %341 = vmatpush1.msra.mxu0 0.0
  %342 = vmatprep.mubr.f32.mxu0 0.0
  %343 = vmatmul.mubr.f32.gmra.mrb[0].mxu0 %v273
  %v344 = vpop.f32.mrb[0].mxu0
  %v345 = vadd.f32 %v264, %v344
  %v346 = vpop.f32.mrb[0].mxu0
  %347 = vmatprep.mubr.f32.mxu0 0.0
  %348 = vmatmul.mubr.f32.gmra.mrb[0].mxu0 %v276
  %v349 = vpop.f32.mrb[0].mxu0
  %v350 = vadd.f32 %v269, %v349
  %v351 = vpop.f32.mrb[0].mxu0
  %352 = vdwg.mxu0
  %357 = vrot.lane.b32.xlu0 %v174, 127
  %v358 = vpop.permute.xlu0 %357
  %359 = vrot.lane.b32.xlu0 %v175, 127
  %v360 = vpop.permute.xlu0 %359
  %361 = vrot.lane.b32.xlu0 %v176, 127
  %v362 = vpop.permute.xlu0 %361
  %363 = vrot.lane.b32.xlu0 %v177, 127
  %v364 = vpop.permute.xlu0 %363
  %vm365 = vcmask 1039360
  %v366 = vsel %vm365, %v358, %v360
  %v367 = vsel %vm365, %v362, %v364
  %v371 = vsel %vm190, %v184, 0
  %v374 = vsel %vm190, %v185, 0
  %376 = vmatprep.subr.mxu0 0.0
  %377 = vmatpush1.msra.mxu0 %v366
  %378 = vmatprep.subr.mxu0 0.0
  %379 = vmatpush1.msra.mxu0 %v367
  %380 = vmatprep.subr.mxu0 0.0
  %381 = vmatpush1.msra.mxu0 0.0
  %382 = vmatprep.subr.mxu0 0.0
  %383 = vmatpush1.msra.mxu0 0.0
  %384 = vmatprep.subr.mxu0 0.0
  %385 = vmatpush1.msra.mxu0 0.0
  %386 = vmatprep.subr.mxu0 0.0
  %387 = vmatpush1.msra.mxu0 0.0
  %388 = vmatprep.subr.mxu0 0.0
  %389 = vmatpush1.msra.mxu0 0.0
  %390 = vmatprep.subr.mxu0 0.0
  %391 = vmatpush1.msra.mxu0 0.0
  %392 = vmatprep.subr.mxu0 0.0
  %393 = vmatpush1.msra.mxu0 0.0
  %394 = vmatprep.subr.mxu0 0.0
  %395 = vmatpush1.msra.mxu0 0.0
  %396 = vmatprep.subr.mxu0 0.0
  %397 = vmatpush1.msra.mxu0 0.0
  %398 = vmatprep.subr.mxu0 0.0
  %399 = vmatpush1.msra.mxu0 0.0
  %400 = vmatprep.subr.mxu0 0.0
  %401 = vmatpush1.msra.mxu0 0.0
  %402 = vmatprep.subr.mxu0 0.0
  %403 = vmatpush1.msra.mxu0 0.0
  %404 = vmatprep.subr.mxu0 0.0
  %405 = vmatpush1.msra.mxu0 0.0
  %406 = vmatprep.subr.mxu0 0.0
  %407 = vmatpush1.msra.mxu0 0.0
  %408 = vmatprep.subr.mxu0 0.0
  %409 = vmatpush1.msra.mxu0 0.0
  %410 = vmatprep.subr.mxu0 0.0
  %411 = vmatpush1.msra.mxu0 0.0
  %412 = vmatprep.subr.mxu0 0.0
  %413 = vmatpush1.msra.mxu0 0.0
  %414 = vmatprep.subr.mxu0 0.0
  %415 = vmatpush1.msra.mxu0 0.0
  %416 = vmatprep.subr.mxu0 0.0
  %417 = vmatpush1.msra.mxu0 0.0
  %418 = vmatprep.subr.mxu0 0.0
  %419 = vmatpush1.msra.mxu0 0.0
  %420 = vmatprep.subr.mxu0 0.0
  %421 = vmatpush1.msra.mxu0 0.0
  %422 = vmatprep.subr.mxu0 0.0
  %423 = vmatpush1.msra.mxu0 0.0
  %424 = vmatprep.subr.mxu0 0.0
  %425 = vmatpush1.msra.mxu0 0.0
  %426 = vmatprep.subr.mxu0 0.0
  %427 = vmatpush1.msra.mxu0 0.0
  %428 = vmatprep.subr.mxu0 0.0
  %429 = vmatpush1.msra.mxu0 0.0
  %430 = vmatprep.subr.mxu0 0.0
  %431 = vmatpush1.msra.mxu0 0.0
  %432 = vmatprep.subr.mxu0 0.0
  %433 = vmatpush1.msra.mxu0 0.0
  %434 = vmatprep.subr.mxu0 0.0
  %435 = vmatpush1.msra.mxu0 0.0
  %436 = vmatprep.subr.mxu0 0.0
  %437 = vmatpush1.msra.mxu0 0.0
  %438 = vmatprep.subr.mxu0 0.0
  %439 = vmatpush1.msra.mxu0 0.0
  %440 = vmatprep.mubr.f32.mxu0 0.0
  %441 = vmatmul.mubr.f32.gmra.mrb[0].mxu0 %v371
  %v442 = vpop.f32.mrb[0].mxu0
  %v443 = vadd.f32 0.0, %v442
  %v444 = vpop.f32.mrb[0].mxu0
  %445 = vmatprep.mubr.f32.mxu0 0.0
  %446 = vmatmul.mubr.f32.gmra.mrb[0].mxu0 %v374
  %v447 = vpop.f32.mrb[0].mxu0
  %v448 = vadd.f32 0.0, %v447
  %v449 = vpop.f32.mrb[0].mxu0
  %450 = vdwg.mxu0
  %v451 = vadd.f32 %v345, %v443
  %v452 = vadd.f32 %v350, %v448
  %453 = vmatprep.subr.mxu0 0.0
  %454 = vmatpush1.msra.mxu0 %v366
  %455 = vmatprep.subr.mxu0 0.0
  %456 = vmatpush1.msra.mxu0 %v367
  %457 = vmatprep.subr.mxu0 0.0
  %458 = vmatpush1.msra.mxu0 0.0
  %459 = vmatprep.subr.mxu0 0.0
  %460 = vmatpush1.msra.mxu0 0.0
  %461 = vmatprep.subr.mxu0 0.0
  %462 = vmatpush1.msra.mxu0 0.0
  %463 = vmatprep.subr.mxu0 0.0
  %464 = vmatpush1.msra.mxu0 0.0
  %465 = vmatprep.subr.mxu0 0.0
  %466 = vmatpush1.msra.mxu0 0.0
  %467 = vmatprep.subr.mxu0 0.0
  %468 = vmatpush1.msra.mxu0 0.0
  %469 = vmatprep.subr.mxu0 0.0
  %470 = vmatpush1.msra.mxu0 0.0
  %471 = vmatprep.subr.mxu0 0.0
  %472 = vmatpush1.msra.mxu0 0.0
  %473 = vmatprep.subr.mxu0 0.0
  %474 = vmatpush1.msra.mxu0 0.0
  %475 = vmatprep.subr.mxu0 0.0
  %476 = vmatpush1.msra.mxu0 0.0
  %477 = vmatprep.subr.mxu0 0.0
  %478 = vmatpush1.msra.mxu0 0.0
  %479 = vmatprep.subr.mxu0 0.0
  %480 = vmatpush1.msra.mxu0 0.0
  %481 = vmatprep.subr.mxu0 0.0
  %482 = vmatpush1.msra.mxu0 0.0
  %483 = vmatprep.subr.mxu0 0.0
  %484 = vmatpush1.msra.mxu0 0.0
  %485 = vmatprep.subr.mxu0 0.0
  %486 = vmatpush1.msra.mxu0 0.0
  %487 = vmatprep.subr.mxu0 0.0
  %488 = vmatpush1.msra.mxu0 0.0
  %489 = vmatprep.subr.mxu0 0.0
  %490 = vmatpush1.msra.mxu0 0.0
  %491 = vmatprep.subr.mxu0 0.0
  %492 = vmatpush1.msra.mxu0 0.0
  %493 = vmatprep.subr.mxu0 0.0
  %494 = vmatpush1.msra.mxu0 0.0
  %495 = vmatprep.subr.mxu0 0.0
  %496 = vmatpush1.msra.mxu0 0.0
  %497 = vmatprep.subr.mxu0 0.0
  %498 = vmatpush1.msra.mxu0 0.0
  %499 = vmatprep.subr.mxu0 0.0
  %500 = vmatpush1.msra.mxu0 0.0
  %501 = vmatprep.subr.mxu0 0.0
  %502 = vmatpush1.msra.mxu0 0.0
  %503 = vmatprep.subr.mxu0 0.0
  %504 = vmatpush1.msra.mxu0 0.0
  %505 = vmatprep.subr.mxu0 0.0
  %506 = vmatpush1.msra.mxu0 0.0
  %507 = vmatprep.subr.mxu0 0.0
  %508 = vmatpush1.msra.mxu0 0.0
  %509 = vmatprep.subr.mxu0 0.0
  %510 = vmatpush1.msra.mxu0 0.0
  %511 = vmatprep.subr.mxu0 0.0
  %512 = vmatpush1.msra.mxu0 0.0
  %513 = vmatprep.subr.mxu0 0.0
  %514 = vmatpush1.msra.mxu0 0.0
  %515 = vmatprep.subr.mxu0 0.0
  %516 = vmatpush1.msra.mxu0 0.0
  %517 = vmatprep.mubr.f32.mxu0 0.0
  %518 = vmatmul.mubr.f32.gmra.mrb[0].mxu0 %v192
  %v519 = vpop.f32.mrb[0].mxu0
  %v520 = vadd.f32 0.0, %v519
  %v521 = vpop.f32.mrb[0].mxu0
  %522 = vmatprep.mubr.f32.mxu0 0.0
  %523 = vmatmul.mubr.f32.gmra.mrb[0].mxu0 %v195
  %v524 = vpop.f32.mrb[0].mxu0
  %v525 = vadd.f32 0.0, %v524
  %v526 = vpop.f32.mrb[0].mxu0
  %527 = vdwg.mxu0
  %528 = vmatprep.subr.mxu0 0.0
  %529 = vmatpush1.msra.mxu0 %v170
  %530 = vmatprep.subr.mxu0 0.0
  %531 = vmatpush1.msra.mxu0 %v172
  %532 = vmatprep.subr.mxu0 0.0
  %533 = vmatpush1.msra.mxu0 0.0
  %534 = vmatprep.subr.mxu0 0.0
  %535 = vmatpush1.msra.mxu0 0.0
  %536 = vmatprep.subr.mxu0 0.0
  %537 = vmatpush1.msra.mxu0 0.0
  %538 = vmatprep.subr.mxu0 0.0
  %539 = vmatpush1.msra.mxu0 0.0
  %540 = vmatprep.subr.mxu0 0.0
  %541 = vmatpush1.msra.mxu0 0.0
  %542 = vmatprep.subr.mxu0 0.0
  %543 = vmatpush1.msra.mxu0 0.0
  %544 = vmatprep.subr.mxu0 0.0
  %545 = vmatpush1.msra.mxu0 0.0
  %546 = vmatprep.subr.mxu0 0.0
  %547 = vmatpush1.msra.mxu0 0.0
  %548 = vmatprep.subr.mxu0 0.0
  %549 = vmatpush1.msra.mxu0 0.0
  %550 = vmatprep.subr.mxu0 0.0
  %551 = vmatpush1.msra.mxu0 0.0
  %552 = vmatprep.subr.mxu0 0.0
  %553 = vmatpush1.msra.mxu0 0.0
  %554 = vmatprep.subr.mxu0 0.0
  %555 = vmatpush1.msra.mxu0 0.0
  %556 = vmatprep.subr.mxu0 0.0
  %557 = vmatpush1.msra.mxu0 0.0
  %558 = vmatprep.subr.mxu0 0.0
  %559 = vmatpush1.msra.mxu0 0.0
  %560 = vmatprep.subr.mxu0 0.0
  %561 = vmatpush1.msra.mxu0 0.0
  %562 = vmatprep.subr.mxu0 0.0
  %563 = vmatpush1.msra.mxu0 0.0
  %564 = vmatprep.subr.mxu0 0.0
  %565 = vmatpush1.msra.mxu0 0.0
  %566 = vmatprep.subr.mxu0 0.0
  %567 = vmatpush1.msra.mxu0 0.0
  %568 = vmatprep.subr.mxu0 0.0
  %569 = vmatpush1.msra.mxu0 0.0
  %570 = vmatprep.subr.mxu0 0.0
  %571 = vmatpush1.msra.mxu0 0.0
  %572 = vmatprep.subr.mxu0 0.0
  %573 = vmatpush1.msra.mxu0 0.0
  %574 = vmatprep.subr.mxu0 0.0
  %575 = vmatpush1.msra.mxu0 0.0
  %576 = vmatprep.subr.mxu0 0.0
  %577 = vmatpush1.msra.mxu0 0.0
  %578 = vmatprep.subr.mxu0 0.0
  %579 = vmatpush1.msra.mxu0 0.0
  %580 = vmatprep.subr.mxu0 0.0
  %581 = vmatpush1.msra.mxu0 0.0
  %582 = vmatprep.subr.mxu0 0.0
  %583 = vmatpush1.msra.mxu0 0.0
  %584 = vmatprep.subr.mxu0 0.0
  %585 = vmatpush1.msra.mxu0 0.0
  %586 = vmatprep.subr.mxu0 0.0
  %587 = vmatpush1.msra.mxu0 0.0
  %588 = vmatprep.subr.mxu0 0.0
  %589 = vmatpush1.msra.mxu0 0.0
  %590 = vmatprep.subr.mxu0 0.0
  %591 = vmatpush1.msra.mxu0 0.0
  %592 = vmatprep.mubr.f32.mxu0 0.0
  %593 = vmatmul.mubr.f32.gmra.mrb[0].mxu0 %v273
  %v594 = vpop.f32.mrb[0].mxu0
  %v595 = vadd.f32 %v520, %v594
  %v596 = vpop.f32.mrb[0].mxu0
  %597 = vmatprep.mubr.f32.mxu0 0.0
  %598 = vmatmul.mubr.f32.gmra.mrb[0].mxu0 %v276
  %v599 = vpop.f32.mrb[0].mxu0
  %v600 = vadd.f32 %v525, %v599
  %v601 = vpop.f32.mrb[0].mxu0
  %602 = vdwg.mxu0
  %607 = vrot.lane.b32.xlu0 %v170, 127
  %v608 = vpop.permute.xlu0 %607
  %609 = vrot.lane.b32.xlu0 %v171, 127
  %v610 = vpop.permute.xlu0 %609
  %611 = vrot.lane.b32.xlu0 %v172, 127
  %v612 = vpop.permute.xlu0 %611
  %613 = vrot.lane.b32.xlu0 %v173, 127
  %v614 = vpop.permute.xlu0 %613
  %v615 = vsel %vm365, %v608, %v610
  %v616 = vsel %vm365, %v612, %v614
  %619 = vmatprep.subr.mxu0 0.0
  %620 = vmatpush1.msra.mxu0 %v615
  %621 = vmatprep.subr.mxu0 0.0
  %622 = vmatpush1.msra.mxu0 %v616
  %623 = vmatprep.subr.mxu0 0.0
  %624 = vmatpush1.msra.mxu0 0.0
  %625 = vmatprep.subr.mxu0 0.0
  %626 = vmatpush1.msra.mxu0 0.0
  %627 = vmatprep.subr.mxu0 0.0
  %628 = vmatpush1.msra.mxu0 0.0
  %629 = vmatprep.subr.mxu0 0.0
  %630 = vmatpush1.msra.mxu0 0.0
  %631 = vmatprep.subr.mxu0 0.0
  %632 = vmatpush1.msra.mxu0 0.0
  %633 = vmatprep.subr.mxu0 0.0
  %634 = vmatpush1.msra.mxu0 0.0
  %635 = vmatprep.subr.mxu0 0.0
  %636 = vmatpush1.msra.mxu0 0.0
  %637 = vmatprep.subr.mxu0 0.0
  %638 = vmatpush1.msra.mxu0 0.0
  %639 = vmatprep.subr.mxu0 0.0
  %640 = vmatpush1.msra.mxu0 0.0
  %641 = vmatprep.subr.mxu0 0.0
  %642 = vmatpush1.msra.mxu0 0.0
  %643 = vmatprep.subr.mxu0 0.0
  %644 = vmatpush1.msra.mxu0 0.0
  %645 = vmatprep.subr.mxu0 0.0
  %646 = vmatpush1.msra.mxu0 0.0
  %647 = vmatprep.subr.mxu0 0.0
  %648 = vmatpush1.msra.mxu0 0.0
  %649 = vmatprep.subr.mxu0 0.0
  %650 = vmatpush1.msra.mxu0 0.0
  %651 = vmatprep.subr.mxu0 0.0
  %652 = vmatpush1.msra.mxu0 0.0
  %653 = vmatprep.subr.mxu0 0.0
  %654 = vmatpush1.msra.mxu0 0.0
  %655 = vmatprep.subr.mxu0 0.0
  %656 = vmatpush1.msra.mxu0 0.0
  %657 = vmatprep.subr.mxu0 0.0
  %658 = vmatpush1.msra.mxu0 0.0
  %659 = vmatprep.subr.mxu0 0.0
  %660 = vmatpush1.msra.mxu0 0.0
  %661 = vmatprep.subr.mxu0 0.0
  %662 = vmatpush1.msra.mxu0 0.0
  %663 = vmatprep.subr.mxu0 0.0
  %664 = vmatpush1.msra.mxu0 0.0
  %665 = vmatprep.subr.mxu0 0.0
  %666 = vmatpush1.msra.mxu0 0.0
  %667 = vmatprep.subr.mxu0 0.0
  %668 = vmatpush1.msra.mxu0 0.0
  %669 = vmatprep.subr.mxu0 0.0
  %670 = vmatpush1.msra.mxu0 0.0
  %671 = vmatprep.subr.mxu0 0.0
  %672 = vmatpush1.msra.mxu0 0.0
  %673 = vmatprep.subr.mxu0 0.0
  %674 = vmatpush1.msra.mxu0 0.0
  %675 = vmatprep.subr.mxu0 0.0
  %676 = vmatpush1.msra.mxu0 0.0
  %677 = vmatprep.subr.mxu0 0.0
  %678 = vmatpush1.msra.mxu0 0.0
  %679 = vmatprep.subr.mxu0 0.0
  %680 = vmatpush1.msra.mxu0 0.0
  %681 = vmatprep.subr.mxu0 0.0
  %682 = vmatpush1.msra.mxu0 0.0
  %683 = vmatprep.mubr.f32.mxu0 0.0
  %684 = vmatmul.mubr.f32.gmra.mrb[0].mxu0 %v371
  %v685 = vpop.f32.mrb[0].mxu0
  %v686 = vadd.f32 0.0, %v685
  %v687 = vpop.f32.mrb[0].mxu0
  %688 = vmatprep.mubr.f32.mxu0 0.0
  %689 = vmatmul.mubr.f32.gmra.mrb[0].mxu0 %v374
  %v690 = vpop.f32.mrb[0].mxu0
  %v691 = vadd.f32 0.0, %v690
  %v692 = vpop.f32.mrb[0].mxu0
  %693 = vdwg.mxu0
  %v694 = vadd.f32 %v595, %v686
  %v695 = vadd.f32 %v600, %v691
  %697 = vset.pattern.permute.xlu0 0
  %698 = vperm.xlu0 %697, %v186
  %v699 = vpop.permute.xlu0 %698
  %702 = vset.pattern.permute.xlu0 0
  %703 = vperm.xlu0 %702, %v187
  %v704 = vpop.permute.xlu0 %703
  %v706 = vmul.f32 %v451, %v699
  %v707 = vmul.f32 %v452, %v704
  %709 = vset.pattern.permute.xlu0 0
  %710 = vperm.xlu0 %709, %v188
  %v711 = vpop.permute.xlu0 %710
  %714 = vset.pattern.permute.xlu0 0
  %715 = vperm.xlu0 %714, %v189
  %v716 = vpop.permute.xlu0 %715
  %v718 = vadd.f32 %v706, %v711
  %v719 = vadd.f32 %v707, %v716
  %v720 = vmax.f32 %v718, 0.0
  %v721 = vmax.f32 %v719, 0.0
  %v722 = vmul.f32 %v694, %v699
  %v723 = vmul.f32 %v695, %v704
  %v724 = vadd.f32 %v722, %v711
  %v725 = vadd.f32 %v723, %v716
  %v726 = vmax.f32 %v724, 0.0
  %v727 = vmax.f32 %v725, 0.0
  %v728 = vmax.f32 %v720, %v726
  %v729 = vmax.f32 %v721, %v727
  %v730 = vld [vmem:[%s49] sm:$0xff]
  %v731 = vld [vmem:[%s49 + $0x8] sm:$0xff]
  %v732 = vld [vmem:[%s49 + $0x10] sm:$0xff]
  %v733 = vld [vmem:[%s49 + $0x18] sm:$0xff]
  %v734 = vld [vmem:[%s49 + $0x20] sm:$0xff]
  %v735 = vld [vmem:[%s49 + $0x28] sm:$0xff]
  %v736 = vld [vmem:[%s49 + $0x30] sm:$0xff]
  %v737 = vld [vmem:[%s49 + $0x38] sm:$0xff]
  %v738 = vld [vmem:[%s49 + $0x40] sm:$0xff]
  %v739 = vld [vmem:[%s49 + $0x48] sm:$0xff]
  %v740 = vld [vmem:[%s49 + $0x50] sm:$0xff]
  %v741 = vld [vmem:[%s49 + $0x58] sm:$0xff]
  %v742 = vld [vmem:[%s49 + $0x60] sm:$0xff]
  %v743 = vld [vmem:[%s49 + $0x68] sm:$0xff]
  %v744 = vld [vmem:[%s49 + $0x70] sm:$0xff]
  %v745 = vld [vmem:[%s49 + $0x78] sm:$0xff]
  %746 = vmatprep.subr.mxu0 0.0
  %747 = vmatpush1.msra.mxu0 %v730
  %748 = vmatprep.subr.mxu0 0.0
  %749 = vmatpush1.msra.mxu0 %v731
  %750 = vmatprep.subr.mxu0 0.0
  %751 = vmatpush1.msra.mxu0 %v732
  %752 = vmatprep.subr.mxu0 0.0
  %753 = vmatpush1.msra.mxu0 %v733
  %754 = vmatprep.subr.mxu0 0.0
  %755 = vmatpush1.msra.mxu0 %v734
  %756 = vmatprep.subr.mxu0 0.0
  %757 = vmatpush1.msra.mxu0 %v735
  %758 = vmatprep.subr.mxu0 0.0
  %759 = vmatpush1.msra.mxu0 %v736
  %760 = vmatprep.subr.mxu0 0.0
  %761 = vmatpush1.msra.mxu0 %v737
  %762 = vmatprep.subr.mxu0 0.0
  %763 = vmatpush1.msra.mxu0 %v738
  %764 = vmatprep.subr.mxu0 0.0
  %765 = vmatpush1.msra.mxu0 %v739
  %766 = vmatprep.subr.mxu0 0.0
  %767 = vmatpush1.msra.mxu0 %v740
  %768 = vmatprep.subr.mxu0 0.0
  %769 = vmatpush1.msra.mxu0 %v741
  %770 = vmatprep.subr.mxu0 0.0
  %771 = vmatpush1.msra.mxu0 %v742
  %772 = vmatprep.subr.mxu0 0.0
  %773 = vmatpush1.msra.mxu0 %v743
  %774 = vmatprep.subr.mxu0 0.0
  %775 = vmatpush1.msra.mxu0 %v744
  %776 = vmatprep.subr.mxu0 0.0
  %777 = vmatpush1.msra.mxu0 %v745
  %778 = vmatprep.subr.mxu0 0.0
  %779 = vmatpush1.msra.mxu0 0.0
  %780 = vmatprep.subr.mxu0 0.0
  %781 = vmatpush1.msra.mxu0 0.0
  %782 = vmatprep.subr.mxu0 0.0
  %783 = vmatpush1.msra.mxu0 0.0
  %784 = vmatprep.subr.mxu0 0.0
  %785 = vmatpush1.msra.mxu0 0.0
  %786 = vmatprep.subr.mxu0 0.0
  %787 = vmatpush1.msra.mxu0 0.0
  %788 = vmatprep.subr.mxu0 0.0
  %789 = vmatpush1.msra.mxu0 0.0
  %790 = vmatprep.subr.mxu0 0.0
  %791 = vmatpush1.msra.mxu0 0.0
  %792 = vmatprep.subr.mxu0 0.0
  %793 = vmatpush1.msra.mxu0 0.0
  %794 = vmatprep.subr.mxu0 0.0
  %795 = vmatpush1.msra.mxu0 0.0
  %796 = vmatprep.subr.mxu0 0.0
  %797 = vmatpush1.msra.mxu0 0.0
  %798 = vmatprep.subr.mxu0 0.0
  %799 = vmatpush1.msra.mxu0 0.0
  %800 = vmatprep.subr.mxu0 0.0
  %801 = vmatpush1.msra.mxu0 0.0
  %802 = vmatprep.subr.mxu0 0.0
  %803 = vmatpush1.msra.mxu0 0.0
  %804 = vmatprep.subr.mxu0 0.0
  %805 = vmatpush1.msra.mxu0 0.0
  %806 = vmatprep.subr.mxu0 0.0
  %807 = vmatpush1.msra.mxu0 0.0
  %808 = vmatprep.subr.mxu0 0.0
  %809 = vmatpush1.msra.mxu0 0.0
  %810 = vmatprep.mubr.f32.mxu0 0.0
  %811 = vmatmul.mubr.f32.gmra.mrb[0].mxu0 %v728
  %v812 = vpop.f32.mrb[0].mxu0
  %v813 = vadd.f32 0.0, %v812
  %v814 = vpop.f32.mrb[0].mxu0
  %815 = vmatprep.mubr.f32.mxu0 0.0
  %816 = vmatmul.mubr.f32.gmra.mrb[0].mxu0 %v729
  %v817 = vpop.f32.mrb[0].mxu0
  %v818 = vadd.f32 0.0, %v817
  %v819 = vpop.f32.mrb[0].mxu0
  %820 = vdwg.mxu0
  %v821 = vld [vmem:[%s51] sm:$0xff]
  %v822 = vld [vmem:[%s51 + $0x8] sm:$0xff]
  %v823 = vld [vmem:[%s51 + $0x10] sm:$0xff]
  %v824 = vld [vmem:[%s51 + $0x18] sm:$0xff]
  %v825 = vld [vmem:[%s51 + $0x20] sm:$0xff]
  %v826 = vld [vmem:[%s51 + $0x28] sm:$0xff]
  %v827 = vld [vmem:[%s51 + $0x30] sm:$0xff]
  %v828 = vld [vmem:[%s51 + $0x38] sm:$0xff]
  %v829 = vld [vmem:[%s51 + $0x40] sm:$0xff]
  %v830 = vld [vmem:[%s51 + $0x48] sm:$0xff]
  %v831 = vld [vmem:[%s51 + $0x50] sm:$0xff]
  %v832 = vld [vmem:[%s51 + $0x58] sm:$0xff]
  %v833 = vld [vmem:[%s51 + $0x60] sm:$0xff]
  %v834 = vld [vmem:[%s51 + $0x68] sm:$0xff]
  %v835 = vld [vmem:[%s51 + $0x70] sm:$0xff]
  %v836 = vld [vmem:[%s51 + $0x78] sm:$0xff]
  %837 = vmatprep.subr.mxu0 0.0
  %838 = vmatpush1.msra.mxu0 %v821
  %839 = vmatprep.subr.mxu0 0.0
  %840 = vmatpush1.msra.mxu0 %v822
  %841 = vmatprep.subr.mxu0 0.0
  %842 = vmatpush1.msra.mxu0 %v823
  %843 = vmatprep.subr.mxu0 0.0
  %844 = vmatpush1.msra.mxu0 %v824
  %845 = vmatprep.subr.mxu0 0.0
  %846 = vmatpush1.msra.mxu0 %v825
  %847 = vmatprep.subr.mxu0 0.0
  %848 = vmatpush1.msra.mxu0 %v826
  %849 = vmatprep.subr.mxu0 0.0
  %850 = vmatpush1.msra.mxu0 %v827
  %851 = vmatprep.subr.mxu0 0.0
  %852 = vmatpush1.msra.mxu0 %v828
  %853 = vmatprep.subr.mxu0 0.0
  %854 = vmatpush1.msra.mxu0 %v829
  %855 = vmatprep.subr.mxu0 0.0
  %856 = vmatpush1.msra.mxu0 %v830
  %857 = vmatprep.subr.mxu0 0.0
  %858 = vmatpush1.msra.mxu0 %v831
  %859 = vmatprep.subr.mxu0 0.0
  %860 = vmatpush1.msra.mxu0 %v832
  %861 = vmatprep.subr.mxu0 0.0
  %862 = vmatpush1.msra.mxu0 %v833
  %863 = vmatprep.subr.mxu0 0.0
  %864 = vmatpush1.msra.mxu0 %v834
  %865 = vmatprep.subr.mxu0 0.0
  %866 = vmatpush1.msra.mxu0 %v835
  %867 = vmatprep.subr.mxu0 0.0
  %868 = vmatpush1.msra.mxu0 %v836
  %869 = vmatprep.subr.mxu0 0.0
  %870 = vmatpush1.msra.mxu0 0.0
  %871 = vmatprep.subr.mxu0 0.0
  %872 = vmatpush1.msra.mxu0 0.0
  %873 = vmatprep.subr.mxu0 0.0
  %874 = vmatpush1.msra.mxu0 0.0
  %875 = vmatprep.subr.mxu0 0.0
  %876 = vmatpush1.msra.mxu0 0.0
  %877 = vmatprep.subr.mxu0 0.0
  %878 = vmatpush1.msra.mxu0 0.0
  %879 = vmatprep.subr.mxu0 0.0
  %880 = vmatpush1.msra.mxu0 0.0
  %881 = vmatprep.subr.mxu0 0.0
  %882 = vmatpush1.msra.mxu0 0.0
  %883 = vmatprep.subr.mxu0 0.0
  %884 = vmatpush1.msra.mxu0 0.0
  %885 = vmatprep.subr.mxu0 0.0
  %886 = vmatpush1.msra.mxu0 0.0
  %887 = vmatprep.subr.mxu0 0.0
  %888 = vmatpush1.msra.mxu0 0.0
  %889 = vmatprep.subr.mxu0 0.0
  %890 = vmatpush1.msra.mxu0 0.0
  %891 = vmatprep.subr.mxu0 0.0
  %892 = vmatpush1.msra.mxu0 0.0
  %893 = vmatprep.subr.mxu0 0.0
  %894 = vmatpush1.msra.mxu0 0.0
  %895 = vmatprep.subr.mxu0 0.0
  %896 = vmatpush1.msra.mxu0 0.0
  %897 = vmatprep.subr.mxu0 0.0
  %898 = vmatpush1.msra.mxu0 0.0
  %899 = vmatprep.subr.mxu0 0.0
  %900 = vmatpush1.msra.mxu0 0.0
  %901 = vmatprep.mubr.f32.mxu0 0.0
  %902 = vmatmul.mubr.f32.gmra.mrb[0].mxu0 %v728
  %v903 = vpop.f32.mrb[0].mxu0
  %v904 = vadd.f32 0.0, %v903
  %v905 = vpop.f32.mrb[0].mxu0
  %906 = vmatprep.mubr.f32.mxu0 0.0
  %907 = vmatmul.mubr.f32.gmra.mrb[0].mxu0 %v729
  %v908 = vpop.f32.mrb[0].mxu0
  %v909 = vadd.f32 0.0, %v908
  %v910 = vpop.f32.mrb[0].mxu0
  %911 = vdwg.mxu0
  %v912 = vld [vmem:[%s13] sm:$0xff]
  %v913 = vld [vmem:[%s13 + $0x8] sm:$0xff]
  %s914 = scalar_lea.vmem %s13, 16
  %v915 = vld [vmem:[%s914] sm:$0xff]
  %v916 = vld [vmem:[%s914 + $0x8] sm:$0xff]
  %s917 = scalar_lea.vmem %s13, 32
  %v918 = vld [vmem:[%s917] sm:$0xff]
  %v919 = vld [vmem:[%s917 + $0x8] sm:$0xff]
  %v920 = vld [vmem:[%s15] sm:$0xff]
  %v921 = vld [vmem:[%s15 + $0x8] sm:$0xff]
  %v922 = vld [vmem:[%s17] sm:$0xff]
  %v923 = vld [vmem:[%s17 + $0x8] sm:$0xff]
  %v925 = vsel %vm190, %v915, 0
  %v928 = vsel %vm190, %v916, 0
  %930 = vmatprep.subr.mxu0 0.0
  %931 = vmatpush1.msra.mxu0 %v813
  %932 = vmatprep.subr.mxu0 0.0
  %933 = vmatpush1.msra.mxu0 %v818
  %934 = vmatprep.subr.mxu0 0.0
  %935 = vmatpush1.msra.mxu0 0.0
  %936 = vmatprep.subr.mxu0 0.0
  %937 = vmatpush1.msra.mxu0 0.0
  %938 = vmatprep.subr.mxu0 0.0
  %939 = vmatpush1.msra.mxu0 0.0
  %940 = vmatprep.subr.mxu0 0.0
  %941 = vmatpush1.msra.mxu0 0.0
  %942 = vmatprep.subr.mxu0 0.0
  %943 = vmatpush1.msra.mxu0 0.0
  %944 = vmatprep.subr.mxu0 0.0
  %945 = vmatpush1.msra.mxu0 0.0
  %946 = vmatprep.subr.mxu0 0.0
  %947 = vmatpush1.msra.mxu0 0.0
  %948 = vmatprep.subr.mxu0 0.0
  %949 = vmatpush1.msra.mxu0 0.0
  %950 = vmatprep.subr.mxu0 0.0
  %951 = vmatpush1.msra.mxu0 0.0
  %952 = vmatprep.subr.mxu0 0.0
  %953 = vmatpush1.msra.mxu0 0.0
  %954 = vmatprep.subr.mxu0 0.0
  %955 = vmatpush1.msra.mxu0 0.0
  %956 = vmatprep.subr.mxu0 0.0
  %957 = vmatpush1.msra.mxu0 0.0
  %958 = vmatprep.subr.mxu0 0.0
  %959 = vmatpush1.msra.mxu0 0.0
  %960 = vmatprep.subr.mxu0 0.0
  %961 = vmatpush1.msra.mxu0 0.0
  %962 = vmatprep.subr.mxu0 0.0
  %963 = vmatpush1.msra.mxu0 0.0
  %964 = vmatprep.subr.mxu0 0.0
  %965 = vmatpush1.msra.mxu0 0.0
  %966 = vmatprep.subr.mxu0 0.0
  %967 = vmatpush1.msra.mxu0 0.0
  %968 = vmatprep.subr.mxu0 0.0
  %969 = vmatpush1.msra.mxu0 0.0
  %970 = vmatprep.subr.mxu0 0.0
  %971 = vmatpush1.msra.mxu0 0.0
  %972 = vmatprep.subr.mxu0 0.0
  %973 = vmatpush1.msra.mxu0 0.0
  %974 = vmatprep.subr.mxu0 0.0
  %975 = vmatpush1.msra.mxu0 0.0
  %976 = vmatprep.subr.mxu0 0.0
  %977 = vmatpush1.msra.mxu0 0.0
  %978 = vmatprep.subr.mxu0 0.0
  %979 = vmatpush1.msra.mxu0 0.0
  %980 = vmatprep.subr.mxu0 0.0
  %981 = vmatpush1.msra.mxu0 0.0
  %982 = vmatprep.subr.mxu0 0.0
  %983 = vmatpush1.msra.mxu0 0.0
  %984 = vmatprep.subr.mxu0 0.0
  %985 = vmatpush1.msra.mxu0 0.0
  %986 = vmatprep.subr.mxu0 0.0
  %987 = vmatpush1.msra.mxu0 0.0
  %988 = vmatprep.subr.mxu0 0.0
  %989 = vmatpush1.msra.mxu0 0.0
  %990 = vmatprep.subr.mxu0 0.0
  %991 = vmatpush1.msra.mxu0 0.0
  %992 = vmatprep.subr.mxu0 0.0
  %993 = vmatpush1.msra.mxu0 0.0
  %994 = vmatprep.mubr.f32.mxu0 0.0
  %995 = vmatmul.mubr.f32.gmra.mrb[0].mxu0 %v925
  %v996 = vpop.f32.mrb[0].mxu0
  %v997 = vadd.f32 0.0, %v996
  %v998 = vpop.f32.mrb[0].mxu0
  %999 = vmatprep.mubr.f32.mxu0 0.0
  %1000 = vmatmul.mubr.f32.gmra.mrb[0].mxu0 %v928
  %v1001 = vpop.f32.mrb[0].mxu0
  %v1002 = vadd.f32 0.0, %v1001
  %v1003 = vpop.f32.mrb[0].mxu0
  %1004 = vdwg.mxu0
  %v1006 = vsel %vm190, %v912, 0
  %v1009 = vsel %vm190, %v913, 0
  %1011 = vmatprep.subr.mxu0 0.0
  %1012 = vmatpush1.msra.mxu0 %v904
  %1013 = vmatprep.subr.mxu0 0.0
  %1014 = vmatpush1.msra.mxu0 %v909
  %1015 = vmatprep.subr.mxu0 0.0
  %1016 = vmatpush1.msra.mxu0 0.0
  %1017 = vmatprep.subr.mxu0 0.0
  %1018 = vmatpush1.msra.mxu0 0.0
  %1019 = vmatprep.subr.mxu0 0.0
  %1020 = vmatpush1.msra.mxu0 0.0
  %1021 = vmatprep.subr.mxu0 0.0
  %1022 = vmatpush1.msra.mxu0 0.0
  %1023 = vmatprep.subr.mxu0 0.0
  %1024 = vmatpush1.msra.mxu0 0.0
  %1025 = vmatprep.subr.mxu0 0.0
  %1026 = vmatpush1.msra.mxu0 0.0
  %1027 = vmatprep.subr.mxu0 0.0
  %1028 = vmatpush1.msra.mxu0 0.0
  %1029 = vmatprep.subr.mxu0 0.0
  %1030 = vmatpush1.msra.mxu0 0.0
  %1031 = vmatprep.subr.mxu0 0.0
  %1032 = vmatpush1.msra.mxu0 0.0
  %1033 = vmatprep.subr.mxu0 0.0
  %1034 = vmatpush1.msra.mxu0 0.0
  %1035 = vmatprep.subr.mxu0 0.0
  %1036 = vmatpush1.msra.mxu0 0.0
  %1037 = vmatprep.subr.mxu0 0.0
  %1038 = vmatpush1.msra.mxu0 0.0
  %1039 = vmatprep.subr.mxu0 0.0
  %1040 = vmatpush1.msra.mxu0 0.0
  %1041 = vmatprep.subr.mxu0 0.0
  %1042 = vmatpush1.msra.mxu0 0.0
  %1043 = vmatprep.subr.mxu0 0.0
  %1044 = vmatpush1.msra.mxu0 0.0
  %1045 = vmatprep.subr.mxu0 0.0
  %1046 = vmatpush1.msra.mxu0 0.0
  %1047 = vmatprep.subr.mxu0 0.0
  %1048 = vmatpush1.msra.mxu0 0.0
  %1049 = vmatprep.subr.mxu0 0.0
  %1050 = vmatpush1.msra.mxu0 0.0
  %1051 = vmatprep.subr.mxu0 0.0
  %1052 = vmatpush1.msra.mxu0 0.0
  %1053 = vmatprep.subr.mxu0 0.0
  %1054 = vmatpush1.msra.mxu0 0.0
  %1055 = vmatprep.subr.mxu0 0.0
  %1056 = vmatpush1.msra.mxu0 0.0
  %1057 = vmatprep.subr.mxu0 0.0
  %1058 = vmatpush1.msra.mxu0 0.0
  %1059 = vmatprep.subr.mxu0 0.0
  %1060 = vmatpush1.msra.mxu0 0.0
  %1061 = vmatprep.subr.mxu0 0.0
  %1062 = vmatpush1.msra.mxu0 0.0
  %1063 = vmatprep.subr.mxu0 0.0
  %1064 = vmatpush1.msra.mxu0 0.0
  %1065 = vmatprep.subr.mxu0 0.0
  %1066 = vmatpush1.msra.mxu0 0.0
  %1067 = vmatprep.subr.mxu0 0.0
  %1068 = vmatpush1.msra.mxu0 0.0
  %1069 = vmatprep.subr.mxu0 0.0
  %1070 = vmatpush1.msra.mxu0 0.0
  %1071 = vmatprep.subr.mxu0 0.0
  %1072 = vmatpush1.msra.mxu0 0.0
  %1073 = vmatprep.subr.mxu0 0.0
  %1074 = vmatpush1.msra.mxu0 0.0
  %1075 = vmatprep.mubr.f32.mxu0 0.0
  %1076 = vmatmul.mubr.f32.gmra.mrb[0].mxu0 %v1006
  %v1077 = vpop.f32.mrb[0].mxu0
  %v1078 = vadd.f32 %v997, %v1077
  %v1079 = vpop.f32.mrb[0].mxu0
  %1080 = vmatprep.mubr.f32.mxu0 0.0
  %1081 = vmatmul.mubr.f32.gmra.mrb[0].mxu0 %v1009
  %v1082 = vpop.f32.mrb[0].mxu0
  %v1083 = vadd.f32 %v1002, %v1082
  %v1084 = vpop.f32.mrb[0].mxu0
  %1085 = vdwg.mxu0
  %1088 = vrot.lane.b32.xlu0 %v904, 127
  %v1089 = vpop.permute.xlu0 %1088
  %1090 = vrot.lane.b32.xlu0 %v909, 127
  %v1091 = vpop.permute.xlu0 %1090
  %v1095 = vsel %vm190, %v918, 0
  %v1098 = vsel %vm190, %v919, 0
  %1100 = vmatprep.subr.mxu0 0.0
  %1101 = vmatpush1.msra.mxu0 %v1089
  %1102 = vmatprep.subr.mxu0 0.0
  %1103 = vmatpush1.msra.mxu0 %v1091
  %1104 = vmatprep.subr.mxu0 0.0
  %1105 = vmatpush1.msra.mxu0 0.0
  %1106 = vmatprep.subr.mxu0 0.0
  %1107 = vmatpush1.msra.mxu0 0.0
  %1108 = vmatprep.subr.mxu0 0.0
  %1109 = vmatpush1.msra.mxu0 0.0
  %1110 = vmatprep.subr.mxu0 0.0
  %1111 = vmatpush1.msra.mxu0 0.0
  %1112 = vmatprep.subr.mxu0 0.0
  %1113 = vmatpush1.msra.mxu0 0.0
  %1114 = vmatprep.subr.mxu0 0.0
  %1115 = vmatpush1.msra.mxu0 0.0
  %1116 = vmatprep.subr.mxu0 0.0
  %1117 = vmatpush1.msra.mxu0 0.0
  %1118 = vmatprep.subr.mxu0 0.0
  %1119 = vmatpush1.msra.mxu0 0.0
  %1120 = vmatprep.subr.mxu0 0.0
  %1121 = vmatpush1.msra.mxu0 0.0
  %1122 = vmatprep.subr.mxu0 0.0
  %1123 = vmatpush1.msra.mxu0 0.0
  %1124 = vmatprep.subr.mxu0 0.0
  %1125 = vmatpush1.msra.mxu0 0.0
  %1126 = vmatprep.subr.mxu0 0.0
  %1127 = vmatpush1.msra.mxu0 0.0
  %1128 = vmatprep.subr.mxu0 0.0
  %1129 = vmatpush1.msra.mxu0 0.0
  %1130 = vmatprep.subr.mxu0 0.0
  %1131 = vmatpush1.msra.mxu0 0.0
  %1132 = vmatprep.subr.mxu0 0.0
  %1133 = vmatpush1.msra.mxu0 0.0
  %1134 = vmatprep.subr.mxu0 0.0
  %1135 = vmatpush1.msra.mxu0 0.0
  %1136 = vmatprep.subr.mxu0 0.0
  %1137 = vmatpush1.msra.mxu0 0.0
  %1138 = vmatprep.subr.mxu0 0.0
  %1139 = vmatpush1.msra.mxu0 0.0
  %1140 = vmatprep.subr.mxu0 0.0
  %1141 = vmatpush1.msra.mxu0 0.0
  %1142 = vmatprep.subr.mxu0 0.0
  %1143 = vmatpush1.msra.mxu0 0.0
  %1144 = vmatprep.subr.mxu0 0.0
  %1145 = vmatpush1.msra.mxu0 0.0
  %1146 = vmatprep.subr.mxu0 0.0
  %1147 = vmatpush1.msra.mxu0 0.0
  %1148 = vmatprep.subr.mxu0 0.0
  %1149 = vmatpush1.msra.mxu0 0.0
  %1150 = vmatprep.subr.mxu0 0.0
  %1151 = vmatpush1.msra.mxu0 0.0
  %1152 = vmatprep.subr.mxu0 0.0
  %1153 = vmatpush1.msra.mxu0 0.0
  %1154 = vmatprep.subr.mxu0 0.0
  %1155 = vmatpush1.msra.mxu0 0.0
  %1156 = vmatprep.subr.mxu0 0.0
  %1157 = vmatpush1.msra.mxu0 0.0
  %1158 = vmatprep.subr.mxu0 0.0
  %1159 = vmatpush1.msra.mxu0 0.0
  %1160 = vmatprep.subr.mxu0 0.0
  %1161 = vmatpush1.msra.mxu0 0.0
  %1162 = vmatprep.subr.mxu0 0.0
  %1163 = vmatpush1.msra.mxu0 0.0
  %1164 = vmatprep.mubr.f32.mxu0 0.0
  %1165 = vmatmul.mubr.f32.gmra.mrb[0].mxu0 %v1095
  %v1166 = vpop.f32.mrb[0].mxu0
  %v1167 = vadd.f32 0.0, %v1166
  %v1168 = vpop.f32.mrb[0].mxu0
  %1169 = vmatprep.mubr.f32.mxu0 0.0
  %1170 = vmatmul.mubr.f32.gmra.mrb[0].mxu0 %v1098
  %v1171 = vpop.f32.mrb[0].mxu0
  %v1172 = vadd.f32 0.0, %v1171
  %v1173 = vpop.f32.mrb[0].mxu0
  %1174 = vdwg.mxu0
  %v1175 = vadd.f32 %v1078, %v1167
  %v1176 = vadd.f32 %v1083, %v1172
  %1177 = vmatprep.subr.mxu0 0.0
  %1178 = vmatpush1.msra.mxu0 %v1089
  %1179 = vmatprep.subr.mxu0 0.0
  %1180 = vmatpush1.msra.mxu0 %v1091
  %1181 = vmatprep.subr.mxu0 0.0
  %1182 = vmatpush1.msra.mxu0 0.0
  %1183 = vmatprep.subr.mxu0 0.0
  %1184 = vmatpush1.msra.mxu0 0.0
  %1185 = vmatprep.subr.mxu0 0.0
  %1186 = vmatpush1.msra.mxu0 0.0
  %1187 = vmatprep.subr.mxu0 0.0
  %1188 = vmatpush1.msra.mxu0 0.0
  %1189 = vmatprep.subr.mxu0 0.0
  %1190 = vmatpush1.msra.mxu0 0.0
  %1191 = vmatprep.subr.mxu0 0.0
  %1192 = vmatpush1.msra.mxu0 0.0
  %1193 = vmatprep.subr.mxu0 0.0
  %1194 = vmatpush1.msra.mxu0 0.0
  %1195 = vmatprep.subr.mxu0 0.0
  %1196 = vmatpush1.msra.mxu0 0.0
  %1197 = vmatprep.subr.mxu0 0.0
  %1198 = vmatpush1.msra.mxu0 0.0
  %1199 = vmatprep.subr.mxu0 0.0
  %1200 = vmatpush1.msra.mxu0 0.0
  %1201 = vmatprep.subr.mxu0 0.0
  %1202 = vmatpush1.msra.mxu0 0.0
  %1203 = vmatprep.subr.mxu0 0.0
  %1204 = vmatpush1.msra.mxu0 0.0
  %1205 = vmatprep.subr.mxu0 0.0
  %1206 = vmatpush1.msra.mxu0 0.0
  %1207 = vmatprep.subr.mxu0 0.0
  %1208 = vmatpush1.msra.mxu0 0.0
  %1209 = vmatprep.subr.mxu0 0.0
  %1210 = vmatpush1.msra.mxu0 0.0
  %1211 = vmatprep.subr.mxu0 0.0
  %1212 = vmatpush1.msra.mxu0 0.0
  %1213 = vmatprep.subr.mxu0 0.0
  %1214 = vmatpush1.msra.mxu0 0.0
  %1215 = vmatprep.subr.mxu0 0.0
  %1216 = vmatpush1.msra.mxu0 0.0
  %1217 = vmatprep.subr.mxu0 0.0
  %1218 = vmatpush1.msra.mxu0 0.0
  %1219 = vmatprep.subr.mxu0 0.0
  %1220 = vmatpush1.msra.mxu0 0.0
  %1221 = vmatprep.subr.mxu0 0.0
  %1222 = vmatpush1.msra.mxu0 0.0
  %1223 = vmatprep.subr.mxu0 0.0
  %1224 = vmatpush1.msra.mxu0 0.0
  %1225 = vmatprep.subr.mxu0 0.0
  %1226 = vmatpush1.msra.mxu0 0.0
  %1227 = vmatprep.subr.mxu0 0.0
  %1228 = vmatpush1.msra.mxu0 0.0
  %1229 = vmatprep.subr.mxu0 0.0
  %1230 = vmatpush1.msra.mxu0 0.0
  %1231 = vmatprep.subr.mxu0 0.0
  %1232 = vmatpush1.msra.mxu0 0.0
  %1233 = vmatprep.subr.mxu0 0.0
  %1234 = vmatpush1.msra.mxu0 0.0
  %1235 = vmatprep.subr.mxu0 0.0
  %1236 = vmatpush1.msra.mxu0 0.0
  %1237 = vmatprep.subr.mxu0 0.0
  %1238 = vmatpush1.msra.mxu0 0.0
  %1239 = vmatprep.subr.mxu0 0.0
  %1240 = vmatpush1.msra.mxu0 0.0
  %1241 = vmatprep.mubr.f32.mxu0 0.0
  %1242 = vmatmul.mubr.f32.gmra.mrb[0].mxu0 %v925
  %v1243 = vpop.f32.mrb[0].mxu0
  %v1244 = vadd.f32 0.0, %v1243
  %v1245 = vpop.f32.mrb[0].mxu0
  %1246 = vmatprep.mubr.f32.mxu0 0.0
  %1247 = vmatmul.mubr.f32.gmra.mrb[0].mxu0 %v928
  %v1248 = vpop.f32.mrb[0].mxu0
  %v1249 = vadd.f32 0.0, %v1248
  %v1250 = vpop.f32.mrb[0].mxu0
  %1251 = vdwg.mxu0
  %1252 = vmatprep.subr.mxu0 0.0
  %1253 = vmatpush1.msra.mxu0 %v813
  %1254 = vmatprep.subr.mxu0 0.0
  %1255 = vmatpush1.msra.mxu0 %v818
  %1256 = vmatprep.subr.mxu0 0.0
  %1257 = vmatpush1.msra.mxu0 0.0
  %1258 = vmatprep.subr.mxu0 0.0
  %1259 = vmatpush1.msra.mxu0 0.0
  %1260 = vmatprep.subr.mxu0 0.0
  %1261 = vmatpush1.msra.mxu0 0.0
  %1262 = vmatprep.subr.mxu0 0.0
  %1263 = vmatpush1.msra.mxu0 0.0
  %1264 = vmatprep.subr.mxu0 0.0
  %1265 = vmatpush1.msra.mxu0 0.0
  %1266 = vmatprep.subr.mxu0 0.0
  %1267 = vmatpush1.msra.mxu0 0.0
  %1268 = vmatprep.subr.mxu0 0.0
  %1269 = vmatpush1.msra.mxu0 0.0
  %1270 = vmatprep.subr.mxu0 0.0
  %1271 = vmatpush1.msra.mxu0 0.0
  %1272 = vmatprep.subr.mxu0 0.0
  %1273 = vmatpush1.msra.mxu0 0.0
  %1274 = vmatprep.subr.mxu0 0.0
  %1275 = vmatpush1.msra.mxu0 0.0
  %1276 = vmatprep.subr.mxu0 0.0
  %1277 = vmatpush1.msra.mxu0 0.0
  %1278 = vmatprep.subr.mxu0 0.0
  %1279 = vmatpush1.msra.mxu0 0.0
  %1280 = vmatprep.subr.mxu0 0.0
  %1281 = vmatpush1.msra.mxu0 0.0
  %1282 = vmatprep.subr.mxu0 0.0
  %1283 = vmatpush1.msra.mxu0 0.0
  %1284 = vmatprep.subr.mxu0 0.0
  %1285 = vmatpush1.msra.mxu0 0.0
  %1286 = vmatprep.subr.mxu0 0.0
  %1287 = vmatpush1.msra.mxu0 0.0
  %1288 = vmatprep.subr.mxu0 0.0
  %1289 = vmatpush1.msra.mxu0 0.0
  %1290 = vmatprep.subr.mxu0 0.0
  %1291 = vmatpush1.msra.mxu0 0.0
  %1292 = vmatprep.subr.mxu0 0.0
  %1293 = vmatpush1.msra.mxu0 0.0
  %1294 = vmatprep.subr.mxu0 0.0
  %1295 = vmatpush1.msra.mxu0 0.0
  %1296 = vmatprep.subr.mxu0 0.0
  %1297 = vmatpush1.msra.mxu0 0.0
  %1298 = vmatprep.subr.mxu0 0.0
  %1299 = vmatpush1.msra.mxu0 0.0
  %1300 = vmatprep.subr.mxu0 0.0
  %1301 = vmatpush1.msra.mxu0 0.0
  %1302 = vmatprep.subr.mxu0 0.0
  %1303 = vmatpush1.msra.mxu0 0.0
  %1304 = vmatprep.subr.mxu0 0.0
  %1305 = vmatpush1.msra.mxu0 0.0
  %1306 = vmatprep.subr.mxu0 0.0
  %1307 = vmatpush1.msra.mxu0 0.0
  %1308 = vmatprep.subr.mxu0 0.0
  %1309 = vmatpush1.msra.mxu0 0.0
  %1310 = vmatprep.subr.mxu0 0.0
  %1311 = vmatpush1.msra.mxu0 0.0
  %1312 = vmatprep.subr.mxu0 0.0
  %1313 = vmatpush1.msra.mxu0 0.0
  %1314 = vmatprep.subr.mxu0 0.0
  %1315 = vmatpush1.msra.mxu0 0.0
  %1316 = vmatprep.mubr.f32.mxu0 0.0
  %1317 = vmatmul.mubr.f32.gmra.mrb[0].mxu0 %v1006
  %v1318 = vpop.f32.mrb[0].mxu0
  %v1319 = vadd.f32 %v1244, %v1318
  %v1320 = vpop.f32.mrb[0].mxu0
  %1321 = vmatprep.mubr.f32.mxu0 0.0
  %1322 = vmatmul.mubr.f32.gmra.mrb[0].mxu0 %v1009
  %v1323 = vpop.f32.mrb[0].mxu0
  %v1324 = vadd.f32 %v1249, %v1323
  %v1325 = vpop.f32.mrb[0].mxu0
  %1326 = vdwg.mxu0
  %1329 = vrot.lane.b32.xlu0 %v813, 127
  %v1330 = vpop.permute.xlu0 %1329
  %1331 = vrot.lane.b32.xlu0 %v818, 127
  %v1332 = vpop.permute.xlu0 %1331
  %1335 = vmatprep.subr.mxu0 0.0
  %1336 = vmatpush1.msra.mxu0 %v1330
  %1337 = vmatprep.subr.mxu0 0.0
  %1338 = vmatpush1.msra.mxu0 %v1332
  %1339 = vmatprep.subr.mxu0 0.0
  %1340 = vmatpush1.msra.mxu0 0.0
  %1341 = vmatprep.subr.mxu0 0.0
  %1342 = vmatpush1.msra.mxu0 0.0
  %1343 = vmatprep.subr.mxu0 0.0
  %1344 = vmatpush1.msra.mxu0 0.0
  %1345 = vmatprep.subr.mxu0 0.0
  %1346 = vmatpush1.msra.mxu0 0.0
  %1347 = vmatprep.subr.mxu0 0.0
  %1348 = vmatpush1.msra.mxu0 0.0
  %1349 = vmatprep.subr.mxu0 0.0
  %1350 = vmatpush1.msra.mxu0 0.0
  %1351 = vmatprep.subr.mxu0 0.0
  %1352 = vmatpush1.msra.mxu0 0.0
  %1353 = vmatprep.subr.mxu0 0.0
  %1354 = vmatpush1.msra.mxu0 0.0
  %1355 = vmatprep.subr.mxu0 0.0
  %1356 = vmatpush1.msra.mxu0 0.0
  %1357 = vmatprep.subr.mxu0 0.0
  %1358 = vmatpush1.msra.mxu0 0.0
  %1359 = vmatprep.subr.mxu0 0.0
  %1360 = vmatpush1.msra.mxu0 0.0
  %1361 = vmatprep.subr.mxu0 0.0
  %1362 = vmatpush1.msra.mxu0 0.0
  %1363 = vmatprep.subr.mxu0 0.0
  %1364 = vmatpush1.msra.mxu0 0.0
  %1365 = vmatprep.subr.mxu0 0.0
  %1366 = vmatpush1.msra.mxu0 0.0
  %1367 = vmatprep.subr.mxu0 0.0
  %1368 = vmatpush1.msra.mxu0 0.0
  %1369 = vmatprep.subr.mxu0 0.0
  %1370 = vmatpush1.msra.mxu0 0.0
  %1371 = vmatprep.subr.mxu0 0.0
  %1372 = vmatpush1.msra.mxu0 0.0
  %1373 = vmatprep.subr.mxu0 0.0
  %1374 = vmatpush1.msra.mxu0 0.0
  %1375 = vmatprep.subr.mxu0 0.0
  %1376 = vmatpush1.msra.mxu0 0.0
  %1377 = vmatprep.subr.mxu0 0.0
  %1378 = vmatpush1.msra.mxu0 0.0
  %1379 = vmatprep.subr.mxu0 0.0
  %1380 = vmatpush1.msra.mxu0 0.0
  %1381 = vmatprep.subr.mxu0 0.0
  %1382 = vmatpush1.msra.mxu0 0.0
  %1383 = vmatprep.subr.mxu0 0.0
  %1384 = vmatpush1.msra.mxu0 0.0
  %1385 = vmatprep.subr.mxu0 0.0
  %1386 = vmatpush1.msra.mxu0 0.0
  %1387 = vmatprep.subr.mxu0 0.0
  %1388 = vmatpush1.msra.mxu0 0.0
  %1389 = vmatprep.subr.mxu0 0.0
  %1390 = vmatpush1.msra.mxu0 0.0
  %1391 = vmatprep.subr.mxu0 0.0
  %1392 = vmatpush1.msra.mxu0 0.0
  %1393 = vmatprep.subr.mxu0 0.0
  %1394 = vmatpush1.msra.mxu0 0.0
  %1395 = vmatprep.subr.mxu0 0.0
  %1396 = vmatpush1.msra.mxu0 0.0
  %1397 = vmatprep.subr.mxu0 0.0
  %1398 = vmatpush1.msra.mxu0 0.0
  %1399 = vmatprep.mubr.f32.mxu0 0.0
  %1400 = vmatmul.mubr.f32.gmra.mrb[0].mxu0 %v1095
  %v1401 = vpop.f32.mrb[0].mxu0
  %v1402 = vadd.f32 0.0, %v1401
  %v1403 = vpop.f32.mrb[0].mxu0
  %1404 = vmatprep.mubr.f32.mxu0 0.0
  %1405 = vmatmul.mubr.f32.gmra.mrb[0].mxu0 %v1098
  %v1406 = vpop.f32.mrb[0].mxu0
  %v1407 = vadd.f32 0.0, %v1406
  %v1408 = vpop.f32.mrb[0].mxu0
  %1409 = vdwg.mxu0
  %v1410 = vadd.f32 %v1319, %v1402
  %v1411 = vadd.f32 %v1324, %v1407
  %1413 = vset.pattern.permute.xlu0 0
  %1414 = vperm.xlu0 %1413, %v920
  %v1415 = vpop.permute.xlu0 %1414
  %1418 = vset.pattern.permute.xlu0 0
  %1419 = vperm.xlu0 %1418, %v921
  %v1420 = vpop.permute.xlu0 %1419
  %v1422 = vmul.f32 %v1175, %v1415
  %v1423 = vmul.f32 %v1176, %v1420
  %1425 = vset.pattern.permute.xlu0 0
  %1426 = vperm.xlu0 %1425, %v922
  %v1427 = vpop.permute.xlu0 %1426
  %1430 = vset.pattern.permute.xlu0 0
  %1431 = vperm.xlu0 %1430, %v923
  %v1432 = vpop.permute.xlu0 %1431
  %v1434 = vadd.f32 %v1422, %v1427
  %v1435 = vadd.f32 %v1423, %v1432
  %v1436 = vmax.f32 %v1434, 0.0
  %v1437 = vmax.f32 %v1435, 0.0
  %v1438 = vmul.f32 %v1410, %v1415
  %v1439 = vmul.f32 %v1411, %v1420
  %v1440 = vadd.f32 %v1438, %v1427
  %v1441 = vadd.f32 %v1439, %v1432
  %v1442 = vmax.f32 %v1440, 0.0
  %v1443 = vmax.f32 %v1441, 0.0
  %v1444 = vmax.f32 %v1436, %v1442
  %v1445 = vmax.f32 %v1437, %v1443
  %v1446 = vld [vmem:[%s53] sm:$0xff]
  %v1447 = vld [vmem:[%s53 + $0x8] sm:$0xff]
  %v1448 = vld [vmem:[%s53 + $0x10] sm:$0xff]
  %v1449 = vld [vmem:[%s53 + $0x18] sm:$0xff]
  %v1450 = vld [vmem:[%s53 + $0x20] sm:$0xff]
  %v1451 = vld [vmem:[%s53 + $0x28] sm:$0xff]
  %v1452 = vld [vmem:[%s53 + $0x30] sm:$0xff]
  %v1453 = vld [vmem:[%s53 + $0x38] sm:$0xff]
  %vm1454 = vcmask 523264
  %v1456 = vsel %vm1454, %v1444, 0
  %v1459 = vsel %vm1454, %v1445, 0
  %1461 = vmatprep.subr.mxu0 0.0
  %1462 = vmatpush1.msra.mxu0 %v1446
  %1463 = vmatprep.subr.mxu0 0.0
  %1464 = vmatpush1.msra.mxu0 %v1447
  %1465 = vmatprep.subr.mxu0 0.0
  %1466 = vmatpush1.msra.mxu0 %v1448
  %1467 = vmatprep.subr.mxu0 0.0
  %1468 = vmatpush1.msra.mxu0 %v1449
  %1469 = vmatprep.subr.mxu0 0.0
  %1470 = vmatpush1.msra.mxu0 %v1450
  %1471 = vmatprep.subr.mxu0 0.0
  %1472 = vmatpush1.msra.mxu0 %v1451
  %1473 = vmatprep.subr.mxu0 0.0
  %1474 = vmatpush1.msra.mxu0 %v1452
  %1475 = vmatprep.subr.mxu0 0.0
  %1476 = vmatpush1.msra.mxu0 %v1453
  %1477 = vmatprep.subr.mxu0 0.0
  %1478 = vmatpush1.msra.mxu0 0.0
  %1479 = vmatprep.subr.mxu0 0.0
  %1480 = vmatpush1.msra.mxu0 0.0
  %1481 = vmatprep.subr.mxu0 0.0
  %1482 = vmatpush1.msra.mxu0 0.0
  %1483 = vmatprep.subr.mxu0 0.0
  %1484 = vmatpush1.msra.mxu0 0.0
  %1485 = vmatprep.subr.mxu0 0.0
  %1486 = vmatpush1.msra.mxu0 0.0
  %1487 = vmatprep.subr.mxu0 0.0
  %1488 = vmatpush1.msra.mxu0 0.0
  %1489 = vmatprep.subr.mxu0 0.0
  %1490 = vmatpush1.msra.mxu0 0.0
  %1491 = vmatprep.subr.mxu0 0.0
  %1492 = vmatpush1.msra.mxu0 0.0
  %1493 = vmatprep.subr.mxu0 0.0
  %1494 = vmatpush1.msra.mxu0 0.0
  %1495 = vmatprep.subr.mxu0 0.0
  %1496 = vmatpush1.msra.mxu0 0.0
  %1497 = vmatprep.subr.mxu0 0.0
  %1498 = vmatpush1.msra.mxu0 0.0
  %1499 = vmatprep.subr.mxu0 0.0
  %1500 = vmatpush1.msra.mxu0 0.0
  %1501 = vmatprep.subr.mxu0 0.0
  %1502 = vmatpush1.msra.mxu0 0.0
  %1503 = vmatprep.subr.mxu0 0.0
  %1504 = vmatpush1.msra.mxu0 0.0
  %1505 = vmatprep.subr.mxu0 0.0
  %1506 = vmatpush1.msra.mxu0 0.0
  %1507 = vmatprep.subr.mxu0 0.0
  %1508 = vmatpush1.msra.mxu0 0.0
  %1509 = vmatprep.subr.mxu0 0.0
  %1510 = vmatpush1.msra.mxu0 0.0
  %1511 = vmatprep.subr.mxu0 0.0
  %1512 = vmatpush1.msra.mxu0 0.0
  %1513 = vmatprep.subr.mxu0 0.0
  %1514 = vmatpush1.msra.mxu0 0.0
  %1515 = vmatprep.subr.mxu0 0.0
  %1516 = vmatpush1.msra.mxu0 0.0
  %1517 = vmatprep.subr.mxu0 0.0
  %1518 = vmatpush1.msra.mxu0 0.0
  %1519 = vmatprep.subr.mxu0 0.0
  %1520 = vmatpush1.msra.mxu0 0.0
  %1521 = vmatprep.subr.mxu0 0.0
  %1522 = vmatpush1.msra.mxu0 0.0
  %1523 = vmatprep.subr.mxu0 0.0
  %1524 = vmatpush1.msra.mxu0 0.0
  %1525 = vmatprep.mubr.f32.mxu0 0.0
  %1526 = vmatmul.mubr.f32.gmra.mrb[0].mxu0 %v1456
  %v1527 = vpop.f32.mrb[0].mxu0
  %v1528 = vadd.f32 0.0, %v1527
  %v1529 = vpop.f32.mrb[0].mxu0
  %1530 = vmatprep.mubr.f32.mxu0 0.0
  %1531 = vmatmul.mubr.f32.gmra.mrb[0].mxu0 %v1459
  %v1532 = vpop.f32.mrb[0].mxu0
  %v1533 = vadd.f32 0.0, %v1532
  %v1534 = vpop.f32.mrb[0].mxu0
  %1535 = vdwg.mxu0
  %v1536 = vld [vmem:[%s55] sm:$0xff]
  %v1537 = vld [vmem:[%s55 + $0x8] sm:$0xff]
  %v1538 = vld [vmem:[%s55 + $0x10] sm:$0xff]
  %v1539 = vld [vmem:[%s55 + $0x18] sm:$0xff]
  %v1540 = vld [vmem:[%s55 + $0x20] sm:$0xff]
  %v1541 = vld [vmem:[%s55 + $0x28] sm:$0xff]
  %v1542 = vld [vmem:[%s55 + $0x30] sm:$0xff]
  %v1543 = vld [vmem:[%s55 + $0x38] sm:$0xff]
  %1544 = vmatprep.subr.mxu0 0.0
  %1545 = vmatpush1.msra.mxu0 %v1536
  %1546 = vmatprep.subr.mxu0 0.0
  %1547 = vmatpush1.msra.mxu0 %v1537
  %1548 = vmatprep.subr.mxu0 0.0
  %1549 = vmatpush1.msra.mxu0 %v1538
  %1550 = vmatprep.subr.mxu0 0.0
  %1551 = vmatpush1.msra.mxu0 %v1539
  %1552 = vmatprep.subr.mxu0 0.0
  %1553 = vmatpush1.msra.mxu0 %v1540
  %1554 = vmatprep.subr.mxu0 0.0
  %1555 = vmatpush1.msra.mxu0 %v1541
  %1556 = vmatprep.subr.mxu0 0.0
  %1557 = vmatpush1.msra.mxu0 %v1542
  %1558 = vmatprep.subr.mxu0 0.0
  %1559 = vmatpush1.msra.mxu0 %v1543
  %1560 = vmatprep.subr.mxu0 0.0
  %1561 = vmatpush1.msra.mxu0 0.0
  %1562 = vmatprep.subr.mxu0 0.0
  %1563 = vmatpush1.msra.mxu0 0.0
  %1564 = vmatprep.subr.mxu0 0.0
  %1565 = vmatpush1.msra.mxu0 0.0
  %1566 = vmatprep.subr.mxu0 0.0
  %1567 = vmatpush1.msra.mxu0 0.0
  %1568 = vmatprep.subr.mxu0 0.0
  %1569 = vmatpush1.msra.mxu0 0.0
  %1570 = vmatprep.subr.mxu0 0.0
  %1571 = vmatpush1.msra.mxu0 0.0
  %1572 = vmatprep.subr.mxu0 0.0
  %1573 = vmatpush1.msra.mxu0 0.0
  %1574 = vmatprep.subr.mxu0 0.0
  %1575 = vmatpush1.msra.mxu0 0.0
  %1576 = vmatprep.subr.mxu0 0.0
  %1577 = vmatpush1.msra.mxu0 0.0
  %1578 = vmatprep.subr.mxu0 0.0
  %1579 = vmatpush1.msra.mxu0 0.0
  %1580 = vmatprep.subr.mxu0 0.0
  %1581 = vmatpush1.msra.mxu0 0.0
  %1582 = vmatprep.subr.mxu0 0.0
  %1583 = vmatpush1.msra.mxu0 0.0
  %1584 = vmatprep.subr.mxu0 0.0
  %1585 = vmatpush1.msra.mxu0 0.0
  %1586 = vmatprep.subr.mxu0 0.0
  %1587 = vmatpush1.msra.mxu0 0.0
  %1588 = vmatprep.subr.mxu0 0.0
  %1589 = vmatpush1.msra.mxu0 0.0
  %1590 = vmatprep.subr.mxu0 0.0
  %1591 = vmatpush1.msra.mxu0 0.0
  %1592 = vmatprep.subr.mxu0 0.0
  %1593 = vmatpush1.msra.mxu0 0.0
  %1594 = vmatprep.subr.mxu0 0.0
  %1595 = vmatpush1.msra.mxu0 0.0
  %1596 = vmatprep.subr.mxu0 0.0
  %1597 = vmatpush1.msra.mxu0 0.0
  %1598 = vmatprep.subr.mxu0 0.0
  %1599 = vmatpush1.msra.mxu0 0.0
  %1600 = vmatprep.subr.mxu0 0.0
  %1601 = vmatpush1.msra.mxu0 0.0
  %1602 = vmatprep.subr.mxu0 0.0
  %1603 = vmatpush1.msra.mxu0 0.0
  %1604 = vmatprep.subr.mxu0 0.0
  %1605 = vmatpush1.msra.mxu0 0.0
  %1606 = vmatprep.subr.mxu0 0.0
  %1607 = vmatpush1.msra.mxu0 0.0
  %1608 = vmatprep.mubr.f32.mxu0 0.0
  %1609 = vmatmul.mubr.f32.gmra.mrb[0].mxu0 %v1456
  %v1610 = vpop.f32.mrb[0].mxu0
  %v1611 = vadd.f32 0.0, %v1610
  %v1612 = vpop.f32.mrb[0].mxu0
  %1613 = vmatprep.mubr.f32.mxu0 0.0
  %1614 = vmatmul.mubr.f32.gmra.mrb[0].mxu0 %v1459
  %v1615 = vpop.f32.mrb[0].mxu0
  %v1616 = vadd.f32 0.0, %v1615
  %v1617 = vpop.f32.mrb[0].mxu0
  %1618 = vdwg.mxu0
  %v1619 = vld [vmem:[%s19] sm:$0xff]
  %v1620 = vld [vmem:[%s19 + $0x8] sm:$0xff]
  %s1621 = scalar_lea.vmem %s19, 16
  %v1622 = vld [vmem:[%s1621] sm:$0xff]
  %v1623 = vld [vmem:[%s1621 + $0x8] sm:$0xff]
  %s1624 = scalar_lea.vmem %s19, 32
  %v1625 = vld [vmem:[%s1624] sm:$0xff]
  %v1626 = vld [vmem:[%s1624 + $0x8] sm:$0xff]
  %v1627 = vld [vmem:[%s21] sm:$0xff]
  %v1628 = vld [vmem:[%s21 + $0x8] sm:$0xff]
  %v1629 = vld [vmem:[%s23] sm:$0xff]
  %v1630 = vld [vmem:[%s23 + $0x8] sm:$0xff]
  %v1632 = vsel %vm190, %v1622, 0
  %v1635 = vsel %vm190, %v1623, 0
  %1637 = vmatprep.subr.mxu0 0.0
  %1638 = vmatpush1.msra.mxu0 %v1528
  %1639 = vmatprep.subr.mxu0 0.0
  %1640 = vmatpush1.msra.mxu0 %v1533
  %1641 = vmatprep.subr.mxu0 0.0
  %1642 = vmatpush1.msra.mxu0 0.0
  %1643 = vmatprep.subr.mxu0 0.0
  %1644 = vmatpush1.msra.mxu0 0.0
  %1645 = vmatprep.subr.mxu0 0.0
  %1646 = vmatpush1.msra.mxu0 0.0
  %1647 = vmatprep.subr.mxu0 0.0
  %1648 = vmatpush1.msra.mxu0 0.0
  %1649 = vmatprep.subr.mxu0 0.0
  %1650 = vmatpush1.msra.mxu0 0.0
  %1651 = vmatprep.subr.mxu0 0.0
  %1652 = vmatpush1.msra.mxu0 0.0
  %1653 = vmatprep.subr.mxu0 0.0
  %1654 = vmatpush1.msra.mxu0 0.0
  %1655 = vmatprep.subr.mxu0 0.0
  %1656 = vmatpush1.msra.mxu0 0.0
  %1657 = vmatprep.subr.mxu0 0.0
  %1658 = vmatpush1.msra.mxu0 0.0
  %1659 = vmatprep.subr.mxu0 0.0
  %1660 = vmatpush1.msra.mxu0 0.0
  %1661 = vmatprep.subr.mxu0 0.0
  %1662 = vmatpush1.msra.mxu0 0.0
  %1663 = vmatprep.subr.mxu0 0.0
  %1664 = vmatpush1.msra.mxu0 0.0
  %1665 = vmatprep.subr.mxu0 0.0
  %1666 = vmatpush1.msra.mxu0 0.0
  %1667 = vmatprep.subr.mxu0 0.0
  %1668 = vmatpush1.msra.mxu0 0.0
  %1669 = vmatprep.subr.mxu0 0.0
  %1670 = vmatpush1.msra.mxu0 0.0
  %1671 = vmatprep.subr.mxu0 0.0
  %1672 = vmatpush1.msra.mxu0 0.0
  %1673 = vmatprep.subr.mxu0 0.0
  %1674 = vmatpush1.msra.mxu0 0.0
  %1675 = vmatprep.subr.mxu0 0.0
  %1676 = vmatpush1.msra.mxu0 0.0
  %1677 = vmatprep.subr.mxu0 0.0
  %1678 = vmatpush1.msra.mxu0 0.0
  %1679 = vmatprep.subr.mxu0 0.0
  %1680 = vmatpush1.msra.mxu0 0.0
  %1681 = vmatprep.subr.mxu0 0.0
  %1682 = vmatpush1.msra.mxu0 0.0
  %1683 = vmatprep.subr.mxu0 0.0
  %1684 = vmatpush1.msra.mxu0 0.0
  %1685 = vmatprep.subr.mxu0 0.0
  %1686 = vmatpush1.msra.mxu0 0.0
  %1687 = vmatprep.subr.mxu0 0.0
  %1688 = vmatpush1.msra.mxu0 0.0
  %1689 = vmatprep.subr.mxu0 0.0
  %1690 = vmatpush1.msra.mxu0 0.0
  %1691 = vmatprep.subr.mxu0 0.0
  %1692 = vmatpush1.msra.mxu0 0.0
  %1693 = vmatprep.subr.mxu0 0.0
  %1694 = vmatpush1.msra.mxu0 0.0
  %1695 = vmatprep.subr.mxu0 0.0
  %1696 = vmatpush1.msra.mxu0 0.0
  %1697 = vmatprep.subr.mxu0 0.0
  %1698 = vmatpush1.msra.mxu0 0.0
  %1699 = vmatprep.subr.mxu0 0.0
  %1700 = vmatpush1.msra.mxu0 0.0
  %1701 = vmatprep.mubr.f32.mxu0 0.0
  %1702 = vmatmul.mubr.f32.gmra.mrb[0].mxu0 %v1632
  %v1703 = vpop.f32.mrb[0].mxu0
  %v1704 = vadd.f32 0.0, %v1703
  %v1705 = vpop.f32.mrb[0].mxu0
  %1706 = vmatprep.mubr.f32.mxu0 0.0
  %1707 = vmatmul.mubr.f32.gmra.mrb[0].mxu0 %v1635
  %v1708 = vpop.f32.mrb[0].mxu0
  %v1709 = vadd.f32 0.0, %v1708
  %v1710 = vpop.f32.mrb[0].mxu0
  %1711 = vdwg.mxu0
  %v1713 = vsel %vm190, %v1619, 0
  %v1716 = vsel %vm190, %v1620, 0
  %1718 = vmatprep.subr.mxu0 0.0
  %1719 = vmatpush1.msra.mxu0 %v1611
  %1720 = vmatprep.subr.mxu0 0.0
  %1721 = vmatpush1.msra.mxu0 %v1616
  %1722 = vmatprep.subr.mxu0 0.0
  %1723 = vmatpush1.msra.mxu0 0.0
  %1724 = vmatprep.subr.mxu0 0.0
  %1725 = vmatpush1.msra.mxu0 0.0
  %1726 = vmatprep.subr.mxu0 0.0
  %1727 = vmatpush1.msra.mxu0 0.0
  %1728 = vmatprep.subr.mxu0 0.0
  %1729 = vmatpush1.msra.mxu0 0.0
  %1730 = vmatprep.subr.mxu0 0.0
  %1731 = vmatpush1.msra.mxu0 0.0
  %1732 = vmatprep.subr.mxu0 0.0
  %1733 = vmatpush1.msra.mxu0 0.0
  %1734 = vmatprep.subr.mxu0 0.0
  %1735 = vmatpush1.msra.mxu0 0.0
  %1736 = vmatprep.subr.mxu0 0.0
  %1737 = vmatpush1.msra.mxu0 0.0
  %1738 = vmatprep.subr.mxu0 0.0
  %1739 = vmatpush1.msra.mxu0 0.0
  %1740 = vmatprep.subr.mxu0 0.0
  %1741 = vmatpush1.msra.mxu0 0.0
  %1742 = vmatprep.subr.mxu0 0.0
  %1743 = vmatpush1.msra.mxu0 0.0
  %1744 = vmatprep.subr.mxu0 0.0
  %1745 = vmatpush1.msra.mxu0 0.0
  %1746 = vmatprep.subr.mxu0 0.0
  %1747 = vmatpush1.msra.mxu0 0.0
  %1748 = vmatprep.subr.mxu0 0.0
  %1749 = vmatpush1.msra.mxu0 0.0
  %1750 = vmatprep.subr.mxu0 0.0
  %1751 = vmatpush1.msra.mxu0 0.0
  %1752 = vmatprep.subr.mxu0 0.0
  %1753 = vmatpush1.msra.mxu0 0.0
  %1754 = vmatprep.subr.mxu0 0.0
  %1755 = vmatpush1.msra.mxu0 0.0
  %1756 = vmatprep.subr.mxu0 0.0
  %1757 = vmatpush1.msra.mxu0 0.0
  %1758 = vmatprep.subr.mxu0 0.0
  %1759 = vmatpush1.msra.mxu0 0.0
  %1760 = vmatprep.subr.mxu0 0.0
  %1761 = vmatpush1.msra.mxu0 0.0
  %1762 = vmatprep.subr.mxu0 0.0
  %1763 = vmatpush1.msra.mxu0 0.0
  %1764 = vmatprep.subr.mxu0 0.0
  %1765 = vmatpush1.msra.mxu0 0.0
  %1766 = vmatprep.subr.mxu0 0.0
  %1767 = vmatpush1.msra.mxu0 0.0
  %1768 = vmatprep.subr.mxu0 0.0
  %1769 = vmatpush1.msra.mxu0 0.0
  %1770 = vmatprep.subr.mxu0 0.0
  %1771 = vmatpush1.msra.mxu0 0.0
  %1772 = vmatprep.subr.mxu0 0.0
  %1773 = vmatpush1.msra.mxu0 0.0
  %1774 = vmatprep.subr.mxu0 0.0
  %1775 = vmatpush1.msra.mxu0 0.0
  %1776 = vmatprep.subr.mxu0 0.0
  %1777 = vmatpush1.msra.mxu0 0.0
  %1778 = vmatprep.subr.mxu0 0.0
  %1779 = vmatpush1.msra.mxu0 0.0
  %1780 = vmatprep.subr.mxu0 0.0
  %1781 = vmatpush1.msra.mxu0 0.0
  %1782 = vmatprep.mubr.f32.mxu0 0.0
  %1783 = vmatmul.mubr.f32.gmra.mrb[0].mxu0 %v1713
  %v1784 = vpop.f32.mrb[0].mxu0
  %v1785 = vadd.f32 %v1704, %v1784
  %v1786 = vpop.f32.mrb[0].mxu0
  %1787 = vmatprep.mubr.f32.mxu0 0.0
  %1788 = vmatmul.mubr.f32.gmra.mrb[0].mxu0 %v1716
  %v1789 = vpop.f32.mrb[0].mxu0
  %v1790 = vadd.f32 %v1709, %v1789
  %v1791 = vpop.f32.mrb[0].mxu0
  %1792 = vdwg.mxu0
  %1795 = vrot.lane.b32.xlu0 %v1611, 127
  %v1796 = vpop.permute.xlu0 %1795
  %1797 = vrot.lane.b32.xlu0 %v1616, 127
  %v1798 = vpop.permute.xlu0 %1797
  %v1802 = vsel %vm190, %v1625, 0
  %v1805 = vsel %vm190, %v1626, 0
  %1807 = vmatprep.subr.mxu0 0.0
  %1808 = vmatpush1.msra.mxu0 %v1796
  %1809 = vmatprep.subr.mxu0 0.0
  %1810 = vmatpush1.msra.mxu0 %v1798
  %1811 = vmatprep.subr.mxu0 0.0
  %1812 = vmatpush1.msra.mxu0 0.0
  %1813 = vmatprep.subr.mxu0 0.0
  %1814 = vmatpush1.msra.mxu0 0.0
  %1815 = vmatprep.subr.mxu0 0.0
  %1816 = vmatpush1.msra.mxu0 0.0
  %1817 = vmatprep.subr.mxu0 0.0
  %1818 = vmatpush1.msra.mxu0 0.0
  %1819 = vmatprep.subr.mxu0 0.0
  %1820 = vmatpush1.msra.mxu0 0.0
  %1821 = vmatprep.subr.mxu0 0.0
  %1822 = vmatpush1.msra.mxu0 0.0
  %1823 = vmatprep.subr.mxu0 0.0
  %1824 = vmatpush1.msra.mxu0 0.0
  %1825 = vmatprep.subr.mxu0 0.0
  %1826 = vmatpush1.msra.mxu0 0.0
  %1827 = vmatprep.subr.mxu0 0.0
  %1828 = vmatpush1.msra.mxu0 0.0
  %1829 = vmatprep.subr.mxu0 0.0
  %1830 = vmatpush1.msra.mxu0 0.0
  %1831 = vmatprep.subr.mxu0 0.0
  %1832 = vmatpush1.msra.mxu0 0.0
  %1833 = vmatprep.subr.mxu0 0.0
  %1834 = vmatpush1.msra.mxu0 0.0
  %1835 = vmatprep.subr.mxu0 0.0
  %1836 = vmatpush1.msra.mxu0 0.0
  %1837 = vmatprep.subr.mxu0 0.0
  %1838 = vmatpush1.msra.mxu0 0.0
  %1839 = vmatprep.subr.mxu0 0.0
  %1840 = vmatpush1.msra.mxu0 0.0
  %1841 = vmatprep.subr.mxu0 0.0
  %1842 = vmatpush1.msra.mxu0 0.0
  %1843 = vmatprep.subr.mxu0 0.0
  %1844 = vmatpush1.msra.mxu0 0.0
  %1845 = vmatprep.subr.mxu0 0.0
  %1846 = vmatpush1.msra.mxu0 0.0
  %1847 = vmatprep.subr.mxu0 0.0
  %1848 = vmatpush1.msra.mxu0 0.0
  %1849 = vmatprep.subr.mxu0 0.0
  %1850 = vmatpush1.msra.mxu0 0.0
  %1851 = vmatprep.subr.mxu0 0.0
  %1852 = vmatpush1.msra.mxu0 0.0
  %1853 = vmatprep.subr.mxu0 0.0
  %1854 = vmatpush1.msra.mxu0 0.0
  %1855 = vmatprep.subr.mxu0 0.0
  %1856 = vmatpush1.msra.mxu0 0.0
  %1857 = vmatprep.subr.mxu0 0.0
  %1858 = vmatpush1.msra.mxu0 0.0
  %1859 = vmatprep.subr.mxu0 0.0
  %1860 = vmatpush1.msra.mxu0 0.0
  %1861 = vmatprep.subr.mxu0 0.0
  %1862 = vmatpush1.msra.mxu0 0.0
  %1863 = vmatprep.subr.mxu0 0.0
  %1864 = vmatpush1.msra.mxu0 0.0
  %1865 = vmatprep.subr.mxu0 0.0
  %1866 = vmatpush1.msra.mxu0 0.0
  %1867 = vmatprep.subr.mxu0 0.0
  %1868 = vmatpush1.msra.mxu0 0.0
  %1869 = vmatprep.subr.mxu0 0.0
  %1870 = vmatpush1.msra.mxu0 0.0
  %1871 = vmatprep.mubr.f32.mxu0 0.0
  %1872 = vmatmul.mubr.f32.gmra.mrb[0].mxu0 %v1802
  %v1873 = vpop.f32.mrb[0].mxu0
  %v1874 = vadd.f32 0.0, %v1873
  %v1875 = vpop.f32.mrb[0].mxu0
  %1876 = vmatprep.mubr.f32.mxu0 0.0
  %1877 = vmatmul.mubr.f32.gmra.mrb[0].mxu0 %v1805
  %v1878 = vpop.f32.mrb[0].mxu0
  %v1879 = vadd.f32 0.0, %v1878
  %v1880 = vpop.f32.mrb[0].mxu0
  %1881 = vdwg.mxu0
  %v1882 = vadd.f32 %v1785, %v1874
  %v1883 = vadd.f32 %v1790, %v1879
  %1884 = vmatprep.subr.mxu0 0.0
  %1885 = vmatpush1.msra.mxu0 %v1796
  %1886 = vmatprep.subr.mxu0 0.0
  %1887 = vmatpush1.msra.mxu0 %v1798
  %1888 = vmatprep.subr.mxu0 0.0
  %1889 = vmatpush1.msra.mxu0 0.0
  %1890 = vmatprep.subr.mxu0 0.0
  %1891 = vmatpush1.msra.mxu0 0.0
  %1892 = vmatprep.subr.mxu0 0.0
  %1893 = vmatpush1.msra.mxu0 0.0
  %1894 = vmatprep.subr.mxu0 0.0
  %1895 = vmatpush1.msra.mxu0 0.0
  %1896 = vmatprep.subr.mxu0 0.0
  %1897 = vmatpush1.msra.mxu0 0.0
  %1898 = vmatprep.subr.mxu0 0.0
  %1899 = vmatpush1.msra.mxu0 0.0
  %1900 = vmatprep.subr.mxu0 0.0
  %1901 = vmatpush1.msra.mxu0 0.0
  %1902 = vmatprep.subr.mxu0 0.0
  %1903 = vmatpush1.msra.mxu0 0.0
  %1904 = vmatprep.subr.mxu0 0.0
  %1905 = vmatpush1.msra.mxu0 0.0
  %1906 = vmatprep.subr.mxu0 0.0
  %1907 = vmatpush1.msra.mxu0 0.0
  %1908 = vmatprep.subr.mxu0 0.0
  %1909 = vmatpush1.msra.mxu0 0.0
  %1910 = vmatprep.subr.mxu0 0.0
  %1911 = vmatpush1.msra.mxu0 0.0
  %1912 = vmatprep.subr.mxu0 0.0
  %1913 = vmatpush1.msra.mxu0 0.0
  %1914 = vmatprep.subr.mxu0 0.0
  %1915 = vmatpush1.msra.mxu0 0.0
  %1916 = vmatprep.subr.mxu0 0.0
  %1917 = vmatpush1.msra.mxu0 0.0
  %1918 = vmatprep.subr.mxu0 0.0
  %1919 = vmatpush1.msra.mxu0 0.0
  %1920 = vmatprep.subr.mxu0 0.0
  %1921 = vmatpush1.msra.mxu0 0.0
  %1922 = vmatprep.subr.mxu0 0.0
  %1923 = vmatpush1.msra.mxu0 0.0
  %1924 = vmatprep.subr.mxu0 0.0
  %1925 = vmatpush1.msra.mxu0 0.0
  %1926 = vmatprep.subr.mxu0 0.0
  %1927 = vmatpush1.msra.mxu0 0.0
  %1928 = vmatprep.subr.mxu0 0.0
  %1929 = vmatpush1.msra.mxu0 0.0
  %1930 = vmatprep.subr.mxu0 0.0
  %1931 = vmatpush1.msra.mxu0 0.0
  %1932 = vmatprep.subr.mxu0 0.0
  %1933 = vmatpush1.msra.mxu0 0.0
  %1934 = vmatprep.subr.mxu0 0.0
  %1935 = vmatpush1.msra.mxu0 0.0
  %1936 = vmatprep.subr.mxu0 0.0
  %1937 = vmatpush1.msra.mxu0 0.0
  %1938 = vmatprep.subr.mxu0 0.0
  %1939 = vmatpush1.msra.mxu0 0.0
  %1940 = vmatprep.subr.mxu0 0.0
  %1941 = vmatpush1.msra.mxu0 0.0
  %1942 = vmatprep.subr.mxu0 0.0
  %1943 = vmatpush1.msra.mxu0 0.0
  %1944 = vmatprep.subr.mxu0 0.0
  %1945 = vmatpush1.msra.mxu0 0.0
  %1946 = vmatprep.subr.mxu0 0.0
  %1947 = vmatpush1.msra.mxu0 0.0
  %1948 = vmatprep.mubr.f32.mxu0 0.0
  %1949 = vmatmul.mubr.f32.gmra.mrb[0].mxu0 %v1632
  %v1950 = vpop.f32.mrb[0].mxu0
  %v1951 = vadd.f32 0.0, %v1950
  %v1952 = vpop.f32.mrb[0].mxu0
  %1953 = vmatprep.mubr.f32.mxu0 0.0
  %1954 = vmatmul.mubr.f32.gmra.mrb[0].mxu0 %v1635
  %v1955 = vpop.f32.mrb[0].mxu0
  %v1956 = vadd.f32 0.0, %v1955
  %v1957 = vpop.f32.mrb[0].mxu0
  %1958 = vdwg.mxu0
  %1959 = vmatprep.subr.mxu0 0.0
  %1960 = vmatpush1.msra.mxu0 %v1528
  %1961 = vmatprep.subr.mxu0 0.0
  %1962 = vmatpush1.msra.mxu0 %v1533
  %1963 = vmatprep.subr.mxu0 0.0
  %1964 = vmatpush1.msra.mxu0 0.0
  %1965 = vmatprep.subr.mxu0 0.0
  %1966 = vmatpush1.msra.mxu0 0.0
  %1967 = vmatprep.subr.mxu0 0.0
  %1968 = vmatpush1.msra.mxu0 0.0
  %1969 = vmatprep.subr.mxu0 0.0
  %1970 = vmatpush1.msra.mxu0 0.0
  %1971 = vmatprep.subr.mxu0 0.0
  %1972 = vmatpush1.msra.mxu0 0.0
  %1973 = vmatprep.subr.mxu0 0.0
  %1974 = vmatpush1.msra.mxu0 0.0
  %1975 = vmatprep.subr.mxu0 0.0
  %1976 = vmatpush1.msra.mxu0 0.0
  %1977 = vmatprep.subr.mxu0 0.0
  %1978 = vmatpush1.msra.mxu0 0.0
  %1979 = vmatprep.subr.mxu0 0.0
  %1980 = vmatpush1.msra.mxu0 0.0
  %1981 = vmatprep.subr.mxu0 0.0
  %1982 = vmatpush1.msra.mxu0 0.0
  %1983 = vmatprep.subr.mxu0 0.0
  %1984 = vmatpush1.msra.mxu0 0.0
  %1985 = vmatprep.subr.mxu0 0.0
  %1986 = vmatpush1.msra.mxu0 0.0
  %1987 = vmatprep.subr.mxu0 0.0
  %1988 = vmatpush1.msra.mxu0 0.0
  %1989 = vmatprep.subr.mxu0 0.0
  %1990 = vmatpush1.msra.mxu0 0.0
  %1991 = vmatprep.subr.mxu0 0.0
  %1992 = vmatpush1.msra.mxu0 0.0
  %1993 = vmatprep.subr.mxu0 0.0
  %1994 = vmatpush1.msra.mxu0 0.0
  %1995 = vmatprep.subr.mxu0 0.0
  %1996 = vmatpush1.msra.mxu0 0.0
  %1997 = vmatprep.subr.mxu0 0.0
  %1998 = vmatpush1.msra.mxu0 0.0
  %1999 = vmatprep.subr.mxu0 0.0
  %2000 = vmatpush1.msra.mxu0 0.0
  %2001 = vmatprep.subr.mxu0 0.0
  %2002 = vmatpush1.msra.mxu0 0.0
  %2003 = vmatprep.subr.mxu0 0.0
  %2004 = vmatpush1.msra.mxu0 0.0
  %2005 = vmatprep.subr.mxu0 0.0
  %2006 = vmatpush1.msra.mxu0 0.0
  %2007 = vmatprep.subr.mxu0 0.0
  %2008 = vmatpush1.msra.mxu0 0.0
  %2009 = vmatprep.subr.mxu0 0.0
  %2010 = vmatpush1.msra.mxu0 0.0
  %2011 = vmatprep.subr.mxu0 0.0
  %2012 = vmatpush1.msra.mxu0 0.0
  %2013 = vmatprep.subr.mxu0 0.0
  %2014 = vmatpush1.msra.mxu0 0.0
  %2015 = vmatprep.subr.mxu0 0.0
  %2016 = vmatpush1.msra.mxu0 0.0
  %2017 = vmatprep.subr.mxu0 0.0
  %2018 = vmatpush1.msra.mxu0 0.0
  %2019 = vmatprep.subr.mxu0 0.0
  %2020 = vmatpush1.msra.mxu0 0.0
  %2021 = vmatprep.subr.mxu0 0.0
  %2022 = vmatpush1.msra.mxu0 0.0
  %2023 = vmatprep.mubr.f32.mxu0 0.0
  %2024 = vmatmul.mubr.f32.gmra.mrb[0].mxu0 %v1713
  %v2025 = vpop.f32.mrb[0].mxu0
  %v2026 = vadd.f32 %v1951, %v2025
  %v2027 = vpop.f32.mrb[0].mxu0
  %2028 = vmatprep.mubr.f32.mxu0 0.0
  %2029 = vmatmul.mubr.f32.gmra.mrb[0].mxu0 %v1716
  %v2030 = vpop.f32.mrb[0].mxu0
  %v2031 = vadd.f32 %v1956, %v2030
  %v2032 = vpop.f32.mrb[0].mxu0
  %2033 = vdwg.mxu0
  %2036 = vrot.lane.b32.xlu0 %v1528, 127
  %v2037 = vpop.permute.xlu0 %2036
  %2038 = vrot.lane.b32.xlu0 %v1533, 127
  %v2039 = vpop.permute.xlu0 %2038
  %2042 = vmatprep.subr.mxu0 0.0
  %2043 = vmatpush1.msra.mxu0 %v2037
  %2044 = vmatprep.subr.mxu0 0.0
  %2045 = vmatpush1.msra.mxu0 %v2039
  %2046 = vmatprep.subr.mxu0 0.0
  %2047 = vmatpush1.msra.mxu0 0.0
  %2048 = vmatprep.subr.mxu0 0.0
  %2049 = vmatpush1.msra.mxu0 0.0
  %2050 = vmatprep.subr.mxu0 0.0
  %2051 = vmatpush1.msra.mxu0 0.0
  %2052 = vmatprep.subr.mxu0 0.0
  %2053 = vmatpush1.msra.mxu0 0.0
  %2054 = vmatprep.subr.mxu0 0.0
  %2055 = vmatpush1.msra.mxu0 0.0
  %2056 = vmatprep.subr.mxu0 0.0
  %2057 = vmatpush1.msra.mxu0 0.0
  %2058 = vmatprep.subr.mxu0 0.0
  %2059 = vmatpush1.msra.mxu0 0.0
  %2060 = vmatprep.subr.mxu0 0.0
  %2061 = vmatpush1.msra.mxu0 0.0
  %2062 = vmatprep.subr.mxu0 0.0
  %2063 = vmatpush1.msra.mxu0 0.0
  %2064 = vmatprep.subr.mxu0 0.0
  %2065 = vmatpush1.msra.mxu0 0.0
  %2066 = vmatprep.subr.mxu0 0.0
  %2067 = vmatpush1.msra.mxu0 0.0
  %2068 = vmatprep.subr.mxu0 0.0
  %2069 = vmatpush1.msra.mxu0 0.0
  %2070 = vmatprep.subr.mxu0 0.0
  %2071 = vmatpush1.msra.mxu0 0.0
  %2072 = vmatprep.subr.mxu0 0.0
  %2073 = vmatpush1.msra.mxu0 0.0
  %2074 = vmatprep.subr.mxu0 0.0
  %2075 = vmatpush1.msra.mxu0 0.0
  %2076 = vmatprep.subr.mxu0 0.0
  %2077 = vmatpush1.msra.mxu0 0.0
  %2078 = vmatprep.subr.mxu0 0.0
  %2079 = vmatpush1.msra.mxu0 0.0
  %2080 = vmatprep.subr.mxu0 0.0
  %2081 = vmatpush1.msra.mxu0 0.0
  %2082 = vmatprep.subr.mxu0 0.0
  %2083 = vmatpush1.msra.mxu0 0.0
  %2084 = vmatprep.subr.mxu0 0.0
  %2085 = vmatpush1.msra.mxu0 0.0
  %2086 = vmatprep.subr.mxu0 0.0
  %2087 = vmatpush1.msra.mxu0 0.0
  %2088 = vmatprep.subr.mxu0 0.0
  %2089 = vmatpush1.msra.mxu0 0.0
  %2090 = vmatprep.subr.mxu0 0.0
  %2091 = vmatpush1.msra.mxu0 0.0
  %2092 = vmatprep.subr.mxu0 0.0
  %2093 = vmatpush1.msra.mxu0 0.0
  %2094 = vmatprep.subr.mxu0 0.0
  %2095 = vmatpush1.msra.mxu0 0.0
  %2096 = vmatprep.subr.mxu0 0.0
  %2097 = vmatpush1.msra.mxu0 0.0
  %2098 = vmatprep.subr.mxu0 0.0
  %2099 = vmatpush1.msra.mxu0 0.0
  %2100 = vmatprep.subr.mxu0 0.0
  %2101 = vmatpush1.msra.mxu0 0.0
  %2102 = vmatprep.subr.mxu0 0.0
  %2103 = vmatpush1.msra.mxu0 0.0
  %2104 = vmatprep.subr.mxu0 0.0
  %2105 = vmatpush1.msra.mxu0 0.0
  %2106 = vmatprep.mubr.f32.mxu0 0.0
  %2107 = vmatmul.mubr.f32.gmra.mrb[0].mxu0 %v1802
  %v2108 = vpop.f32.mrb[0].mxu0
  %v2109 = vadd.f32 0.0, %v2108
  %v2110 = vpop.f32.mrb[0].mxu0
  %2111 = vmatprep.mubr.f32.mxu0 0.0
  %2112 = vmatmul.mubr.f32.gmra.mrb[0].mxu0 %v1805
  %v2113 = vpop.f32.mrb[0].mxu0
  %v2114 = vadd.f32 0.0, %v2113
  %v2115 = vpop.f32.mrb[0].mxu0
  %2116 = vdwg.mxu0
  %v2117 = vadd.f32 %v2026, %v2109
  %v2118 = vadd.f32 %v2031, %v2114
  %2120 = vset.pattern.permute.xlu0 0
  %2121 = vperm.xlu0 %2120, %v1627
  %v2122 = vpop.permute.xlu0 %2121
  %2125 = vset.pattern.permute.xlu0 0
  %2126 = vperm.xlu0 %2125, %v1628
  %v2127 = vpop.permute.xlu0 %2126
  %v2129 = vmul.f32 %v1882, %v2122
  %v2130 = vmul.f32 %v1883, %v2127
  %2132 = vset.pattern.permute.xlu0 0
  %2133 = vperm.xlu0 %2132, %v1629
  %v2134 = vpop.permute.xlu0 %2133
  %2137 = vset.pattern.permute.xlu0 0
  %2138 = vperm.xlu0 %2137, %v1630
  %v2139 = vpop.permute.xlu0 %2138
  %v2141 = vadd.f32 %v2129, %v2134
  %v2142 = vadd.f32 %v2130, %v2139
  %v2143 = vmax.f32 %v2141, 0.0
  %v2144 = vmax.f32 %v2142, 0.0
  %v2145 = vmul.f32 %v2117, %v2122
  %v2146 = vmul.f32 %v2118, %v2127
  %v2147 = vadd.f32 %v2145, %v2134
  %v2148 = vadd.f32 %v2146, %v2139
  %v2149 = vmax.f32 %v2147, 0.0
  %v2150 = vmax.f32 %v2148, 0.0
  %v2151 = vmax.f32 %v2143, %v2149
  %v2152 = vmax.f32 %v2144, %v2150
  %v2153 = vld [vmem:[%s57] sm:$0xff]
  %v2154 = vld [vmem:[%s57 + $0x8] sm:$0xff]
  %v2155 = vld [vmem:[%s57 + $0x10] sm:$0xff]
  %v2156 = vld [vmem:[%s57 + $0x18] sm:$0xff]
  %vm2157 = vcmask 261120
  %v2159 = vsel %vm2157, %v2151, 0
  %v2162 = vsel %vm2157, %v2152, 0
  %2164 = vmatprep.subr.mxu0 0.0
  %2165 = vmatpush1.msra.mxu0 %v2153
  %2166 = vmatprep.subr.mxu0 0.0
  %2167 = vmatpush1.msra.mxu0 %v2154
  %2168 = vmatprep.subr.mxu0 0.0
  %2169 = vmatpush1.msra.mxu0 %v2155
  %2170 = vmatprep.subr.mxu0 0.0
  %2171 = vmatpush1.msra.mxu0 %v2156
  %2172 = vmatprep.subr.mxu0 0.0
  %2173 = vmatpush1.msra.mxu0 0.0
  %2174 = vmatprep.subr.mxu0 0.0
  %2175 = vmatpush1.msra.mxu0 0.0
  %2176 = vmatprep.subr.mxu0 0.0
  %2177 = vmatpush1.msra.mxu0 0.0
  %2178 = vmatprep.subr.mxu0 0.0
  %2179 = vmatpush1.msra.mxu0 0.0
  %2180 = vmatprep.subr.mxu0 0.0
  %2181 = vmatpush1.msra.mxu0 0.0
  %2182 = vmatprep.subr.mxu0 0.0
  %2183 = vmatpush1.msra.mxu0 0.0
  %2184 = vmatprep.subr.mxu0 0.0
  %2185 = vmatpush1.msra.mxu0 0.0
  %2186 = vmatprep.subr.mxu0 0.0
  %2187 = vmatpush1.msra.mxu0 0.0
  %2188 = vmatprep.subr.mxu0 0.0
  %2189 = vmatpush1.msra.mxu0 0.0
  %2190 = vmatprep.subr.mxu0 0.0
  %2191 = vmatpush1.msra.mxu0 0.0
  %2192 = vmatprep.subr.mxu0 0.0
  %2193 = vmatpush1.msra.mxu0 0.0
  %2194 = vmatprep.subr.mxu0 0.0
  %2195 = vmatpush1.msra.mxu0 0.0
  %2196 = vmatprep.subr.mxu0 0.0
  %2197 = vmatpush1.msra.mxu0 0.0
  %2198 = vmatprep.subr.mxu0 0.0
  %2199 = vmatpush1.msra.mxu0 0.0
  %2200 = vmatprep.subr.mxu0 0.0
  %2201 = vmatpush1.msra.mxu0 0.0
  %2202 = vmatprep.subr.mxu0 0.0
  %2203 = vmatpush1.msra.mxu0 0.0
  %2204 = vmatprep.subr.mxu0 0.0
  %2205 = vmatpush1.msra.mxu0 0.0
  %2206 = vmatprep.subr.mxu0 0.0
  %2207 = vmatpush1.msra.mxu0 0.0
  %2208 = vmatprep.subr.mxu0 0.0
  %2209 = vmatpush1.msra.mxu0 0.0
  %2210 = vmatprep.subr.mxu0 0.0
  %2211 = vmatpush1.msra.mxu0 0.0
  %2212 = vmatprep.subr.mxu0 0.0
  %2213 = vmatpush1.msra.mxu0 0.0
  %2214 = vmatprep.subr.mxu0 0.0
  %2215 = vmatpush1.msra.mxu0 0.0
  %2216 = vmatprep.subr.mxu0 0.0
  %2217 = vmatpush1.msra.mxu0 0.0
  %2218 = vmatprep.subr.mxu0 0.0
  %2219 = vmatpush1.msra.mxu0 0.0
  %2220 = vmatprep.subr.mxu0 0.0
  %2221 = vmatpush1.msra.mxu0 0.0
  %2222 = vmatprep.subr.mxu0 0.0
  %2223 = vmatpush1.msra.mxu0 0.0
  %2224 = vmatprep.subr.mxu0 0.0
  %2225 = vmatpush1.msra.mxu0 0.0
  %2226 = vmatprep.subr.mxu0 0.0
  %2227 = vmatpush1.msra.mxu0 0.0
  %2228 = vmatprep.mubr.f32.mxu0 0.0
  %2229 = vmatmul.mubr.f32.gmra.mrb[0].mxu0 %v2159
  %v2230 = vpop.f32.mrb[0].mxu0
  %v2231 = vadd.f32 0.0, %v2230
  %v2232 = vpop.f32.mrb[0].mxu0
  %2233 = vmatprep.mubr.f32.mxu0 0.0
  %2234 = vmatmul.mubr.f32.gmra.mrb[0].mxu0 %v2162
  %v2235 = vpop.f32.mrb[0].mxu0
  %v2236 = vadd.f32 0.0, %v2235
  %v2237 = vpop.f32.mrb[0].mxu0
  %2238 = vdwg.mxu0
  %v2239 = vld [vmem:[%s59] sm:$0xff]
  %v2240 = vld [vmem:[%s59 + $0x8] sm:$0xff]
  %v2241 = vld [vmem:[%s59 + $0x10] sm:$0xff]
  %v2242 = vld [vmem:[%s59 + $0x18] sm:$0xff]
  %2243 = vmatprep.subr.mxu0 0.0
  %2244 = vmatpush1.msra.mxu0 %v2239
  %2245 = vmatprep.subr.mxu0 0.0
  %2246 = vmatpush1.msra.mxu0 %v2240
  %2247 = vmatprep.subr.mxu0 0.0
  %2248 = vmatpush1.msra.mxu0 %v2241
  %2249 = vmatprep.subr.mxu0 0.0
  %2250 = vmatpush1.msra.mxu0 %v2242
  %2251 = vmatprep.subr.mxu0 0.0
  %2252 = vmatpush1.msra.mxu0 0.0
  %2253 = vmatprep.subr.mxu0 0.0
  %2254 = vmatpush1.msra.mxu0 0.0
  %2255 = vmatprep.subr.mxu0 0.0
  %2256 = vmatpush1.msra.mxu0 0.0
  %2257 = vmatprep.subr.mxu0 0.0
  %2258 = vmatpush1.msra.mxu0 0.0
  %2259 = vmatprep.subr.mxu0 0.0
  %2260 = vmatpush1.msra.mxu0 0.0
  %2261 = vmatprep.subr.mxu0 0.0
  %2262 = vmatpush1.msra.mxu0 0.0
  %2263 = vmatprep.subr.mxu0 0.0
  %2264 = vmatpush1.msra.mxu0 0.0
  %2265 = vmatprep.subr.mxu0 0.0
  %2266 = vmatpush1.msra.mxu0 0.0
  %2267 = vmatprep.subr.mxu0 0.0
  %2268 = vmatpush1.msra.mxu0 0.0
  %2269 = vmatprep.subr.mxu0 0.0
  %2270 = vmatpush1.msra.mxu0 0.0
  %2271 = vmatprep.subr.mxu0 0.0
  %2272 = vmatpush1.msra.mxu0 0.0
  %2273 = vmatprep.subr.mxu0 0.0
  %2274 = vmatpush1.msra.mxu0 0.0
  %2275 = vmatprep.subr.mxu0 0.0
  %2276 = vmatpush1.msra.mxu0 0.0
  %2277 = vmatprep.subr.mxu0 0.0
  %2278 = vmatpush1.msra.mxu0 0.0
  %2279 = vmatprep.subr.mxu0 0.0
  %2280 = vmatpush1.msra.mxu0 0.0
  %2281 = vmatprep.subr.mxu0 0.0
  %2282 = vmatpush1.msra.mxu0 0.0
  %2283 = vmatprep.subr.mxu0 0.0
  %2284 = vmatpush1.msra.mxu0 0.0
  %2285 = vmatprep.subr.mxu0 0.0
  %2286 = vmatpush1.msra.mxu0 0.0
  %2287 = vmatprep.subr.mxu0 0.0
  %2288 = vmatpush1.msra.mxu0 0.0
  %2289 = vmatprep.subr.mxu0 0.0
  %2290 = vmatpush1.msra.mxu0 0.0
  %2291 = vmatprep.subr.mxu0 0.0
  %2292 = vmatpush1.msra.mxu0 0.0
  %2293 = vmatprep.subr.mxu0 0.0
  %2294 = vmatpush1.msra.mxu0 0.0
  %2295 = vmatprep.subr.mxu0 0.0
  %2296 = vmatpush1.msra.mxu0 0.0
  %2297 = vmatprep.subr.mxu0 0.0
  %2298 = vmatpush1.msra.mxu0 0.0
  %2299 = vmatprep.subr.mxu0 0.0
  %2300 = vmatpush1.msra.mxu0 0.0
  %2301 = vmatprep.subr.mxu0 0.0
  %2302 = vmatpush1.msra.mxu0 0.0
  %2303 = vmatprep.subr.mxu0 0.0
  %2304 = vmatpush1.msra.mxu0 0.0
  %2305 = vmatprep.subr.mxu0 0.0
  %2306 = vmatpush1.msra.mxu0 0.0
  %2307 = vmatprep.mubr.f32.mxu0 0.0
  %2308 = vmatmul.mubr.f32.gmra.mrb[0].mxu0 %v2159
  %v2309 = vpop.f32.mrb[0].mxu0
  %v2310 = vadd.f32 0.0, %v2309
  %v2311 = vpop.f32.mrb[0].mxu0
  %2312 = vmatprep.mubr.f32.mxu0 0.0
  %2313 = vmatmul.mubr.f32.gmra.mrb[0].mxu0 %v2162
  %v2314 = vpop.f32.mrb[0].mxu0
  %v2315 = vadd.f32 0.0, %v2314
  %v2316 = vpop.f32.mrb[0].mxu0
  %2317 = vdwg.mxu0
  %v2318 = vld [vmem:[%s25] sm:$0xff]
  %v2319 = vld [vmem:[%s25 + $0x8] sm:$0xff]
  %s2320 = scalar_lea.vmem %s25, 16
  %v2321 = vld [vmem:[%s2320] sm:$0xff]
  %v2322 = vld [vmem:[%s2320 + $0x8] sm:$0xff]
  %s2323 = scalar_lea.vmem %s25, 32
  %v2324 = vld [vmem:[%s2323] sm:$0xff]
  %v2325 = vld [vmem:[%s2323 + $0x8] sm:$0xff]
  %v2326 = vld [vmem:[%s27] sm:$0xff]
  %v2327 = vld [vmem:[%s27 + $0x8] sm:$0xff]
  %v2328 = vld [vmem:[%s29] sm:$0xff]
  %v2329 = vld [vmem:[%s29 + $0x8] sm:$0xff]
  %v2331 = vsel %vm190, %v2321, 0
  %v2334 = vsel %vm190, %v2322, 0
  %2336 = vmatprep.subr.mxu0 0.0
  %2337 = vmatpush1.msra.mxu0 %v2231
  %2338 = vmatprep.subr.mxu0 0.0
  %2339 = vmatpush1.msra.mxu0 %v2236
  %2340 = vmatprep.subr.mxu0 0.0
  %2341 = vmatpush1.msra.mxu0 0.0
  %2342 = vmatprep.subr.mxu0 0.0
  %2343 = vmatpush1.msra.mxu0 0.0
  %2344 = vmatprep.subr.mxu0 0.0
  %2345 = vmatpush1.msra.mxu0 0.0
  %2346 = vmatprep.subr.mxu0 0.0
  %2347 = vmatpush1.msra.mxu0 0.0
  %2348 = vmatprep.subr.mxu0 0.0
  %2349 = vmatpush1.msra.mxu0 0.0
  %2350 = vmatprep.subr.mxu0 0.0
  %2351 = vmatpush1.msra.mxu0 0.0
  %2352 = vmatprep.subr.mxu0 0.0
  %2353 = vmatpush1.msra.mxu0 0.0
  %2354 = vmatprep.subr.mxu0 0.0
  %2355 = vmatpush1.msra.mxu0 0.0
  %2356 = vmatprep.subr.mxu0 0.0
  %2357 = vmatpush1.msra.mxu0 0.0
  %2358 = vmatprep.subr.mxu0 0.0
  %2359 = vmatpush1.msra.mxu0 0.0
  %2360 = vmatprep.subr.mxu0 0.0
  %2361 = vmatpush1.msra.mxu0 0.0
  %2362 = vmatprep.subr.mxu0 0.0
  %2363 = vmatpush1.msra.mxu0 0.0
  %2364 = vmatprep.subr.mxu0 0.0
  %2365 = vmatpush1.msra.mxu0 0.0
  %2366 = vmatprep.subr.mxu0 0.0
  %2367 = vmatpush1.msra.mxu0 0.0
  %2368 = vmatprep.subr.mxu0 0.0
  %2369 = vmatpush1.msra.mxu0 0.0
  %2370 = vmatprep.subr.mxu0 0.0
  %2371 = vmatpush1.msra.mxu0 0.0
  %2372 = vmatprep.subr.mxu0 0.0
  %2373 = vmatpush1.msra.mxu0 0.0
  %2374 = vmatprep.subr.mxu0 0.0
  %2375 = vmatpush1.msra.mxu0 0.0
  %2376 = vmatprep.subr.mxu0 0.0
  %2377 = vmatpush1.msra.mxu0 0.0
  %2378 = vmatprep.subr.mxu0 0.0
  %2379 = vmatpush1.msra.mxu0 0.0
  %2380 = vmatprep.subr.mxu0 0.0
  %2381 = vmatpush1.msra.mxu0 0.0
  %2382 = vmatprep.subr.mxu0 0.0
  %2383 = vmatpush1.msra.mxu0 0.0
  %2384 = vmatprep.subr.mxu0 0.0
  %2385 = vmatpush1.msra.mxu0 0.0
  %2386 = vmatprep.subr.mxu0 0.0
  %2387 = vmatpush1.msra.mxu0 0.0
  %2388 = vmatprep.subr.mxu0 0.0
  %2389 = vmatpush1.msra.mxu0 0.0
  %2390 = vmatprep.subr.mxu0 0.0
  %2391 = vmatpush1.msra.mxu0 0.0
  %2392 = vmatprep.subr.mxu0 0.0
  %2393 = vmatpush1.msra.mxu0 0.0
  %2394 = vmatprep.subr.mxu0 0.0
  %2395 = vmatpush1.msra.mxu0 0.0
  %2396 = vmatprep.subr.mxu0 0.0
  %2397 = vmatpush1.msra.mxu0 0.0
  %2398 = vmatprep.subr.mxu0 0.0
  %2399 = vmatpush1.msra.mxu0 0.0
  %2400 = vmatprep.mubr.f32.mxu0 0.0
  %2401 = vmatmul.mubr.f32.gmra.mrb[0].mxu0 %v2331
  %v2402 = vpop.f32.mrb[0].mxu0
  %v2403 = vadd.f32 0.0, %v2402
  %v2404 = vpop.f32.mrb[0].mxu0
  %2405 = vmatprep.mubr.f32.mxu0 0.0
  %2406 = vmatmul.mubr.f32.gmra.mrb[0].mxu0 %v2334
  %v2407 = vpop.f32.mrb[0].mxu0
  %v2408 = vadd.f32 0.0, %v2407
  %v2409 = vpop.f32.mrb[0].mxu0
  %2410 = vdwg.mxu0
  %v2412 = vsel %vm190, %v2318, 0
  %v2415 = vsel %vm190, %v2319, 0
  %2417 = vmatprep.subr.mxu0 0.0
  %2418 = vmatpush1.msra.mxu0 %v2310
  %2419 = vmatprep.subr.mxu0 0.0
  %2420 = vmatpush1.msra.mxu0 %v2315
  %2421 = vmatprep.subr.mxu0 0.0
  %2422 = vmatpush1.msra.mxu0 0.0
  %2423 = vmatprep.subr.mxu0 0.0
  %2424 = vmatpush1.msra.mxu0 0.0
  %2425 = vmatprep.subr.mxu0 0.0
  %2426 = vmatpush1.msra.mxu0 0.0
  %2427 = vmatprep.subr.mxu0 0.0
  %2428 = vmatpush1.msra.mxu0 0.0
  %2429 = vmatprep.subr.mxu0 0.0
  %2430 = vmatpush1.msra.mxu0 0.0
  %2431 = vmatprep.subr.mxu0 0.0
  %2432 = vmatpush1.msra.mxu0 0.0
  %2433 = vmatprep.subr.mxu0 0.0
  %2434 = vmatpush1.msra.mxu0 0.0
  %2435 = vmatprep.subr.mxu0 0.0
  %2436 = vmatpush1.msra.mxu0 0.0
  %2437 = vmatprep.subr.mxu0 0.0
  %2438 = vmatpush1.msra.mxu0 0.0
  %2439 = vmatprep.subr.mxu0 0.0
  %2440 = vmatpush1.msra.mxu0 0.0
  %2441 = vmatprep.subr.mxu0 0.0
  %2442 = vmatpush1.msra.mxu0 0.0
  %2443 = vmatprep.subr.mxu0 0.0
  %2444 = vmatpush1.msra.mxu0 0.0
  %2445 = vmatprep.subr.mxu0 0.0
  %2446 = vmatpush1.msra.mxu0 0.0
  %2447 = vmatprep.subr.mxu0 0.0
  %2448 = vmatpush1.msra.mxu0 0.0
  %2449 = vmatprep.subr.mxu0 0.0
  %2450 = vmatpush1.msra.mxu0 0.0
  %2451 = vmatprep.subr.mxu0 0.0
  %2452 = vmatpush1.msra.mxu0 0.0
  %2453 = vmatprep.subr.mxu0 0.0
  %2454 = vmatpush1.msra.mxu0 0.0
  %2455 = vmatprep.subr.mxu0 0.0
  %2456 = vmatpush1.msra.mxu0 0.0
  %2457 = vmatprep.subr.mxu0 0.0
  %2458 = vmatpush1.msra.mxu0 0.0
  %2459 = vmatprep.subr.mxu0 0.0
  %2460 = vmatpush1.msra.mxu0 0.0
  %2461 = vmatprep.subr.mxu0 0.0
  %2462 = vmatpush1.msra.mxu0 0.0
  %2463 = vmatprep.subr.mxu0 0.0
  %2464 = vmatpush1.msra.mxu0 0.0
  %2465 = vmatprep.subr.mxu0 0.0
  %2466 = vmatpush1.msra.mxu0 0.0
  %2467 = vmatprep.subr.mxu0 0.0
  %2468 = vmatpush1.msra.mxu0 0.0
  %2469 = vmatprep.subr.mxu0 0.0
  %2470 = vmatpush1.msra.mxu0 0.0
  %2471 = vmatprep.subr.mxu0 0.0
  %2472 = vmatpush1.msra.mxu0 0.0
  %2473 = vmatprep.subr.mxu0 0.0
  %2474 = vmatpush1.msra.mxu0 0.0
  %2475 = vmatprep.subr.mxu0 0.0
  %2476 = vmatpush1.msra.mxu0 0.0
  %2477 = vmatprep.subr.mxu0 0.0
  %2478 = vmatpush1.msra.mxu0 0.0
  %2479 = vmatprep.subr.mxu0 0.0
  %2480 = vmatpush1.msra.mxu0 0.0
  %2481 = vmatprep.mubr.f32.mxu0 0.0
  %2482 = vmatmul.mubr.f32.gmra.mrb[0].mxu0 %v2412
  %v2483 = vpop.f32.mrb[0].mxu0
  %v2484 = vadd.f32 %v2403, %v2483
  %v2485 = vpop.f32.mrb[0].mxu0
  %2486 = vmatprep.mubr.f32.mxu0 0.0
  %2487 = vmatmul.mubr.f32.gmra.mrb[0].mxu0 %v2415
  %v2488 = vpop.f32.mrb[0].mxu0
  %v2489 = vadd.f32 %v2408, %v2488
  %v2490 = vpop.f32.mrb[0].mxu0
  %2491 = vdwg.mxu0
  %2494 = vrot.lane.b32.xlu0 %v2310, 127
  %v2495 = vpop.permute.xlu0 %2494
  %2496 = vrot.lane.b32.xlu0 %v2315, 127
  %v2497 = vpop.permute.xlu0 %2496
  %v2501 = vsel %vm190, %v2324, 0
  %v2504 = vsel %vm190, %v2325, 0
  %2506 = vmatprep.subr.mxu0 0.0
  %2507 = vmatpush1.msra.mxu0 %v2495
  %2508 = vmatprep.subr.mxu0 0.0
  %2509 = vmatpush1.msra.mxu0 %v2497
  %2510 = vmatprep.subr.mxu0 0.0
  %2511 = vmatpush1.msra.mxu0 0.0
  %2512 = vmatprep.subr.mxu0 0.0
  %2513 = vmatpush1.msra.mxu0 0.0
  %2514 = vmatprep.subr.mxu0 0.0
  %2515 = vmatpush1.msra.mxu0 0.0
  %2516 = vmatprep.subr.mxu0 0.0
  %2517 = vmatpush1.msra.mxu0 0.0
  %2518 = vmatprep.subr.mxu0 0.0
  %2519 = vmatpush1.msra.mxu0 0.0
  %2520 = vmatprep.subr.mxu0 0.0
  %2521 = vmatpush1.msra.mxu0 0.0
  %2522 = vmatprep.subr.mxu0 0.0
  %2523 = vmatpush1.msra.mxu0 0.0
  %2524 = vmatprep.subr.mxu0 0.0
  %2525 = vmatpush1.msra.mxu0 0.0
  %2526 = vmatprep.subr.mxu0 0.0
  %2527 = vmatpush1.msra.mxu0 0.0
  %2528 = vmatprep.subr.mxu0 0.0
  %2529 = vmatpush1.msra.mxu0 0.0
  %2530 = vmatprep.subr.mxu0 0.0
  %2531 = vmatpush1.msra.mxu0 0.0
  %2532 = vmatprep.subr.mxu0 0.0
  %2533 = vmatpush1.msra.mxu0 0.0
  %2534 = vmatprep.subr.mxu0 0.0
  %2535 = vmatpush1.msra.mxu0 0.0
  %2536 = vmatprep.subr.mxu0 0.0
  %2537 = vmatpush1.msra.mxu0 0.0
  %2538 = vmatprep.subr.mxu0 0.0
  %2539 = vmatpush1.msra.mxu0 0.0
  %2540 = vmatprep.subr.mxu0 0.0
  %2541 = vmatpush1.msra.mxu0 0.0
  %2542 = vmatprep.subr.mxu0 0.0
  %2543 = vmatpush1.msra.mxu0 0.0
  %2544 = vmatprep.subr.mxu0 0.0
  %2545 = vmatpush1.msra.mxu0 0.0
  %2546 = vmatprep.subr.mxu0 0.0
  %2547 = vmatpush1.msra.mxu0 0.0
  %2548 = vmatprep.subr.mxu0 0.0
  %2549 = vmatpush1.msra.mxu0 0.0
  %2550 = vmatprep.subr.mxu0 0.0
  %2551 = vmatpush1.msra.mxu0 0.0
  %2552 = vmatprep.subr.mxu0 0.0
  %2553 = vmatpush1.msra.mxu0 0.0
  %2554 = vmatprep.subr.mxu0 0.0
  %2555 = vmatpush1.msra.mxu0 0.0
  %2556 = vmatprep.subr.mxu0 0.0
  %2557 = vmatpush1.msra.mxu0 0.0
  %2558 = vmatprep.subr.mxu0 0.0
  %2559 = vmatpush1.msra.mxu0 0.0
  %2560 = vmatprep.subr.mxu0 0.0
  %2561 = vmatpush1.msra.mxu0 0.0
  %2562 = vmatprep.subr.mxu0 0.0
  %2563 = vmatpush1.msra.mxu0 0.0
  %2564 = vmatprep.subr.mxu0 0.0
  %2565 = vmatpush1.msra.mxu0 0.0
  %2566 = vmatprep.subr.mxu0 0.0
  %2567 = vmatpush1.msra.mxu0 0.0
  %2568 = vmatprep.subr.mxu0 0.0
  %2569 = vmatpush1.msra.mxu0 0.0
  %2570 = vmatprep.mubr.f32.mxu0 0.0
  %2571 = vmatmul.mubr.f32.gmra.mrb[0].mxu0 %v2501
  %v2572 = vpop.f32.mrb[0].mxu0
  %v2573 = vadd.f32 0.0, %v2572
  %v2574 = vpop.f32.mrb[0].mxu0
  %2575 = vmatprep.mubr.f32.mxu0 0.0
  %2576 = vmatmul.mubr.f32.gmra.mrb[0].mxu0 %v2504
  %v2577 = vpop.f32.mrb[0].mxu0
  %v2578 = vadd.f32 0.0, %v2577
  %v2579 = vpop.f32.mrb[0].mxu0
  %2580 = vdwg.mxu0
  %v2581 = vadd.f32 %v2484, %v2573
  %v2582 = vadd.f32 %v2489, %v2578
  %2583 = vmatprep.subr.mxu0 0.0
  %2584 = vmatpush1.msra.mxu0 %v2495
  %2585 = vmatprep.subr.mxu0 0.0
  %2586 = vmatpush1.msra.mxu0 %v2497
  %2587 = vmatprep.subr.mxu0 0.0
  %2588 = vmatpush1.msra.mxu0 0.0
  %2589 = vmatprep.subr.mxu0 0.0
  %2590 = vmatpush1.msra.mxu0 0.0
  %2591 = vmatprep.subr.mxu0 0.0
  %2592 = vmatpush1.msra.mxu0 0.0
  %2593 = vmatprep.subr.mxu0 0.0
  %2594 = vmatpush1.msra.mxu0 0.0
  %2595 = vmatprep.subr.mxu0 0.0
  %2596 = vmatpush1.msra.mxu0 0.0
  %2597 = vmatprep.subr.mxu0 0.0
  %2598 = vmatpush1.msra.mxu0 0.0
  %2599 = vmatprep.subr.mxu0 0.0
  %2600 = vmatpush1.msra.mxu0 0.0
  %2601 = vmatprep.subr.mxu0 0.0
  %2602 = vmatpush1.msra.mxu0 0.0
  %2603 = vmatprep.subr.mxu0 0.0
  %2604 = vmatpush1.msra.mxu0 0.0
  %2605 = vmatprep.subr.mxu0 0.0
  %2606 = vmatpush1.msra.mxu0 0.0
  %2607 = vmatprep.subr.mxu0 0.0
  %2608 = vmatpush1.msra.mxu0 0.0
  %2609 = vmatprep.subr.mxu0 0.0
  %2610 = vmatpush1.msra.mxu0 0.0
  %2611 = vmatprep.subr.mxu0 0.0
  %2612 = vmatpush1.msra.mxu0 0.0
  %2613 = vmatprep.subr.mxu0 0.0
  %2614 = vmatpush1.msra.mxu0 0.0
  %2615 = vmatprep.subr.mxu0 0.0
  %2616 = vmatpush1.msra.mxu0 0.0
  %2617 = vmatprep.subr.mxu0 0.0
  %2618 = vmatpush1.msra.mxu0 0.0
  %2619 = vmatprep.subr.mxu0 0.0
  %2620 = vmatpush1.msra.mxu0 0.0
  %2621 = vmatprep.subr.mxu0 0.0
  %2622 = vmatpush1.msra.mxu0 0.0
  %2623 = vmatprep.subr.mxu0 0.0
  %2624 = vmatpush1.msra.mxu0 0.0
  %2625 = vmatprep.subr.mxu0 0.0
  %2626 = vmatpush1.msra.mxu0 0.0
  %2627 = vmatprep.subr.mxu0 0.0
  %2628 = vmatpush1.msra.mxu0 0.0
  %2629 = vmatprep.subr.mxu0 0.0
  %2630 = vmatpush1.msra.mxu0 0.0
  %2631 = vmatprep.subr.mxu0 0.0
  %2632 = vmatpush1.msra.mxu0 0.0
  %2633 = vmatprep.subr.mxu0 0.0
  %2634 = vmatpush1.msra.mxu0 0.0
  %2635 = vmatprep.subr.mxu0 0.0
  %2636 = vmatpush1.msra.mxu0 0.0
  %2637 = vmatprep.subr.mxu0 0.0
  %2638 = vmatpush1.msra.mxu0 0.0
  %2639 = vmatprep.subr.mxu0 0.0
  %2640 = vmatpush1.msra.mxu0 0.0
  %2641 = vmatprep.subr.mxu0 0.0
  %2642 = vmatpush1.msra.mxu0 0.0
  %2643 = vmatprep.subr.mxu0 0.0
  %2644 = vmatpush1.msra.mxu0 0.0
  %2645 = vmatprep.subr.mxu0 0.0
  %2646 = vmatpush1.msra.mxu0 0.0
  %2647 = vmatprep.mubr.f32.mxu0 0.0
  %2648 = vmatmul.mubr.f32.gmra.mrb[0].mxu0 %v2331
  %v2649 = vpop.f32.mrb[0].mxu0
  %v2650 = vadd.f32 0.0, %v2649
  %v2651 = vpop.f32.mrb[0].mxu0
  %2652 = vmatprep.mubr.f32.mxu0 0.0
  %2653 = vmatmul.mubr.f32.gmra.mrb[0].mxu0 %v2334
  %v2654 = vpop.f32.mrb[0].mxu0
  %v2655 = vadd.f32 0.0, %v2654
  %v2656 = vpop.f32.mrb[0].mxu0
  %2657 = vdwg.mxu0
  %2658 = vmatprep.subr.mxu0 0.0
  %2659 = vmatpush1.msra.mxu0 %v2231
  %2660 = vmatprep.subr.mxu0 0.0
  %2661 = vmatpush1.msra.mxu0 %v2236
  %2662 = vmatprep.subr.mxu0 0.0
  %2663 = vmatpush1.msra.mxu0 0.0
  %2664 = vmatprep.subr.mxu0 0.0
  %2665 = vmatpush1.msra.mxu0 0.0
  %2666 = vmatprep.subr.mxu0 0.0
  %2667 = vmatpush1.msra.mxu0 0.0
  %2668 = vmatprep.subr.mxu0 0.0
  %2669 = vmatpush1.msra.mxu0 0.0
  %2670 = vmatprep.subr.mxu0 0.0
  %2671 = vmatpush1.msra.mxu0 0.0
  %2672 = vmatprep.subr.mxu0 0.0
  %2673 = vmatpush1.msra.mxu0 0.0
  %2674 = vmatprep.subr.mxu0 0.0
  %2675 = vmatpush1.msra.mxu0 0.0
  %2676 = vmatprep.subr.mxu0 0.0
  %2677 = vmatpush1.msra.mxu0 0.0
  %2678 = vmatprep.subr.mxu0 0.0
  %2679 = vmatpush1.msra.mxu0 0.0
  %2680 = vmatprep.subr.mxu0 0.0
  %2681 = vmatpush1.msra.mxu0 0.0
  %2682 = vmatprep.subr.mxu0 0.0
  %2683 = vmatpush1.msra.mxu0 0.0
  %2684 = vmatprep.subr.mxu0 0.0
  %2685 = vmatpush1.msra.mxu0 0.0
  %2686 = vmatprep.subr.mxu0 0.0
  %2687 = vmatpush1.msra.mxu0 0.0
  %2688 = vmatprep.subr.mxu0 0.0
  %2689 = vmatpush1.msra.mxu0 0.0
  %2690 = vmatprep.subr.mxu0 0.0
  %2691 = vmatpush1.msra.mxu0 0.0
  %2692 = vmatprep.subr.mxu0 0.0
  %2693 = vmatpush1.msra.mxu0 0.0
  %2694 = vmatprep.subr.mxu0 0.0
  %2695 = vmatpush1.msra.mxu0 0.0
  %2696 = vmatprep.subr.mxu0 0.0
  %2697 = vmatpush1.msra.mxu0 0.0
  %2698 = vmatprep.subr.mxu0 0.0
  %2699 = vmatpush1.msra.mxu0 0.0
  %2700 = vmatprep.subr.mxu0 0.0
  %2701 = vmatpush1.msra.mxu0 0.0
  %2702 = vmatprep.subr.mxu0 0.0
  %2703 = vmatpush1.msra.mxu0 0.0
  %2704 = vmatprep.subr.mxu0 0.0
  %2705 = vmatpush1.msra.mxu0 0.0
  %2706 = vmatprep.subr.mxu0 0.0
  %2707 = vmatpush1.msra.mxu0 0.0
  %2708 = vmatprep.subr.mxu0 0.0
  %2709 = vmatpush1.msra.mxu0 0.0
  %2710 = vmatprep.subr.mxu0 0.0
  %2711 = vmatpush1.msra.mxu0 0.0
  %2712 = vmatprep.subr.mxu0 0.0
  %2713 = vmatpush1.msra.mxu0 0.0
  %2714 = vmatprep.subr.mxu0 0.0
  %2715 = vmatpush1.msra.mxu0 0.0
  %2716 = vmatprep.subr.mxu0 0.0
  %2717 = vmatpush1.msra.mxu0 0.0
  %2718 = vmatprep.subr.mxu0 0.0
  %2719 = vmatpush1.msra.mxu0 0.0
  %2720 = vmatprep.subr.mxu0 0.0
  %2721 = vmatpush1.msra.mxu0 0.0
  %2722 = vmatprep.mubr.f32.mxu0 0.0
  %2723 = vmatmul.mubr.f32.gmra.mrb[0].mxu0 %v2412
  %v2724 = vpop.f32.mrb[0].mxu0
  %v2725 = vadd.f32 %v2650, %v2724
  %v2726 = vpop.f32.mrb[0].mxu0
  %2727 = vmatprep.mubr.f32.mxu0 0.0
  %2728 = vmatmul.mubr.f32.gmra.mrb[0].mxu0 %v2415
  %v2729 = vpop.f32.mrb[0].mxu0
  %v2730 = vadd.f32 %v2655, %v2729
  %v2731 = vpop.f32.mrb[0].mxu0
  %2732 = vdwg.mxu0
  %2735 = vrot.lane.b32.xlu0 %v2231, 127
  %v2736 = vpop.permute.xlu0 %2735
  %2737 = vrot.lane.b32.xlu0 %v2236, 127
  %v2738 = vpop.permute.xlu0 %2737
  %2741 = vmatprep.subr.mxu0 0.0
  %2742 = vmatpush1.msra.mxu0 %v2736
  %2743 = vmatprep.subr.mxu0 0.0
  %2744 = vmatpush1.msra.mxu0 %v2738
  %2745 = vmatprep.subr.mxu0 0.0
  %2746 = vmatpush1.msra.mxu0 0.0
  %2747 = vmatprep.subr.mxu0 0.0
  %2748 = vmatpush1.msra.mxu0 0.0
  %2749 = vmatprep.subr.mxu0 0.0
  %2750 = vmatpush1.msra.mxu0 0.0
  %2751 = vmatprep.subr.mxu0 0.0
  %2752 = vmatpush1.msra.mxu0 0.0
  %2753 = vmatprep.subr.mxu0 0.0
  %2754 = vmatpush1.msra.mxu0 0.0
  %2755 = vmatprep.subr.mxu0 0.0
  %2756 = vmatpush1.msra.mxu0 0.0
  %2757 = vmatprep.subr.mxu0 0.0
  %2758 = vmatpush1.msra.mxu0 0.0
  %2759 = vmatprep.subr.mxu0 0.0
  %2760 = vmatpush1.msra.mxu0 0.0
  %2761 = vmatprep.subr.mxu0 0.0
  %2762 = vmatpush1.msra.mxu0 0.0
  %2763 = vmatprep.subr.mxu0 0.0
  %2764 = vmatpush1.msra.mxu0 0.0
  %2765 = vmatprep.subr.mxu0 0.0
  %2766 = vmatpush1.msra.mxu0 0.0
  %2767 = vmatprep.subr.mxu0 0.0
  %2768 = vmatpush1.msra.mxu0 0.0
  %2769 = vmatprep.subr.mxu0 0.0
  %2770 = vmatpush1.msra.mxu0 0.0
  %2771 = vmatprep.subr.mxu0 0.0
  %2772 = vmatpush1.msra.mxu0 0.0
  %2773 = vmatprep.subr.mxu0 0.0
  %2774 = vmatpush1.msra.mxu0 0.0
  %2775 = vmatprep.subr.mxu0 0.0
  %2776 = vmatpush1.msra.mxu0 0.0
  %2777 = vmatprep.subr.mxu0 0.0
  %2778 = vmatpush1.msra.mxu0 0.0
  %2779 = vmatprep.subr.mxu0 0.0
  %2780 = vmatpush1.msra.mxu0 0.0
  %2781 = vmatprep.subr.mxu0 0.0
  %2782 = vmatpush1.msra.mxu0 0.0
  %2783 = vmatprep.subr.mxu0 0.0
  %2784 = vmatpush1.msra.mxu0 0.0
  %2785 = vmatprep.subr.mxu0 0.0
  %2786 = vmatpush1.msra.mxu0 0.0
  %2787 = vmatprep.subr.mxu0 0.0
  %2788 = vmatpush1.msra.mxu0 0.0
  %2789 = vmatprep.subr.mxu0 0.0
  %2790 = vmatpush1.msra.mxu0 0.0
  %2791 = vmatprep.subr.mxu0 0.0
  %2792 = vmatpush1.msra.mxu0 0.0
  %2793 = vmatprep.subr.mxu0 0.0
  %2794 = vmatpush1.msra.mxu0 0.0
  %2795 = vmatprep.subr.mxu0 0.0
  %2796 = vmatpush1.msra.mxu0 0.0
  %2797 = vmatprep.subr.mxu0 0.0
  %2798 = vmatpush1.msra.mxu0 0.0
  %2799 = vmatprep.subr.mxu0 0.0
  %2800 = vmatpush1.msra.mxu0 0.0
  %2801 = vmatprep.subr.mxu0 0.0
  %2802 = vmatpush1.msra.mxu0 0.0
  %2803 = vmatprep.subr.mxu0 0.0
  %2804 = vmatpush1.msra.mxu0 0.0
  %2805 = vmatprep.mubr.f32.mxu0 0.0
  %2806 = vmatmul.mubr.f32.gmra.mrb[0].mxu0 %v2501
  %v2807 = vpop.f32.mrb[0].mxu0
  %v2808 = vadd.f32 0.0, %v2807
  %v2809 = vpop.f32.mrb[0].mxu0
  %2810 = vmatprep.mubr.f32.mxu0 0.0
  %2811 = vmatmul.mubr.f32.gmra.mrb[0].mxu0 %v2504
  %v2812 = vpop.f32.mrb[0].mxu0
  %v2813 = vadd.f32 0.0, %v2812
  %v2814 = vpop.f32.mrb[0].mxu0
  %2815 = vdwg.mxu0
  %v2816 = vadd.f32 %v2725, %v2808
  %v2817 = vadd.f32 %v2730, %v2813
  %2819 = vset.pattern.permute.xlu0 0
  %2820 = vperm.xlu0 %2819, %v2326
  %v2821 = vpop.permute.xlu0 %2820
  %2824 = vset.pattern.permute.xlu0 0
  %2825 = vperm.xlu0 %2824, %v2327
  %v2826 = vpop.permute.xlu0 %2825
  %v2828 = vmul.f32 %v2581, %v2821
  %v2829 = vmul.f32 %v2582, %v2826
  %2831 = vset.pattern.permute.xlu0 0
  %2832 = vperm.xlu0 %2831, %v2328
  %v2833 = vpop.permute.xlu0 %2832
  %2836 = vset.pattern.permute.xlu0 0
  %2837 = vperm.xlu0 %2836, %v2329
  %v2838 = vpop.permute.xlu0 %2837
  %v2840 = vadd.f32 %v2828, %v2833
  %v2841 = vadd.f32 %v2829, %v2838
  %v2842 = vmax.f32 %v2840, 0.0
  %v2843 = vmax.f32 %v2841, 0.0
  %v2844 = vmul.f32 %v2816, %v2821
  %v2845 = vmul.f32 %v2817, %v2826
  %v2846 = vadd.f32 %v2844, %v2833
  %v2847 = vadd.f32 %v2845, %v2838
  %v2848 = vmax.f32 %v2846, 0.0
  %v2849 = vmax.f32 %v2847, 0.0
  %v2850 = vmax.f32 %v2842, %v2848
  %v2851 = vmax.f32 %v2843, %v2849
  %v2852 = vld [vmem:[%s61] sm:$0xff]
  %v2853 = vld [vmem:[%s61 + $0x8] sm:$0xff]
  %v2855 = vsel %vm190, %v2850, 0
  %v2858 = vsel %vm190, %v2851, 0
  %2860 = vmatprep.subr.mxu0 0.0
  %2861 = vmatpush1.msra.mxu0 %v2852
  %2862 = vmatprep.subr.mxu0 0.0
  %2863 = vmatpush1.msra.mxu0 %v2853
  %2864 = vmatprep.subr.mxu0 0.0
  %2865 = vmatpush1.msra.mxu0 0.0
  %2866 = vmatprep.subr.mxu0 0.0
  %2867 = vmatpush1.msra.mxu0 0.0
  %2868 = vmatprep.subr.mxu0 0.0
  %2869 = vmatpush1.msra.mxu0 0.0
  %2870 = vmatprep.subr.mxu0 0.0
  %2871 = vmatpush1.msra.mxu0 0.0
  %2872 = vmatprep.subr.mxu0 0.0
  %2873 = vmatpush1.msra.mxu0 0.0
  %2874 = vmatprep.subr.mxu0 0.0
  %2875 = vmatpush1.msra.mxu0 0.0
  %2876 = vmatprep.subr.mxu0 0.0
  %2877 = vmatpush1.msra.mxu0 0.0
  %2878 = vmatprep.subr.mxu0 0.0
  %2879 = vmatpush1.msra.mxu0 0.0
  %2880 = vmatprep.subr.mxu0 0.0
  %2881 = vmatpush1.msra.mxu0 0.0
  %2882 = vmatprep.subr.mxu0 0.0
  %2883 = vmatpush1.msra.mxu0 0.0
  %2884 = vmatprep.subr.mxu0 0.0
  %2885 = vmatpush1.msra.mxu0 0.0
  %2886 = vmatprep.subr.mxu0 0.0
  %2887 = vmatpush1.msra.mxu0 0.0
  %2888 = vmatprep.subr.mxu0 0.0
  %2889 = vmatpush1.msra.mxu0 0.0
  %2890 = vmatprep.subr.mxu0 0.0
  %2891 = vmatpush1.msra.mxu0 0.0
  %2892 = vmatprep.subr.mxu0 0.0
  %2893 = vmatpush1.msra.mxu0 0.0
  %2894 = vmatprep.subr.mxu0 0.0
  %2895 = vmatpush1.msra.mxu0 0.0
  %2896 = vmatprep.subr.mxu0 0.0
  %2897 = vmatpush1.msra.mxu0 0.0
  %2898 = vmatprep.subr.mxu0 0.0
  %2899 = vmatpush1.msra.mxu0 0.0
  %2900 = vmatprep.subr.mxu0 0.0
  %2901 = vmatpush1.msra.mxu0 0.0
  %2902 = vmatprep.subr.mxu0 0.0
  %2903 = vmatpush1.msra.mxu0 0.0
  %2904 = vmatprep.subr.mxu0 0.0
  %2905 = vmatpush1.msra.mxu0 0.0
  %2906 = vmatprep.subr.mxu0 0.0
  %2907 = vmatpush1.msra.mxu0 0.0
  %2908 = vmatprep.subr.mxu0 0.0
  %2909 = vmatpush1.msra.mxu0 0.0
  %2910 = vmatprep.subr.mxu0 0.0
  %2911 = vmatpush1.msra.mxu0 0.0
  %2912 = vmatprep.subr.mxu0 0.0
  %2913 = vmatpush1.msra.mxu0 0.0
  %2914 = vmatprep.subr.mxu0 0.0
  %2915 = vmatpush1.msra.mxu0 0.0
  %2916 = vmatprep.subr.mxu0 0.0
  %2917 = vmatpush1.msra.mxu0 0.0
  %2918 = vmatprep.subr.mxu0 0.0
  %2919 = vmatpush1.msra.mxu0 0.0
  %2920 = vmatprep.subr.mxu0 0.0
  %2921 = vmatpush1.msra.mxu0 0.0
  %2922 = vmatprep.subr.mxu0 0.0
  %2923 = vmatpush1.msra.mxu0 0.0
  %2924 = vmatprep.mubr.f32.mxu0 0.0
  %2925 = vmatmul.mubr.f32.gmra.mrb[0].mxu0 %v2855
  %v2926 = vpop.f32.mrb[0].mxu0
  %v2927 = vadd.f32 0.0, %v2926
  %v2928 = vpop.f32.mrb[0].mxu0
  %2929 = vmatprep.mubr.f32.mxu0 0.0
  %2930 = vmatmul.mubr.f32.gmra.mrb[0].mxu0 %v2858
  %v2931 = vpop.f32.mrb[0].mxu0
  %v2932 = vadd.f32 0.0, %v2931
  %v2933 = vpop.f32.mrb[0].mxu0
  %2934 = vdwg.mxu0
  %v2935 = vld [vmem:[%s63] sm:$0xff]
  %v2936 = vld [vmem:[%s63 + $0x8] sm:$0xff]
  %2937 = vmatprep.subr.mxu0 0.0
  %2938 = vmatpush1.msra.mxu0 %v2935
  %2939 = vmatprep.subr.mxu0 0.0
  %2940 = vmatpush1.msra.mxu0 %v2936
  %2941 = vmatprep.subr.mxu0 0.0
  %2942 = vmatpush1.msra.mxu0 0.0
  %2943 = vmatprep.subr.mxu0 0.0
  %2944 = vmatpush1.msra.mxu0 0.0
  %2945 = vmatprep.subr.mxu0 0.0
  %2946 = vmatpush1.msra.mxu0 0.0
  %2947 = vmatprep.subr.mxu0 0.0
  %2948 = vmatpush1.msra.mxu0 0.0
  %2949 = vmatprep.subr.mxu0 0.0
  %2950 = vmatpush1.msra.mxu0 0.0
  %2951 = vmatprep.subr.mxu0 0.0
  %2952 = vmatpush1.msra.mxu0 0.0
  %2953 = vmatprep.subr.mxu0 0.0
  %2954 = vmatpush1.msra.mxu0 0.0
  %2955 = vmatprep.subr.mxu0 0.0
  %2956 = vmatpush1.msra.mxu0 0.0
  %2957 = vmatprep.subr.mxu0 0.0
  %2958 = vmatpush1.msra.mxu0 0.0
  %2959 = vmatprep.subr.mxu0 0.0
  %2960 = vmatpush1.msra.mxu0 0.0
  %2961 = vmatprep.subr.mxu0 0.0
  %2962 = vmatpush1.msra.mxu0 0.0
  %2963 = vmatprep.subr.mxu0 0.0
  %2964 = vmatpush1.msra.mxu0 0.0
  %2965 = vmatprep.subr.mxu0 0.0
  %2966 = vmatpush1.msra.mxu0 0.0
  %2967 = vmatprep.subr.mxu0 0.0
  %2968 = vmatpush1.msra.mxu0 0.0
  %2969 = vmatprep.subr.mxu0 0.0
  %2970 = vmatpush1.msra.mxu0 0.0
  %2971 = vmatprep.subr.mxu0 0.0
  %2972 = vmatpush1.msra.mxu0 0.0
  %2973 = vmatprep.subr.mxu0 0.0
  %2974 = vmatpush1.msra.mxu0 0.0
  %2975 = vmatprep.subr.mxu0 0.0
  %2976 = vmatpush1.msra.mxu0 0.0
  %2977 = vmatprep.subr.mxu0 0.0
  %2978 = vmatpush1.msra.mxu0 0.0
  %2979 = vmatprep.subr.mxu0 0.0
  %2980 = vmatpush1.msra.mxu0 0.0
  %2981 = vmatprep.subr.mxu0 0.0
  %2982 = vmatpush1.msra.mxu0 0.0
  %2983 = vmatprep.subr.mxu0 0.0
  %2984 = vmatpush1.msra.mxu0 0.0
  %2985 = vmatprep.subr.mxu0 0.0
  %2986 = vmatpush1.msra.mxu0 0.0
  %2987 = vmatprep.subr.mxu0 0.0
  %2988 = vmatpush1.msra.mxu0 0.0
  %2989 = vmatprep.subr.mxu0 0.0
  %2990 = vmatpush1.msra.mxu0 0.0
  %2991 = vmatprep.subr.mxu0 0.0
  %2992 = vmatpush1.msra.mxu0 0.0
  %2993 = vmatprep.subr.mxu0 0.0
  %2994 = vmatpush1.msra.mxu0 0.0
  %2995 = vmatprep.subr.mxu0 0.0
  %2996 = vmatpush1.msra.mxu0 0.0
  %2997 = vmatprep.subr.mxu0 0.0
  %2998 = vmatpush1.msra.mxu0 0.0
  %2999 = vmatprep.subr.mxu0 0.0
  %3000 = vmatpush1.msra.mxu0 0.0
  %3001 = vmatprep.mubr.f32.mxu0 0.0
  %3002 = vmatmul.mubr.f32.gmra.mrb[0].mxu0 %v2855
  %v3003 = vpop.f32.mrb[0].mxu0
  %v3004 = vadd.f32 0.0, %v3003
  %v3005 = vpop.f32.mrb[0].mxu0
  %3006 = vmatprep.mubr.f32.mxu0 0.0
  %3007 = vmatmul.mubr.f32.gmra.mrb[0].mxu0 %v2858
  %v3008 = vpop.f32.mrb[0].mxu0
  %v3009 = vadd.f32 0.0, %v3008
  %v3010 = vpop.f32.mrb[0].mxu0
  %3011 = vdwg.mxu0
  %v3012 = vld [vmem:[%s31] sm:$0xff]
  %v3013 = vld [vmem:[%s31 + $0x8] sm:$0xff]
  %v3014 = vld [vmem:[%s31 + $0x10] sm:$0xff]
  %v3015 = vld [vmem:[%s31 + $0x18] sm:$0xff]
  %s3016 = scalar_lea.vmem %s31, 32
  %v3017 = vld [vmem:[%s3016] sm:$0xff]
  %v3018 = vld [vmem:[%s3016 + $0x8] sm:$0xff]
  %v3019 = vld [vmem:[%s3016 + $0x10] sm:$0xff]
  %v3020 = vld [vmem:[%s3016 + $0x18] sm:$0xff]
  %s3021 = scalar_lea.vmem %s31, 64
  %v3022 = vld [vmem:[%s3021] sm:$0xff]
  %v3023 = vld [vmem:[%s3021 + $0x8] sm:$0xff]
  %v3024 = vld [vmem:[%s3021 + $0x10] sm:$0xff]
  %v3025 = vld [vmem:[%s3021 + $0x18] sm:$0xff]
  %v3026 = vld [vmem:[%s33] sm:$0xff]
  %v3027 = vld [vmem:[%s33 + $0x8] sm:$0xff]
  %v3028 = vld [vmem:[%s33 + $0x10] sm:$0xff]
  %v3029 = vld [vmem:[%s33 + $0x18] sm:$0xff]
  %v3030 = vld [vmem:[%s35] sm:$0xff]
  %v3031 = vld [vmem:[%s35 + $0x8] sm:$0xff]
  %v3032 = vld [vmem:[%s35 + $0x10] sm:$0xff]
  %v3033 = vld [vmem:[%s35 + $0x18] sm:$0xff]
  %v3035 = vsel %vm190, %v3017, 0
  %v3038 = vsel %vm190, %v3018, 0
  %v3041 = vsel %vm190, %v3019, 0
  %v3044 = vsel %vm190, %v3020, 0
  %3046 = vmatprep.subr.mxu0 0.0
  %3047 = vmatpush1.msra.mxu0 %v2927
  %3048 = vmatprep.subr.mxu0 0.0
  %3049 = vmatpush1.msra.mxu0 %v2932
  %3050 = vmatprep.subr.mxu0 0.0
  %3051 = vmatpush1.msra.mxu0 0.0
  %3052 = vmatprep.subr.mxu0 0.0
  %3053 = vmatpush1.msra.mxu0 0.0
  %3054 = vmatprep.subr.mxu0 0.0
  %3055 = vmatpush1.msra.mxu0 0.0
  %3056 = vmatprep.subr.mxu0 0.0
  %3057 = vmatpush1.msra.mxu0 0.0
  %3058 = vmatprep.subr.mxu0 0.0
  %3059 = vmatpush1.msra.mxu0 0.0
  %3060 = vmatprep.subr.mxu0 0.0
  %3061 = vmatpush1.msra.mxu0 0.0
  %3062 = vmatprep.subr.mxu0 0.0
  %3063 = vmatpush1.msra.mxu0 0.0
  %3064 = vmatprep.subr.mxu0 0.0
  %3065 = vmatpush1.msra.mxu0 0.0
  %3066 = vmatprep.subr.mxu0 0.0
  %3067 = vmatpush1.msra.mxu0 0.0
  %3068 = vmatprep.subr.mxu0 0.0
  %3069 = vmatpush1.msra.mxu0 0.0
  %3070 = vmatprep.subr.mxu0 0.0
  %3071 = vmatpush1.msra.mxu0 0.0
  %3072 = vmatprep.subr.mxu0 0.0
  %3073 = vmatpush1.msra.mxu0 0.0
  %3074 = vmatprep.subr.mxu0 0.0
  %3075 = vmatpush1.msra.mxu0 0.0
  %3076 = vmatprep.subr.mxu0 0.0
  %3077 = vmatpush1.msra.mxu0 0.0
  %3078 = vmatprep.subr.mxu0 0.0
  %3079 = vmatpush1.msra.mxu0 0.0
  %3080 = vmatprep.subr.mxu0 0.0
  %3081 = vmatpush1.msra.mxu0 0.0
  %3082 = vmatprep.subr.mxu0 0.0
  %3083 = vmatpush1.msra.mxu0 0.0
  %3084 = vmatprep.subr.mxu0 0.0
  %3085 = vmatpush1.msra.mxu0 0.0
  %3086 = vmatprep.subr.mxu0 0.0
  %3087 = vmatpush1.msra.mxu0 0.0
  %3088 = vmatprep.subr.mxu0 0.0
  %3089 = vmatpush1.msra.mxu0 0.0
  %3090 = vmatprep.subr.mxu0 0.0
  %3091 = vmatpush1.msra.mxu0 0.0
  %3092 = vmatprep.subr.mxu0 0.0
  %3093 = vmatpush1.msra.mxu0 0.0
  %3094 = vmatprep.subr.mxu0 0.0
  %3095 = vmatpush1.msra.mxu0 0.0
  %3096 = vmatprep.subr.mxu0 0.0
  %3097 = vmatpush1.msra.mxu0 0.0
  %3098 = vmatprep.subr.mxu0 0.0
  %3099 = vmatpush1.msra.mxu0 0.0
  %3100 = vmatprep.subr.mxu0 0.0
  %3101 = vmatpush1.msra.mxu0 0.0
  %3102 = vmatprep.subr.mxu0 0.0
  %3103 = vmatpush1.msra.mxu0 0.0
  %3104 = vmatprep.subr.mxu0 0.0
  %3105 = vmatpush1.msra.mxu0 0.0
  %3106 = vmatprep.subr.mxu0 0.0
  %3107 = vmatpush1.msra.mxu0 0.0
  %3108 = vmatprep.subr.mxu0 0.0
  %3109 = vmatpush1.msra.mxu0 0.0
  %3110 = vmatprep.mubr.f32.mxu0 0.0
  %3111 = vmatmul.mubr.f32.gmra.mrb[0].mxu0 %v3035
  %v3112 = vpop.f32.mrb[0].mxu0
  %v3113 = vadd.f32 0.0, %v3112
  %v3114 = vpop.f32.mrb[0].mxu0
  %3115 = vmatprep.mubr.f32.mxu0 0.0
  %3116 = vmatmul.mubr.f32.gmra.mrb[0].mxu0 %v3038
  %v3117 = vpop.f32.mrb[0].mxu0
  %v3118 = vadd.f32 0.0, %v3117
  %v3119 = vpop.f32.mrb[0].mxu0
  %3120 = vmatprep.mubr.f32.mxu0 0.0
  %3121 = vmatmul.mubr.f32.gmra.mrb[0].mxu0 %v3041
  %v3122 = vpop.f32.mrb[0].mxu0
  %v3123 = vadd.f32 0.0, %v3122
  %v3124 = vpop.f32.mrb[0].mxu0
  %3125 = vmatprep.mubr.f32.mxu0 0.0
  %3126 = vmatmul.mubr.f32.gmra.mrb[0].mxu0 %v3044
  %v3127 = vpop.f32.mrb[0].mxu0
  %v3128 = vadd.f32 0.0, %v3127
  %v3129 = vpop.f32.mrb[0].mxu0
  %3130 = vdwg.mxu0
  %v3132 = vsel %vm190, %v3012, 0
  %v3135 = vsel %vm190, %v3013, 0
  %v3138 = vsel %vm190, %v3014, 0
  %v3141 = vsel %vm190, %v3015, 0
  %3143 = vmatprep.subr.mxu0 0.0
  %3144 = vmatpush1.msra.mxu0 %v3004
  %3145 = vmatprep.subr.mxu0 0.0
  %3146 = vmatpush1.msra.mxu0 %v3009
  %3147 = vmatprep.subr.mxu0 0.0
  %3148 = vmatpush1.msra.mxu0 0.0
  %3149 = vmatprep.subr.mxu0 0.0
  %3150 = vmatpush1.msra.mxu0 0.0
  %3151 = vmatprep.subr.mxu0 0.0
  %3152 = vmatpush1.msra.mxu0 0.0
  %3153 = vmatprep.subr.mxu0 0.0
  %3154 = vmatpush1.msra.mxu0 0.0
  %3155 = vmatprep.subr.mxu0 0.0
  %3156 = vmatpush1.msra.mxu0 0.0
  %3157 = vmatprep.subr.mxu0 0.0
  %3158 = vmatpush1.msra.mxu0 0.0
  %3159 = vmatprep.subr.mxu0 0.0
  %3160 = vmatpush1.msra.mxu0 0.0
  %3161 = vmatprep.subr.mxu0 0.0
  %3162 = vmatpush1.msra.mxu0 0.0
  %3163 = vmatprep.subr.mxu0 0.0
  %3164 = vmatpush1.msra.mxu0 0.0
  %3165 = vmatprep.subr.mxu0 0.0
  %3166 = vmatpush1.msra.mxu0 0.0
  %3167 = vmatprep.subr.mxu0 0.0
  %3168 = vmatpush1.msra.mxu0 0.0
  %3169 = vmatprep.subr.mxu0 0.0
  %3170 = vmatpush1.msra.mxu0 0.0
  %3171 = vmatprep.subr.mxu0 0.0
  %3172 = vmatpush1.msra.mxu0 0.0
  %3173 = vmatprep.subr.mxu0 0.0
  %3174 = vmatpush1.msra.mxu0 0.0
  %3175 = vmatprep.subr.mxu0 0.0
  %3176 = vmatpush1.msra.mxu0 0.0
  %3177 = vmatprep.subr.mxu0 0.0
  %3178 = vmatpush1.msra.mxu0 0.0
  %3179 = vmatprep.subr.mxu0 0.0
  %3180 = vmatpush1.msra.mxu0 0.0
  %3181 = vmatprep.subr.mxu0 0.0
  %3182 = vmatpush1.msra.mxu0 0.0
  %3183 = vmatprep.subr.mxu0 0.0
  %3184 = vmatpush1.msra.mxu0 0.0
  %3185 = vmatprep.subr.mxu0 0.0
  %3186 = vmatpush1.msra.mxu0 0.0
  %3187 = vmatprep.subr.mxu0 0.0
  %3188 = vmatpush1.msra.mxu0 0.0
  %3189 = vmatprep.subr.mxu0 0.0
  %3190 = vmatpush1.msra.mxu0 0.0
  %3191 = vmatprep.subr.mxu0 0.0
  %3192 = vmatpush1.msra.mxu0 0.0
  %3193 = vmatprep.subr.mxu0 0.0
  %3194 = vmatpush1.msra.mxu0 0.0
  %3195 = vmatprep.subr.mxu0 0.0
  %3196 = vmatpush1.msra.mxu0 0.0
  %3197 = vmatprep.subr.mxu0 0.0
  %3198 = vmatpush1.msra.mxu0 0.0
  %3199 = vmatprep.subr.mxu0 0.0
  %3200 = vmatpush1.msra.mxu0 0.0
  %3201 = vmatprep.subr.mxu0 0.0
  %3202 = vmatpush1.msra.mxu0 0.0
  %3203 = vmatprep.subr.mxu0 0.0
  %3204 = vmatpush1.msra.mxu0 0.0
  %3205 = vmatprep.subr.mxu0 0.0
  %3206 = vmatpush1.msra.mxu0 0.0
  %3207 = vmatprep.mubr.f32.mxu0 0.0
  %3208 = vmatmul.mubr.f32.gmra.mrb[0].mxu0 %v3132
  %v3209 = vpop.f32.mrb[0].mxu0
  %v3210 = vadd.f32 %v3113, %v3209
  %v3211 = vpop.f32.mrb[0].mxu0
  %3212 = vmatprep.mubr.f32.mxu0 0.0
  %3213 = vmatmul.mubr.f32.gmra.mrb[0].mxu0 %v3135
  %v3214 = vpop.f32.mrb[0].mxu0
  %v3215 = vadd.f32 %v3118, %v3214
  %v3216 = vpop.f32.mrb[0].mxu0
  %3217 = vmatprep.mubr.f32.mxu0 0.0
  %3218 = vmatmul.mubr.f32.gmra.mrb[0].mxu0 %v3138
  %v3219 = vpop.f32.mrb[0].mxu0
  %v3220 = vadd.f32 %v3123, %v3219
  %v3221 = vpop.f32.mrb[0].mxu0
  %3222 = vmatprep.mubr.f32.mxu0 0.0
  %3223 = vmatmul.mubr.f32.gmra.mrb[0].mxu0 %v3141
  %v3224 = vpop.f32.mrb[0].mxu0
  %v3225 = vadd.f32 %v3128, %v3224
  %v3226 = vpop.f32.mrb[0].mxu0
  %3227 = vdwg.mxu0
  %3230 = vrot.lane.b32.xlu0 %v3004, 127
  %v3231 = vpop.permute.xlu0 %3230
  %3232 = vrot.lane.b32.xlu0 %v3009, 127
  %v3233 = vpop.permute.xlu0 %3232
  %v3237 = vsel %vm190, %v3022, 0
  %v3240 = vsel %vm190, %v3023, 0
  %v3243 = vsel %vm190, %v3024, 0
  %v3246 = vsel %vm190, %v3025, 0
  %3248 = vmatprep.subr.mxu0 0.0
  %3249 = vmatpush1.msra.mxu0 %v3231
  %3250 = vmatprep.subr.mxu0 0.0
  %3251 = vmatpush1.msra.mxu0 %v3233
  %3252 = vmatprep.subr.mxu0 0.0
  %3253 = vmatpush1.msra.mxu0 0.0
  %3254 = vmatprep.subr.mxu0 0.0
  %3255 = vmatpush1.msra.mxu0 0.0
  %3256 = vmatprep.subr.mxu0 0.0
  %3257 = vmatpush1.msra.mxu0 0.0
  %3258 = vmatprep.subr.mxu0 0.0
  %3259 = vmatpush1.msra.mxu0 0.0
  %3260 = vmatprep.subr.mxu0 0.0
  %3261 = vmatpush1.msra.mxu0 0.0
  %3262 = vmatprep.subr.mxu0 0.0
  %3263 = vmatpush1.msra.mxu0 0.0
  %3264 = vmatprep.subr.mxu0 0.0
  %3265 = vmatpush1.msra.mxu0 0.0
  %3266 = vmatprep.subr.mxu0 0.0
  %3267 = vmatpush1.msra.mxu0 0.0
  %3268 = vmatprep.subr.mxu0 0.0
  %3269 = vmatpush1.msra.mxu0 0.0
  %3270 = vmatprep.subr.mxu0 0.0
  %3271 = vmatpush1.msra.mxu0 0.0
  %3272 = vmatprep.subr.mxu0 0.0
  %3273 = vmatpush1.msra.mxu0 0.0
  %3274 = vmatprep.subr.mxu0 0.0
  %3275 = vmatpush1.msra.mxu0 0.0
  %3276 = vmatprep.subr.mxu0 0.0
  %3277 = vmatpush1.msra.mxu0 0.0
  %3278 = vmatprep.subr.mxu0 0.0
  %3279 = vmatpush1.msra.mxu0 0.0
  %3280 = vmatprep.subr.mxu0 0.0
  %3281 = vmatpush1.msra.mxu0 0.0
  %3282 = vmatprep.subr.mxu0 0.0
  %3283 = vmatpush1.msra.mxu0 0.0
  %3284 = vmatprep.subr.mxu0 0.0
  %3285 = vmatpush1.msra.mxu0 0.0
  %3286 = vmatprep.subr.mxu0 0.0
  %3287 = vmatpush1.msra.mxu0 0.0
  %3288 = vmatprep.subr.mxu0 0.0
  %3289 = vmatpush1.msra.mxu0 0.0
  %3290 = vmatprep.subr.mxu0 0.0
  %3291 = vmatpush1.msra.mxu0 0.0
  %3292 = vmatprep.subr.mxu0 0.0
  %3293 = vmatpush1.msra.mxu0 0.0
  %3294 = vmatprep.subr.mxu0 0.0
  %3295 = vmatpush1.msra.mxu0 0.0
  %3296 = vmatprep.subr.mxu0 0.0
  %3297 = vmatpush1.msra.mxu0 0.0
  %3298 = vmatprep.subr.mxu0 0.0
  %3299 = vmatpush1.msra.mxu0 0.0
  %3300 = vmatprep.subr.mxu0 0.0
  %3301 = vmatpush1.msra.mxu0 0.0
  %3302 = vmatprep.subr.mxu0 0.0
  %3303 = vmatpush1.msra.mxu0 0.0
  %3304 = vmatprep.subr.mxu0 0.0
  %3305 = vmatpush1.msra.mxu0 0.0
  %3306 = vmatprep.subr.mxu0 0.0
  %3307 = vmatpush1.msra.mxu0 0.0
  %3308 = vmatprep.subr.mxu0 0.0
  %3309 = vmatpush1.msra.mxu0 0.0
  %3310 = vmatprep.subr.mxu0 0.0
  %3311 = vmatpush1.msra.mxu0 0.0
  %3312 = vmatprep.mubr.f32.mxu0 0.0
  %3313 = vmatmul.mubr.f32.gmra.mrb[0].mxu0 %v3237
  %v3314 = vpop.f32.mrb[0].mxu0
  %v3315 = vadd.f32 0.0, %v3314
  %v3316 = vpop.f32.mrb[0].mxu0
  %3317 = vmatprep.mubr.f32.mxu0 0.0
  %3318 = vmatmul.mubr.f32.gmra.mrb[0].mxu0 %v3240
  %v3319 = vpop.f32.mrb[0].mxu0
  %v3320 = vadd.f32 0.0, %v3319
  %v3321 = vpop.f32.mrb[0].mxu0
  %3322 = vmatprep.mubr.f32.mxu0 0.0
  %3323 = vmatmul.mubr.f32.gmra.mrb[0].mxu0 %v3243
  %v3324 = vpop.f32.mrb[0].mxu0
  %v3325 = vadd.f32 0.0, %v3324
  %v3326 = vpop.f32.mrb[0].mxu0
  %3327 = vmatprep.mubr.f32.mxu0 0.0
  %3328 = vmatmul.mubr.f32.gmra.mrb[0].mxu0 %v3246
  %v3329 = vpop.f32.mrb[0].mxu0
  %v3330 = vadd.f32 0.0, %v3329
  %v3331 = vpop.f32.mrb[0].mxu0
  %3332 = vdwg.mxu0
  %v3333 = vadd.f32 %v3210, %v3315
  %v3334 = vadd.f32 %v3215, %v3320
  %v3335 = vadd.f32 %v3220, %v3325
  %v3336 = vadd.f32 %v3225, %v3330
  %3337 = vmatprep.subr.mxu0 0.0
  %3338 = vmatpush1.msra.mxu0 %v3231
  %3339 = vmatprep.subr.mxu0 0.0
  %3340 = vmatpush1.msra.mxu0 %v3233
  %3341 = vmatprep.subr.mxu0 0.0
  %3342 = vmatpush1.msra.mxu0 0.0
  %3343 = vmatprep.subr.mxu0 0.0
  %3344 = vmatpush1.msra.mxu0 0.0
  %3345 = vmatprep.subr.mxu0 0.0
  %3346 = vmatpush1.msra.mxu0 0.0
  %3347 = vmatprep.subr.mxu0 0.0
  %3348 = vmatpush1.msra.mxu0 0.0
  %3349 = vmatprep.subr.mxu0 0.0
  %3350 = vmatpush1.msra.mxu0 0.0
  %3351 = vmatprep.subr.mxu0 0.0
  %3352 = vmatpush1.msra.mxu0 0.0
  %3353 = vmatprep.subr.mxu0 0.0
  %3354 = vmatpush1.msra.mxu0 0.0
  %3355 = vmatprep.subr.mxu0 0.0
  %3356 = vmatpush1.msra.mxu0 0.0
  %3357 = vmatprep.subr.mxu0 0.0
  %3358 = vmatpush1.msra.mxu0 0.0
  %3359 = vmatprep.subr.mxu0 0.0
  %3360 = vmatpush1.msra.mxu0 0.0
  %3361 = vmatprep.subr.mxu0 0.0
  %3362 = vmatpush1.msra.mxu0 0.0
  %3363 = vmatprep.subr.mxu0 0.0
  %3364 = vmatpush1.msra.mxu0 0.0
  %3365 = vmatprep.subr.mxu0 0.0
  %3366 = vmatpush1.msra.mxu0 0.0
  %3367 = vmatprep.subr.mxu0 0.0
  %3368 = vmatpush1.msra.mxu0 0.0
  %3369 = vmatprep.subr.mxu0 0.0
  %3370 = vmatpush1.msra.mxu0 0.0
  %3371 = vmatprep.subr.mxu0 0.0
  %3372 = vmatpush1.msra.mxu0 0.0
  %3373 = vmatprep.subr.mxu0 0.0
  %3374 = vmatpush1.msra.mxu0 0.0
  %3375 = vmatprep.subr.mxu0 0.0
  %3376 = vmatpush1.msra.mxu0 0.0
  %3377 = vmatprep.subr.mxu0 0.0
  %3378 = vmatpush1.msra.mxu0 0.0
  %3379 = vmatprep.subr.mxu0 0.0
  %3380 = vmatpush1.msra.mxu0 0.0
  %3381 = vmatprep.subr.mxu0 0.0
  %3382 = vmatpush1.msra.mxu0 0.0
  %3383 = vmatprep.subr.mxu0 0.0
  %3384 = vmatpush1.msra.mxu0 0.0
  %3385 = vmatprep.subr.mxu0 0.0
  %3386 = vmatpush1.msra.mxu0 0.0
  %3387 = vmatprep.subr.mxu0 0.0
  %3388 = vmatpush1.msra.mxu0 0.0
  %3389 = vmatprep.subr.mxu0 0.0
  %3390 = vmatpush1.msra.mxu0 0.0
  %3391 = vmatprep.subr.mxu0 0.0
  %3392 = vmatpush1.msra.mxu0 0.0
  %3393 = vmatprep.subr.mxu0 0.0
  %3394 = vmatpush1.msra.mxu0 0.0
  %3395 = vmatprep.subr.mxu0 0.0
  %3396 = vmatpush1.msra.mxu0 0.0
  %3397 = vmatprep.subr.mxu0 0.0
  %3398 = vmatpush1.msra.mxu0 0.0
  %3399 = vmatprep.subr.mxu0 0.0
  %3400 = vmatpush1.msra.mxu0 0.0
  %3401 = vmatprep.mubr.f32.mxu0 0.0
  %3402 = vmatmul.mubr.f32.gmra.mrb[0].mxu0 %v3035
  %v3403 = vpop.f32.mrb[0].mxu0
  %v3404 = vadd.f32 0.0, %v3403
  %v3405 = vpop.f32.mrb[0].mxu0
  %3406 = vmatprep.mubr.f32.mxu0 0.0
  %3407 = vmatmul.mubr.f32.gmra.mrb[0].mxu0 %v3038
  %v3408 = vpop.f32.mrb[0].mxu0
  %v3409 = vadd.f32 0.0, %v3408
  %v3410 = vpop.f32.mrb[0].mxu0
  %3411 = vmatprep.mubr.f32.mxu0 0.0
  %3412 = vmatmul.mubr.f32.gmra.mrb[0].mxu0 %v3041
  %v3413 = vpop.f32.mrb[0].mxu0
  %v3414 = vadd.f32 0.0, %v3413
  %v3415 = vpop.f32.mrb[0].mxu0
  %3416 = vmatprep.mubr.f32.mxu0 0.0
  %3417 = vmatmul.mubr.f32.gmra.mrb[0].mxu0 %v3044
  %v3418 = vpop.f32.mrb[0].mxu0
  %v3419 = vadd.f32 0.0, %v3418
  %v3420 = vpop.f32.mrb[0].mxu0
  %3421 = vdwg.mxu0
  %3422 = vmatprep.subr.mxu0 0.0
  %3423 = vmatpush1.msra.mxu0 %v2927
  %3424 = vmatprep.subr.mxu0 0.0
  %3425 = vmatpush1.msra.mxu0 %v2932
  %3426 = vmatprep.subr.mxu0 0.0
  %3427 = vmatpush1.msra.mxu0 0.0
  %3428 = vmatprep.subr.mxu0 0.0
  %3429 = vmatpush1.msra.mxu0 0.0
  %3430 = vmatprep.subr.mxu0 0.0
  %3431 = vmatpush1.msra.mxu0 0.0
  %3432 = vmatprep.subr.mxu0 0.0
  %3433 = vmatpush1.msra.mxu0 0.0
  %3434 = vmatprep.subr.mxu0 0.0
  %3435 = vmatpush1.msra.mxu0 0.0
  %3436 = vmatprep.subr.mxu0 0.0
  %3437 = vmatpush1.msra.mxu0 0.0
  %3438 = vmatprep.subr.mxu0 0.0
  %3439 = vmatpush1.msra.mxu0 0.0
  %3440 = vmatprep.subr.mxu0 0.0
  %3441 = vmatpush1.msra.mxu0 0.0
  %3442 = vmatprep.subr.mxu0 0.0
  %3443 = vmatpush1.msra.mxu0 0.0
  %3444 = vmatprep.subr.mxu0 0.0
  %3445 = vmatpush1.msra.mxu0 0.0
  %3446 = vmatprep.subr.mxu0 0.0
  %3447 = vmatpush1.msra.mxu0 0.0
  %3448 = vmatprep.subr.mxu0 0.0
  %3449 = vmatpush1.msra.mxu0 0.0
  %3450 = vmatprep.subr.mxu0 0.0
  %3451 = vmatpush1.msra.mxu0 0.0
  %3452 = vmatprep.subr.mxu0 0.0
  %3453 = vmatpush1.msra.mxu0 0.0
  %3454 = vmatprep.subr.mxu0 0.0
  %3455 = vmatpush1.msra.mxu0 0.0
  %3456 = vmatprep.subr.mxu0 0.0
  %3457 = vmatpush1.msra.mxu0 0.0
  %3458 = vmatprep.subr.mxu0 0.0
  %3459 = vmatpush1.msra.mxu0 0.0
  %3460 = vmatprep.subr.mxu0 0.0
  %3461 = vmatpush1.msra.mxu0 0.0
  %3462 = vmatprep.subr.mxu0 0.0
  %3463 = vmatpush1.msra.mxu0 0.0
  %3464 = vmatprep.subr.mxu0 0.0
  %3465 = vmatpush1.msra.mxu0 0.0
  %3466 = vmatprep.subr.mxu0 0.0
  %3467 = vmatpush1.msra.mxu0 0.0
  %3468 = vmatprep.subr.mxu0 0.0
  %3469 = vmatpush1.msra.mxu0 0.0
  %3470 = vmatprep.subr.mxu0 0.0
  %3471 = vmatpush1.msra.mxu0 0.0
  %3472 = vmatprep.subr.mxu0 0.0
  %3473 = vmatpush1.msra.mxu0 0.0
  %3474 = vmatprep.subr.mxu0 0.0
  %3475 = vmatpush1.msra.mxu0 0.0
  %3476 = vmatprep.subr.mxu0 0.0
  %3477 = vmatpush1.msra.mxu0 0.0
  %3478 = vmatprep.subr.mxu0 0.0
  %3479 = vmatpush1.msra.mxu0 0.0
  %3480 = vmatprep.subr.mxu0 0.0
  %3481 = vmatpush1.msra.mxu0 0.0
  %3482 = vmatprep.subr.mxu0 0.0
  %3483 = vmatpush1.msra.mxu0 0.0
  %3484 = vmatprep.subr.mxu0 0.0
  %3485 = vmatpush1.msra.mxu0 0.0
  %3486 = vmatprep.mubr.f32.mxu0 0.0
  %3487 = vmatmul.mubr.f32.gmra.mrb[0].mxu0 %v3132
  %v3488 = vpop.f32.mrb[0].mxu0
  %v3489 = vadd.f32 %v3404, %v3488
  %v3490 = vpop.f32.mrb[0].mxu0
  %3491 = vmatprep.mubr.f32.mxu0 0.0
  %3492 = vmatmul.mubr.f32.gmra.mrb[0].mxu0 %v3135
  %v3493 = vpop.f32.mrb[0].mxu0
  %v3494 = vadd.f32 %v3409, %v3493
  %v3495 = vpop.f32.mrb[0].mxu0
  %3496 = vmatprep.mubr.f32.mxu0 0.0
  %3497 = vmatmul.mubr.f32.gmra.mrb[0].mxu0 %v3138
  %v3498 = vpop.f32.mrb[0].mxu0
  %v3499 = vadd.f32 %v3414, %v3498
  %v3500 = vpop.f32.mrb[0].mxu0
  %3501 = vmatprep.mubr.f32.mxu0 0.0
  %3502 = vmatmul.mubr.f32.gmra.mrb[0].mxu0 %v3141
  %v3503 = vpop.f32.mrb[0].mxu0
  %v3504 = vadd.f32 %v3419, %v3503
  %v3505 = vpop.f32.mrb[0].mxu0
  %3506 = vdwg.mxu0
  %3509 = vrot.lane.b32.xlu0 %v2927, 127
  %v3510 = vpop.permute.xlu0 %3509
  %3511 = vrot.lane.b32.xlu0 %v2932, 127
  %v3512 = vpop.permute.xlu0 %3511
  %3515 = vmatprep.subr.mxu0 0.0
  %3516 = vmatpush1.msra.mxu0 %v3510
  %3517 = vmatprep.subr.mxu0 0.0
  %3518 = vmatpush1.msra.mxu0 %v3512
  %3519 = vmatprep.subr.mxu0 0.0
  %3520 = vmatpush1.msra.mxu0 0.0
  %3521 = vmatprep.subr.mxu0 0.0
  %3522 = vmatpush1.msra.mxu0 0.0
  %3523 = vmatprep.subr.mxu0 0.0
  %3524 = vmatpush1.msra.mxu0 0.0
  %3525 = vmatprep.subr.mxu0 0.0
  %3526 = vmatpush1.msra.mxu0 0.0
  %3527 = vmatprep.subr.mxu0 0.0
  %3528 = vmatpush1.msra.mxu0 0.0
  %3529 = vmatprep.subr.mxu0 0.0
  %3530 = vmatpush1.msra.mxu0 0.0
  %3531 = vmatprep.subr.mxu0 0.0
  %3532 = vmatpush1.msra.mxu0 0.0
  %3533 = vmatprep.subr.mxu0 0.0
  %3534 = vmatpush1.msra.mxu0 0.0
  %3535 = vmatprep.subr.mxu0 0.0
  %3536 = vmatpush1.msra.mxu0 0.0
  %3537 = vmatprep.subr.mxu0 0.0
  %3538 = vmatpush1.msra.mxu0 0.0
  %3539 = vmatprep.subr.mxu0 0.0
  %3540 = vmatpush1.msra.mxu0 0.0
  %3541 = vmatprep.subr.mxu0 0.0
  %3542 = vmatpush1.msra.mxu0 0.0
  %3543 = vmatprep.subr.mxu0 0.0
  %3544 = vmatpush1.msra.mxu0 0.0
  %3545 = vmatprep.subr.mxu0 0.0
  %3546 = vmatpush1.msra.mxu0 0.0
  %3547 = vmatprep.subr.mxu0 0.0
  %3548 = vmatpush1.msra.mxu0 0.0
  %3549 = vmatprep.subr.mxu0 0.0
  %3550 = vmatpush1.msra.mxu0 0.0
  %3551 = vmatprep.subr.mxu0 0.0
  %3552 = vmatpush1.msra.mxu0 0.0
  %3553 = vmatprep.subr.mxu0 0.0
  %3554 = vmatpush1.msra.mxu0 0.0
  %3555 = vmatprep.subr.mxu0 0.0
  %3556 = vmatpush1.msra.mxu0 0.0
  %3557 = vmatprep.subr.mxu0 0.0
  %3558 = vmatpush1.msra.mxu0 0.0
  %3559 = vmatprep.subr.mxu0 0.0
  %3560 = vmatpush1.msra.mxu0 0.0
  %3561 = vmatprep.subr.mxu0 0.0
  %3562 = vmatpush1.msra.mxu0 0.0
  %3563 = vmatprep.subr.mxu0 0.0
  %3564 = vmatpush1.msra.mxu0 0.0
  %3565 = vmatprep.subr.mxu0 0.0
  %3566 = vmatpush1.msra.mxu0 0.0
  %3567 = vmatprep.subr.mxu0 0.0
  %3568 = vmatpush1.msra.mxu0 0.0
  %3569 = vmatprep.subr.mxu0 0.0
  %3570 = vmatpush1.msra.mxu0 0.0
  %3571 = vmatprep.subr.mxu0 0.0
  %3572 = vmatpush1.msra.mxu0 0.0
  %3573 = vmatprep.subr.mxu0 0.0
  %3574 = vmatpush1.msra.mxu0 0.0
  %3575 = vmatprep.subr.mxu0 0.0
  %3576 = vmatpush1.msra.mxu0 0.0
  %3577 = vmatprep.subr.mxu0 0.0
  %3578 = vmatpush1.msra.mxu0 0.0
  %3579 = vmatprep.mubr.f32.mxu0 0.0
  %3580 = vmatmul.mubr.f32.gmra.mrb[0].mxu0 %v3237
  %v3581 = vpop.f32.mrb[0].mxu0
  %v3582 = vadd.f32 0.0, %v3581
  %v3583 = vpop.f32.mrb[0].mxu0
  %3584 = vmatprep.mubr.f32.mxu0 0.0
  %3585 = vmatmul.mubr.f32.gmra.mrb[0].mxu0 %v3240
  %v3586 = vpop.f32.mrb[0].mxu0
  %v3587 = vadd.f32 0.0, %v3586
  %v3588 = vpop.f32.mrb[0].mxu0
  %3589 = vmatprep.mubr.f32.mxu0 0.0
  %3590 = vmatmul.mubr.f32.gmra.mrb[0].mxu0 %v3243
  %v3591 = vpop.f32.mrb[0].mxu0
  %v3592 = vadd.f32 0.0, %v3591
  %v3593 = vpop.f32.mrb[0].mxu0
  %3594 = vmatprep.mubr.f32.mxu0 0.0
  %3595 = vmatmul.mubr.f32.gmra.mrb[0].mxu0 %v3246
  %v3596 = vpop.f32.mrb[0].mxu0
  %v3597 = vadd.f32 0.0, %v3596
  %v3598 = vpop.f32.mrb[0].mxu0
  %3599 = vdwg.mxu0
  %v3600 = vadd.f32 %v3489, %v3582
  %v3601 = vadd.f32 %v3494, %v3587
  %v3602 = vadd.f32 %v3499, %v3592
  %v3603 = vadd.f32 %v3504, %v3597
  %3605 = vset.pattern.permute.xlu0 0
  %3606 = vperm.xlu0 %3605, %v3026
  %v3607 = vpop.permute.xlu0 %3606
  %3610 = vset.pattern.permute.xlu0 0
  %3611 = vperm.xlu0 %3610, %v3027
  %v3612 = vpop.permute.xlu0 %3611
  %3615 = vset.pattern.permute.xlu0 0
  %3616 = vperm.xlu0 %3615, %v3028
  %v3617 = vpop.permute.xlu0 %3616
  %3620 = vset.pattern.permute.xlu0 0
  %3621 = vperm.xlu0 %3620, %v3029
  %v3622 = vpop.permute.xlu0 %3621
  %v3624 = vmul.f32 %v3333, %v3607
  %v3625 = vmul.f32 %v3334, %v3612
  %v3626 = vmul.f32 %v3335, %v3617
  %v3627 = vmul.f32 %v3336, %v3622
  %3629 = vset.pattern.permute.xlu0 0
  %3630 = vperm.xlu0 %3629, %v3030
  %v3631 = vpop.permute.xlu0 %3630
  %3634 = vset.pattern.permute.xlu0 0
  %3635 = vperm.xlu0 %3634, %v3031
  %v3636 = vpop.permute.xlu0 %3635
  %3639 = vset.pattern.permute.xlu0 0
  %3640 = vperm.xlu0 %3639, %v3032
  %v3641 = vpop.permute.xlu0 %3640
  %3644 = vset.pattern.permute.xlu0 0
  %3645 = vperm.xlu0 %3644, %v3033
  %v3646 = vpop.permute.xlu0 %3645
  %v3648 = vadd.f32 %v3624, %v3631
  %v3649 = vadd.f32 %v3625, %v3636
  %v3650 = vadd.f32 %v3626, %v3641
  %v3651 = vadd.f32 %v3627, %v3646
  %v3652 = vmax.f32 %v3648, 0.0
  %v3653 = vmax.f32 %v3649, 0.0
  %v3654 = vmax.f32 %v3650, 0.0
  %v3655 = vmax.f32 %v3651, 0.0
  %v3656 = vmul.f32 %v3600, %v3607
  %v3657 = vmul.f32 %v3601, %v3612
  %v3658 = vmul.f32 %v3602, %v3617
  %v3659 = vmul.f32 %v3603, %v3622
  %v3660 = vadd.f32 %v3656, %v3631
  %v3661 = vadd.f32 %v3657, %v3636
  %v3662 = vadd.f32 %v3658, %v3641
  %v3663 = vadd.f32 %v3659, %v3646
  %v3664 = vmax.f32 %v3660, 0.0
  %v3665 = vmax.f32 %v3661, 0.0
  %v3666 = vmax.f32 %v3662, 0.0
  %v3667 = vmax.f32 %v3663, 0.0
  %v3668 = vmax.f32 %v3652, %v3664
  %v3669 = vmax.f32 %v3653, %v3665
  %v3670 = vmax.f32 %v3654, %v3666
  %v3671 = vmax.f32 %v3655, %v3667
  %v3672 = vld [vmem:[%s65] sm:$0xff]
  %vm3673 = vcmask 64512
  %v3675 = vsel %vm3673, %v3668, 0
  %v3678 = vsel %vm3673, %v3669, 0
  %v3681 = vsel %vm3673, %v3670, 0
  %v3684 = vsel %vm3673, %v3671, 0
  %3686 = vmatprep.subr.mxu0 0.0
  %3687 = vmatpush1.msra.mxu0 %v3672
  %3688 = vmatprep.subr.mxu0 0.0
  %3689 = vmatpush1.msra.mxu0 0.0
  %3690 = vmatprep.subr.mxu0 0.0
  %3691 = vmatpush1.msra.mxu0 0.0
  %3692 = vmatprep.subr.mxu0 0.0
  %3693 = vmatpush1.msra.mxu0 0.0
  %3694 = vmatprep.subr.mxu0 0.0
  %3695 = vmatpush1.msra.mxu0 0.0
  %3696 = vmatprep.subr.mxu0 0.0
  %3697 = vmatpush1.msra.mxu0 0.0
  %3698 = vmatprep.subr.mxu0 0.0
  %3699 = vmatpush1.msra.mxu0 0.0
  %3700 = vmatprep.subr.mxu0 0.0
  %3701 = vmatpush1.msra.mxu0 0.0
  %3702 = vmatprep.subr.mxu0 0.0
  %3703 = vmatpush1.msra.mxu0 0.0
  %3704 = vmatprep.subr.mxu0 0.0
  %3705 = vmatpush1.msra.mxu0 0.0
  %3706 = vmatprep.subr.mxu0 0.0
  %3707 = vmatpush1.msra.mxu0 0.0
  %3708 = vmatprep.subr.mxu0 0.0
  %3709 = vmatpush1.msra.mxu0 0.0
  %3710 = vmatprep.subr.mxu0 0.0
  %3711 = vmatpush1.msra.mxu0 0.0
  %3712 = vmatprep.subr.mxu0 0.0
  %3713 = vmatpush1.msra.mxu0 0.0
  %3714 = vmatprep.subr.mxu0 0.0
  %3715 = vmatpush1.msra.mxu0 0.0
  %3716 = vmatprep.subr.mxu0 0.0
  %3717 = vmatpush1.msra.mxu0 0.0
  %3718 = vmatprep.subr.mxu0 0.0
  %3719 = vmatpush1.msra.mxu0 0.0
  %3720 = vmatprep.subr.mxu0 0.0
  %3721 = vmatpush1.msra.mxu0 0.0
  %3722 = vmatprep.subr.mxu0 0.0
  %3723 = vmatpush1.msra.mxu0 0.0
  %3724 = vmatprep.subr.mxu0 0.0
  %3725 = vmatpush1.msra.mxu0 0.0
  %3726 = vmatprep.subr.mxu0 0.0
  %3727 = vmatpush1.msra.mxu0 0.0
  %3728 = vmatprep.subr.mxu0 0.0
  %3729 = vmatpush1.msra.mxu0 0.0
  %3730 = vmatprep.subr.mxu0 0.0
  %3731 = vmatpush1.msra.mxu0 0.0
  %3732 = vmatprep.subr.mxu0 0.0
  %3733 = vmatpush1.msra.mxu0 0.0
  %3734 = vmatprep.subr.mxu0 0.0
  %3735 = vmatpush1.msra.mxu0 0.0
  %3736 = vmatprep.subr.mxu0 0.0
  %3737 = vmatpush1.msra.mxu0 0.0
  %3738 = vmatprep.subr.mxu0 0.0
  %3739 = vmatpush1.msra.mxu0 0.0
  %3740 = vmatprep.subr.mxu0 0.0
  %3741 = vmatpush1.msra.mxu0 0.0
  %3742 = vmatprep.subr.mxu0 0.0
  %3743 = vmatpush1.msra.mxu0 0.0
  %3744 = vmatprep.subr.mxu0 0.0
  %3745 = vmatpush1.msra.mxu0 0.0
  %3746 = vmatprep.subr.mxu0 0.0
  %3747 = vmatpush1.msra.mxu0 0.0
  %3748 = vmatprep.subr.mxu0 0.0
  %3749 = vmatpush1.msra.mxu0 0.0
  %3750 = vmatprep.mubr.f32.mxu0 0.0
  %3751 = vmatmul.mubr.f32.gmra.mrb[0].mxu0 %v3675
  %v3752 = vpop.f32.mrb[0].mxu0
  %v3753 = vadd.f32 0.0, %v3752
  %v3754 = vpop.f32.mrb[0].mxu0
  %3755 = vmatprep.mubr.f32.mxu0 0.0
  %3756 = vmatmul.mubr.f32.gmra.mrb[0].mxu0 %v3678
  %v3757 = vpop.f32.mrb[0].mxu0
  %v3758 = vadd.f32 0.0, %v3757
  %v3759 = vpop.f32.mrb[0].mxu0
  %3760 = vmatprep.mubr.f32.mxu0 0.0
  %3761 = vmatmul.mubr.f32.gmra.mrb[0].mxu0 %v3681
  %v3762 = vpop.f32.mrb[0].mxu0
  %v3763 = vadd.f32 0.0, %v3762
  %v3764 = vpop.f32.mrb[0].mxu0
  %3765 = vmatprep.mubr.f32.mxu0 0.0
  %3766 = vmatmul.mubr.f32.gmra.mrb[0].mxu0 %v3684
  %v3767 = vpop.f32.mrb[0].mxu0
  %v3768 = vadd.f32 0.0, %v3767
  %v3769 = vpop.f32.mrb[0].mxu0
  %3770 = vdwg.mxu0
  %v3771 = vld [vmem:[%s67] sm:$0xff]
  %3772 = vmatprep.subr.mxu0 0.0
  %3773 = vmatpush1.msra.mxu0 %v3771
  %3774 = vmatprep.subr.mxu0 0.0
  %3775 = vmatpush1.msra.mxu0 0.0
  %3776 = vmatprep.subr.mxu0 0.0
  %3777 = vmatpush1.msra.mxu0 0.0
  %3778 = vmatprep.subr.mxu0 0.0
  %3779 = vmatpush1.msra.mxu0 0.0
  %3780 = vmatprep.subr.mxu0 0.0
  %3781 = vmatpush1.msra.mxu0 0.0
  %3782 = vmatprep.subr.mxu0 0.0
  %3783 = vmatpush1.msra.mxu0 0.0
  %3784 = vmatprep.subr.mxu0 0.0
  %3785 = vmatpush1.msra.mxu0 0.0
  %3786 = vmatprep.subr.mxu0 0.0
  %3787 = vmatpush1.msra.mxu0 0.0
  %3788 = vmatprep.subr.mxu0 0.0
  %3789 = vmatpush1.msra.mxu0 0.0
  %3790 = vmatprep.subr.mxu0 0.0
  %3791 = vmatpush1.msra.mxu0 0.0
  %3792 = vmatprep.subr.mxu0 0.0
  %3793 = vmatpush1.msra.mxu0 0.0
  %3794 = vmatprep.subr.mxu0 0.0
  %3795 = vmatpush1.msra.mxu0 0.0
  %3796 = vmatprep.subr.mxu0 0.0
  %3797 = vmatpush1.msra.mxu0 0.0
  %3798 = vmatprep.subr.mxu0 0.0
  %3799 = vmatpush1.msra.mxu0 0.0
  %3800 = vmatprep.subr.mxu0 0.0
  %3801 = vmatpush1.msra.mxu0 0.0
  %3802 = vmatprep.subr.mxu0 0.0
  %3803 = vmatpush1.msra.mxu0 0.0
  %3804 = vmatprep.subr.mxu0 0.0
  %3805 = vmatpush1.msra.mxu0 0.0
  %3806 = vmatprep.subr.mxu0 0.0
  %3807 = vmatpush1.msra.mxu0 0.0
  %3808 = vmatprep.subr.mxu0 0.0
  %3809 = vmatpush1.msra.mxu0 0.0
  %3810 = vmatprep.subr.mxu0 0.0
  %3811 = vmatpush1.msra.mxu0 0.0
  %3812 = vmatprep.subr.mxu0 0.0
  %3813 = vmatpush1.msra.mxu0 0.0
  %3814 = vmatprep.subr.mxu0 0.0
  %3815 = vmatpush1.msra.mxu0 0.0
  %3816 = vmatprep.subr.mxu0 0.0
  %3817 = vmatpush1.msra.mxu0 0.0
  %3818 = vmatprep.subr.mxu0 0.0
  %3819 = vmatpush1.msra.mxu0 0.0
  %3820 = vmatprep.subr.mxu0 0.0
  %3821 = vmatpush1.msra.mxu0 0.0
  %3822 = vmatprep.subr.mxu0 0.0
  %3823 = vmatpush1.msra.mxu0 0.0
  %3824 = vmatprep.subr.mxu0 0.0
  %3825 = vmatpush1.msra.mxu0 0.0
  %3826 = vmatprep.subr.mxu0 0.0
  %3827 = vmatpush1.msra.mxu0 0.0
  %3828 = vmatprep.subr.mxu0 0.0
  %3829 = vmatpush1.msra.mxu0 0.0
  %3830 = vmatprep.subr.mxu0 0.0
  %3831 = vmatpush1.msra.mxu0 0.0
  %3832 = vmatprep.subr.mxu0 0.0
  %3833 = vmatpush1.msra.mxu0 0.0
  %3834 = vmatprep.subr.mxu0 0.0
  %3835 = vmatpush1.msra.mxu0 0.0
  %3836 = vmatprep.mubr.f32.mxu0 0.0
  %3837 = vmatmul.mubr.f32.gmra.mrb[0].mxu0 %v3675
  %v3838 = vpop.f32.mrb[0].mxu0
  %v3839 = vadd.f32 0.0, %v3838
  %v3840 = vpop.f32.mrb[0].mxu0
  %3841 = vmatprep.mubr.f32.mxu0 0.0
  %3842 = vmatmul.mubr.f32.gmra.mrb[0].mxu0 %v3678
  %v3843 = vpop.f32.mrb[0].mxu0
  %v3844 = vadd.f32 0.0, %v3843
  %v3845 = vpop.f32.mrb[0].mxu0
  %3846 = vmatprep.mubr.f32.mxu0 0.0
  %3847 = vmatmul.mubr.f32.gmra.mrb[0].mxu0 %v3681
  %v3848 = vpop.f32.mrb[0].mxu0
  %v3849 = vadd.f32 0.0, %v3848
  %v3850 = vpop.f32.mrb[0].mxu0
  %3851 = vmatprep.mubr.f32.mxu0 0.0
  %3852 = vmatmul.mubr.f32.gmra.mrb[0].mxu0 %v3684
  %v3853 = vpop.f32.mrb[0].mxu0
  %v3854 = vadd.f32 0.0, %v3853
  %v3855 = vpop.f32.mrb[0].mxu0
  %3856 = vdwg.mxu0
  %v3857 = vld [vmem:[%s37] sm:$0xff]
  %v3858 = vld [vmem:[%s37 + $0x8] sm:$0xff]
  %v3859 = vld [vmem:[%s37 + $0x10] sm:$0xff]
  %v3860 = vld [vmem:[%s37 + $0x18] sm:$0xff]
  %v3861 = vld [vmem:[%s37 + $0x20] sm:$0xff]
  %v3862 = vld [vmem:[%s37 + $0x28] sm:$0xff]
  %v3863 = vld [vmem:[%s37 + $0x30] sm:$0xff]
  %v3864 = vld [vmem:[%s37 + $0x38] sm:$0xff]
  %s3865 = scalar_lea.vmem %s37, 64
  %v3866 = vld [vmem:[%s3865] sm:$0xff]
  %v3867 = vld [vmem:[%s3865 + $0x8] sm:$0xff]
  %v3868 = vld [vmem:[%s3865 + $0x10] sm:$0xff]
  %v3869 = vld [vmem:[%s3865 + $0x18] sm:$0xff]
  %v3870 = vld [vmem:[%s3865 + $0x20] sm:$0xff]
  %v3871 = vld [vmem:[%s3865 + $0x28] sm:$0xff]
  %v3872 = vld [vmem:[%s3865 + $0x30] sm:$0xff]
  %v3873 = vld [vmem:[%s3865 + $0x38] sm:$0xff]
  %s3874 = scalar_lea.vmem %s37, 128
  %v3875 = vld [vmem:[%s3874] sm:$0xff]
  %v3876 = vld [vmem:[%s3874 + $0x8] sm:$0xff]
  %v3877 = vld [vmem:[%s3874 + $0x10] sm:$0xff]
  %v3878 = vld [vmem:[%s3874 + $0x18] sm:$0xff]
  %v3879 = vld [vmem:[%s3874 + $0x20] sm:$0xff]
  %v3880 = vld [vmem:[%s3874 + $0x28] sm:$0xff]
  %v3881 = vld [vmem:[%s3874 + $0x30] sm:$0xff]
  %v3882 = vld [vmem:[%s3874 + $0x38] sm:$0xff]
  %v3883 = vld [vmem:[%s39] sm:$0xff]
  %v3884 = vld [vmem:[%s39 + $0x8] sm:$0xff]
  %v3885 = vld [vmem:[%s39 + $0x10] sm:$0xff]
  %v3886 = vld [vmem:[%s39 + $0x18] sm:$0xff]
  %v3887 = vld [vmem:[%s39 + $0x20] sm:$0xff]
  %v3888 = vld [vmem:[%s39 + $0x28] sm:$0xff]
  %v3889 = vld [vmem:[%s39 + $0x30] sm:$0xff]
  %v3890 = vld [vmem:[%s39 + $0x38] sm:$0xff]
  %v3891 = vld [vmem:[%s41] sm:$0xff]
  %v3892 = vld [vmem:[%s41 + $0x8] sm:$0xff]
  %v3893 = vld [vmem:[%s41 + $0x10] sm:$0xff]
  %v3894 = vld [vmem:[%s41 + $0x18] sm:$0xff]
  %v3895 = vld [vmem:[%s41 + $0x20] sm:$0xff]
  %v3896 = vld [vmem:[%s41 + $0x28] sm:$0xff]
  %v3897 = vld [vmem:[%s41 + $0x30] sm:$0xff]
  %v3898 = vld [vmem:[%s41 + $0x38] sm:$0xff]
  %v3900 = vsel %vm2157, %v3866, 0
  %v3903 = vsel %vm2157, %v3867, 0
  %v3906 = vsel %vm2157, %v3868, 0
  %v3909 = vsel %vm2157, %v3869, 0
  %v3912 = vsel %vm2157, %v3870, 0
  %v3915 = vsel %vm2157, %v3871, 0
  %v3918 = vsel %vm2157, %v3872, 0
  %v3921 = vsel %vm2157, %v3873, 0
  %3923 = vmatprep.subr.mxu0 0.0
  %3924 = vmatpush1.msra.mxu0 %v3753
  %3925 = vmatprep.subr.mxu0 0.0
  %3926 = vmatpush1.msra.mxu0 %v3758
  %3927 = vmatprep.subr.mxu0 0.0
  %3928 = vmatpush1.msra.mxu0 %v3763
  %3929 = vmatprep.subr.mxu0 0.0
  %3930 = vmatpush1.msra.mxu0 %v3768
  %3931 = vmatprep.subr.mxu0 0.0
  %3932 = vmatpush1.msra.mxu0 0.0
  %3933 = vmatprep.subr.mxu0 0.0
  %3934 = vmatpush1.msra.mxu0 0.0
  %3935 = vmatprep.subr.mxu0 0.0
  %3936 = vmatpush1.msra.mxu0 0.0
  %3937 = vmatprep.subr.mxu0 0.0
  %3938 = vmatpush1.msra.mxu0 0.0
  %3939 = vmatprep.subr.mxu0 0.0
  %3940 = vmatpush1.msra.mxu0 0.0
  %3941 = vmatprep.subr.mxu0 0.0
  %3942 = vmatpush1.msra.mxu0 0.0
  %3943 = vmatprep.subr.mxu0 0.0
  %3944 = vmatpush1.msra.mxu0 0.0
  %3945 = vmatprep.subr.mxu0 0.0
  %3946 = vmatpush1.msra.mxu0 0.0
  %3947 = vmatprep.subr.mxu0 0.0
  %3948 = vmatpush1.msra.mxu0 0.0
  %3949 = vmatprep.subr.mxu0 0.0
  %3950 = vmatpush1.msra.mxu0 0.0
  %3951 = vmatprep.subr.mxu0 0.0
  %3952 = vmatpush1.msra.mxu0 0.0
  %3953 = vmatprep.subr.mxu0 0.0
  %3954 = vmatpush1.msra.mxu0 0.0
  %3955 = vmatprep.subr.mxu0 0.0
  %3956 = vmatpush1.msra.mxu0 0.0
  %3957 = vmatprep.subr.mxu0 0.0
  %3958 = vmatpush1.msra.mxu0 0.0
  %3959 = vmatprep.subr.mxu0 0.0
  %3960 = vmatpush1.msra.mxu0 0.0
  %3961 = vmatprep.subr.mxu0 0.0
  %3962 = vmatpush1.msra.mxu0 0.0
  %3963 = vmatprep.subr.mxu0 0.0
  %3964 = vmatpush1.msra.mxu0 0.0
  %3965 = vmatprep.subr.mxu0 0.0
  %3966 = vmatpush1.msra.mxu0 0.0
  %3967 = vmatprep.subr.mxu0 0.0
  %3968 = vmatpush1.msra.mxu0 0.0
  %3969 = vmatprep.subr.mxu0 0.0
  %3970 = vmatpush1.msra.mxu0 0.0
  %3971 = vmatprep.subr.mxu0 0.0
  %3972 = vmatpush1.msra.mxu0 0.0
  %3973 = vmatprep.subr.mxu0 0.0
  %3974 = vmatpush1.msra.mxu0 0.0
  %3975 = vmatprep.subr.mxu0 0.0
  %3976 = vmatpush1.msra.mxu0 0.0
  %3977 = vmatprep.subr.mxu0 0.0
  %3978 = vmatpush1.msra.mxu0 0.0
  %3979 = vmatprep.subr.mxu0 0.0
  %3980 = vmatpush1.msra.mxu0 0.0
  %3981 = vmatprep.subr.mxu0 0.0
  %3982 = vmatpush1.msra.mxu0 0.0
  %3983 = vmatprep.subr.mxu0 0.0
  %3984 = vmatpush1.msra.mxu0 0.0
  %3985 = vmatprep.subr.mxu0 0.0
  %3986 = vmatpush1.msra.mxu0 0.0
  %3987 = vmatprep.mubr.f32.mxu0 0.0
  %3988 = vmatmul.mubr.f32.gmra.mrb[0].mxu0 %v3900
  %v3989 = vpop.f32.mrb[0].mxu0
  %v3990 = vadd.f32 0.0, %v3989
  %v3991 = vpop.f32.mrb[0].mxu0
  %3992 = vmatprep.mubr.f32.mxu0 0.0
  %3993 = vmatmul.mubr.f32.gmra.mrb[0].mxu0 %v3903
  %v3994 = vpop.f32.mrb[0].mxu0
  %v3995 = vadd.f32 0.0, %v3994
  %v3996 = vpop.f32.mrb[0].mxu0
  %3997 = vmatprep.mubr.f32.mxu0 0.0
  %3998 = vmatmul.mubr.f32.gmra.mrb[0].mxu0 %v3906
  %v3999 = vpop.f32.mrb[0].mxu0
  %v4000 = vadd.f32 0.0, %v3999
  %v4001 = vpop.f32.mrb[0].mxu0
  %4002 = vmatprep.mubr.f32.mxu0 0.0
  %4003 = vmatmul.mubr.f32.gmra.mrb[0].mxu0 %v3909
  %v4004 = vpop.f32.mrb[0].mxu0
  %v4005 = vadd.f32 0.0, %v4004
  %v4006 = vpop.f32.mrb[0].mxu0
  %4007 = vmatprep.mubr.f32.mxu0 0.0
  %4008 = vmatmul.mubr.f32.gmra.mrb[0].mxu0 %v3912
  %v4009 = vpop.f32.mrb[0].mxu0
  %v4010 = vadd.f32 0.0, %v4009
  %v4011 = vpop.f32.mrb[0].mxu0
  %4012 = vmatprep.mubr.f32.mxu0 0.0
  %4013 = vmatmul.mubr.f32.gmra.mrb[0].mxu0 %v3915
  %v4014 = vpop.f32.mrb[0].mxu0
  %v4015 = vadd.f32 0.0, %v4014
  %v4016 = vpop.f32.mrb[0].mxu0
  %4017 = vmatprep.mubr.f32.mxu0 0.0
  %4018 = vmatmul.mubr.f32.gmra.mrb[0].mxu0 %v3918
  %v4019 = vpop.f32.mrb[0].mxu0
  %v4020 = vadd.f32 0.0, %v4019
  %v4021 = vpop.f32.mrb[0].mxu0
  %4022 = vmatprep.mubr.f32.mxu0 0.0
  %4023 = vmatmul.mubr.f32.gmra.mrb[0].mxu0 %v3921
  %v4024 = vpop.f32.mrb[0].mxu0
  %v4025 = vadd.f32 0.0, %v4024
  %v4026 = vpop.f32.mrb[0].mxu0
  %4027 = vdwg.mxu0
  %v4029 = vsel %vm2157, %v3857, 0
  %v4032 = vsel %vm2157, %v3858, 0
  %v4035 = vsel %vm2157, %v3859, 0
  %v4038 = vsel %vm2157, %v3860, 0
  %v4041 = vsel %vm2157, %v3861, 0
  %v4044 = vsel %vm2157, %v3862, 0
  %v4047 = vsel %vm2157, %v3863, 0
  %v4050 = vsel %vm2157, %v3864, 0
  %4052 = vmatprep.subr.mxu0 0.0
  %4053 = vmatpush1.msra.mxu0 %v3839
  %4054 = vmatprep.subr.mxu0 0.0
  %4055 = vmatpush1.msra.mxu0 %v3844
  %4056 = vmatprep.subr.mxu0 0.0
  %4057 = vmatpush1.msra.mxu0 %v3849
  %4058 = vmatprep.subr.mxu0 0.0
  %4059 = vmatpush1.msra.mxu0 %v3854
  %4060 = vmatprep.subr.mxu0 0.0
  %4061 = vmatpush1.msra.mxu0 0.0
  %4062 = vmatprep.subr.mxu0 0.0
  %4063 = vmatpush1.msra.mxu0 0.0
  %4064 = vmatprep.subr.mxu0 0.0
  %4065 = vmatpush1.msra.mxu0 0.0
  %4066 = vmatprep.subr.mxu0 0.0
  %4067 = vmatpush1.msra.mxu0 0.0
  %4068 = vmatprep.subr.mxu0 0.0
  %4069 = vmatpush1.msra.mxu0 0.0
  %4070 = vmatprep.subr.mxu0 0.0
  %4071 = vmatpush1.msra.mxu0 0.0
  %4072 = vmatprep.subr.mxu0 0.0
  %4073 = vmatpush1.msra.mxu0 0.0
  %4074 = vmatprep.subr.mxu0 0.0
  %4075 = vmatpush1.msra.mxu0 0.0
  %4076 = vmatprep.subr.mxu0 0.0
  %4077 = vmatpush1.msra.mxu0 0.0
  %4078 = vmatprep.subr.mxu0 0.0
  %4079 = vmatpush1.msra.mxu0 0.0
  %4080 = vmatprep.subr.mxu0 0.0
  %4081 = vmatpush1.msra.mxu0 0.0
  %4082 = vmatprep.subr.mxu0 0.0
  %4083 = vmatpush1.msra.mxu0 0.0
  %4084 = vmatprep.subr.mxu0 0.0
  %4085 = vmatpush1.msra.mxu0 0.0
  %4086 = vmatprep.subr.mxu0 0.0
  %4087 = vmatpush1.msra.mxu0 0.0
  %4088 = vmatprep.subr.mxu0 0.0
  %4089 = vmatpush1.msra.mxu0 0.0
  %4090 = vmatprep.subr.mxu0 0.0
  %4091 = vmatpush1.msra.mxu0 0.0
  %4092 = vmatprep.subr.mxu0 0.0
  %4093 = vmatpush1.msra.mxu0 0.0
  %4094 = vmatprep.subr.mxu0 0.0
  %4095 = vmatpush1.msra.mxu0 0.0
  %4096 = vmatprep.subr.mxu0 0.0
  %4097 = vmatpush1.msra.mxu0 0.0
  %4098 = vmatprep.subr.mxu0 0.0
  %4099 = vmatpush1.msra.mxu0 0.0
  %4100 = vmatprep.subr.mxu0 0.0
  %4101 = vmatpush1.msra.mxu0 0.0
  %4102 = vmatprep.subr.mxu0 0.0
  %4103 = vmatpush1.msra.mxu0 0.0
  %4104 = vmatprep.subr.mxu0 0.0
  %4105 = vmatpush1.msra.mxu0 0.0
  %4106 = vmatprep.subr.mxu0 0.0
  %4107 = vmatpush1.msra.mxu0 0.0
  %4108 = vmatprep.subr.mxu0 0.0
  %4109 = vmatpush1.msra.mxu0 0.0
  %4110 = vmatprep.subr.mxu0 0.0
  %4111 = vmatpush1.msra.mxu0 0.0
  %4112 = vmatprep.subr.mxu0 0.0
  %4113 = vmatpush1.msra.mxu0 0.0
  %4114 = vmatprep.subr.mxu0 0.0
  %4115 = vmatpush1.msra.mxu0 0.0
  %4116 = vmatprep.mubr.f32.mxu0 0.0
  %4117 = vmatmul.mubr.f32.gmra.mrb[0].mxu0 %v4029
  %v4118 = vpop.f32.mrb[0].mxu0
  %v4119 = vadd.f32 %v3990, %v4118
  %v4120 = vpop.f32.mrb[0].mxu0
  %4121 = vmatprep.mubr.f32.mxu0 0.0
  %4122 = vmatmul.mubr.f32.gmra.mrb[0].mxu0 %v4032
  %v4123 = vpop.f32.mrb[0].mxu0
  %v4124 = vadd.f32 %v3995, %v4123
  %v4125 = vpop.f32.mrb[0].mxu0
  %4126 = vmatprep.mubr.f32.mxu0 0.0
  %4127 = vmatmul.mubr.f32.gmra.mrb[0].mxu0 %v4035
  %v4128 = vpop.f32.mrb[0].mxu0
  %v4129 = vadd.f32 %v4000, %v4128
  %v4130 = vpop.f32.mrb[0].mxu0
  %4131 = vmatprep.mubr.f32.mxu0 0.0
  %4132 = vmatmul.mubr.f32.gmra.mrb[0].mxu0 %v4038
  %v4133 = vpop.f32.mrb[0].mxu0
  %v4134 = vadd.f32 %v4005, %v4133
  %v4135 = vpop.f32.mrb[0].mxu0
  %4136 = vmatprep.mubr.f32.mxu0 0.0
  %4137 = vmatmul.mubr.f32.gmra.mrb[0].mxu0 %v4041
  %v4138 = vpop.f32.mrb[0].mxu0
  %v4139 = vadd.f32 %v4010, %v4138
  %v4140 = vpop.f32.mrb[0].mxu0
  %4141 = vmatprep.mubr.f32.mxu0 0.0
  %4142 = vmatmul.mubr.f32.gmra.mrb[0].mxu0 %v4044
  %v4143 = vpop.f32.mrb[0].mxu0
  %v4144 = vadd.f32 %v4015, %v4143
  %v4145 = vpop.f32.mrb[0].mxu0
  %4146 = vmatprep.mubr.f32.mxu0 0.0
  %4147 = vmatmul.mubr.f32.gmra.mrb[0].mxu0 %v4047
  %v4148 = vpop.f32.mrb[0].mxu0
  %v4149 = vadd.f32 %v4020, %v4148
  %v4150 = vpop.f32.mrb[0].mxu0
  %4151 = vmatprep.mubr.f32.mxu0 0.0
  %4152 = vmatmul.mubr.f32.gmra.mrb[0].mxu0 %v4050
  %v4153 = vpop.f32.mrb[0].mxu0
  %v4154 = vadd.f32 %v4025, %v4153
  %v4155 = vpop.f32.mrb[0].mxu0
  %4156 = vdwg.mxu0
  %4161 = vrot.lane.b32.xlu0 %v3839, 127
  %v4162 = vpop.permute.xlu0 %4161
  %4163 = vrot.lane.b32.xlu0 %v3844, 127
  %v4164 = vpop.permute.xlu0 %4163
  %4165 = vrot.lane.b32.xlu0 %v3849, 127
  %v4166 = vpop.permute.xlu0 %4165
  %4167 = vrot.lane.b32.xlu0 %v3854, 127
  %v4168 = vpop.permute.xlu0 %4167
  %v4174 = vsel %vm2157, %v3875, 0
  %v4177 = vsel %vm2157, %v3876, 0
  %v4180 = vsel %vm2157, %v3877, 0
  %v4183 = vsel %vm2157, %v3878, 0
  %v4186 = vsel %vm2157, %v3879, 0
  %v4189 = vsel %vm2157, %v3880, 0
  %v4192 = vsel %vm2157, %v3881, 0
  %v4195 = vsel %vm2157, %v3882, 0
  %4197 = vmatprep.subr.mxu0 0.0
  %4198 = vmatpush1.msra.mxu0 %v4162
  %4199 = vmatprep.subr.mxu0 0.0
  %4200 = vmatpush1.msra.mxu0 %v4164
  %4201 = vmatprep.subr.mxu0 0.0
  %4202 = vmatpush1.msra.mxu0 %v4166
  %4203 = vmatprep.subr.mxu0 0.0
  %4204 = vmatpush1.msra.mxu0 %v4168
  %4205 = vmatprep.subr.mxu0 0.0
  %4206 = vmatpush1.msra.mxu0 0.0
  %4207 = vmatprep.subr.mxu0 0.0
  %4208 = vmatpush1.msra.mxu0 0.0
  %4209 = vmatprep.subr.mxu0 0.0
  %4210 = vmatpush1.msra.mxu0 0.0
  %4211 = vmatprep.subr.mxu0 0.0
  %4212 = vmatpush1.msra.mxu0 0.0
  %4213 = vmatprep.subr.mxu0 0.0
  %4214 = vmatpush1.msra.mxu0 0.0
  %4215 = vmatprep.subr.mxu0 0.0
  %4216 = vmatpush1.msra.mxu0 0.0
  %4217 = vmatprep.subr.mxu0 0.0
  %4218 = vmatpush1.msra.mxu0 0.0
  %4219 = vmatprep.subr.mxu0 0.0
  %4220 = vmatpush1.msra.mxu0 0.0
  %4221 = vmatprep.subr.mxu0 0.0
  %4222 = vmatpush1.msra.mxu0 0.0
  %4223 = vmatprep.subr.mxu0 0.0
  %4224 = vmatpush1.msra.mxu0 0.0
  %4225 = vmatprep.subr.mxu0 0.0
  %4226 = vmatpush1.msra.mxu0 0.0
  %4227 = vmatprep.subr.mxu0 0.0
  %4228 = vmatpush1.msra.mxu0 0.0
  %4229 = vmatprep.subr.mxu0 0.0
  %4230 = vmatpush1.msra.mxu0 0.0
  %4231 = vmatprep.subr.mxu0 0.0
  %4232 = vmatpush1.msra.mxu0 0.0
  %4233 = vmatprep.subr.mxu0 0.0
  %4234 = vmatpush1.msra.mxu0 0.0
  %4235 = vmatprep.subr.mxu0 0.0
  %4236 = vmatpush1.msra.mxu0 0.0
  %4237 = vmatprep.subr.mxu0 0.0
  %4238 = vmatpush1.msra.mxu0 0.0
  %4239 = vmatprep.subr.mxu0 0.0
  %4240 = vmatpush1.msra.mxu0 0.0
  %4241 = vmatprep.subr.mxu0 0.0
  %4242 = vmatpush1.msra.mxu0 0.0
  %4243 = vmatprep.subr.mxu0 0.0
  %4244 = vmatpush1.msra.mxu0 0.0
  %4245 = vmatprep.subr.mxu0 0.0
  %4246 = vmatpush1.msra.mxu0 0.0
  %4247 = vmatprep.subr.mxu0 0.0
  %4248 = vmatpush1.msra.mxu0 0.0
  %4249 = vmatprep.subr.mxu0 0.0
  %4250 = vmatpush1.msra.mxu0 0.0
  %4251 = vmatprep.subr.mxu0 0.0
  %4252 = vmatpush1.msra.mxu0 0.0
  %4253 = vmatprep.subr.mxu0 0.0
  %4254 = vmatpush1.msra.mxu0 0.0
  %4255 = vmatprep.subr.mxu0 0.0
  %4256 = vmatpush1.msra.mxu0 0.0
  %4257 = vmatprep.subr.mxu0 0.0
  %4258 = vmatpush1.msra.mxu0 0.0
  %4259 = vmatprep.subr.mxu0 0.0
  %4260 = vmatpush1.msra.mxu0 0.0
  %4261 = vmatprep.mubr.f32.mxu0 0.0
  %4262 = vmatmul.mubr.f32.gmra.mrb[0].mxu0 %v4174
  %v4263 = vpop.f32.mrb[0].mxu0
  %v4264 = vadd.f32 0.0, %v4263
  %v4265 = vpop.f32.mrb[0].mxu0
  %4266 = vmatprep.mubr.f32.mxu0 0.0
  %4267 = vmatmul.mubr.f32.gmra.mrb[0].mxu0 %v4177
  %v4268 = vpop.f32.mrb[0].mxu0
  %v4269 = vadd.f32 0.0, %v4268
  %v4270 = vpop.f32.mrb[0].mxu0
  %4271 = vmatprep.mubr.f32.mxu0 0.0
  %4272 = vmatmul.mubr.f32.gmra.mrb[0].mxu0 %v4180
  %v4273 = vpop.f32.mrb[0].mxu0
  %v4274 = vadd.f32 0.0, %v4273
  %v4275 = vpop.f32.mrb[0].mxu0
  %4276 = vmatprep.mubr.f32.mxu0 0.0
  %4277 = vmatmul.mubr.f32.gmra.mrb[0].mxu0 %v4183
  %v4278 = vpop.f32.mrb[0].mxu0
  %v4279 = vadd.f32 0.0, %v4278
  %v4280 = vpop.f32.mrb[0].mxu0
  %4281 = vmatprep.mubr.f32.mxu0 0.0
  %4282 = vmatmul.mubr.f32.gmra.mrb[0].mxu0 %v4186
  %v4283 = vpop.f32.mrb[0].mxu0
  %v4284 = vadd.f32 0.0, %v4283
  %v4285 = vpop.f32.mrb[0].mxu0
  %4286 = vmatprep.mubr.f32.mxu0 0.0
  %4287 = vmatmul.mubr.f32.gmra.mrb[0].mxu0 %v4189
  %v4288 = vpop.f32.mrb[0].mxu0
  %v4289 = vadd.f32 0.0, %v4288
  %v4290 = vpop.f32.mrb[0].mxu0
  %4291 = vmatprep.mubr.f32.mxu0 0.0
  %4292 = vmatmul.mubr.f32.gmra.mrb[0].mxu0 %v4192
  %v4293 = vpop.f32.mrb[0].mxu0
  %v4294 = vadd.f32 0.0, %v4293
  %v4295 = vpop.f32.mrb[0].mxu0
  %4296 = vmatprep.mubr.f32.mxu0 0.0
  %4297 = vmatmul.mubr.f32.gmra.mrb[0].mxu0 %v4195
  %v4298 = vpop.f32.mrb[0].mxu0
  %v4299 = vadd.f32 0.0, %v4298
  %v4300 = vpop.f32.mrb[0].mxu0
  %4301 = vdwg.mxu0
  %v4302 = vadd.f32 %v4119, %v4264
  %v4303 = vadd.f32 %v4124, %v4269
  %v4304 = vadd.f32 %v4129, %v4274
  %v4305 = vadd.f32 %v4134, %v4279
  %v4306 = vadd.f32 %v4139, %v4284
  %v4307 = vadd.f32 %v4144, %v4289
  %v4308 = vadd.f32 %v4149, %v4294
  %v4309 = vadd.f32 %v4154, %v4299
  %4310 = vmatprep.subr.mxu0 0.0
  %4311 = vmatpush1.msra.mxu0 %v4162
  %4312 = vmatprep.subr.mxu0 0.0
  %4313 = vmatpush1.msra.mxu0 %v4164
  %4314 = vmatprep.subr.mxu0 0.0
  %4315 = vmatpush1.msra.mxu0 %v4166
  %4316 = vmatprep.subr.mxu0 0.0
  %4317 = vmatpush1.msra.mxu0 %v4168
  %4318 = vmatprep.subr.mxu0 0.0
  %4319 = vmatpush1.msra.mxu0 0.0
  %4320 = vmatprep.subr.mxu0 0.0
  %4321 = vmatpush1.msra.mxu0 0.0
  %4322 = vmatprep.subr.mxu0 0.0
  %4323 = vmatpush1.msra.mxu0 0.0
  %4324 = vmatprep.subr.mxu0 0.0
  %4325 = vmatpush1.msra.mxu0 0.0
  %4326 = vmatprep.subr.mxu0 0.0
  %4327 = vmatpush1.msra.mxu0 0.0
  %4328 = vmatprep.subr.mxu0 0.0
  %4329 = vmatpush1.msra.mxu0 0.0
  %4330 = vmatprep.subr.mxu0 0.0
  %4331 = vmatpush1.msra.mxu0 0.0
  %4332 = vmatprep.subr.mxu0 0.0
  %4333 = vmatpush1.msra.mxu0 0.0
  %4334 = vmatprep.subr.mxu0 0.0
  %4335 = vmatpush1.msra.mxu0 0.0
  %4336 = vmatprep.subr.mxu0 0.0
  %4337 = vmatpush1.msra.mxu0 0.0
  %4338 = vmatprep.subr.mxu0 0.0
  %4339 = vmatpush1.msra.mxu0 0.0
  %4340 = vmatprep.subr.mxu0 0.0
  %4341 = vmatpush1.msra.mxu0 0.0
  %4342 = vmatprep.subr.mxu0 0.0
  %4343 = vmatpush1.msra.mxu0 0.0
  %4344 = vmatprep.subr.mxu0 0.0
  %4345 = vmatpush1.msra.mxu0 0.0
  %4346 = vmatprep.subr.mxu0 0.0
  %4347 = vmatpush1.msra.mxu0 0.0
  %4348 = vmatprep.subr.mxu0 0.0
  %4349 = vmatpush1.msra.mxu0 0.0
  %4350 = vmatprep.subr.mxu0 0.0
  %4351 = vmatpush1.msra.mxu0 0.0
  %4352 = vmatprep.subr.mxu0 0.0
  %4353 = vmatpush1.msra.mxu0 0.0
  %4354 = vmatprep.subr.mxu0 0.0
  %4355 = vmatpush1.msra.mxu0 0.0
  %4356 = vmatprep.subr.mxu0 0.0
  %4357 = vmatpush1.msra.mxu0 0.0
  %4358 = vmatprep.subr.mxu0 0.0
  %4359 = vmatpush1.msra.mxu0 0.0
  %4360 = vmatprep.subr.mxu0 0.0
  %4361 = vmatpush1.msra.mxu0 0.0
  %4362 = vmatprep.subr.mxu0 0.0
  %4363 = vmatpush1.msra.mxu0 0.0
  %4364 = vmatprep.subr.mxu0 0.0
  %4365 = vmatpush1.msra.mxu0 0.0
  %4366 = vmatprep.subr.mxu0 0.0
  %4367 = vmatpush1.msra.mxu0 0.0
  %4368 = vmatprep.subr.mxu0 0.0
  %4369 = vmatpush1.msra.mxu0 0.0
  %4370 = vmatprep.subr.mxu0 0.0
  %4371 = vmatpush1.msra.mxu0 0.0
  %4372 = vmatprep.subr.mxu0 0.0
  %4373 = vmatpush1.msra.mxu0 0.0
  %4374 = vmatprep.mubr.f32.mxu0 0.0
  %4375 = vmatmul.mubr.f32.gmra.mrb[0].mxu0 %v3900
  %v4376 = vpop.f32.mrb[0].mxu0
  %v4377 = vadd.f32 0.0, %v4376
  %v4378 = vpop.f32.mrb[0].mxu0
  %4379 = vmatprep.mubr.f32.mxu0 0.0
  %4380 = vmatmul.mubr.f32.gmra.mrb[0].mxu0 %v3903
  %v4381 = vpop.f32.mrb[0].mxu0
  %v4382 = vadd.f32 0.0, %v4381
  %v4383 = vpop.f32.mrb[0].mxu0
  %4384 = vmatprep.mubr.f32.mxu0 0.0
  %4385 = vmatmul.mubr.f32.gmra.mrb[0].mxu0 %v3906
  %v4386 = vpop.f32.mrb[0].mxu0
  %v4387 = vadd.f32 0.0, %v4386
  %v4388 = vpop.f32.mrb[0].mxu0
  %4389 = vmatprep.mubr.f32.mxu0 0.0
  %4390 = vmatmul.mubr.f32.gmra.mrb[0].mxu0 %v3909
  %v4391 = vpop.f32.mrb[0].mxu0
  %v4392 = vadd.f32 0.0, %v4391
  %v4393 = vpop.f32.mrb[0].mxu0
  %4394 = vmatprep.mubr.f32.mxu0 0.0
  %4395 = vmatmul.mubr.f32.gmra.mrb[0].mxu0 %v3912
  %v4396 = vpop.f32.mrb[0].mxu0
  %v4397 = vadd.f32 0.0, %v4396
  %v4398 = vpop.f32.mrb[0].mxu0
  %4399 = vmatprep.mubr.f32.mxu0 0.0
  %4400 = vmatmul.mubr.f32.gmra.mrb[0].mxu0 %v3915
  %v4401 = vpop.f32.mrb[0].mxu0
  %v4402 = vadd.f32 0.0, %v4401
  %v4403 = vpop.f32.mrb[0].mxu0
  %4404 = vmatprep.mubr.f32.mxu0 0.0
  %4405 = vmatmul.mubr.f32.gmra.mrb[0].mxu0 %v3918
  %v4406 = vpop.f32.mrb[0].mxu0
  %v4407 = vadd.f32 0.0, %v4406
  %v4408 = vpop.f32.mrb[0].mxu0
  %4409 = vmatprep.mubr.f32.mxu0 0.0
  %4410 = vmatmul.mubr.f32.gmra.mrb[0].mxu0 %v3921
  %v4411 = vpop.f32.mrb[0].mxu0
  %v4412 = vadd.f32 0.0, %v4411
  %v4413 = vpop.f32.mrb[0].mxu0
  %4414 = vdwg.mxu0
  %4415 = vmatprep.subr.mxu0 0.0
  %4416 = vmatpush1.msra.mxu0 %v3753
  %4417 = vmatprep.subr.mxu0 0.0
  %4418 = vmatpush1.msra.mxu0 %v3758
  %4419 = vmatprep.subr.mxu0 0.0
  %4420 = vmatpush1.msra.mxu0 %v3763
  %4421 = vmatprep.subr.mxu0 0.0
  %4422 = vmatpush1.msra.mxu0 %v3768
  %4423 = vmatprep.subr.mxu0 0.0
  %4424 = vmatpush1.msra.mxu0 0.0
  %4425 = vmatprep.subr.mxu0 0.0
  %4426 = vmatpush1.msra.mxu0 0.0
  %4427 = vmatprep.subr.mxu0 0.0
  %4428 = vmatpush1.msra.mxu0 0.0
  %4429 = vmatprep.subr.mxu0 0.0
  %4430 = vmatpush1.msra.mxu0 0.0
  %4431 = vmatprep.subr.mxu0 0.0
  %4432 = vmatpush1.msra.mxu0 0.0
  %4433 = vmatprep.subr.mxu0 0.0
  %4434 = vmatpush1.msra.mxu0 0.0
  %4435 = vmatprep.subr.mxu0 0.0
  %4436 = vmatpush1.msra.mxu0 0.0
  %4437 = vmatprep.subr.mxu0 0.0
  %4438 = vmatpush1.msra.mxu0 0.0
  %4439 = vmatprep.subr.mxu0 0.0
  %4440 = vmatpush1.msra.mxu0 0.0
  %4441 = vmatprep.subr.mxu0 0.0
  %4442 = vmatpush1.msra.mxu0 0.0
  %4443 = vmatprep.subr.mxu0 0.0
  %4444 = vmatpush1.msra.mxu0 0.0
  %4445 = vmatprep.subr.mxu0 0.0
  %4446 = vmatpush1.msra.mxu0 0.0
  %4447 = vmatprep.subr.mxu0 0.0
  %4448 = vmatpush1.msra.mxu0 0.0
  %4449 = vmatprep.subr.mxu0 0.0
  %4450 = vmatpush1.msra.mxu0 0.0
  %4451 = vmatprep.subr.mxu0 0.0
  %4452 = vmatpush1.msra.mxu0 0.0
  %4453 = vmatprep.subr.mxu0 0.0
  %4454 = vmatpush1.msra.mxu0 0.0
  %4455 = vmatprep.subr.mxu0 0.0
  %4456 = vmatpush1.msra.mxu0 0.0
  %4457 = vmatprep.subr.mxu0 0.0
  %4458 = vmatpush1.msra.mxu0 0.0
  %4459 = vmatprep.subr.mxu0 0.0
  %4460 = vmatpush1.msra.mxu0 0.0
  %4461 = vmatprep.subr.mxu0 0.0
  %4462 = vmatpush1.msra.mxu0 0.0
  %4463 = vmatprep.subr.mxu0 0.0
  %4464 = vmatpush1.msra.mxu0 0.0
  %4465 = vmatprep.subr.mxu0 0.0
  %4466 = vmatpush1.msra.mxu0 0.0
  %4467 = vmatprep.subr.mxu0 0.0
  %4468 = vmatpush1.msra.mxu0 0.0
  %4469 = vmatprep.subr.mxu0 0.0
  %4470 = vmatpush1.msra.mxu0 0.0
  %4471 = vmatprep.subr.mxu0 0.0
  %4472 = vmatpush1.msra.mxu0 0.0
  %4473 = vmatprep.subr.mxu0 0.0
  %4474 = vmatpush1.msra.mxu0 0.0
  %4475 = vmatprep.subr.mxu0 0.0
  %4476 = vmatpush1.msra.mxu0 0.0
  %4477 = vmatprep.subr.mxu0 0.0
  %4478 = vmatpush1.msra.mxu0 0.0
  %4479 = vmatprep.mubr.f32.mxu0 0.0
  %4480 = vmatmul.mubr.f32.gmra.mrb[0].mxu0 %v4029
  %v4481 = vpop.f32.mrb[0].mxu0
  %v4482 = vadd.f32 %v4377, %v4481
  %v4483 = vpop.f32.mrb[0].mxu0
  %4484 = vmatprep.mubr.f32.mxu0 0.0
  %4485 = vmatmul.mubr.f32.gmra.mrb[0].mxu0 %v4032
  %v4486 = vpop.f32.mrb[0].mxu0
  %v4487 = vadd.f32 %v4382, %v4486
  %v4488 = vpop.f32.mrb[0].mxu0
  %4489 = vmatprep.mubr.f32.mxu0 0.0
  %4490 = vmatmul.mubr.f32.gmra.mrb[0].mxu0 %v4035
  %v4491 = vpop.f32.mrb[0].mxu0
  %v4492 = vadd.f32 %v4387, %v4491
  %v4493 = vpop.f32.mrb[0].mxu0
  %4494 = vmatprep.mubr.f32.mxu0 0.0
  %4495 = vmatmul.mubr.f32.gmra.mrb[0].mxu0 %v4038
  %v4496 = vpop.f32.mrb[0].mxu0
  %v4497 = vadd.f32 %v4392, %v4496
  %v4498 = vpop.f32.mrb[0].mxu0
  %4499 = vmatprep.mubr.f32.mxu0 0.0
  %4500 = vmatmul.mubr.f32.gmra.mrb[0].mxu0 %v4041
  %v4501 = vpop.f32.mrb[0].mxu0
  %v4502 = vadd.f32 %v4397, %v4501
  %v4503 = vpop.f32.mrb[0].mxu0
  %4504 = vmatprep.mubr.f32.mxu0 0.0
  %4505 = vmatmul.mubr.f32.gmra.mrb[0].mxu0 %v4044
  %v4506 = vpop.f32.mrb[0].mxu0
  %v4507 = vadd.f32 %v4402, %v4506
  %v4508 = vpop.f32.mrb[0].mxu0
  %4509 = vmatprep.mubr.f32.mxu0 0.0
  %4510 = vmatmul.mubr.f32.gmra.mrb[0].mxu0 %v4047
  %v4511 = vpop.f32.mrb[0].mxu0
  %v4512 = vadd.f32 %v4407, %v4511
  %v4513 = vpop.f32.mrb[0].mxu0
  %4514 = vmatprep.mubr.f32.mxu0 0.0
  %4515 = vmatmul.mubr.f32.gmra.mrb[0].mxu0 %v4050
  %v4516 = vpop.f32.mrb[0].mxu0
  %v4517 = vadd.f32 %v4412, %v4516
  %v4518 = vpop.f32.mrb[0].mxu0
  %4519 = vdwg.mxu0
  %4524 = vrot.lane.b32.xlu0 %v3753, 127
  %v4525 = vpop.permute.xlu0 %4524
  %4526 = vrot.lane.b32.xlu0 %v3758, 127
  %v4527 = vpop.permute.xlu0 %4526
  %4528 = vrot.lane.b32.xlu0 %v3763, 127
  %v4529 = vpop.permute.xlu0 %4528
  %4530 = vrot.lane.b32.xlu0 %v3768, 127
  %v4531 = vpop.permute.xlu0 %4530
  %4536 = vmatprep.subr.mxu0 0.0
  %4537 = vmatpush1.msra.mxu0 %v4525
  %4538 = vmatprep.subr.mxu0 0.0
  %4539 = vmatpush1.msra.mxu0 %v4527
  %4540 = vmatprep.subr.mxu0 0.0
  %4541 = vmatpush1.msra.mxu0 %v4529
  %4542 = vmatprep.subr.mxu0 0.0
  %4543 = vmatpush1.msra.mxu0 %v4531
  %4544 = vmatprep.subr.mxu0 0.0
  %4545 = vmatpush1.msra.mxu0 0.0
  %4546 = vmatprep.subr.mxu0 0.0
  %4547 = vmatpush1.msra.mxu0 0.0
  %4548 = vmatprep.subr.mxu0 0.0
  %4549 = vmatpush1.msra.mxu0 0.0
  %4550 = vmatprep.subr.mxu0 0.0
  %4551 = vmatpush1.msra.mxu0 0.0
  %4552 = vmatprep.subr.mxu0 0.0
  %4553 = vmatpush1.msra.mxu0 0.0
  %4554 = vmatprep.subr.mxu0 0.0
  %4555 = vmatpush1.msra.mxu0 0.0
  %4556 = vmatprep.subr.mxu0 0.0
  %4557 = vmatpush1.msra.mxu0 0.0
  %4558 = vmatprep.subr.mxu0 0.0
  %4559 = vmatpush1.msra.mxu0 0.0
  %4560 = vmatprep.subr.mxu0 0.0
  %4561 = vmatpush1.msra.mxu0 0.0
  %4562 = vmatprep.subr.mxu0 0.0
  %4563 = vmatpush1.msra.mxu0 0.0
  %4564 = vmatprep.subr.mxu0 0.0
  %4565 = vmatpush1.msra.mxu0 0.0
  %4566 = vmatprep.subr.mxu0 0.0
  %4567 = vmatpush1.msra.mxu0 0.0
  %4568 = vmatprep.subr.mxu0 0.0
  %4569 = vmatpush1.msra.mxu0 0.0
  %4570 = vmatprep.subr.mxu0 0.0
  %4571 = vmatpush1.msra.mxu0 0.0
  %4572 = vmatprep.subr.mxu0 0.0
  %4573 = vmatpush1.msra.mxu0 0.0
  %4574 = vmatprep.subr.mxu0 0.0
  %4575 = vmatpush1.msra.mxu0 0.0
  %4576 = vmatprep.subr.mxu0 0.0
  %4577 = vmatpush1.msra.mxu0 0.0
  %4578 = vmatprep.subr.mxu0 0.0
  %4579 = vmatpush1.msra.mxu0 0.0
  %4580 = vmatprep.subr.mxu0 0.0
  %4581 = vmatpush1.msra.mxu0 0.0
  %4582 = vmatprep.subr.mxu0 0.0
  %4583 = vmatpush1.msra.mxu0 0.0
  %4584 = vmatprep.subr.mxu0 0.0
  %4585 = vmatpush1.msra.mxu0 0.0
  %4586 = vmatprep.subr.mxu0 0.0
  %4587 = vmatpush1.msra.mxu0 0.0
  %4588 = vmatprep.subr.mxu0 0.0
  %4589 = vmatpush1.msra.mxu0 0.0
  %4590 = vmatprep.subr.mxu0 0.0
  %4591 = vmatpush1.msra.mxu0 0.0
  %4592 = vmatprep.subr.mxu0 0.0
  %4593 = vmatpush1.msra.mxu0 0.0
  %4594 = vmatprep.subr.mxu0 0.0
  %4595 = vmatpush1.msra.mxu0 0.0
  %4596 = vmatprep.subr.mxu0 0.0
  %4597 = vmatpush1.msra.mxu0 0.0
  %4598 = vmatprep.subr.mxu0 0.0
  %4599 = vmatpush1.msra.mxu0 0.0
  %4600 = vmatprep.mubr.f32.mxu0 0.0
  %4601 = vmatmul.mubr.f32.gmra.mrb[0].mxu0 %v4174
  %v4602 = vpop.f32.mrb[0].mxu0
  %v4603 = vadd.f32 0.0, %v4602
  %v4604 = vpop.f32.mrb[0].mxu0
  %4605 = vmatprep.mubr.f32.mxu0 0.0
  %4606 = vmatmul.mubr.f32.gmra.mrb[0].mxu0 %v4177
  %v4607 = vpop.f32.mrb[0].mxu0
  %v4608 = vadd.f32 0.0, %v4607
  %v4609 = vpop.f32.mrb[0].mxu0
  %4610 = vmatprep.mubr.f32.mxu0 0.0
  %4611 = vmatmul.mubr.f32.gmra.mrb[0].mxu0 %v4180
  %v4612 = vpop.f32.mrb[0].mxu0
  %v4613 = vadd.f32 0.0, %v4612
  %v4614 = vpop.f32.mrb[0].mxu0
  %4615 = vmatprep.mubr.f32.mxu0 0.0
  %4616 = vmatmul.mubr.f32.gmra.mrb[0].mxu0 %v4183
  %v4617 = vpop.f32.mrb[0].mxu0
  %v4618 = vadd.f32 0.0, %v4617
  %v4619 = vpop.f32.mrb[0].mxu0
  %4620 = vmatprep.mubr.f32.mxu0 0.0
  %4621 = vmatmul.mubr.f32.gmra.mrb[0].mxu0 %v4186
  %v4622 = vpop.f32.mrb[0].mxu0
  %v4623 = vadd.f32 0.0, %v4622
  %v4624 = vpop.f32.mrb[0].mxu0
  %4625 = vmatprep.mubr.f32.mxu0 0.0
  %4626 = vmatmul.mubr.f32.gmra.mrb[0].mxu0 %v4189
  %v4627 = vpop.f32.mrb[0].mxu0
  %v4628 = vadd.f32 0.0, %v4627
  %v4629 = vpop.f32.mrb[0].mxu0
  %4630 = vmatprep.mubr.f32.mxu0 0.0
  %4631 = vmatmul.mubr.f32.gmra.mrb[0].mxu0 %v4192
  %v4632 = vpop.f32.mrb[0].mxu0
  %v4633 = vadd.f32 0.0, %v4632
  %v4634 = vpop.f32.mrb[0].mxu0
  %4635 = vmatprep.mubr.f32.mxu0 0.0
  %4636 = vmatmul.mubr.f32.gmra.mrb[0].mxu0 %v4195
  %v4637 = vpop.f32.mrb[0].mxu0
  %v4638 = vadd.f32 0.0, %v4637
  %v4639 = vpop.f32.mrb[0].mxu0
  %4640 = vdwg.mxu0
  %v4641 = vadd.f32 %v4482, %v4603
  %v4642 = vadd.f32 %v4487, %v4608
  %v4643 = vadd.f32 %v4492, %v4613
  %v4644 = vadd.f32 %v4497, %v4618
  %v4645 = vadd.f32 %v4502, %v4623
  %v4646 = vadd.f32 %v4507, %v4628
  %v4647 = vadd.f32 %v4512, %v4633
  %v4648 = vadd.f32 %v4517, %v4638
  %4650 = vset.pattern.permute.xlu0 0
  %4651 = vperm.xlu0 %4650, %v3883
  %v4652 = vpop.permute.xlu0 %4651
  %4655 = vset.pattern.permute.xlu0 0
  %4656 = vperm.xlu0 %4655, %v3884
  %v4657 = vpop.permute.xlu0 %4656
  %4660 = vset.pattern.permute.xlu0 0
  %4661 = vperm.xlu0 %4660, %v3885
  %v4662 = vpop.permute.xlu0 %4661
  %4665 = vset.pattern.permute.xlu0 0
  %4666 = vperm.xlu0 %4665, %v3886
  %v4667 = vpop.permute.xlu0 %4666
  %4670 = vset.pattern.permute.xlu0 0
  %4671 = vperm.xlu0 %4670, %v3887
  %v4672 = vpop.permute.xlu0 %4671
  %4675 = vset.pattern.permute.xlu0 0
  %4676 = vperm.xlu0 %4675, %v3888
  %v4677 = vpop.permute.xlu0 %4676
  %4680 = vset.pattern.permute.xlu0 0
  %4681 = vperm.xlu0 %4680, %v3889
  %v4682 = vpop.permute.xlu0 %4681
  %4685 = vset.pattern.permute.xlu0 0
  %4686 = vperm.xlu0 %4685, %v3890
  %v4687 = vpop.permute.xlu0 %4686
  %v4689 = vmul.f32 %v4302, %v4652
  %v4690 = vmul.f32 %v4303, %v4657
  %v4691 = vmul.f32 %v4304, %v4662
  %v4692 = vmul.f32 %v4305, %v4667
  %v4693 = vmul.f32 %v4306, %v4672
  %v4694 = vmul.f32 %v4307, %v4677
  %v4695 = vmul.f32 %v4308, %v4682
  %v4696 = vmul.f32 %v4309, %v4687
  %4698 = vset.pattern.permute.xlu0 0
  %4699 = vperm.xlu0 %4698, %v3891
  %v4700 = vpop.permute.xlu0 %4699
  %4703 = vset.pattern.permute.xlu0 0
  %4704 = vperm.xlu0 %4703, %v3892
  %v4705 = vpop.permute.xlu0 %4704
  %4708 = vset.pattern.permute.xlu0 0
  %4709 = vperm.xlu0 %4708, %v3893
  %v4710 = vpop.permute.xlu0 %4709
  %4713 = vset.pattern.permute.xlu0 0
  %4714 = vperm.xlu0 %4713, %v3894
  %v4715 = vpop.permute.xlu0 %4714
  %4718 = vset.pattern.permute.xlu0 0
  %4719 = vperm.xlu0 %4718, %v3895
  %v4720 = vpop.permute.xlu0 %4719
  %4723 = vset.pattern.permute.xlu0 0
  %4724 = vperm.xlu0 %4723, %v3896
  %v4725 = vpop.permute.xlu0 %4724
  %4728 = vset.pattern.permute.xlu0 0
  %4729 = vperm.xlu0 %4728, %v3897
  %v4730 = vpop.permute.xlu0 %4729
  %4733 = vset.pattern.permute.xlu0 0
  %4734 = vperm.xlu0 %4733, %v3898
  %v4735 = vpop.permute.xlu0 %4734
  %v4737 = vadd.f32 %v4689, %v4700
  %v4738 = vadd.f32 %v4690, %v4705
  %v4739 = vadd.f32 %v4691, %v4710
  %v4740 = vadd.f32 %v4692, %v4715
  %v4741 = vadd.f32 %v4693, %v4720
  %v4742 = vadd.f32 %v4694, %v4725
  %v4743 = vadd.f32 %v4695, %v4730
  %v4744 = vadd.f32 %v4696, %v4735
  %v4745 = vmax.f32 %v4737, 0.0
  %v4746 = vmax.f32 %v4738, 0.0
  %v4747 = vmax.f32 %v4739, 0.0
  %v4748 = vmax.f32 %v4740, 0.0
  %v4749 = vmax.f32 %v4741, 0.0
  %v4750 = vmax.f32 %v4742, 0.0
  %v4751 = vmax.f32 %v4743, 0.0
  %v4752 = vmax.f32 %v4744, 0.0
  %v4753 = vmul.f32 %v4641, %v4652
  %v4754 = vmul.f32 %v4642, %v4657
  %v4755 = vmul.f32 %v4643, %v4662
  %v4756 = vmul.f32 %v4644, %v4667
  %v4757 = vmul.f32 %v4645, %v4672
  %v4758 = vmul.f32 %v4646, %v4677
  %v4759 = vmul.f32 %v4647, %v4682
  %v4760 = vmul.f32 %v4648, %v4687
  %v4761 = vadd.f32 %v4753, %v4700
  %v4762 = vadd.f32 %v4754, %v4705
  %v4763 = vadd.f32 %v4755, %v4710
  %v4764 = vadd.f32 %v4756, %v4715
  %v4765 = vadd.f32 %v4757, %v4720
  %v4766 = vadd.f32 %v4758, %v4725
  %v4767 = vadd.f32 %v4759, %v4730
  %v4768 = vadd.f32 %v4760, %v4735
  %v4769 = vmax.f32 %v4761, 0.0
  %v4770 = vmax.f32 %v4762, 0.0
  %v4771 = vmax.f32 %v4763, 0.0
  %v4772 = vmax.f32 %v4764, 0.0
  %v4773 = vmax.f32 %v4765, 0.0
  %v4774 = vmax.f32 %v4766, 0.0
  %v4775 = vmax.f32 %v4767, 0.0
  %v4776 = vmax.f32 %v4768, 0.0
  %v4777 = vmax.f32 %v4745, %v4769
  %v4778 = vmax.f32 %v4746, %v4770
  %v4779 = vmax.f32 %v4747, %v4771
  %v4780 = vmax.f32 %v4748, %v4772
  %v4781 = vmax.f32 %v4749, %v4773
  %v4782 = vmax.f32 %v4750, %v4774
  %v4783 = vmax.f32 %v4751, %v4775
  %v4784 = vmax.f32 %v4752, %v4776
  %v4785 = vld [vmem:[%s69] sm:$0xf]
  %vm4786 = vcmask 31744
  %v4788 = vsel %vm4786, %v4777, 0
  %v4791 = vsel %vm4786, %v4778, 0
  %v4794 = vsel %vm4786, %v4779, 0
  %v4797 = vsel %vm4786, %v4780, 0
  %v4800 = vsel %vm4786, %v4781, 0
  %v4803 = vsel %vm4786, %v4782, 0
  %v4806 = vsel %vm4786, %v4783, 0
  %v4809 = vsel %vm4786, %v4784, 0
  %vm4811 = vcmask 1043456
  %v4813 = vsel %vm4811, %v4785, 0
  %4815 = vmatprep.subr.mxu0 0.0
  %4816 = vmatpush1.msra.mxu0 %v4813
  %4817 = vmatprep.subr.mxu0 0.0
  %4818 = vmatpush1.msra.mxu0 0.0
  %4819 = vmatprep.subr.mxu0 0.0
  %4820 = vmatpush1.msra.mxu0 0.0
  %4821 = vmatprep.subr.mxu0 0.0
  %4822 = vmatpush1.msra.mxu0 0.0
  %4823 = vmatprep.subr.mxu0 0.0
  %4824 = vmatpush1.msra.mxu0 0.0
  %4825 = vmatprep.subr.mxu0 0.0
  %4826 = vmatpush1.msra.mxu0 0.0
  %4827 = vmatprep.subr.mxu0 0.0
  %4828 = vmatpush1.msra.mxu0 0.0
  %4829 = vmatprep.subr.mxu0 0.0
  %4830 = vmatpush1.msra.mxu0 0.0
  %4831 = vmatprep.subr.mxu0 0.0
  %4832 = vmatpush1.msra.mxu0 0.0
  %4833 = vmatprep.subr.mxu0 0.0
  %4834 = vmatpush1.msra.mxu0 0.0
  %4835 = vmatprep.subr.mxu0 0.0
  %4836 = vmatpush1.msra.mxu0 0.0
  %4837 = vmatprep.subr.mxu0 0.0
  %4838 = vmatpush1.msra.mxu0 0.0
  %4839 = vmatprep.subr.mxu0 0.0
  %4840 = vmatpush1.msra.mxu0 0.0
  %4841 = vmatprep.subr.mxu0 0.0
  %4842 = vmatpush1.msra.mxu0 0.0
  %4843 = vmatprep.subr.mxu0 0.0
  %4844 = vmatpush1.msra.mxu0 0.0
  %4845 = vmatprep.subr.mxu0 0.0
  %4846 = vmatpush1.msra.mxu0 0.0
  %4847 = vmatprep.subr.mxu0 0.0
  %4848 = vmatpush1.msra.mxu0 0.0
  %4849 = vmatprep.subr.mxu0 0.0
  %4850 = vmatpush1.msra.mxu0 0.0
  %4851 = vmatprep.subr.mxu0 0.0
  %4852 = vmatpush1.msra.mxu0 0.0
  %4853 = vmatprep.subr.mxu0 0.0
  %4854 = vmatpush1.msra.mxu0 0.0
  %4855 = vmatprep.subr.mxu0 0.0
  %4856 = vmatpush1.msra.mxu0 0.0
  %4857 = vmatprep.subr.mxu0 0.0
  %4858 = vmatpush1.msra.mxu0 0.0
  %4859 = vmatprep.subr.mxu0 0.0
  %4860 = vmatpush1.msra.mxu0 0.0
  %4861 = vmatprep.subr.mxu0 0.0
  %4862 = vmatpush1.msra.mxu0 0.0
  %4863 = vmatprep.subr.mxu0 0.0
  %4864 = vmatpush1.msra.mxu0 0.0
  %4865 = vmatprep.subr.mxu0 0.0
  %4866 = vmatpush1.msra.mxu0 0.0
  %4867 = vmatprep.subr.mxu0 0.0
  %4868 = vmatpush1.msra.mxu0 0.0
  %4869 = vmatprep.subr.mxu0 0.0
  %4870 = vmatpush1.msra.mxu0 0.0
  %4871 = vmatprep.subr.mxu0 0.0
  %4872 = vmatpush1.msra.mxu0 0.0
  %4873 = vmatprep.subr.mxu0 0.0
  %4874 = vmatpush1.msra.mxu0 0.0
  %4875 = vmatprep.subr.mxu0 0.0
  %4876 = vmatpush1.msra.mxu0 0.0
  %4877 = vmatprep.subr.mxu0 0.0
  %4878 = vmatpush1.msra.mxu0 0.0
  %4879 = vmatprep.mubr.f32.mxu0 0.0
  %4880 = vmatmul.mubr.f32.gmra.mrb[0].mxu0 %v4788
  %v4881 = vpop.f32.mrb[0].mxu0
  %v4882 = vadd.f32 0.0, %v4881
  %v4883 = vpop.f32.mrb[0].mxu0
  %4884 = vmatprep.mubr.f32.mxu0 0.0
  %4885 = vmatmul.mubr.f32.gmra.mrb[0].mxu0 %v4791
  %v4886 = vpop.f32.mrb[0].mxu0
  %v4887 = vadd.f32 0.0, %v4886
  %v4888 = vpop.f32.mrb[0].mxu0
  %4889 = vmatprep.mubr.f32.mxu0 0.0
  %4890 = vmatmul.mubr.f32.gmra.mrb[0].mxu0 %v4794
  %v4891 = vpop.f32.mrb[0].mxu0
  %v4892 = vadd.f32 0.0, %v4891
  %v4893 = vpop.f32.mrb[0].mxu0
  %4894 = vmatprep.mubr.f32.mxu0 0.0
  %4895 = vmatmul.mubr.f32.gmra.mrb[0].mxu0 %v4797
  %v4896 = vpop.f32.mrb[0].mxu0
  %v4897 = vadd.f32 0.0, %v4896
  %v4898 = vpop.f32.mrb[0].mxu0
  %4899 = vmatprep.mubr.f32.mxu0 0.0
  %4900 = vmatmul.mubr.f32.gmra.mrb[0].mxu0 %v4800
  %v4901 = vpop.f32.mrb[0].mxu0
  %v4902 = vadd.f32 0.0, %v4901
  %v4903 = vpop.f32.mrb[0].mxu0
  %4904 = vmatprep.mubr.f32.mxu0 0.0
  %4905 = vmatmul.mubr.f32.gmra.mrb[0].mxu0 %v4803
  %v4906 = vpop.f32.mrb[0].mxu0
  %v4907 = vadd.f32 0.0, %v4906
  %v4908 = vpop.f32.mrb[0].mxu0
  %4909 = vmatprep.mubr.f32.mxu0 0.0
  %4910 = vmatmul.mubr.f32.gmra.mrb[0].mxu0 %v4806
  %v4911 = vpop.f32.mrb[0].mxu0
  %v4912 = vadd.f32 0.0, %v4911
  %v4913 = vpop.f32.mrb[0].mxu0
  %4914 = vmatprep.mubr.f32.mxu0 0.0
  %4915 = vmatmul.mubr.f32.gmra.mrb[0].mxu0 %v4809
  %v4916 = vpop.f32.mrb[0].mxu0
  %v4917 = vadd.f32 0.0, %v4916
  %v4918 = vpop.f32.mrb[0].mxu0
  %4919 = vdwg.mxu0
  %v4920 = vld [vmem:[%s71] sm:$0xf]
  %v4922 = vsel %vm4811, %v4920, 0
  %4924 = vmatprep.subr.mxu0 0.0
  %4925 = vmatpush1.msra.mxu0 %v4922
  %4926 = vmatprep.subr.mxu0 0.0
  %4927 = vmatpush1.msra.mxu0 0.0
  %4928 = vmatprep.subr.mxu0 0.0
  %4929 = vmatpush1.msra.mxu0 0.0
  %4930 = vmatprep.subr.mxu0 0.0
  %4931 = vmatpush1.msra.mxu0 0.0
  %4932 = vmatprep.subr.mxu0 0.0
  %4933 = vmatpush1.msra.mxu0 0.0
  %4934 = vmatprep.subr.mxu0 0.0
  %4935 = vmatpush1.msra.mxu0 0.0
  %4936 = vmatprep.subr.mxu0 0.0
  %4937 = vmatpush1.msra.mxu0 0.0
  %4938 = vmatprep.subr.mxu0 0.0
  %4939 = vmatpush1.msra.mxu0 0.0
  %4940 = vmatprep.subr.mxu0 0.0
  %4941 = vmatpush1.msra.mxu0 0.0
  %4942 = vmatprep.subr.mxu0 0.0
  %4943 = vmatpush1.msra.mxu0 0.0
  %4944 = vmatprep.subr.mxu0 0.0
  %4945 = vmatpush1.msra.mxu0 0.0
  %4946 = vmatprep.subr.mxu0 0.0
  %4947 = vmatpush1.msra.mxu0 0.0
  %4948 = vmatprep.subr.mxu0 0.0
  %4949 = vmatpush1.msra.mxu0 0.0
  %4950 = vmatprep.subr.mxu0 0.0
  %4951 = vmatpush1.msra.mxu0 0.0
  %4952 = vmatprep.subr.mxu0 0.0
  %4953 = vmatpush1.msra.mxu0 0.0
  %4954 = vmatprep.subr.mxu0 0.0
  %4955 = vmatpush1.msra.mxu0 0.0
  %4956 = vmatprep.subr.mxu0 0.0
  %4957 = vmatpush1.msra.mxu0 0.0
  %4958 = vmatprep.subr.mxu0 0.0
  %4959 = vmatpush1.msra.mxu0 0.0
  %4960 = vmatprep.subr.mxu0 0.0
  %4961 = vmatpush1.msra.mxu0 0.0
  %4962 = vmatprep.subr.mxu0 0.0
  %4963 = vmatpush1.msra.mxu0 0.0
  %4964 = vmatprep.subr.mxu0 0.0
  %4965 = vmatpush1.msra.mxu0 0.0
  %4966 = vmatprep.subr.mxu0 0.0
  %4967 = vmatpush1.msra.mxu0 0.0
  %4968 = vmatprep.subr.mxu0 0.0
  %4969 = vmatpush1.msra.mxu0 0.0
  %4970 = vmatprep.subr.mxu0 0.0
  %4971 = vmatpush1.msra.mxu0 0.0
  %4972 = vmatprep.subr.mxu0 0.0
  %4973 = vmatpush1.msra.mxu0 0.0
  %4974 = vmatprep.subr.mxu0 0.0
  %4975 = vmatpush1.msra.mxu0 0.0
  %4976 = vmatprep.subr.mxu0 0.0
  %4977 = vmatpush1.msra.mxu0 0.0
  %4978 = vmatprep.subr.mxu0 0.0
  %4979 = vmatpush1.msra.mxu0 0.0
  %4980 = vmatprep.subr.mxu0 0.0
  %4981 = vmatpush1.msra.mxu0 0.0
  %4982 = vmatprep.subr.mxu0 0.0
  %4983 = vmatpush1.msra.mxu0 0.0
  %4984 = vmatprep.subr.mxu0 0.0
  %4985 = vmatpush1.msra.mxu0 0.0
  %4986 = vmatprep.subr.mxu0 0.0
  %4987 = vmatpush1.msra.mxu0 0.0
  %4988 = vmatprep.mubr.f32.mxu0 0.0
  %4989 = vmatmul.mubr.f32.gmra.mrb[0].mxu0 %v4788
  %v4990 = vpop.f32.mrb[0].mxu0
  %v4991 = vadd.f32 0.0, %v4990
  %v4992 = vpop.f32.mrb[0].mxu0
  %4993 = vmatprep.mubr.f32.mxu0 0.0
  %4994 = vmatmul.mubr.f32.gmra.mrb[0].mxu0 %v4791
  %v4995 = vpop.f32.mrb[0].mxu0
  %v4996 = vadd.f32 0.0, %v4995
  %v4997 = vpop.f32.mrb[0].mxu0
  %4998 = vmatprep.mubr.f32.mxu0 0.0
  %4999 = vmatmul.mubr.f32.gmra.mrb[0].mxu0 %v4794
  %v5000 = vpop.f32.mrb[0].mxu0
  %v5001 = vadd.f32 0.0, %v5000
  %v5002 = vpop.f32.mrb[0].mxu0
  %5003 = vmatprep.mubr.f32.mxu0 0.0
  %5004 = vmatmul.mubr.f32.gmra.mrb[0].mxu0 %v4797
  %v5005 = vpop.f32.mrb[0].mxu0
  %v5006 = vadd.f32 0.0, %v5005
  %v5007 = vpop.f32.mrb[0].mxu0
  %5008 = vmatprep.mubr.f32.mxu0 0.0
  %5009 = vmatmul.mubr.f32.gmra.mrb[0].mxu0 %v4800
  %v5010 = vpop.f32.mrb[0].mxu0
  %v5011 = vadd.f32 0.0, %v5010
  %v5012 = vpop.f32.mrb[0].mxu0
  %5013 = vmatprep.mubr.f32.mxu0 0.0
  %5014 = vmatmul.mubr.f32.gmra.mrb[0].mxu0 %v4803
  %v5015 = vpop.f32.mrb[0].mxu0
  %v5016 = vadd.f32 0.0, %v5015
  %v5017 = vpop.f32.mrb[0].mxu0
  %5018 = vmatprep.mubr.f32.mxu0 0.0
  %5019 = vmatmul.mubr.f32.gmra.mrb[0].mxu0 %v4806
  %v5020 = vpop.f32.mrb[0].mxu0
  %v5021 = vadd.f32 0.0, %v5020
  %v5022 = vpop.f32.mrb[0].mxu0
  %5023 = vmatprep.mubr.f32.mxu0 0.0
  %5024 = vmatmul.mubr.f32.gmra.mrb[0].mxu0 %v4809
  %v5025 = vpop.f32.mrb[0].mxu0
  %v5026 = vadd.f32 0.0, %v5025
  %v5027 = vpop.f32.mrb[0].mxu0
  %5028 = vdwg.mxu0
  %v5029 = vld [vmem:[%s43] sm:$0xff]
  %v5030 = vld [vmem:[%s43 + $0x8] sm:$0xff]
  %v5031 = vld [vmem:[%s43 + $0x10] sm:$0xff]
  %v5032 = vld [vmem:[%s43 + $0x18] sm:$0xff]
  %v5033 = vld [vmem:[%s43 + $0x20] sm:$0xff]
  %v5034 = vld [vmem:[%s43 + $0x28] sm:$0xff]
  %v5035 = vld [vmem:[%s43 + $0x30] sm:$0xff]
  %v5036 = vld [vmem:[%s43 + $0x38] sm:$0xff]
  %v5037 = vld [vmem:[%s43 + $0x40] sm:$0xff]
  %v5038 = vld [vmem:[%s43 + $0x48] sm:$0xff]
  %v5039 = vld [vmem:[%s43 + $0x50] sm:$0xff]
  %v5040 = vld [vmem:[%s43 + $0x58] sm:$0xff]
  %v5041 = vld [vmem:[%s43 + $0x60] sm:$0xff]
  %v5042 = vld [vmem:[%s43 + $0x68] sm:$0xff]
  %v5043 = vld [vmem:[%s43 + $0x70] sm:$0xff]
  %v5044 = vld [vmem:[%s43 + $0x78] sm:$0xff]
  %s5045 = scalar_lea.vmem %s43, 128
  %v5046 = vld [vmem:[%s5045] sm:$0xff]
  %v5047 = vld [vmem:[%s5045 + $0x8] sm:$0xff]
  %v5048 = vld [vmem:[%s5045 + $0x10] sm:$0xff]
  %v5049 = vld [vmem:[%s5045 + $0x18] sm:$0xff]
  %v5050 = vld [vmem:[%s5045 + $0x20] sm:$0xff]
  %v5051 = vld [vmem:[%s5045 + $0x28] sm:$0xff]
  %v5052 = vld [vmem:[%s5045 + $0x30] sm:$0xff]
  %v5053 = vld [vmem:[%s5045 + $0x38] sm:$0xff]
  %v5054 = vld [vmem:[%s5045 + $0x40] sm:$0xff]
  %v5055 = vld [vmem:[%s5045 + $0x48] sm:$0xff]
  %v5056 = vld [vmem:[%s5045 + $0x50] sm:$0xff]
  %v5057 = vld [vmem:[%s5045 + $0x58] sm:$0xff]
  %v5058 = vld [vmem:[%s5045 + $0x60] sm:$0xff]
  %v5059 = vld [vmem:[%s5045 + $0x68] sm:$0xff]
  %v5060 = vld [vmem:[%s5045 + $0x70] sm:$0xff]
  %v5061 = vld [vmem:[%s5045 + $0x78] sm:$0xff]
  %s5062 = scalar_lea.vmem %s43, 256
  %v5063 = vld [vmem:[%s5062] sm:$0xff]
  %v5064 = vld [vmem:[%s5062 + $0x8] sm:$0xff]
  %v5065 = vld [vmem:[%s5062 + $0x10] sm:$0xff]
  %v5066 = vld [vmem:[%s5062 + $0x18] sm:$0xff]
  %v5067 = vld [vmem:[%s5062 + $0x20] sm:$0xff]
  %v5068 = vld [vmem:[%s5062 + $0x28] sm:$0xff]
  %v5069 = vld [vmem:[%s5062 + $0x30] sm:$0xff]
  %v5070 = vld [vmem:[%s5062 + $0x38] sm:$0xff]
  %v5071 = vld [vmem:[%s5062 + $0x40] sm:$0xff]
  %v5072 = vld [vmem:[%s5062 + $0x48] sm:$0xff]
  %v5073 = vld [vmem:[%s5062 + $0x50] sm:$0xff]
  %v5074 = vld [vmem:[%s5062 + $0x58] sm:$0xff]
  %v5075 = vld [vmem:[%s5062 + $0x60] sm:$0xff]
  %v5076 = vld [vmem:[%s5062 + $0x68] sm:$0xff]
  %v5077 = vld [vmem:[%s5062 + $0x70] sm:$0xff]
  %v5078 = vld [vmem:[%s5062 + $0x78] sm:$0xff]
  %v5079 = vld [vmem:[%s45] sm:$0xff]
  %v5080 = vld [vmem:[%s45 + $0x8] sm:$0xff]
  %v5081 = vld [vmem:[%s45 + $0x10] sm:$0xff]
  %v5082 = vld [vmem:[%s45 + $0x18] sm:$0xff]
  %v5083 = vld [vmem:[%s45 + $0x20] sm:$0xff]
  %v5084 = vld [vmem:[%s45 + $0x28] sm:$0xff]
  %v5085 = vld [vmem:[%s45 + $0x30] sm:$0xff]
  %v5086 = vld [vmem:[%s45 + $0x38] sm:$0xff]
  %v5087 = vld [vmem:[%s45 + $0x40] sm:$0xff]
  %v5088 = vld [vmem:[%s45 + $0x48] sm:$0xff]
  %v5089 = vld [vmem:[%s45 + $0x50] sm:$0xff]
  %v5090 = vld [vmem:[%s45 + $0x58] sm:$0xff]
  %v5091 = vld [vmem:[%s45 + $0x60] sm:$0xff]
  %v5092 = vld [vmem:[%s45 + $0x68] sm:$0xff]
  %v5093 = vld [vmem:[%s45 + $0x70] sm:$0xff]
  %v5094 = vld [vmem:[%s45 + $0x78] sm:$0xff]
  %v5095 = vld [vmem:[%s47] sm:$0xff]
  %v5096 = vld [vmem:[%s47 + $0x8] sm:$0xff]
  %v5097 = vld [vmem:[%s47 + $0x10] sm:$0xff]
  %v5098 = vld [vmem:[%s47 + $0x18] sm:$0xff]
  %v5099 = vld [vmem:[%s47 + $0x20] sm:$0xff]
  %v5100 = vld [vmem:[%s47 + $0x28] sm:$0xff]
  %v5101 = vld [vmem:[%s47 + $0x30] sm:$0xff]
  %v5102 = vld [vmem:[%s47 + $0x38] sm:$0xff]
  %v5103 = vld [vmem:[%s47 + $0x40] sm:$0xff]
  %v5104 = vld [vmem:[%s47 + $0x48] sm:$0xff]
  %v5105 = vld [vmem:[%s47 + $0x50] sm:$0xff]
  %v5106 = vld [vmem:[%s47 + $0x58] sm:$0xff]
  %v5107 = vld [vmem:[%s47 + $0x60] sm:$0xff]
  %v5108 = vld [vmem:[%s47 + $0x68] sm:$0xff]
  %v5109 = vld [vmem:[%s47 + $0x70] sm:$0xff]
  %v5110 = vld [vmem:[%s47 + $0x78] sm:$0xff]
  %v5112 = vsel %vm1454, %v5046, 0
  %v5115 = vsel %vm1454, %v5047, 0
  %v5118 = vsel %vm1454, %v5048, 0
  %v5121 = vsel %vm1454, %v5049, 0
  %v5124 = vsel %vm1454, %v5050, 0
  %v5127 = vsel %vm1454, %v5051, 0
  %v5130 = vsel %vm1454, %v5052, 0
  %v5133 = vsel %vm1454, %v5053, 0
  %v5136 = vsel %vm1454, %v5054, 0
  %v5139 = vsel %vm1454, %v5055, 0
  %v5142 = vsel %vm1454, %v5056, 0
  %v5145 = vsel %vm1454, %v5057, 0
  %v5148 = vsel %vm1454, %v5058, 0
  %v5151 = vsel %vm1454, %v5059, 0
  %v5154 = vsel %vm1454, %v5060, 0
  %v5157 = vsel %vm1454, %v5061, 0
  %5159 = vmatprep.subr.mxu0 0.0
  %5160 = vmatpush1.msra.mxu0 %v4882
  %5161 = vmatprep.subr.mxu0 0.0
  %5162 = vmatpush1.msra.mxu0 %v4887
  %5163 = vmatprep.subr.mxu0 0.0
  %5164 = vmatpush1.msra.mxu0 %v4892
  %5165 = vmatprep.subr.mxu0 0.0
  %5166 = vmatpush1.msra.mxu0 %v4897
  %5167 = vmatprep.subr.mxu0 0.0
  %5168 = vmatpush1.msra.mxu0 %v4902
  %5169 = vmatprep.subr.mxu0 0.0
  %5170 = vmatpush1.msra.mxu0 %v4907
  %5171 = vmatprep.subr.mxu0 0.0
  %5172 = vmatpush1.msra.mxu0 %v4912
  %5173 = vmatprep.subr.mxu0 0.0
  %5174 = vmatpush1.msra.mxu0 %v4917
  %5175 = vmatprep.subr.mxu0 0.0
  %5176 = vmatpush1.msra.mxu0 0.0
  %5177 = vmatprep.subr.mxu0 0.0
  %5178 = vmatpush1.msra.mxu0 0.0
  %5179 = vmatprep.subr.mxu0 0.0
  %5180 = vmatpush1.msra.mxu0 0.0
  %5181 = vmatprep.subr.mxu0 0.0
  %5182 = vmatpush1.msra.mxu0 0.0
  %5183 = vmatprep.subr.mxu0 0.0
  %5184 = vmatpush1.msra.mxu0 0.0
  %5185 = vmatprep.subr.mxu0 0.0
  %5186 = vmatpush1.msra.mxu0 0.0
  %5187 = vmatprep.subr.mxu0 0.0
  %5188 = vmatpush1.msra.mxu0 0.0
  %5189 = vmatprep.subr.mxu0 0.0
  %5190 = vmatpush1.msra.mxu0 0.0
  %5191 = vmatprep.subr.mxu0 0.0
  %5192 = vmatpush1.msra.mxu0 0.0
  %5193 = vmatprep.subr.mxu0 0.0
  %5194 = vmatpush1.msra.mxu0 0.0
  %5195 = vmatprep.subr.mxu0 0.0
  %5196 = vmatpush1.msra.mxu0 0.0
  %5197 = vmatprep.subr.mxu0 0.0
  %5198 = vmatpush1.msra.mxu0 0.0
  %5199 = vmatprep.subr.mxu0 0.0
  %5200 = vmatpush1.msra.mxu0 0.0
  %5201 = vmatprep.subr.mxu0 0.0
  %5202 = vmatpush1.msra.mxu0 0.0
  %5203 = vmatprep.subr.mxu0 0.0
  %5204 = vmatpush1.msra.mxu0 0.0
  %5205 = vmatprep.subr.mxu0 0.0
  %5206 = vmatpush1.msra.mxu0 0.0
  %5207 = vmatprep.subr.mxu0 0.0
  %5208 = vmatpush1.msra.mxu0 0.0
  %5209 = vmatprep.subr.mxu0 0.0
  %5210 = vmatpush1.msra.mxu0 0.0
  %5211 = vmatprep.subr.mxu0 0.0
  %5212 = vmatpush1.msra.mxu0 0.0
  %5213 = vmatprep.subr.mxu0 0.0
  %5214 = vmatpush1.msra.mxu0 0.0
  %5215 = vmatprep.subr.mxu0 0.0
  %5216 = vmatpush1.msra.mxu0 0.0
  %5217 = vmatprep.subr.mxu0 0.0
  %5218 = vmatpush1.msra.mxu0 0.0
  %5219 = vmatprep.subr.mxu0 0.0
  %5220 = vmatpush1.msra.mxu0 0.0
  %5221 = vmatprep.subr.mxu0 0.0
  %5222 = vmatpush1.msra.mxu0 0.0
  %5223 = vmatprep.mubr.f32.mxu0 0.0
  %5224 = vmatmul.mubr.f32.gmra.mrb[0].mxu0 %v5112
  %v5225 = vpop.f32.mrb[0].mxu0
  %v5226 = vadd.f32 0.0, %v5225
  %v5227 = vpop.f32.mrb[0].mxu0
  %5228 = vmatprep.mubr.f32.mxu0 0.0
  %5229 = vmatmul.mubr.f32.gmra.mrb[0].mxu0 %v5115
  %v5230 = vpop.f32.mrb[0].mxu0
  %v5231 = vadd.f32 0.0, %v5230
  %v5232 = vpop.f32.mrb[0].mxu0
  %5233 = vmatprep.mubr.f32.mxu0 0.0
  %5234 = vmatmul.mubr.f32.gmra.mrb[0].mxu0 %v5118
  %v5235 = vpop.f32.mrb[0].mxu0
  %v5236 = vadd.f32 0.0, %v5235
  %v5237 = vpop.f32.mrb[0].mxu0
  %5238 = vmatprep.mubr.f32.mxu0 0.0
  %5239 = vmatmul.mubr.f32.gmra.mrb[0].mxu0 %v5121
  %v5240 = vpop.f32.mrb[0].mxu0
  %v5241 = vadd.f32 0.0, %v5240
  %v5242 = vpop.f32.mrb[0].mxu0
  %5243 = vmatprep.mubr.f32.mxu0 0.0
  %5244 = vmatmul.mubr.f32.gmra.mrb[0].mxu0 %v5124
  %v5245 = vpop.f32.mrb[0].mxu0
  %v5246 = vadd.f32 0.0, %v5245
  %v5247 = vpop.f32.mrb[0].mxu0
  %5248 = vmatprep.mubr.f32.mxu0 0.0
  %5249 = vmatmul.mubr.f32.gmra.mrb[0].mxu0 %v5127
  %v5250 = vpop.f32.mrb[0].mxu0
  %v5251 = vadd.f32 0.0, %v5250
  %v5252 = vpop.f32.mrb[0].mxu0
  %5253 = vmatprep.mubr.f32.mxu0 0.0
  %5254 = vmatmul.mubr.f32.gmra.mrb[0].mxu0 %v5130
  %v5255 = vpop.f32.mrb[0].mxu0
  %v5256 = vadd.f32 0.0, %v5255
  %v5257 = vpop.f32.mrb[0].mxu0
  %5258 = vmatprep.mubr.f32.mxu0 0.0
  %5259 = vmatmul.mubr.f32.gmra.mrb[0].mxu0 %v5133
  %v5260 = vpop.f32.mrb[0].mxu0
  %v5261 = vadd.f32 0.0, %v5260
  %v5262 = vpop.f32.mrb[0].mxu0
  %5263 = vmatprep.mubr.f32.mxu0 0.0
  %5264 = vmatmul.mubr.f32.gmra.mrb[0].mxu0 %v5136
  %v5265 = vpop.f32.mrb[0].mxu0
  %v5266 = vadd.f32 0.0, %v5265
  %v5267 = vpop.f32.mrb[0].mxu0
  %5268 = vmatprep.mubr.f32.mxu0 0.0
  %5269 = vmatmul.mubr.f32.gmra.mrb[0].mxu0 %v5139
  %v5270 = vpop.f32.mrb[0].mxu0
  %v5271 = vadd.f32 0.0, %v5270
  %v5272 = vpop.f32.mrb[0].mxu0
  %5273 = vmatprep.mubr.f32.mxu0 0.0
  %5274 = vmatmul.mubr.f32.gmra.mrb[0].mxu0 %v5142
  %v5275 = vpop.f32.mrb[0].mxu0
  %v5276 = vadd.f32 0.0, %v5275
  %v5277 = vpop.f32.mrb[0].mxu0
  %5278 = vmatprep.mubr.f32.mxu0 0.0
  %5279 = vmatmul.mubr.f32.gmra.mrb[0].mxu0 %v5145
  %v5280 = vpop.f32.mrb[0].mxu0
  %v5281 = vadd.f32 0.0, %v5280
  %v5282 = vpop.f32.mrb[0].mxu0
  %5283 = vmatprep.mubr.f32.mxu0 0.0
  %5284 = vmatmul.mubr.f32.gmra.mrb[0].mxu0 %v5148
  %v5285 = vpop.f32.mrb[0].mxu0
  %v5286 = vadd.f32 0.0, %v5285
  %v5287 = vpop.f32.mrb[0].mxu0
  %5288 = vmatprep.mubr.f32.mxu0 0.0
  %5289 = vmatmul.mubr.f32.gmra.mrb[0].mxu0 %v5151
  %v5290 = vpop.f32.mrb[0].mxu0
  %v5291 = vadd.f32 0.0, %v5290
  %v5292 = vpop.f32.mrb[0].mxu0
  %5293 = vmatprep.mubr.f32.mxu0 0.0
  %5294 = vmatmul.mubr.f32.gmra.mrb[0].mxu0 %v5154
  %v5295 = vpop.f32.mrb[0].mxu0
  %v5296 = vadd.f32 0.0, %v5295
  %v5297 = vpop.f32.mrb[0].mxu0
  %5298 = vmatprep.mubr.f32.mxu0 0.0
  %5299 = vmatmul.mubr.f32.gmra.mrb[0].mxu0 %v5157
  %v5300 = vpop.f32.mrb[0].mxu0
  %v5301 = vadd.f32 0.0, %v5300
  %v5302 = vpop.f32.mrb[0].mxu0
  %5303 = vdwg.mxu0
  %v5305 = vsel %vm1454, %v5029, 0
  %v5308 = vsel %vm1454, %v5030, 0
  %v5311 = vsel %vm1454, %v5031, 0
  %v5314 = vsel %vm1454, %v5032, 0
  %v5317 = vsel %vm1454, %v5033, 0
  %v5320 = vsel %vm1454, %v5034, 0
  %v5323 = vsel %vm1454, %v5035, 0
  %v5326 = vsel %vm1454, %v5036, 0
  %v5329 = vsel %vm1454, %v5037, 0
  %v5332 = vsel %vm1454, %v5038, 0
  %v5335 = vsel %vm1454, %v5039, 0
  %v5338 = vsel %vm1454, %v5040, 0
  %v5341 = vsel %vm1454, %v5041, 0
  %v5344 = vsel %vm1454, %v5042, 0
  %v5347 = vsel %vm1454, %v5043, 0
  %v5350 = vsel %vm1454, %v5044, 0
  %5352 = vmatprep.subr.mxu0 0.0
  %5353 = vmatpush1.msra.mxu0 %v4991
  %5354 = vmatprep.subr.mxu0 0.0
  %5355 = vmatpush1.msra.mxu0 %v4996
  %5356 = vmatprep.subr.mxu0 0.0
  %5357 = vmatpush1.msra.mxu0 %v5001
  %5358 = vmatprep.subr.mxu0 0.0
  %5359 = vmatpush1.msra.mxu0 %v5006
  %5360 = vmatprep.subr.mxu0 0.0
  %5361 = vmatpush1.msra.mxu0 %v5011
  %5362 = vmatprep.subr.mxu0 0.0
  %5363 = vmatpush1.msra.mxu0 %v5016
  %5364 = vmatprep.subr.mxu0 0.0
  %5365 = vmatpush1.msra.mxu0 %v5021
  %5366 = vmatprep.subr.mxu0 0.0
  %5367 = vmatpush1.msra.mxu0 %v5026
  %5368 = vmatprep.subr.mxu0 0.0
  %5369 = vmatpush1.msra.mxu0 0.0
  %5370 = vmatprep.subr.mxu0 0.0
  %5371 = vmatpush1.msra.mxu0 0.0
  %5372 = vmatprep.subr.mxu0 0.0
  %5373 = vmatpush1.msra.mxu0 0.0
  %5374 = vmatprep.subr.mxu0 0.0
  %5375 = vmatpush1.msra.mxu0 0.0
  %5376 = vmatprep.subr.mxu0 0.0
  %5377 = vmatpush1.msra.mxu0 0.0
  %5378 = vmatprep.subr.mxu0 0.0
  %5379 = vmatpush1.msra.mxu0 0.0
  %5380 = vmatprep.subr.mxu0 0.0
  %5381 = vmatpush1.msra.mxu0 0.0
  %5382 = vmatprep.subr.mxu0 0.0
  %5383 = vmatpush1.msra.mxu0 0.0
  %5384 = vmatprep.subr.mxu0 0.0
  %5385 = vmatpush1.msra.mxu0 0.0
  %5386 = vmatprep.subr.mxu0 0.0
  %5387 = vmatpush1.msra.mxu0 0.0
  %5388 = vmatprep.subr.mxu0 0.0
  %5389 = vmatpush1.msra.mxu0 0.0
  %5390 = vmatprep.subr.mxu0 0.0
  %5391 = vmatpush1.msra.mxu0 0.0
  %5392 = vmatprep.subr.mxu0 0.0
  %5393 = vmatpush1.msra.mxu0 0.0
  %5394 = vmatprep.subr.mxu0 0.0
  %5395 = vmatpush1.msra.mxu0 0.0
  %5396 = vmatprep.subr.mxu0 0.0
  %5397 = vmatpush1.msra.mxu0 0.0
  %5398 = vmatprep.subr.mxu0 0.0
  %5399 = vmatpush1.msra.mxu0 0.0
  %5400 = vmatprep.subr.mxu0 0.0
  %5401 = vmatpush1.msra.mxu0 0.0
  %5402 = vmatprep.subr.mxu0 0.0
  %5403 = vmatpush1.msra.mxu0 0.0
  %5404 = vmatprep.subr.mxu0 0.0
  %5405 = vmatpush1.msra.mxu0 0.0
  %5406 = vmatprep.subr.mxu0 0.0
  %5407 = vmatpush1.msra.mxu0 0.0
  %5408 = vmatprep.subr.mxu0 0.0
  %5409 = vmatpush1.msra.mxu0 0.0
  %5410 = vmatprep.subr.mxu0 0.0
  %5411 = vmatpush1.msra.mxu0 0.0
  %5412 = vmatprep.subr.mxu0 0.0
  %5413 = vmatpush1.msra.mxu0 0.0
  %5414 = vmatprep.subr.mxu0 0.0
  %5415 = vmatpush1.msra.mxu0 0.0
  %5416 = vmatprep.mubr.f32.mxu0 0.0
  %5417 = vmatmul.mubr.f32.gmra.mrb[0].mxu0 %v5305
  %v5418 = vpop.f32.mrb[0].mxu0
  %v5419 = vadd.f32 %v5226, %v5418
  %v5420 = vpop.f32.mrb[0].mxu0
  %5421 = vmatprep.mubr.f32.mxu0 0.0
  %5422 = vmatmul.mubr.f32.gmra.mrb[0].mxu0 %v5308
  %v5423 = vpop.f32.mrb[0].mxu0
  %v5424 = vadd.f32 %v5231, %v5423
  %v5425 = vpop.f32.mrb[0].mxu0
  %5426 = vmatprep.mubr.f32.mxu0 0.0
  %5427 = vmatmul.mubr.f32.gmra.mrb[0].mxu0 %v5311
  %v5428 = vpop.f32.mrb[0].mxu0
  %v5429 = vadd.f32 %v5236, %v5428
  %v5430 = vpop.f32.mrb[0].mxu0
  %5431 = vmatprep.mubr.f32.mxu0 0.0
  %5432 = vmatmul.mubr.f32.gmra.mrb[0].mxu0 %v5314
  %v5433 = vpop.f32.mrb[0].mxu0
  %v5434 = vadd.f32 %v5241, %v5433
  %v5435 = vpop.f32.mrb[0].mxu0
  %5436 = vmatprep.mubr.f32.mxu0 0.0
  %5437 = vmatmul.mubr.f32.gmra.mrb[0].mxu0 %v5317
  %v5438 = vpop.f32.mrb[0].mxu0
  %v5439 = vadd.f32 %v5246, %v5438
  %v5440 = vpop.f32.mrb[0].mxu0
  %5441 = vmatprep.mubr.f32.mxu0 0.0
  %5442 = vmatmul.mubr.f32.gmra.mrb[0].mxu0 %v5320
  %v5443 = vpop.f32.mrb[0].mxu0
  %v5444 = vadd.f32 %v5251, %v5443
  %v5445 = vpop.f32.mrb[0].mxu0
  %5446 = vmatprep.mubr.f32.mxu0 0.0
  %5447 = vmatmul.mubr.f32.gmra.mrb[0].mxu0 %v5323
  %v5448 = vpop.f32.mrb[0].mxu0
  %v5449 = vadd.f32 %v5256, %v5448
  %v5450 = vpop.f32.mrb[0].mxu0
  %5451 = vmatprep.mubr.f32.mxu0 0.0
  %5452 = vmatmul.mubr.f32.gmra.mrb[0].mxu0 %v5326
  %v5453 = vpop.f32.mrb[0].mxu0
  %v5454 = vadd.f32 %v5261, %v5453
  %v5455 = vpop.f32.mrb[0].mxu0
  %5456 = vmatprep.mubr.f32.mxu0 0.0
  %5457 = vmatmul.mubr.f32.gmra.mrb[0].mxu0 %v5329
  %v5458 = vpop.f32.mrb[0].mxu0
  %v5459 = vadd.f32 %v5266, %v5458
  %v5460 = vpop.f32.mrb[0].mxu0
  %5461 = vmatprep.mubr.f32.mxu0 0.0
  %5462 = vmatmul.mubr.f32.gmra.mrb[0].mxu0 %v5332
  %v5463 = vpop.f32.mrb[0].mxu0
  %v5464 = vadd.f32 %v5271, %v5463
  %v5465 = vpop.f32.mrb[0].mxu0
  %5466 = vmatprep.mubr.f32.mxu0 0.0
  %5467 = vmatmul.mubr.f32.gmra.mrb[0].mxu0 %v5335
  %v5468 = vpop.f32.mrb[0].mxu0
  %v5469 = vadd.f32 %v5276, %v5468
  %v5470 = vpop.f32.mrb[0].mxu0
  %5471 = vmatprep.mubr.f32.mxu0 0.0
  %5472 = vmatmul.mubr.f32.gmra.mrb[0].mxu0 %v5338
  %v5473 = vpop.f32.mrb[0].mxu0
  %v5474 = vadd.f32 %v5281, %v5473
  %v5475 = vpop.f32.mrb[0].mxu0
  %5476 = vmatprep.mubr.f32.mxu0 0.0
  %5477 = vmatmul.mubr.f32.gmra.mrb[0].mxu0 %v5341
  %v5478 = vpop.f32.mrb[0].mxu0
  %v5479 = vadd.f32 %v5286, %v5478
  %v5480 = vpop.f32.mrb[0].mxu0
  %5481 = vmatprep.mubr.f32.mxu0 0.0
  %5482 = vmatmul.mubr.f32.gmra.mrb[0].mxu0 %v5344
  %v5483 = vpop.f32.mrb[0].mxu0
  %v5484 = vadd.f32 %v5291, %v5483
  %v5485 = vpop.f32.mrb[0].mxu0
  %5486 = vmatprep.mubr.f32.mxu0 0.0
  %5487 = vmatmul.mubr.f32.gmra.mrb[0].mxu0 %v5347
  %v5488 = vpop.f32.mrb[0].mxu0
  %v5489 = vadd.f32 %v5296, %v5488
  %v5490 = vpop.f32.mrb[0].mxu0
  %5491 = vmatprep.mubr.f32.mxu0 0.0
  %5492 = vmatmul.mubr.f32.gmra.mrb[0].mxu0 %v5350
  %v5493 = vpop.f32.mrb[0].mxu0
  %v5494 = vadd.f32 %v5301, %v5493
  %v5495 = vpop.f32.mrb[0].mxu0
  %5496 = vdwg.mxu0
  %5505 = vrot.lane.b32.xlu0 %v4991, 127
  %v5506 = vpop.permute.xlu0 %5505
  %5507 = vrot.lane.b32.xlu0 %v4996, 127
  %v5508 = vpop.permute.xlu0 %5507
  %5509 = vrot.lane.b32.xlu0 %v5001, 127
  %v5510 = vpop.permute.xlu0 %5509
  %5511 = vrot.lane.b32.xlu0 %v5006, 127
  %v5512 = vpop.permute.xlu0 %5511
  %5513 = vrot.lane.b32.xlu0 %v5011, 127
  %v5514 = vpop.permute.xlu0 %5513
  %5515 = vrot.lane.b32.xlu0 %v5016, 127
  %v5516 = vpop.permute.xlu0 %5515
  %5517 = vrot.lane.b32.xlu0 %v5021, 127
  %v5518 = vpop.permute.xlu0 %5517
  %5519 = vrot.lane.b32.xlu0 %v5026, 127
  %v5520 = vpop.permute.xlu0 %5519
  %v5530 = vsel %vm1454, %v5063, 0
  %v5533 = vsel %vm1454, %v5064, 0
  %v5536 = vsel %vm1454, %v5065, 0
  %v5539 = vsel %vm1454, %v5066, 0
  %v5542 = vsel %vm1454, %v5067, 0
  %v5545 = vsel %vm1454, %v5068, 0
  %v5548 = vsel %vm1454, %v5069, 0
  %v5551 = vsel %vm1454, %v5070, 0
  %v5554 = vsel %vm1454, %v5071, 0
  %v5557 = vsel %vm1454, %v5072, 0
  %v5560 = vsel %vm1454, %v5073, 0
  %v5563 = vsel %vm1454, %v5074, 0
  %v5566 = vsel %vm1454, %v5075, 0
  %v5569 = vsel %vm1454, %v5076, 0
  %v5572 = vsel %vm1454, %v5077, 0
  %v5575 = vsel %vm1454, %v5078, 0
  %5577 = vmatprep.subr.mxu0 0.0
  %5578 = vmatpush1.msra.mxu0 %v5506
  %5579 = vmatprep.subr.mxu0 0.0
  %5580 = vmatpush1.msra.mxu0 %v5508
  %5581 = vmatprep.subr.mxu0 0.0
  %5582 = vmatpush1.msra.mxu0 %v5510
  %5583 = vmatprep.subr.mxu0 0.0
  %5584 = vmatpush1.msra.mxu0 %v5512
  %5585 = vmatprep.subr.mxu0 0.0
  %5586 = vmatpush1.msra.mxu0 %v5514
  %5587 = vmatprep.subr.mxu0 0.0
  %5588 = vmatpush1.msra.mxu0 %v5516
  %5589 = vmatprep.subr.mxu0 0.0
  %5590 = vmatpush1.msra.mxu0 %v5518
  %5591 = vmatprep.subr.mxu0 0.0
  %5592 = vmatpush1.msra.mxu0 %v5520
  %5593 = vmatprep.subr.mxu0 0.0
  %5594 = vmatpush1.msra.mxu0 0.0
  %5595 = vmatprep.subr.mxu0 0.0
  %5596 = vmatpush1.msra.mxu0 0.0
  %5597 = vmatprep.subr.mxu0 0.0
  %5598 = vmatpush1.msra.mxu0 0.0
  %5599 = vmatprep.subr.mxu0 0.0
  %5600 = vmatpush1.msra.mxu0 0.0
  %5601 = vmatprep.subr.mxu0 0.0
  %5602 = vmatpush1.msra.mxu0 0.0
  %5603 = vmatprep.subr.mxu0 0.0
  %5604 = vmatpush1.msra.mxu0 0.0
  %5605 = vmatprep.subr.mxu0 0.0
  %5606 = vmatpush1.msra.mxu0 0.0
  %5607 = vmatprep.subr.mxu0 0.0
  %5608 = vmatpush1.msra.mxu0 0.0
  %5609 = vmatprep.subr.mxu0 0.0
  %5610 = vmatpush1.msra.mxu0 0.0
  %5611 = vmatprep.subr.mxu0 0.0
  %5612 = vmatpush1.msra.mxu0 0.0
  %5613 = vmatprep.subr.mxu0 0.0
  %5614 = vmatpush1.msra.mxu0 0.0
  %5615 = vmatprep.subr.mxu0 0.0
  %5616 = vmatpush1.msra.mxu0 0.0
  %5617 = vmatprep.subr.mxu0 0.0
  %5618 = vmatpush1.msra.mxu0 0.0
  %5619 = vmatprep.subr.mxu0 0.0
  %5620 = vmatpush1.msra.mxu0 0.0
  %5621 = vmatprep.subr.mxu0 0.0
  %5622 = vmatpush1.msra.mxu0 0.0
  %5623 = vmatprep.subr.mxu0 0.0
  %5624 = vmatpush1.msra.mxu0 0.0
  %5625 = vmatprep.subr.mxu0 0.0
  %5626 = vmatpush1.msra.mxu0 0.0
  %5627 = vmatprep.subr.mxu0 0.0
  %5628 = vmatpush1.msra.mxu0 0.0
  %5629 = vmatprep.subr.mxu0 0.0
  %5630 = vmatpush1.msra.mxu0 0.0
  %5631 = vmatprep.subr.mxu0 0.0
  %5632 = vmatpush1.msra.mxu0 0.0
  %5633 = vmatprep.subr.mxu0 0.0
  %5634 = vmatpush1.msra.mxu0 0.0
  %5635 = vmatprep.subr.mxu0 0.0
  %5636 = vmatpush1.msra.mxu0 0.0
  %5637 = vmatprep.subr.mxu0 0.0
  %5638 = vmatpush1.msra.mxu0 0.0
  %5639 = vmatprep.subr.mxu0 0.0
  %5640 = vmatpush1.msra.mxu0 0.0
  %5641 = vmatprep.mubr.f32.mxu0 0.0
  %5642 = vmatmul.mubr.f32.gmra.mrb[0].mxu0 %v5530
  %v5643 = vpop.f32.mrb[0].mxu0
  %v5644 = vadd.f32 0.0, %v5643
  %v5645 = vpop.f32.mrb[0].mxu0
  %5646 = vmatprep.mubr.f32.mxu0 0.0
  %5647 = vmatmul.mubr.f32.gmra.mrb[0].mxu0 %v5533
  %v5648 = vpop.f32.mrb[0].mxu0
  %v5649 = vadd.f32 0.0, %v5648
  %v5650 = vpop.f32.mrb[0].mxu0
  %5651 = vmatprep.mubr.f32.mxu0 0.0
  %5652 = vmatmul.mubr.f32.gmra.mrb[0].mxu0 %v5536
  %v5653 = vpop.f32.mrb[0].mxu0
  %v5654 = vadd.f32 0.0, %v5653
  %v5655 = vpop.f32.mrb[0].mxu0
  %5656 = vmatprep.mubr.f32.mxu0 0.0
  %5657 = vmatmul.mubr.f32.gmra.mrb[0].mxu0 %v5539
  %v5658 = vpop.f32.mrb[0].mxu0
  %v5659 = vadd.f32 0.0, %v5658
  %v5660 = vpop.f32.mrb[0].mxu0
  %5661 = vmatprep.mubr.f32.mxu0 0.0
  %5662 = vmatmul.mubr.f32.gmra.mrb[0].mxu0 %v5542
  %v5663 = vpop.f32.mrb[0].mxu0
  %v5664 = vadd.f32 0.0, %v5663
  %v5665 = vpop.f32.mrb[0].mxu0
  %5666 = vmatprep.mubr.f32.mxu0 0.0
  %5667 = vmatmul.mubr.f32.gmra.mrb[0].mxu0 %v5545
  %v5668 = vpop.f32.mrb[0].mxu0
  %v5669 = vadd.f32 0.0, %v5668
  %v5670 = vpop.f32.mrb[0].mxu0
  %5671 = vmatprep.mubr.f32.mxu0 0.0
  %5672 = vmatmul.mubr.f32.gmra.mrb[0].mxu0 %v5548
  %v5673 = vpop.f32.mrb[0].mxu0
  %v5674 = vadd.f32 0.0, %v5673
  %v5675 = vpop.f32.mrb[0].mxu0
  %5676 = vmatprep.mubr.f32.mxu0 0.0
  %5677 = vmatmul.mubr.f32.gmra.mrb[0].mxu0 %v5551
  %v5678 = vpop.f32.mrb[0].mxu0
  %v5679 = vadd.f32 0.0, %v5678
  %v5680 = vpop.f32.mrb[0].mxu0
  %5681 = vmatprep.mubr.f32.mxu0 0.0
  %5682 = vmatmul.mubr.f32.gmra.mrb[0].mxu0 %v5554
  %v5683 = vpop.f32.mrb[0].mxu0
  %v5684 = vadd.f32 0.0, %v5683
  %v5685 = vpop.f32.mrb[0].mxu0
  %5686 = vmatprep.mubr.f32.mxu0 0.0
  %5687 = vmatmul.mubr.f32.gmra.mrb[0].mxu0 %v5557
  %v5688 = vpop.f32.mrb[0].mxu0
  %v5689 = vadd.f32 0.0, %v5688
  %v5690 = vpop.f32.mrb[0].mxu0
  %5691 = vmatprep.mubr.f32.mxu0 0.0
  %5692 = vmatmul.mubr.f32.gmra.mrb[0].mxu0 %v5560
  %v5693 = vpop.f32.mrb[0].mxu0
  %v5694 = vadd.f32 0.0, %v5693
  %v5695 = vpop.f32.mrb[0].mxu0
  %5696 = vmatprep.mubr.f32.mxu0 0.0
  %5697 = vmatmul.mubr.f32.gmra.mrb[0].mxu0 %v5563
  %v5698 = vpop.f32.mrb[0].mxu0
  %v5699 = vadd.f32 0.0, %v5698
  %v5700 = vpop.f32.mrb[0].mxu0
  %5701 = vmatprep.mubr.f32.mxu0 0.0
  %5702 = vmatmul.mubr.f32.gmra.mrb[0].mxu0 %v5566
  %v5703 = vpop.f32.mrb[0].mxu0
  %v5704 = vadd.f32 0.0, %v5703
  %v5705 = vpop.f32.mrb[0].mxu0
  %5706 = vmatprep.mubr.f32.mxu0 0.0
  %5707 = vmatmul.mubr.f32.gmra.mrb[0].mxu0 %v5569
  %v5708 = vpop.f32.mrb[0].mxu0
  %v5709 = vadd.f32 0.0, %v5708
  %v5710 = vpop.f32.mrb[0].mxu0
  %5711 = vmatprep.mubr.f32.mxu0 0.0
  %5712 = vmatmul.mubr.f32.gmra.mrb[0].mxu0 %v5572
  %v5713 = vpop.f32.mrb[0].mxu0
  %v5714 = vadd.f32 0.0, %v5713
  %v5715 = vpop.f32.mrb[0].mxu0
  %5716 = vmatprep.mubr.f32.mxu0 0.0
  %5717 = vmatmul.mubr.f32.gmra.mrb[0].mxu0 %v5575
  %v5718 = vpop.f32.mrb[0].mxu0
  %v5719 = vadd.f32 0.0, %v5718
  %v5720 = vpop.f32.mrb[0].mxu0
  %5721 = vdwg.mxu0
  %v5722 = vadd.f32 %v5419, %v5644
  %v5723 = vadd.f32 %v5424, %v5649
  %v5724 = vadd.f32 %v5429, %v5654
  %v5725 = vadd.f32 %v5434, %v5659
  %v5726 = vadd.f32 %v5439, %v5664
  %v5727 = vadd.f32 %v5444, %v5669
  %v5728 = vadd.f32 %v5449, %v5674
  %v5729 = vadd.f32 %v5454, %v5679
  %v5730 = vadd.f32 %v5459, %v5684
  %v5731 = vadd.f32 %v5464, %v5689
  %v5732 = vadd.f32 %v5469, %v5694
  %v5733 = vadd.f32 %v5474, %v5699
  %v5734 = vadd.f32 %v5479, %v5704
  %v5735 = vadd.f32 %v5484, %v5709
  %v5736 = vadd.f32 %v5489, %v5714
  %v5737 = vadd.f32 %v5494, %v5719
  %5738 = vmatprep.subr.mxu0 0.0
  %5739 = vmatpush1.msra.mxu0 %v5506
  %5740 = vmatprep.subr.mxu0 0.0
  %5741 = vmatpush1.msra.mxu0 %v5508
  %5742 = vmatprep.subr.mxu0 0.0
  %5743 = vmatpush1.msra.mxu0 %v5510
  %5744 = vmatprep.subr.mxu0 0.0
  %5745 = vmatpush1.msra.mxu0 %v5512
  %5746 = vmatprep.subr.mxu0 0.0
  %5747 = vmatpush1.msra.mxu0 %v5514
  %5748 = vmatprep.subr.mxu0 0.0
  %5749 = vmatpush1.msra.mxu0 %v5516
  %5750 = vmatprep.subr.mxu0 0.0
  %5751 = vmatpush1.msra.mxu0 %v5518
  %5752 = vmatprep.subr.mxu0 0.0
  %5753 = vmatpush1.msra.mxu0 %v5520
  %5754 = vmatprep.subr.mxu0 0.0
  %5755 = vmatpush1.msra.mxu0 0.0
  %5756 = vmatprep.subr.mxu0 0.0
  %5757 = vmatpush1.msra.mxu0 0.0
  %5758 = vmatprep.subr.mxu0 0.0
  %5759 = vmatpush1.msra.mxu0 0.0
  %5760 = vmatprep.subr.mxu0 0.0
  %5761 = vmatpush1.msra.mxu0 0.0
  %5762 = vmatprep.subr.mxu0 0.0
  %5763 = vmatpush1.msra.mxu0 0.0
  %5764 = vmatprep.subr.mxu0 0.0
  %5765 = vmatpush1.msra.mxu0 0.0
  %5766 = vmatprep.subr.mxu0 0.0
  %5767 = vmatpush1.msra.mxu0 0.0
  %5768 = vmatprep.subr.mxu0 0.0
  %5769 = vmatpush1.msra.mxu0 0.0
  %5770 = vmatprep.subr.mxu0 0.0
  %5771 = vmatpush1.msra.mxu0 0.0
  %5772 = vmatprep.subr.mxu0 0.0
  %5773 = vmatpush1.msra.mxu0 0.0
  %5774 = vmatprep.subr.mxu0 0.0
  %5775 = vmatpush1.msra.mxu0 0.0
  %5776 = vmatprep.subr.mxu0 0.0
  %5777 = vmatpush1.msra.mxu0 0.0
  %5778 = vmatprep.subr.mxu0 0.0
  %5779 = vmatpush1.msra.mxu0 0.0
  %5780 = vmatprep.subr.mxu0 0.0
  %5781 = vmatpush1.msra.mxu0 0.0
  %5782 = vmatprep.subr.mxu0 0.0
  %5783 = vmatpush1.msra.mxu0 0.0
  %5784 = vmatprep.subr.mxu0 0.0
  %5785 = vmatpush1.msra.mxu0 0.0
  %5786 = vmatprep.subr.mxu0 0.0
  %5787 = vmatpush1.msra.mxu0 0.0
  %5788 = vmatprep.subr.mxu0 0.0
  %5789 = vmatpush1.msra.mxu0 0.0
  %5790 = vmatprep.subr.mxu0 0.0
  %5791 = vmatpush1.msra.mxu0 0.0
  %5792 = vmatprep.subr.mxu0 0.0
  %5793 = vmatpush1.msra.mxu0 0.0
  %5794 = vmatprep.subr.mxu0 0.0
  %5795 = vmatpush1.msra.mxu0 0.0
  %5796 = vmatprep.subr.mxu0 0.0
  %5797 = vmatpush1.msra.mxu0 0.0
  %5798 = vmatprep.subr.mxu0 0.0
  %5799 = vmatpush1.msra.mxu0 0.0
  %5800 = vmatprep.subr.mxu0 0.0
  %5801 = vmatpush1.msra.mxu0 0.0
  %5802 = vmatprep.mubr.f32.mxu0 0.0
  %5803 = vmatmul.mubr.f32.gmra.mrb[0].mxu0 %v5112
  %v5804 = vpop.f32.mrb[0].mxu0
  %v5805 = vadd.f32 0.0, %v5804
  %v5806 = vpop.f32.mrb[0].mxu0
  %5807 = vmatprep.mubr.f32.mxu0 0.0
  %5808 = vmatmul.mubr.f32.gmra.mrb[0].mxu0 %v5115
  %v5809 = vpop.f32.mrb[0].mxu0
  %v5810 = vadd.f32 0.0, %v5809
  %v5811 = vpop.f32.mrb[0].mxu0
  %5812 = vmatprep.mubr.f32.mxu0 0.0
  %5813 = vmatmul.mubr.f32.gmra.mrb[0].mxu0 %v5118
  %v5814 = vpop.f32.mrb[0].mxu0
  %v5815 = vadd.f32 0.0, %v5814
  %v5816 = vpop.f32.mrb[0].mxu0
  %5817 = vmatprep.mubr.f32.mxu0 0.0
  %5818 = vmatmul.mubr.f32.gmra.mrb[0].mxu0 %v5121
  %v5819 = vpop.f32.mrb[0].mxu0
  %v5820 = vadd.f32 0.0, %v5819
  %v5821 = vpop.f32.mrb[0].mxu0
  %5822 = vmatprep.mubr.f32.mxu0 0.0
  %5823 = vmatmul.mubr.f32.gmra.mrb[0].mxu0 %v5124
  %v5824 = vpop.f32.mrb[0].mxu0
  %v5825 = vadd.f32 0.0, %v5824
  %v5826 = vpop.f32.mrb[0].mxu0
  %5827 = vmatprep.mubr.f32.mxu0 0.0
  %5828 = vmatmul.mubr.f32.gmra.mrb[0].mxu0 %v5127
  %v5829 = vpop.f32.mrb[0].mxu0
  %v5830 = vadd.f32 0.0, %v5829
  %v5831 = vpop.f32.mrb[0].mxu0
  %5832 = vmatprep.mubr.f32.mxu0 0.0
  %5833 = vmatmul.mubr.f32.gmra.mrb[0].mxu0 %v5130
  %v5834 = vpop.f32.mrb[0].mxu0
  %v5835 = vadd.f32 0.0, %v5834
  %v5836 = vpop.f32.mrb[0].mxu0
  %5837 = vmatprep.mubr.f32.mxu0 0.0
  %5838 = vmatmul.mubr.f32.gmra.mrb[0].mxu0 %v5133
  %v5839 = vpop.f32.mrb[0].mxu0
  %v5840 = vadd.f32 0.0, %v5839
  %v5841 = vpop.f32.mrb[0].mxu0
  %5842 = vmatprep.mubr.f32.mxu0 0.0
  %5843 = vmatmul.mubr.f32.gmra.mrb[0].mxu0 %v5136
  %v5844 = vpop.f32.mrb[0].mxu0
  %v5845 = vadd.f32 0.0, %v5844
  %v5846 = vpop.f32.mrb[0].mxu0
  %5847 = vmatprep.mubr.f32.mxu0 0.0
  %5848 = vmatmul.mubr.f32.gmra.mrb[0].mxu0 %v5139
  %v5849 = vpop.f32.mrb[0].mxu0
  %v5850 = vadd.f32 0.0, %v5849
  %v5851 = vpop.f32.mrb[0].mxu0
  %5852 = vmatprep.mubr.f32.mxu0 0.0
  %5853 = vmatmul.mubr.f32.gmra.mrb[0].mxu0 %v5142
  %v5854 = vpop.f32.mrb[0].mxu0
  %v5855 = vadd.f32 0.0, %v5854
  %v5856 = vpop.f32.mrb[0].mxu0
  %5857 = vmatprep.mubr.f32.mxu0 0.0
  %5858 = vmatmul.mubr.f32.gmra.mrb[0].mxu0 %v5145
  %v5859 = vpop.f32.mrb[0].mxu0
  %v5860 = vadd.f32 0.0, %v5859
  %v5861 = vpop.f32.mrb[0].mxu0
  %5862 = vmatprep.mubr.f32.mxu0 0.0
  %5863 = vmatmul.mubr.f32.gmra.mrb[0].mxu0 %v5148
  %v5864 = vpop.f32.mrb[0].mxu0
  %v5865 = vadd.f32 0.0, %v5864
  %v5866 = vpop.f32.mrb[0].mxu0
  %5867 = vmatprep.mubr.f32.mxu0 0.0
  %5868 = vmatmul.mubr.f32.gmra.mrb[0].mxu0 %v5151
  %v5869 = vpop.f32.mrb[0].mxu0
  %v5870 = vadd.f32 0.0, %v5869
  %v5871 = vpop.f32.mrb[0].mxu0
  %5872 = vmatprep.mubr.f32.mxu0 0.0
  %5873 = vmatmul.mubr.f32.gmra.mrb[0].mxu0 %v5154
  %v5874 = vpop.f32.mrb[0].mxu0
  %v5875 = vadd.f32 0.0, %v5874
  %v5876 = vpop.f32.mrb[0].mxu0
  %5877 = vmatprep.mubr.f32.mxu0 0.0
  %5878 = vmatmul.mubr.f32.gmra.mrb[0].mxu0 %v5157
  %v5879 = vpop.f32.mrb[0].mxu0
  %v5880 = vadd.f32 0.0, %v5879
  %v5881 = vpop.f32.mrb[0].mxu0
  %5882 = vdwg.mxu0
  %5883 = vmatprep.subr.mxu0 0.0
  %5884 = vmatpush1.msra.mxu0 %v4882
  %5885 = vmatprep.subr.mxu0 0.0
  %5886 = vmatpush1.msra.mxu0 %v4887
  %5887 = vmatprep.subr.mxu0 0.0
  %5888 = vmatpush1.msra.mxu0 %v4892
  %5889 = vmatprep.subr.mxu0 0.0
  %5890 = vmatpush1.msra.mxu0 %v4897
  %5891 = vmatprep.subr.mxu0 0.0
  %5892 = vmatpush1.msra.mxu0 %v4902
  %5893 = vmatprep.subr.mxu0 0.0
  %5894 = vmatpush1.msra.mxu0 %v4907
  %5895 = vmatprep.subr.mxu0 0.0
  %5896 = vmatpush1.msra.mxu0 %v4912
  %5897 = vmatprep.subr.mxu0 0.0
  %5898 = vmatpush1.msra.mxu0 %v4917
  %5899 = vmatprep.subr.mxu0 0.0
  %5900 = vmatpush1.msra.mxu0 0.0
  %5901 = vmatprep.subr.mxu0 0.0
  %5902 = vmatpush1.msra.mxu0 0.0
  %5903 = vmatprep.subr.mxu0 0.0
  %5904 = vmatpush1.msra.mxu0 0.0
  %5905 = vmatprep.subr.mxu0 0.0
  %5906 = vmatpush1.msra.mxu0 0.0
  %5907 = vmatprep.subr.mxu0 0.0
  %5908 = vmatpush1.msra.mxu0 0.0
  %5909 = vmatprep.subr.mxu0 0.0
  %5910 = vmatpush1.msra.mxu0 0.0
  %5911 = vmatprep.subr.mxu0 0.0
  %5912 = vmatpush1.msra.mxu0 0.0
  %5913 = vmatprep.subr.mxu0 0.0
  %5914 = vmatpush1.msra.mxu0 0.0
  %5915 = vmatprep.subr.mxu0 0.0
  %5916 = vmatpush1.msra.mxu0 0.0
  %5917 = vmatprep.subr.mxu0 0.0
  %5918 = vmatpush1.msra.mxu0 0.0
  %5919 = vmatprep.subr.mxu0 0.0
  %5920 = vmatpush1.msra.mxu0 0.0
  %5921 = vmatprep.subr.mxu0 0.0
  %5922 = vmatpush1.msra.mxu0 0.0
  %5923 = vmatprep.subr.mxu0 0.0
  %5924 = vmatpush1.msra.mxu0 0.0
  %5925 = vmatprep.subr.mxu0 0.0
  %5926 = vmatpush1.msra.mxu0 0.0
  %5927 = vmatprep.subr.mxu0 0.0
  %5928 = vmatpush1.msra.mxu0 0.0
  %5929 = vmatprep.subr.mxu0 0.0
  %5930 = vmatpush1.msra.mxu0 0.0
  %5931 = vmatprep.subr.mxu0 0.0
  %5932 = vmatpush1.msra.mxu0 0.0
  %5933 = vmatprep.subr.mxu0 0.0
  %5934 = vmatpush1.msra.mxu0 0.0
  %5935 = vmatprep.subr.mxu0 0.0
  %5936 = vmatpush1.msra.mxu0 0.0
  %5937 = vmatprep.subr.mxu0 0.0
  %5938 = vmatpush1.msra.mxu0 0.0
  %5939 = vmatprep.subr.mxu0 0.0
  %5940 = vmatpush1.msra.mxu0 0.0
  %5941 = vmatprep.subr.mxu0 0.0
  %5942 = vmatpush1.msra.mxu0 0.0
  %5943 = vmatprep.subr.mxu0 0.0
  %5944 = vmatpush1.msra.mxu0 0.0
  %5945 = vmatprep.subr.mxu0 0.0
  %5946 = vmatpush1.msra.mxu0 0.0
  %5947 = vmatprep.mubr.f32.mxu0 0.0
  %5948 = vmatmul.mubr.f32.gmra.mrb[0].mxu0 %v5305
  %v5949 = vpop.f32.mrb[0].mxu0
  %v5950 = vadd.f32 %v5805, %v5949
  %v5951 = vpop.f32.mrb[0].mxu0
  %5952 = vmatprep.mubr.f32.mxu0 0.0
  %5953 = vmatmul.mubr.f32.gmra.mrb[0].mxu0 %v5308
  %v5954 = vpop.f32.mrb[0].mxu0
  %v5955 = vadd.f32 %v5810, %v5954
  %v5956 = vpop.f32.mrb[0].mxu0
  %5957 = vmatprep.mubr.f32.mxu0 0.0
  %5958 = vmatmul.mubr.f32.gmra.mrb[0].mxu0 %v5311
  %v5959 = vpop.f32.mrb[0].mxu0
  %v5960 = vadd.f32 %v5815, %v5959
  %v5961 = vpop.f32.mrb[0].mxu0
  %5962 = vmatprep.mubr.f32.mxu0 0.0
  %5963 = vmatmul.mubr.f32.gmra.mrb[0].mxu0 %v5314
  %v5964 = vpop.f32.mrb[0].mxu0
  %v5965 = vadd.f32 %v5820, %v5964
  %v5966 = vpop.f32.mrb[0].mxu0
  %5967 = vmatprep.mubr.f32.mxu0 0.0
  %5968 = vmatmul.mubr.f32.gmra.mrb[0].mxu0 %v5317
  %v5969 = vpop.f32.mrb[0].mxu0
  %v5970 = vadd.f32 %v5825, %v5969
  %v5971 = vpop.f32.mrb[0].mxu0
  %5972 = vmatprep.mubr.f32.mxu0 0.0
  %5973 = vmatmul.mubr.f32.gmra.mrb[0].mxu0 %v5320
  %v5974 = vpop.f32.mrb[0].mxu0
  %v5975 = vadd.f32 %v5830, %v5974
  %v5976 = vpop.f32.mrb[0].mxu0
  %5977 = vmatprep.mubr.f32.mxu0 0.0
  %5978 = vmatmul.mubr.f32.gmra.mrb[0].mxu0 %v5323
  %v5979 = vpop.f32.mrb[0].mxu0
  %v5980 = vadd.f32 %v5835, %v5979
  %v5981 = vpop.f32.mrb[0].mxu0
  %5982 = vmatprep.mubr.f32.mxu0 0.0
  %5983 = vmatmul.mubr.f32.gmra.mrb[0].mxu0 %v5326
  %v5984 = vpop.f32.mrb[0].mxu0
  %v5985 = vadd.f32 %v5840, %v5984
  %v5986 = vpop.f32.mrb[0].mxu0
  %5987 = vmatprep.mubr.f32.mxu0 0.0
  %5988 = vmatmul.mubr.f32.gmra.mrb[0].mxu0 %v5329
  %v5989 = vpop.f32.mrb[0].mxu0
  %v5990 = vadd.f32 %v5845, %v5989
  %v5991 = vpop.f32.mrb[0].mxu0
  %5992 = vmatprep.mubr.f32.mxu0 0.0
  %5993 = vmatmul.mubr.f32.gmra.mrb[0].mxu0 %v5332
  %v5994 = vpop.f32.mrb[0].mxu0
  %v5995 = vadd.f32 %v5850, %v5994
  %v5996 = vpop.f32.mrb[0].mxu0
  %5997 = vmatprep.mubr.f32.mxu0 0.0
  %5998 = vmatmul.mubr.f32.gmra.mrb[0].mxu0 %v5335
  %v5999 = vpop.f32.mrb[0].mxu0
  %v6000 = vadd.f32 %v5855, %v5999
  %v6001 = vpop.f32.mrb[0].mxu0
  %6002 = vmatprep.mubr.f32.mxu0 0.0
  %6003 = vmatmul.mubr.f32.gmra.mrb[0].mxu0 %v5338
  %v6004 = vpop.f32.mrb[0].mxu0
  %v6005 = vadd.f32 %v5860, %v6004
  %v6006 = vpop.f32.mrb[0].mxu0
  %6007 = vmatprep.mubr.f32.mxu0 0.0
  %6008 = vmatmul.mubr.f32.gmra.mrb[0].mxu0 %v5341
  %v6009 = vpop.f32.mrb[0].mxu0
  %v6010 = vadd.f32 %v5865, %v6009
  %v6011 = vpop.f32.mrb[0].mxu0
  %6012 = vmatprep.mubr.f32.mxu0 0.0
  %6013 = vmatmul.mubr.f32.gmra.mrb[0].mxu0 %v5344
  %v6014 = vpop.f32.mrb[0].mxu0
  %v6015 = vadd.f32 %v5870, %v6014
  %v6016 = vpop.f32.mrb[0].mxu0
  %6017 = vmatprep.mubr.f32.mxu0 0.0
  %6018 = vmatmul.mubr.f32.gmra.mrb[0].mxu0 %v5347
  %v6019 = vpop.f32.mrb[0].mxu0
  %v6020 = vadd.f32 %v5875, %v6019
  %v6021 = vpop.f32.mrb[0].mxu0
  %6022 = vmatprep.mubr.f32.mxu0 0.0
  %6023 = vmatmul.mubr.f32.gmra.mrb[0].mxu0 %v5350
  %v6024 = vpop.f32.mrb[0].mxu0
  %v6025 = vadd.f32 %v5880, %v6024
  %v6026 = vpop.f32.mrb[0].mxu0
  %6027 = vdwg.mxu0
  %6036 = vrot.lane.b32.xlu0 %v4882, 127
  %v6037 = vpop.permute.xlu0 %6036
  %6038 = vrot.lane.b32.xlu0 %v4887, 127
  %v6039 = vpop.permute.xlu0 %6038
  %6040 = vrot.lane.b32.xlu0 %v4892, 127
  %v6041 = vpop.permute.xlu0 %6040
  %6042 = vrot.lane.b32.xlu0 %v4897, 127
  %v6043 = vpop.permute.xlu0 %6042
  %6044 = vrot.lane.b32.xlu0 %v4902, 127
  %v6045 = vpop.permute.xlu0 %6044
  %6046 = vrot.lane.b32.xlu0 %v4907, 127
  %v6047 = vpop.permute.xlu0 %6046
  %6048 = vrot.lane.b32.xlu0 %v4912, 127
  %v6049 = vpop.permute.xlu0 %6048
  %6050 = vrot.lane.b32.xlu0 %v4917, 127
  %v6051 = vpop.permute.xlu0 %6050
  %6060 = vmatprep.subr.mxu0 0.0
  %6061 = vmatpush1.msra.mxu0 %v6037
  %6062 = vmatprep.subr.mxu0 0.0
  %6063 = vmatpush1.msra.mxu0 %v6039
  %6064 = vmatprep.subr.mxu0 0.0
  %6065 = vmatpush1.msra.mxu0 %v6041
  %6066 = vmatprep.subr.mxu0 0.0
  %6067 = vmatpush1.msra.mxu0 %v6043
  %6068 = vmatprep.subr.mxu0 0.0
  %6069 = vmatpush1.msra.mxu0 %v6045
  %6070 = vmatprep.subr.mxu0 0.0
  %6071 = vmatpush1.msra.mxu0 %v6047
  %6072 = vmatprep.subr.mxu0 0.0
  %6073 = vmatpush1.msra.mxu0 %v6049
  %6074 = vmatprep.subr.mxu0 0.0
  %6075 = vmatpush1.msra.mxu0 %v6051
  %6076 = vmatprep.subr.mxu0 0.0
  %6077 = vmatpush1.msra.mxu0 0.0
  %6078 = vmatprep.subr.mxu0 0.0
  %6079 = vmatpush1.msra.mxu0 0.0
  %6080 = vmatprep.subr.mxu0 0.0
  %6081 = vmatpush1.msra.mxu0 0.0
  %6082 = vmatprep.subr.mxu0 0.0
  %6083 = vmatpush1.msra.mxu0 0.0
  %6084 = vmatprep.subr.mxu0 0.0
  %6085 = vmatpush1.msra.mxu0 0.0
  %6086 = vmatprep.subr.mxu0 0.0
  %6087 = vmatpush1.msra.mxu0 0.0
  %6088 = vmatprep.subr.mxu0 0.0
  %6089 = vmatpush1.msra.mxu0 0.0
  %6090 = vmatprep.subr.mxu0 0.0
  %6091 = vmatpush1.msra.mxu0 0.0
  %6092 = vmatprep.subr.mxu0 0.0
  %6093 = vmatpush1.msra.mxu0 0.0
  %6094 = vmatprep.subr.mxu0 0.0
  %6095 = vmatpush1.msra.mxu0 0.0
  %6096 = vmatprep.subr.mxu0 0.0
  %6097 = vmatpush1.msra.mxu0 0.0
  %6098 = vmatprep.subr.mxu0 0.0
  %6099 = vmatpush1.msra.mxu0 0.0
  %6100 = vmatprep.subr.mxu0 0.0
  %6101 = vmatpush1.msra.mxu0 0.0
  %6102 = vmatprep.subr.mxu0 0.0
  %6103 = vmatpush1.msra.mxu0 0.0
  %6104 = vmatprep.subr.mxu0 0.0
  %6105 = vmatpush1.msra.mxu0 0.0
  %6106 = vmatprep.subr.mxu0 0.0
  %6107 = vmatpush1.msra.mxu0 0.0
  %6108 = vmatprep.subr.mxu0 0.0
  %6109 = vmatpush1.msra.mxu0 0.0
  %6110 = vmatprep.subr.mxu0 0.0
  %6111 = vmatpush1.msra.mxu0 0.0
  %6112 = vmatprep.subr.mxu0 0.0
  %6113 = vmatpush1.msra.mxu0 0.0
  %6114 = vmatprep.subr.mxu0 0.0
  %6115 = vmatpush1.msra.mxu0 0.0
  %6116 = vmatprep.subr.mxu0 0.0
  %6117 = vmatpush1.msra.mxu0 0.0
  %6118 = vmatprep.subr.mxu0 0.0
  %6119 = vmatpush1.msra.mxu0 0.0
  %6120 = vmatprep.subr.mxu0 0.0
  %6121 = vmatpush1.msra.mxu0 0.0
  %6122 = vmatprep.subr.mxu0 0.0
  %6123 = vmatpush1.msra.mxu0 0.0
  %6124 = vmatprep.mubr.f32.mxu0 0.0
  %6125 = vmatmul.mubr.f32.gmra.mrb[0].mxu0 %v5530
  %v6126 = vpop.f32.mrb[0].mxu0
  %v6127 = vadd.f32 0.0, %v6126
  %v6128 = vpop.f32.mrb[0].mxu0
  %6129 = vmatprep.mubr.f32.mxu0 0.0
  %6130 = vmatmul.mubr.f32.gmra.mrb[0].mxu0 %v5533
  %v6131 = vpop.f32.mrb[0].mxu0
  %v6132 = vadd.f32 0.0, %v6131
  %v6133 = vpop.f32.mrb[0].mxu0
  %6134 = vmatprep.mubr.f32.mxu0 0.0
  %6135 = vmatmul.mubr.f32.gmra.mrb[0].mxu0 %v5536
  %v6136 = vpop.f32.mrb[0].mxu0
  %v6137 = vadd.f32 0.0, %v6136
  %v6138 = vpop.f32.mrb[0].mxu0
  %6139 = vmatprep.mubr.f32.mxu0 0.0
  %6140 = vmatmul.mubr.f32.gmra.mrb[0].mxu0 %v5539
  %v6141 = vpop.f32.mrb[0].mxu0
  %v6142 = vadd.f32 0.0, %v6141
  %v6143 = vpop.f32.mrb[0].mxu0
  %6144 = vmatprep.mubr.f32.mxu0 0.0
  %6145 = vmatmul.mubr.f32.gmra.mrb[0].mxu0 %v5542
  %v6146 = vpop.f32.mrb[0].mxu0
  %v6147 = vadd.f32 0.0, %v6146
  %v6148 = vpop.f32.mrb[0].mxu0
  %6149 = vmatprep.mubr.f32.mxu0 0.0
  %6150 = vmatmul.mubr.f32.gmra.mrb[0].mxu0 %v5545
  %v6151 = vpop.f32.mrb[0].mxu0
  %v6152 = vadd.f32 0.0, %v6151
  %v6153 = vpop.f32.mrb[0].mxu0
  %6154 = vmatprep.mubr.f32.mxu0 0.0
  %6155 = vmatmul.mubr.f32.gmra.mrb[0].mxu0 %v5548
  %v6156 = vpop.f32.mrb[0].mxu0
  %v6157 = vadd.f32 0.0, %v6156
  %v6158 = vpop.f32.mrb[0].mxu0
  %6159 = vmatprep.mubr.f32.mxu0 0.0
  %6160 = vmatmul.mubr.f32.gmra.mrb[0].mxu0 %v5551
  %v6161 = vpop.f32.mrb[0].mxu0
  %v6162 = vadd.f32 0.0, %v6161
  %v6163 = vpop.f32.mrb[0].mxu0
  %6164 = vmatprep.mubr.f32.mxu0 0.0
  %6165 = vmatmul.mubr.f32.gmra.mrb[0].mxu0 %v5554
  %v6166 = vpop.f32.mrb[0].mxu0
  %v6167 = vadd.f32 0.0, %v6166
  %v6168 = vpop.f32.mrb[0].mxu0
  %6169 = vmatprep.mubr.f32.mxu0 0.0
  %6170 = vmatmul.mubr.f32.gmra.mrb[0].mxu0 %v5557
  %v6171 = vpop.f32.mrb[0].mxu0
  %v6172 = vadd.f32 0.0, %v6171
  %v6173 = vpop.f32.mrb[0].mxu0
  %6174 = vmatprep.mubr.f32.mxu0 0.0
  %6175 = vmatmul.mubr.f32.gmra.mrb[0].mxu0 %v5560
  %v6176 = vpop.f32.mrb[0].mxu0
  %v6177 = vadd.f32 0.0, %v6176
  %v6178 = vpop.f32.mrb[0].mxu0
  %6179 = vmatprep.mubr.f32.mxu0 0.0
  %6180 = vmatmul.mubr.f32.gmra.mrb[0].mxu0 %v5563
  %v6181 = vpop.f32.mrb[0].mxu0
  %v6182 = vadd.f32 0.0, %v6181
  %v6183 = vpop.f32.mrb[0].mxu0
  %6184 = vmatprep.mubr.f32.mxu0 0.0
  %6185 = vmatmul.mubr.f32.gmra.mrb[0].mxu0 %v5566
  %v6186 = vpop.f32.mrb[0].mxu0
  %v6187 = vadd.f32 0.0, %v6186
  %v6188 = vpop.f32.mrb[0].mxu0
  %6189 = vmatprep.mubr.f32.mxu0 0.0
  %6190 = vmatmul.mubr.f32.gmra.mrb[0].mxu0 %v5569
  %v6191 = vpop.f32.mrb[0].mxu0
  %v6192 = vadd.f32 0.0, %v6191
  %v6193 = vpop.f32.mrb[0].mxu0
  %6194 = vmatprep.mubr.f32.mxu0 0.0
  %6195 = vmatmul.mubr.f32.gmra.mrb[0].mxu0 %v5572
  %v6196 = vpop.f32.mrb[0].mxu0
  %v6197 = vadd.f32 0.0, %v6196
  %v6198 = vpop.f32.mrb[0].mxu0
  %6199 = vmatprep.mubr.f32.mxu0 0.0
  %6200 = vmatmul.mubr.f32.gmra.mrb[0].mxu0 %v5575
  %v6201 = vpop.f32.mrb[0].mxu0
  %v6202 = vadd.f32 0.0, %v6201
  %v6203 = vpop.f32.mrb[0].mxu0
  %6204 = vdwg.mxu0
  %v6205 = vadd.f32 %v5950, %v6127
  %v6206 = vadd.f32 %v5955, %v6132
  %v6207 = vadd.f32 %v5960, %v6137
  %v6208 = vadd.f32 %v5965, %v6142
  %v6209 = vadd.f32 %v5970, %v6147
  %v6210 = vadd.f32 %v5975, %v6152
  %v6211 = vadd.f32 %v5980, %v6157
  %v6212 = vadd.f32 %v5985, %v6162
  %v6213 = vadd.f32 %v5990, %v6167
  %v6214 = vadd.f32 %v5995, %v6172
  %v6215 = vadd.f32 %v6000, %v6177
  %v6216 = vadd.f32 %v6005, %v6182
  %v6217 = vadd.f32 %v6010, %v6187
  %v6218 = vadd.f32 %v6015, %v6192
  %v6219 = vadd.f32 %v6020, %v6197
  %v6220 = vadd.f32 %v6025, %v6202
  %6222 = vset.pattern.permute.xlu0 0
  %6223 = vperm.xlu0 %6222, %v5079
  %v6224 = vpop.permute.xlu0 %6223
  %6227 = vset.pattern.permute.xlu0 0
  %6228 = vperm.xlu0 %6227, %v5080
  %v6229 = vpop.permute.xlu0 %6228
  %6232 = vset.pattern.permute.xlu0 0
  %6233 = vperm.xlu0 %6232, %v5081
  %v6234 = vpop.permute.xlu0 %6233
  %6237 = vset.pattern.permute.xlu0 0
  %6238 = vperm.xlu0 %6237, %v5082
  %v6239 = vpop.permute.xlu0 %6238
  %6242 = vset.pattern.permute.xlu0 0
  %6243 = vperm.xlu0 %6242, %v5083
  %v6244 = vpop.permute.xlu0 %6243
  %6247 = vset.pattern.permute.xlu0 0
  %6248 = vperm.xlu0 %6247, %v5084
  %v6249 = vpop.permute.xlu0 %6248
  %6252 = vset.pattern.permute.xlu0 0
  %6253 = vperm.xlu0 %6252, %v5085
  %v6254 = vpop.permute.xlu0 %6253
  %6257 = vset.pattern.permute.xlu0 0
  %6258 = vperm.xlu0 %6257, %v5086
  %v6259 = vpop.permute.xlu0 %6258
  %6262 = vset.pattern.permute.xlu0 0
  %6263 = vperm.xlu0 %6262, %v5087
  %v6264 = vpop.permute.xlu0 %6263
  %6267 = vset.pattern.permute.xlu0 0
  %6268 = vperm.xlu0 %6267, %v5088
  %v6269 = vpop.permute.xlu0 %6268
  %6272 = vset.pattern.permute.xlu0 0
  %6273 = vperm.xlu0 %6272, %v5089
  %v6274 = vpop.permute.xlu0 %6273
  %6277 = vset.pattern.permute.xlu0 0
  %6278 = vperm.xlu0 %6277, %v5090
  %v6279 = vpop.permute.xlu0 %6278
  %6282 = vset.pattern.permute.xlu0 0
  %6283 = vperm.xlu0 %6282, %v5091
  %v6284 = vpop.permute.xlu0 %6283
  %6287 = vset.pattern.permute.xlu0 0
  %6288 = vperm.xlu0 %6287, %v5092
  %v6289 = vpop.permute.xlu0 %6288
  %6292 = vset.pattern.permute.xlu0 0
  %6293 = vperm.xlu0 %6292, %v5093
  %v6294 = vpop.permute.xlu0 %6293
  %6297 = vset.pattern.permute.xlu0 0
  %6298 = vperm.xlu0 %6297, %v5094
  %v6299 = vpop.permute.xlu0 %6298
  %v6301 = vmul.f32 %v5722, %v6224
  %v6302 = vmul.f32 %v5723, %v6229
  %v6303 = vmul.f32 %v5724, %v6234
  %v6304 = vmul.f32 %v5725, %v6239
  %v6305 = vmul.f32 %v5726, %v6244
  %v6306 = vmul.f32 %v5727, %v6249
  %v6307 = vmul.f32 %v5728, %v6254
  %v6308 = vmul.f32 %v5729, %v6259
  %v6309 = vmul.f32 %v5730, %v6264
  %v6310 = vmul.f32 %v5731, %v6269
  %v6311 = vmul.f32 %v5732, %v6274
  %v6312 = vmul.f32 %v5733, %v6279
  %v6313 = vmul.f32 %v5734, %v6284
  %v6314 = vmul.f32 %v5735, %v6289
  %v6315 = vmul.f32 %v5736, %v6294
  %v6316 = vmul.f32 %v5737, %v6299
  %6318 = vset.pattern.permute.xlu0 0
  %6319 = vperm.xlu0 %6318, %v5095
  %v6320 = vpop.permute.xlu0 %6319
  %6323 = vset.pattern.permute.xlu0 0
  %6324 = vperm.xlu0 %6323, %v5096
  %v6325 = vpop.permute.xlu0 %6324
  %6328 = vset.pattern.permute.xlu0 0
  %6329 = vperm.xlu0 %6328, %v5097
  %v6330 = vpop.permute.xlu0 %6329
  %6333 = vset.pattern.permute.xlu0 0
  %6334 = vperm.xlu0 %6333, %v5098
  %v6335 = vpop.permute.xlu0 %6334
  %6338 = vset.pattern.permute.xlu0 0
  %6339 = vperm.xlu0 %6338, %v5099
  %v6340 = vpop.permute.xlu0 %6339
  %6343 = vset.pattern.permute.xlu0 0
  %6344 = vperm.xlu0 %6343, %v5100
  %v6345 = vpop.permute.xlu0 %6344
  %6348 = vset.pattern.permute.xlu0 0
  %6349 = vperm.xlu0 %6348, %v5101
  %v6350 = vpop.permute.xlu0 %6349
  %6353 = vset.pattern.permute.xlu0 0
  %6354 = vperm.xlu0 %6353, %v5102
  %v6355 = vpop.permute.xlu0 %6354
  %6358 = vset.pattern.permute.xlu0 0
  %6359 = vperm.xlu0 %6358, %v5103
  %v6360 = vpop.permute.xlu0 %6359
  %6363 = vset.pattern.permute.xlu0 0
  %6364 = vperm.xlu0 %6363, %v5104
  %v6365 = vpop.permute.xlu0 %6364
  %6368 = vset.pattern.permute.xlu0 0
  %6369 = vperm.xlu0 %6368, %v5105
  %v6370 = vpop.permute.xlu0 %6369
  %6373 = vset.pattern.permute.xlu0 0
  %6374 = vperm.xlu0 %6373, %v5106
  %v6375 = vpop.permute.xlu0 %6374
  %6378 = vset.pattern.permute.xlu0 0
  %6379 = vperm.xlu0 %6378, %v5107
  %v6380 = vpop.permute.xlu0 %6379
  %6383 = vset.pattern.permute.xlu0 0
  %6384 = vperm.xlu0 %6383, %v5108
  %v6385 = vpop.permute.xlu0 %6384
  %6388 = vset.pattern.permute.xlu0 0
  %6389 = vperm.xlu0 %6388, %v5109
  %v6390 = vpop.permute.xlu0 %6389
  %6393 = vset.pattern.permute.xlu0 0
  %6394 = vperm.xlu0 %6393, %v5110
  %v6395 = vpop.permute.xlu0 %6394
  %v6397 = vadd.f32 %v6301, %v6320
  %v6398 = vadd.f32 %v6302, %v6325
  %v6399 = vadd.f32 %v6303, %v6330
  %v6400 = vadd.f32 %v6304, %v6335
  %v6401 = vadd.f32 %v6305, %v6340
  %v6402 = vadd.f32 %v6306, %v6345
  %v6403 = vadd.f32 %v6307, %v6350
  %v6404 = vadd.f32 %v6308, %v6355
  %v6405 = vadd.f32 %v6309, %v6360
  %v6406 = vadd.f32 %v6310, %v6365
  %v6407 = vadd.f32 %v6311, %v6370
  %v6408 = vadd.f32 %v6312, %v6375
  %v6409 = vadd.f32 %v6313, %v6380
  %v6410 = vadd.f32 %v6314, %v6385
  %v6411 = vadd.f32 %v6315, %v6390
  %v6412 = vadd.f32 %v6316, %v6395
  %v6413 = vmax.f32 %v6397, 0.0
  %v6414 = vmax.f32 %v6398, 0.0
  %v6415 = vmax.f32 %v6399, 0.0
  %v6416 = vmax.f32 %v6400, 0.0
  %v6417 = vmax.f32 %v6401, 0.0
  %v6418 = vmax.f32 %v6402, 0.0
  %v6419 = vmax.f32 %v6403, 0.0
  %v6420 = vmax.f32 %v6404, 0.0
  %v6421 = vmax.f32 %v6405, 0.0
  %v6422 = vmax.f32 %v6406, 0.0
  %v6423 = vmax.f32 %v6407, 0.0
  %v6424 = vmax.f32 %v6408, 0.0
  %v6425 = vmax.f32 %v6409, 0.0
  %v6426 = vmax.f32 %v6410, 0.0
  %v6427 = vmax.f32 %v6411, 0.0
  %v6428 = vmax.f32 %v6412, 0.0
  %v6429 = vmul.f32 %v6205, %v6224
  %v6430 = vmul.f32 %v6206, %v6229
  %v6431 = vmul.f32 %v6207, %v6234
  %v6432 = vmul.f32 %v6208, %v6239
  %v6433 = vmul.f32 %v6209, %v6244
  %v6434 = vmul.f32 %v6210, %v6249
  %v6435 = vmul.f32 %v6211, %v6254
  %v6436 = vmul.f32 %v6212, %v6259
  %v6437 = vmul.f32 %v6213, %v6264
  %v6438 = vmul.f32 %v6214, %v6269
  %v6439 = vmul.f32 %v6215, %v6274
  %v6440 = vmul.f32 %v6216, %v6279
  %v6441 = vmul.f32 %v6217, %v6284
  %v6442 = vmul.f32 %v6218, %v6289
  %v6443 = vmul.f32 %v6219, %v6294
  %v6444 = vmul.f32 %v6220, %v6299
  %v6445 = vadd.f32 %v6429, %v6320
  %v6446 = vadd.f32 %v6430, %v6325
  %v6447 = vadd.f32 %v6431, %v6330
  %v6448 = vadd.f32 %v6432, %v6335
  %v6449 = vadd.f32 %v6433, %v6340
  %v6450 = vadd.f32 %v6434, %v6345
  %v6451 = vadd.f32 %v6435, %v6350
  %v6452 = vadd.f32 %v6436, %v6355
  %v6453 = vadd.f32 %v6437, %v6360
  %v6454 = vadd.f32 %v6438, %v6365
  %v6455 = vadd.f32 %v6439, %v6370
  %v6456 = vadd.f32 %v6440, %v6375
  %v6457 = vadd.f32 %v6441, %v6380
  %v6458 = vadd.f32 %v6442, %v6385
  %v6459 = vadd.f32 %v6443, %v6390
  %v6460 = vadd.f32 %v6444, %v6395
  %v6461 = vmax.f32 %v6445, 0.0
  %v6462 = vmax.f32 %v6446, 0.0
  %v6463 = vmax.f32 %v6447, 0.0
  %v6464 = vmax.f32 %v6448, 0.0
  %v6465 = vmax.f32 %v6449, 0.0
  %v6466 = vmax.f32 %v6450, 0.0
  %v6467 = vmax.f32 %v6451, 0.0
  %v6468 = vmax.f32 %v6452, 0.0
  %v6469 = vmax.f32 %v6453, 0.0
  %v6470 = vmax.f32 %v6454, 0.0
  %v6471 = vmax.f32 %v6455, 0.0
  %v6472 = vmax.f32 %v6456, 0.0
  %v6473 = vmax.f32 %v6457, 0.0
  %v6474 = vmax.f32 %v6458, 0.0
  %v6475 = vmax.f32 %v6459, 0.0
  %v6476 = vmax.f32 %v6460, 0.0
  %v6477 = vmax.f32 %v6413, %v6461
  %v6478 = vmax.f32 %v6414, %v6462
  %v6479 = vmax.f32 %v6415, %v6463
  %v6480 = vmax.f32 %v6416, %v6464
  %v6481 = vmax.f32 %v6417, %v6465
  %v6482 = vmax.f32 %v6418, %v6466
  %v6483 = vmax.f32 %v6419, %v6467
  %v6484 = vmax.f32 %v6420, %v6468
  %v6485 = vmax.f32 %v6421, %v6469
  %v6486 = vmax.f32 %v6422, %v6470
  %v6487 = vmax.f32 %v6423, %v6471
  %v6488 = vmax.f32 %v6424, %v6472
  %v6489 = vmax.f32 %v6425, %v6473
  %v6490 = vmax.f32 %v6426, %v6474
  %v6491 = vmax.f32 %v6427, %v6475
  %v6492 = vmax.f32 %v6428, %v6476
  %v6493 = vld [vmem:[%s5] sm:$0xff]
  %v6494 = vld [vmem:[%s5 + $0x8] sm:$0xff]
  %v6495 = vld [vmem:[%s5 + $0x10] sm:$0xff]
  %v6496 = vld [vmem:[%s5 + $0x18] sm:$0xff]
  %v6497 = vld [vmem:[%s5 + $0x20] sm:$0xff]
  %v6498 = vld [vmem:[%s5 + $0x28] sm:$0xff]
  %v6499 = vld [vmem:[%s5 + $0x30] sm:$0xff]
  %v6500 = vld [vmem:[%s5 + $0x38] sm:$0xff]
  %v6501 = vld [vmem:[%s5 + $0x40] sm:$0xff]
  %v6502 = vld [vmem:[%s5 + $0x48] sm:$0xff]
  %v6503 = vld [vmem:[%s5 + $0x50] sm:$0xff]
  %v6504 = vld [vmem:[%s5 + $0x58] sm:$0xff]
  %v6505 = vld [vmem:[%s5 + $0x60] sm:$0xff]
  %v6506 = vld [vmem:[%s5 + $0x68] sm:$0xff]
  %v6507 = vld [vmem:[%s5 + $0x70] sm:$0xff]
  %v6508 = vld [vmem:[%s5 + $0x78] sm:$0xff]
  %v6509 = vmul.f32 %v6477, %v6493
  %v6510 = vmul.f32 %v6478, %v6494
  %v6511 = vmul.f32 %v6479, %v6495
  %v6512 = vmul.f32 %v6480, %v6496
  %v6513 = vmul.f32 %v6481, %v6497
  %v6514 = vmul.f32 %v6482, %v6498
  %v6515 = vmul.f32 %v6483, %v6499
  %v6516 = vmul.f32 %v6484, %v6500
  %v6517 = vmul.f32 %v6485, %v6501
  %v6518 = vmul.f32 %v6486, %v6502
  %v6519 = vmul.f32 %v6487, %v6503
  %v6520 = vmul.f32 %v6488, %v6504
  %v6521 = vmul.f32 %v6489, %v6505
  %v6522 = vmul.f32 %v6490, %v6506
  %v6523 = vmul.f32 %v6491, %v6507
  %v6524 = vmul.f32 %v6492, %v6508
  %v6525 = vld [vmem:[%s73] sm:$0xff]
  %v6526 = vld [vmem:[%s73 + $0x8] sm:$0xff]
  %v6527 = vld [vmem:[%s73 + $0x10] sm:$0xff]
  %v6528 = vld [vmem:[%s73 + $0x18] sm:$0xff]
  %v6529 = vld [vmem:[%s73 + $0x20] sm:$0xff]
  %v6530 = vld [vmem:[%s73 + $0x28] sm:$0xff]
  %v6531 = vld [vmem:[%s73 + $0x30] sm:$0xff]
  %v6532 = vld [vmem:[%s73 + $0x38] sm:$0xff]
  %v6533 = vld [vmem:[%s73 + $0x40] sm:$0xff]
  %v6534 = vld [vmem:[%s73 + $0x48] sm:$0xff]
  %v6535 = vld [vmem:[%s73 + $0x50] sm:$0xff]
  %v6536 = vld [vmem:[%s73 + $0x58] sm:$0xff]
  %v6537 = vld [vmem:[%s73 + $0x60] sm:$0xff]
  %v6538 = vld [vmem:[%s73 + $0x68] sm:$0xff]
  %v6539 = vld [vmem:[%s73 + $0x70] sm:$0xff]
  %v6540 = vld [vmem:[%s73 + $0x78] sm:$0xff]
  %v6541 = vld [vmem:[%s73 + $0x80] sm:$0xff]
  %v6542 = vld [vmem:[%s73 + $0x88] sm:$0xff]
  %v6543 = vld [vmem:[%s73 + $0x90] sm:$0xff]
  %v6544 = vld [vmem:[%s73 + $0x98] sm:$0xff]
  %v6545 = vld [vmem:[%s73 + $0xa0] sm:$0xff]
  %v6546 = vld [vmem:[%s73 + $0xa8] sm:$0xff]
  %v6547 = vld [vmem:[%s73 + $0xb0] sm:$0xff]
  %v6548 = vld [vmem:[%s73 + $0xb8] sm:$0xff]
  %v6549 = vld [vmem:[%s73 + $0xc0] sm:$0xff]
  %v6550 = vld [vmem:[%s73 + $0xc8] sm:$0xff]
  %v6551 = vld [vmem:[%s73 + $0xd0] sm:$0xff]
  %v6552 = vld [vmem:[%s73 + $0xd8] sm:$0xff]
  %v6553 = vld [vmem:[%s73 + $0xe0] sm:$0xff]
  %v6554 = vld [vmem:[%s73 + $0xe8] sm:$0xff]
  %v6555 = vld [vmem:[%s73 + $0xf0] sm:$0xff]
  %v6556 = vld [vmem:[%s73 + $0xf8] sm:$0xff]
  %6557 = vmatprep.subr.mxu0 0.0
  %6558 = vmatpush1.msra.mxu0 %v6509
  %6559 = vmatprep.subr.mxu0 0.0
  %6560 = vmatpush1.msra.mxu0 %v6510
  %6561 = vmatprep.subr.mxu0 0.0
  %6562 = vmatpush1.msra.mxu0 %v6511
  %6563 = vmatprep.subr.mxu0 0.0
  %6564 = vmatpush1.msra.mxu0 %v6512
  %6565 = vmatprep.subr.mxu0 0.0
  %6566 = vmatpush1.msra.mxu0 %v6513
  %6567 = vmatprep.subr.mxu0 0.0
  %6568 = vmatpush1.msra.mxu0 %v6514
  %6569 = vmatprep.subr.mxu0 0.0
  %6570 = vmatpush1.msra.mxu0 %v6515
  %6571 = vmatprep.subr.mxu0 0.0
  %6572 = vmatpush1.msra.mxu0 %v6516
  %6573 = vmatprep.subr.mxu0 0.0
  %6574 = vmatpush1.msra.mxu0 %v6517
  %6575 = vmatprep.subr.mxu0 0.0
  %6576 = vmatpush1.msra.mxu0 %v6518
  %6577 = vmatprep.subr.mxu0 0.0
  %6578 = vmatpush1.msra.mxu0 %v6519
  %6579 = vmatprep.subr.mxu0 0.0
  %6580 = vmatpush1.msra.mxu0 %v6520
  %6581 = vmatprep.subr.mxu0 0.0
  %6582 = vmatpush1.msra.mxu0 %v6521
  %6583 = vmatprep.subr.mxu0 0.0
  %6584 = vmatpush1.msra.mxu0 %v6522
  %6585 = vmatprep.subr.mxu0 0.0
  %6586 = vmatpush1.msra.mxu0 %v6523
  %6587 = vmatprep.subr.mxu0 0.0
  %6588 = vmatpush1.msra.mxu0 %v6524
  %6589 = vmatprep.subr.mxu0 0.0
  %6590 = vmatpush1.msra.mxu0 0.0
  %6591 = vmatprep.subr.mxu0 0.0
  %6592 = vmatpush1.msra.mxu0 0.0
  %6593 = vmatprep.subr.mxu0 0.0
  %6594 = vmatpush1.msra.mxu0 0.0
  %6595 = vmatprep.subr.mxu0 0.0
  %6596 = vmatpush1.msra.mxu0 0.0
  %6597 = vmatprep.subr.mxu0 0.0
  %6598 = vmatpush1.msra.mxu0 0.0
  %6599 = vmatprep.subr.mxu0 0.0
  %6600 = vmatpush1.msra.mxu0 0.0
  %6601 = vmatprep.subr.mxu0 0.0
  %6602 = vmatpush1.msra.mxu0 0.0
  %6603 = vmatprep.subr.mxu0 0.0
  %6604 = vmatpush1.msra.mxu0 0.0
  %6605 = vmatprep.subr.mxu0 0.0
  %6606 = vmatpush1.msra.mxu0 0.0
  %6607 = vmatprep.subr.mxu0 0.0
  %6608 = vmatpush1.msra.mxu0 0.0
  %6609 = vmatprep.subr.mxu0 0.0
  %6610 = vmatpush1.msra.mxu0 0.0
  %6611 = vmatprep.subr.mxu0 0.0
  %6612 = vmatpush1.msra.mxu0 0.0
  %6613 = vmatprep.subr.mxu0 0.0
  %6614 = vmatpush1.msra.mxu0 0.0
  %6615 = vmatprep.subr.mxu0 0.0
  %6616 = vmatpush1.msra.mxu0 0.0
  %6617 = vmatprep.subr.mxu0 0.0
  %6618 = vmatpush1.msra.mxu0 0.0
  %6619 = vmatprep.subr.mxu0 0.0
  %6620 = vmatpush1.msra.mxu0 0.0
  %6621 = vmatprep.mubr.f32.mxu0 0.0
  %6622 = vmatmul.mubr.f32.gmra.mrb[0].mxu0 %v6525
  %v6623 = vpop.f32.mrb[0].mxu0
  %v6624 = vadd.f32 0.0, %v6623
  %v6625 = vpop.f32.mrb[0].mxu0
  %6626 = vmatprep.mubr.f32.mxu0 0.0
  %6627 = vmatmul.mubr.f32.gmra.mrb[0].mxu0 %v6526
  %v6628 = vpop.f32.mrb[0].mxu0
  %v6629 = vadd.f32 0.0, %v6628
  %v6630 = vpop.f32.mrb[0].mxu0
  %6631 = vmatprep.mubr.f32.mxu0 0.0
  %6632 = vmatmul.mubr.f32.gmra.mrb[0].mxu0 %v6527
  %v6633 = vpop.f32.mrb[0].mxu0
  %v6634 = vadd.f32 0.0, %v6633
  %v6635 = vpop.f32.mrb[0].mxu0
  %6636 = vmatprep.mubr.f32.mxu0 0.0
  %6637 = vmatmul.mubr.f32.gmra.mrb[0].mxu0 %v6528
  %v6638 = vpop.f32.mrb[0].mxu0
  %v6639 = vadd.f32 0.0, %v6638
  %v6640 = vpop.f32.mrb[0].mxu0
  %6641 = vmatprep.mubr.f32.mxu0 0.0
  %6642 = vmatmul.mubr.f32.gmra.mrb[0].mxu0 %v6529
  %v6643 = vpop.f32.mrb[0].mxu0
  %v6644 = vadd.f32 0.0, %v6643
  %v6645 = vpop.f32.mrb[0].mxu0
  %6646 = vmatprep.mubr.f32.mxu0 0.0
  %6647 = vmatmul.mubr.f32.gmra.mrb[0].mxu0 %v6530
  %v6648 = vpop.f32.mrb[0].mxu0
  %v6649 = vadd.f32 0.0, %v6648
  %v6650 = vpop.f32.mrb[0].mxu0
  %6651 = vmatprep.mubr.f32.mxu0 0.0
  %6652 = vmatmul.mubr.f32.gmra.mrb[0].mxu0 %v6531
  %v6653 = vpop.f32.mrb[0].mxu0
  %v6654 = vadd.f32 0.0, %v6653
  %v6655 = vpop.f32.mrb[0].mxu0
  %6656 = vmatprep.mubr.f32.mxu0 0.0
  %6657 = vmatmul.mubr.f32.gmra.mrb[0].mxu0 %v6532
  %v6658 = vpop.f32.mrb[0].mxu0
  %v6659 = vadd.f32 0.0, %v6658
  %v6660 = vpop.f32.mrb[0].mxu0
  %6661 = vmatprep.mubr.f32.mxu0 0.0
  %6662 = vmatmul.mubr.f32.gmra.mrb[0].mxu0 %v6533
  %v6663 = vpop.f32.mrb[0].mxu0
  %v6664 = vadd.f32 0.0, %v6663
  %v6665 = vpop.f32.mrb[0].mxu0
  %6666 = vmatprep.mubr.f32.mxu0 0.0
  %6667 = vmatmul.mubr.f32.gmra.mrb[0].mxu0 %v6534
  %v6668 = vpop.f32.mrb[0].mxu0
  %v6669 = vadd.f32 0.0, %v6668
  %v6670 = vpop.f32.mrb[0].mxu0
  %6671 = vmatprep.mubr.f32.mxu0 0.0
  %6672 = vmatmul.mubr.f32.gmra.mrb[0].mxu0 %v6535
  %v6673 = vpop.f32.mrb[0].mxu0
  %v6674 = vadd.f32 0.0, %v6673
  %v6675 = vpop.f32.mrb[0].mxu0
  %6676 = vmatprep.mubr.f32.mxu0 0.0
  %6677 = vmatmul.mubr.f32.gmra.mrb[0].mxu0 %v6536
  %v6678 = vpop.f32.mrb[0].mxu0
  %v6679 = vadd.f32 0.0, %v6678
  %v6680 = vpop.f32.mrb[0].mxu0
  %6681 = vmatprep.mubr.f32.mxu0 0.0
  %6682 = vmatmul.mubr.f32.gmra.mrb[0].mxu0 %v6537
  %v6683 = vpop.f32.mrb[0].mxu0
  %v6684 = vadd.f32 0.0, %v6683
  %v6685 = vpop.f32.mrb[0].mxu0
  %6686 = vmatprep.mubr.f32.mxu0 0.0
  %6687 = vmatmul.mubr.f32.gmra.mrb[0].mxu0 %v6538
  %v6688 = vpop.f32.mrb[0].mxu0
  %v6689 = vadd.f32 0.0, %v6688
  %v6690 = vpop.f32.mrb[0].mxu0
  %6691 = vmatprep.mubr.f32.mxu0 0.0
  %6692 = vmatmul.mubr.f32.gmra.mrb[0].mxu0 %v6539
  %v6693 = vpop.f32.mrb[0].mxu0
  %v6694 = vadd.f32 0.0, %v6693
  %v6695 = vpop.f32.mrb[0].mxu0
  %6696 = vmatprep.mubr.f32.mxu0 0.0
  %6697 = vmatmul.mubr.f32.gmra.mrb[0].mxu0 %v6540
  %v6698 = vpop.f32.mrb[0].mxu0
  %v6699 = vadd.f32 0.0, %v6698
  %v6700 = vpop.f32.mrb[0].mxu0
  %6701 = vmatprep.mubr.f32.mxu0 0.0
  %6702 = vmatmul.mubr.f32.gmra.mrb[0].mxu0 %v6541
  %v6703 = vpop.f32.mrb[0].mxu0
  %v6704 = vadd.f32 0.0, %v6703
  %v6705 = vpop.f32.mrb[0].mxu0
  %6706 = vmatprep.mubr.f32.mxu0 0.0
  %6707 = vmatmul.mubr.f32.gmra.mrb[0].mxu0 %v6542
  %v6708 = vpop.f32.mrb[0].mxu0
  %v6709 = vadd.f32 0.0, %v6708
  %v6710 = vpop.f32.mrb[0].mxu0
  %6711 = vmatprep.mubr.f32.mxu0 0.0
  %6712 = vmatmul.mubr.f32.gmra.mrb[0].mxu0 %v6543
  %v6713 = vpop.f32.mrb[0].mxu0
  %v6714 = vadd.f32 0.0, %v6713
  %v6715 = vpop.f32.mrb[0].mxu0
  %6716 = vmatprep.mubr.f32.mxu0 0.0
  %6717 = vmatmul.mubr.f32.gmra.mrb[0].mxu0 %v6544
  %v6718 = vpop.f32.mrb[0].mxu0
  %v6719 = vadd.f32 0.0, %v6718
  %v6720 = vpop.f32.mrb[0].mxu0
  %6721 = vmatprep.mubr.f32.mxu0 0.0
  %6722 = vmatmul.mubr.f32.gmra.mrb[0].mxu0 %v6545
  %v6723 = vpop.f32.mrb[0].mxu0
  %v6724 = vadd.f32 0.0, %v6723
  %v6725 = vpop.f32.mrb[0].mxu0
  %6726 = vmatprep.mubr.f32.mxu0 0.0
  %6727 = vmatmul.mubr.f32.gmra.mrb[0].mxu0 %v6546
  %v6728 = vpop.f32.mrb[0].mxu0
  %v6729 = vadd.f32 0.0, %v6728
  %v6730 = vpop.f32.mrb[0].mxu0
  %6731 = vmatprep.mubr.f32.mxu0 0.0
  %6732 = vmatmul.mubr.f32.gmra.mrb[0].mxu0 %v6547
  %v6733 = vpop.f32.mrb[0].mxu0
  %v6734 = vadd.f32 0.0, %v6733
  %v6735 = vpop.f32.mrb[0].mxu0
  %6736 = vmatprep.mubr.f32.mxu0 0.0
  %6737 = vmatmul.mubr.f32.gmra.mrb[0].mxu0 %v6548
  %v6738 = vpop.f32.mrb[0].mxu0
  %v6739 = vadd.f32 0.0, %v6738
  %v6740 = vpop.f32.mrb[0].mxu0
  %6741 = vmatprep.mubr.f32.mxu0 0.0
  %6742 = vmatmul.mubr.f32.gmra.mrb[0].mxu0 %v6549
  %v6743 = vpop.f32.mrb[0].mxu0
  %v6744 = vadd.f32 0.0, %v6743
  %v6745 = vpop.f32.mrb[0].mxu0
  %6746 = vmatprep.mubr.f32.mxu0 0.0
  %6747 = vmatmul.mubr.f32.gmra.mrb[0].mxu0 %v6550
  %v6748 = vpop.f32.mrb[0].mxu0
  %v6749 = vadd.f32 0.0, %v6748
  %v6750 = vpop.f32.mrb[0].mxu0
  %6751 = vmatprep.mubr.f32.mxu0 0.0
  %6752 = vmatmul.mubr.f32.gmra.mrb[0].mxu0 %v6551
  %v6753 = vpop.f32.mrb[0].mxu0
  %v6754 = vadd.f32 0.0, %v6753
  %v6755 = vpop.f32.mrb[0].mxu0
  %6756 = vmatprep.mubr.f32.mxu0 0.0
  %6757 = vmatmul.mubr.f32.gmra.mrb[0].mxu0 %v6552
  %v6758 = vpop.f32.mrb[0].mxu0
  %v6759 = vadd.f32 0.0, %v6758
  %v6760 = vpop.f32.mrb[0].mxu0
  %6761 = vmatprep.mubr.f32.mxu0 0.0
  %6762 = vmatmul.mubr.f32.gmra.mrb[0].mxu0 %v6553
  %v6763 = vpop.f32.mrb[0].mxu0
  %v6764 = vadd.f32 0.0, %v6763
  %v6765 = vpop.f32.mrb[0].mxu0
  %6766 = vmatprep.mubr.f32.mxu0 0.0
  %6767 = vmatmul.mubr.f32.gmra.mrb[0].mxu0 %v6554
  %v6768 = vpop.f32.mrb[0].mxu0
  %v6769 = vadd.f32 0.0, %v6768
  %v6770 = vpop.f32.mrb[0].mxu0
  %6771 = vmatprep.mubr.f32.mxu0 0.0
  %6772 = vmatmul.mubr.f32.gmra.mrb[0].mxu0 %v6555
  %v6773 = vpop.f32.mrb[0].mxu0
  %v6774 = vadd.f32 0.0, %v6773
  %v6775 = vpop.f32.mrb[0].mxu0
  %6776 = vmatprep.mubr.f32.mxu0 0.0
  %6777 = vmatmul.mubr.f32.gmra.mrb[0].mxu0 %v6556
  %v6778 = vpop.f32.mrb[0].mxu0
  %v6779 = vadd.f32 0.0, %v6778
  %v6780 = vpop.f32.mrb[0].mxu0
  %6781 = vdwg.mxu0
  %v6782 = vld [vmem:[%s75] sm:$0xff]
  %v6783 = vld [vmem:[%s75 + $0x8] sm:$0xff]
  %v6784 = vld [vmem:[%s75 + $0x10] sm:$0xff]
  %v6785 = vld [vmem:[%s75 + $0x18] sm:$0xff]
  %v6786 = vld [vmem:[%s75 + $0x20] sm:$0xff]
  %v6787 = vld [vmem:[%s75 + $0x28] sm:$0xff]
  %v6788 = vld [vmem:[%s75 + $0x30] sm:$0xff]
  %v6789 = vld [vmem:[%s75 + $0x38] sm:$0xff]
  %v6790 = vld [vmem:[%s75 + $0x40] sm:$0xff]
  %v6791 = vld [vmem:[%s75 + $0x48] sm:$0xff]
  %v6792 = vld [vmem:[%s75 + $0x50] sm:$0xff]
  %v6793 = vld [vmem:[%s75 + $0x58] sm:$0xff]
  %v6794 = vld [vmem:[%s75 + $0x60] sm:$0xff]
  %v6795 = vld [vmem:[%s75 + $0x68] sm:$0xff]
  %v6796 = vld [vmem:[%s75 + $0x70] sm:$0xff]
  %v6797 = vld [vmem:[%s75 + $0x78] sm:$0xff]
  %v6798 = vld [vmem:[%s75 + $0x80] sm:$0xff]
  %v6799 = vld [vmem:[%s75 + $0x88] sm:$0xff]
  %v6800 = vld [vmem:[%s75 + $0x90] sm:$0xff]
  %v6801 = vld [vmem:[%s75 + $0x98] sm:$0xff]
  %v6802 = vld [vmem:[%s75 + $0xa0] sm:$0xff]
  %v6803 = vld [vmem:[%s75 + $0xa8] sm:$0xff]
  %v6804 = vld [vmem:[%s75 + $0xb0] sm:$0xff]
  %v6805 = vld [vmem:[%s75 + $0xb8] sm:$0xff]
  %v6806 = vld [vmem:[%s75 + $0xc0] sm:$0xff]
  %v6807 = vld [vmem:[%s75 + $0xc8] sm:$0xff]
  %v6808 = vld [vmem:[%s75 + $0xd0] sm:$0xff]
  %v6809 = vld [vmem:[%s75 + $0xd8] sm:$0xff]
  %v6810 = vld [vmem:[%s75 + $0xe0] sm:$0xff]
  %v6811 = vld [vmem:[%s75 + $0xe8] sm:$0xff]
  %v6812 = vld [vmem:[%s75 + $0xf0] sm:$0xff]
  %v6813 = vld [vmem:[%s75 + $0xf8] sm:$0xff]
  %6814 = vmatprep.subr.mxu0 0.0
  %6815 = vmatpush1.msra.mxu0 %v6509
  %6816 = vmatprep.subr.mxu0 0.0
  %6817 = vmatpush1.msra.mxu0 %v6510
  %6818 = vmatprep.subr.mxu0 0.0
  %6819 = vmatpush1.msra.mxu0 %v6511
  %6820 = vmatprep.subr.mxu0 0.0
  %6821 = vmatpush1.msra.mxu0 %v6512
  %6822 = vmatprep.subr.mxu0 0.0
  %6823 = vmatpush1.msra.mxu0 %v6513
  %6824 = vmatprep.subr.mxu0 0.0
  %6825 = vmatpush1.msra.mxu0 %v6514
  %6826 = vmatprep.subr.mxu0 0.0
  %6827 = vmatpush1.msra.mxu0 %v6515
  %6828 = vmatprep.subr.mxu0 0.0
  %6829 = vmatpush1.msra.mxu0 %v6516
  %6830 = vmatprep.subr.mxu0 0.0
  %6831 = vmatpush1.msra.mxu0 %v6517
  %6832 = vmatprep.subr.mxu0 0.0
  %6833 = vmatpush1.msra.mxu0 %v6518
  %6834 = vmatprep.subr.mxu0 0.0
  %6835 = vmatpush1.msra.mxu0 %v6519
  %6836 = vmatprep.subr.mxu0 0.0
  %6837 = vmatpush1.msra.mxu0 %v6520
  %6838 = vmatprep.subr.mxu0 0.0
  %6839 = vmatpush1.msra.mxu0 %v6521
  %6840 = vmatprep.subr.mxu0 0.0
  %6841 = vmatpush1.msra.mxu0 %v6522
  %6842 = vmatprep.subr.mxu0 0.0
  %6843 = vmatpush1.msra.mxu0 %v6523
  %6844 = vmatprep.subr.mxu0 0.0
  %6845 = vmatpush1.msra.mxu0 %v6524
  %6846 = vmatprep.subr.mxu0 0.0
  %6847 = vmatpush1.msra.mxu0 0.0
  %6848 = vmatprep.subr.mxu0 0.0
  %6849 = vmatpush1.msra.mxu0 0.0
  %6850 = vmatprep.subr.mxu0 0.0
  %6851 = vmatpush1.msra.mxu0 0.0
  %6852 = vmatprep.subr.mxu0 0.0
  %6853 = vmatpush1.msra.mxu0 0.0
  %6854 = vmatprep.subr.mxu0 0.0
  %6855 = vmatpush1.msra.mxu0 0.0
  %6856 = vmatprep.subr.mxu0 0.0
  %6857 = vmatpush1.msra.mxu0 0.0
  %6858 = vmatprep.subr.mxu0 0.0
  %6859 = vmatpush1.msra.mxu0 0.0
  %6860 = vmatprep.subr.mxu0 0.0
  %6861 = vmatpush1.msra.mxu0 0.0
  %6862 = vmatprep.subr.mxu0 0.0
  %6863 = vmatpush1.msra.mxu0 0.0
  %6864 = vmatprep.subr.mxu0 0.0
  %6865 = vmatpush1.msra.mxu0 0.0
  %6866 = vmatprep.subr.mxu0 0.0
  %6867 = vmatpush1.msra.mxu0 0.0
  %6868 = vmatprep.subr.mxu0 0.0
  %6869 = vmatpush1.msra.mxu0 0.0
  %6870 = vmatprep.subr.mxu0 0.0
  %6871 = vmatpush1.msra.mxu0 0.0
  %6872 = vmatprep.subr.mxu0 0.0
  %6873 = vmatpush1.msra.mxu0 0.0
  %6874 = vmatprep.subr.mxu0 0.0
  %6875 = vmatpush1.msra.mxu0 0.0
  %6876 = vmatprep.subr.mxu0 0.0
  %6877 = vmatpush1.msra.mxu0 0.0
  %6878 = vmatprep.mubr.f32.mxu0 0.0
  %6879 = vmatmul.mubr.f32.gmra.mrb[0].mxu0 %v6782
  %v6880 = vpop.f32.mrb[0].mxu0
  %v6881 = vadd.f32 0.0, %v6880
  %v6882 = vpop.f32.mrb[0].mxu0
  %6883 = vmatprep.mubr.f32.mxu0 0.0
  %6884 = vmatmul.mubr.f32.gmra.mrb[0].mxu0 %v6783
  %v6885 = vpop.f32.mrb[0].mxu0
  %v6886 = vadd.f32 0.0, %v6885
  %v6887 = vpop.f32.mrb[0].mxu0
  %6888 = vmatprep.mubr.f32.mxu0 0.0
  %6889 = vmatmul.mubr.f32.gmra.mrb[0].mxu0 %v6784
  %v6890 = vpop.f32.mrb[0].mxu0
  %v6891 = vadd.f32 0.0, %v6890
  %v6892 = vpop.f32.mrb[0].mxu0
  %6893 = vmatprep.mubr.f32.mxu0 0.0
  %6894 = vmatmul.mubr.f32.gmra.mrb[0].mxu0 %v6785
  %v6895 = vpop.f32.mrb[0].mxu0
  %v6896 = vadd.f32 0.0, %v6895
  %v6897 = vpop.f32.mrb[0].mxu0
  %6898 = vmatprep.mubr.f32.mxu0 0.0
  %6899 = vmatmul.mubr.f32.gmra.mrb[0].mxu0 %v6786
  %v6900 = vpop.f32.mrb[0].mxu0
  %v6901 = vadd.f32 0.0, %v6900
  %v6902 = vpop.f32.mrb[0].mxu0
  %6903 = vmatprep.mubr.f32.mxu0 0.0
  %6904 = vmatmul.mubr.f32.gmra.mrb[0].mxu0 %v6787
  %v6905 = vpop.f32.mrb[0].mxu0
  %v6906 = vadd.f32 0.0, %v6905
  %v6907 = vpop.f32.mrb[0].mxu0
  %6908 = vmatprep.mubr.f32.mxu0 0.0
  %6909 = vmatmul.mubr.f32.gmra.mrb[0].mxu0 %v6788
  %v6910 = vpop.f32.mrb[0].mxu0
  %v6911 = vadd.f32 0.0, %v6910
  %v6912 = vpop.f32.mrb[0].mxu0
  %6913 = vmatprep.mubr.f32.mxu0 0.0
  %6914 = vmatmul.mubr.f32.gmra.mrb[0].mxu0 %v6789
  %v6915 = vpop.f32.mrb[0].mxu0
  %v6916 = vadd.f32 0.0, %v6915
  %v6917 = vpop.f32.mrb[0].mxu0
  %6918 = vmatprep.mubr.f32.mxu0 0.0
  %6919 = vmatmul.mubr.f32.gmra.mrb[0].mxu0 %v6790
  %v6920 = vpop.f32.mrb[0].mxu0
  %v6921 = vadd.f32 0.0, %v6920
  %v6922 = vpop.f32.mrb[0].mxu0
  %6923 = vmatprep.mubr.f32.mxu0 0.0
  %6924 = vmatmul.mubr.f32.gmra.mrb[0].mxu0 %v6791
  %v6925 = vpop.f32.mrb[0].mxu0
  %v6926 = vadd.f32 0.0, %v6925
  %v6927 = vpop.f32.mrb[0].mxu0
  %6928 = vmatprep.mubr.f32.mxu0 0.0
  %6929 = vmatmul.mubr.f32.gmra.mrb[0].mxu0 %v6792
  %v6930 = vpop.f32.mrb[0].mxu0
  %v6931 = vadd.f32 0.0, %v6930
  %v6932 = vpop.f32.mrb[0].mxu0
  %6933 = vmatprep.mubr.f32.mxu0 0.0
  %6934 = vmatmul.mubr.f32.gmra.mrb[0].mxu0 %v6793
  %v6935 = vpop.f32.mrb[0].mxu0
  %v6936 = vadd.f32 0.0, %v6935
  %v6937 = vpop.f32.mrb[0].mxu0
  %6938 = vmatprep.mubr.f32.mxu0 0.0
  %6939 = vmatmul.mubr.f32.gmra.mrb[0].mxu0 %v6794
  %v6940 = vpop.f32.mrb[0].mxu0
  %v6941 = vadd.f32 0.0, %v6940
  %v6942 = vpop.f32.mrb[0].mxu0
  %6943 = vmatprep.mubr.f32.mxu0 0.0
  %6944 = vmatmul.mubr.f32.gmra.mrb[0].mxu0 %v6795
  %v6945 = vpop.f32.mrb[0].mxu0
  %v6946 = vadd.f32 0.0, %v6945
  %v6947 = vpop.f32.mrb[0].mxu0
  %6948 = vmatprep.mubr.f32.mxu0 0.0
  %6949 = vmatmul.mubr.f32.gmra.mrb[0].mxu0 %v6796
  %v6950 = vpop.f32.mrb[0].mxu0
  %v6951 = vadd.f32 0.0, %v6950
  %v6952 = vpop.f32.mrb[0].mxu0
  %6953 = vmatprep.mubr.f32.mxu0 0.0
  %6954 = vmatmul.mubr.f32.gmra.mrb[0].mxu0 %v6797
  %v6955 = vpop.f32.mrb[0].mxu0
  %v6956 = vadd.f32 0.0, %v6955
  %v6957 = vpop.f32.mrb[0].mxu0
  %6958 = vmatprep.mubr.f32.mxu0 0.0
  %6959 = vmatmul.mubr.f32.gmra.mrb[0].mxu0 %v6798
  %v6960 = vpop.f32.mrb[0].mxu0
  %v6961 = vadd.f32 0.0, %v6960
  %v6962 = vpop.f32.mrb[0].mxu0
  %6963 = vmatprep.mubr.f32.mxu0 0.0
  %6964 = vmatmul.mubr.f32.gmra.mrb[0].mxu0 %v6799
  %v6965 = vpop.f32.mrb[0].mxu0
  %v6966 = vadd.f32 0.0, %v6965
  %v6967 = vpop.f32.mrb[0].mxu0
  %6968 = vmatprep.mubr.f32.mxu0 0.0
  %6969 = vmatmul.mubr.f32.gmra.mrb[0].mxu0 %v6800
  %v6970 = vpop.f32.mrb[0].mxu0
  %v6971 = vadd.f32 0.0, %v6970
  %v6972 = vpop.f32.mrb[0].mxu0
  %6973 = vmatprep.mubr.f32.mxu0 0.0
  %6974 = vmatmul.mubr.f32.gmra.mrb[0].mxu0 %v6801
  %v6975 = vpop.f32.mrb[0].mxu0
  %v6976 = vadd.f32 0.0, %v6975
  %v6977 = vpop.f32.mrb[0].mxu0
  %6978 = vmatprep.mubr.f32.mxu0 0.0
  %6979 = vmatmul.mubr.f32.gmra.mrb[0].mxu0 %v6802
  %v6980 = vpop.f32.mrb[0].mxu0
  %v6981 = vadd.f32 0.0, %v6980
  %v6982 = vpop.f32.mrb[0].mxu0
  %6983 = vmatprep.mubr.f32.mxu0 0.0
  %6984 = vmatmul.mubr.f32.gmra.mrb[0].mxu0 %v6803
  %v6985 = vpop.f32.mrb[0].mxu0
  %v6986 = vadd.f32 0.0, %v6985
  %v6987 = vpop.f32.mrb[0].mxu0
  %6988 = vmatprep.mubr.f32.mxu0 0.0
  %6989 = vmatmul.mubr.f32.gmra.mrb[0].mxu0 %v6804
  %v6990 = vpop.f32.mrb[0].mxu0
  %v6991 = vadd.f32 0.0, %v6990
  %v6992 = vpop.f32.mrb[0].mxu0
  %6993 = vmatprep.mubr.f32.mxu0 0.0
  %6994 = vmatmul.mubr.f32.gmra.mrb[0].mxu0 %v6805
  %v6995 = vpop.f32.mrb[0].mxu0
  %v6996 = vadd.f32 0.0, %v6995
  %v6997 = vpop.f32.mrb[0].mxu0
  %6998 = vmatprep.mubr.f32.mxu0 0.0
  %6999 = vmatmul.mubr.f32.gmra.mrb[0].mxu0 %v6806
  %v7000 = vpop.f32.mrb[0].mxu0
  %v7001 = vadd.f32 0.0, %v7000
  %v7002 = vpop.f32.mrb[0].mxu0
  %7003 = vmatprep.mubr.f32.mxu0 0.0
  %7004 = vmatmul.mubr.f32.gmra.mrb[0].mxu0 %v6807
  %v7005 = vpop.f32.mrb[0].mxu0
  %v7006 = vadd.f32 0.0, %v7005
  %v7007 = vpop.f32.mrb[0].mxu0
  %7008 = vmatprep.mubr.f32.mxu0 0.0
  %7009 = vmatmul.mubr.f32.gmra.mrb[0].mxu0 %v6808
  %v7010 = vpop.f32.mrb[0].mxu0
  %v7011 = vadd.f32 0.0, %v7010
  %v7012 = vpop.f32.mrb[0].mxu0
  %7013 = vmatprep.mubr.f32.mxu0 0.0
  %7014 = vmatmul.mubr.f32.gmra.mrb[0].mxu0 %v6809
  %v7015 = vpop.f32.mrb[0].mxu0
  %v7016 = vadd.f32 0.0, %v7015
  %v7017 = vpop.f32.mrb[0].mxu0
  %7018 = vmatprep.mubr.f32.mxu0 0.0
  %7019 = vmatmul.mubr.f32.gmra.mrb[0].mxu0 %v6810
  %v7020 = vpop.f32.mrb[0].mxu0
  %v7021 = vadd.f32 0.0, %v7020
  %v7022 = vpop.f32.mrb[0].mxu0
  %7023 = vmatprep.mubr.f32.mxu0 0.0
  %7024 = vmatmul.mubr.f32.gmra.mrb[0].mxu0 %v6811
  %v7025 = vpop.f32.mrb[0].mxu0
  %v7026 = vadd.f32 0.0, %v7025
  %v7027 = vpop.f32.mrb[0].mxu0
  %7028 = vmatprep.mubr.f32.mxu0 0.0
  %7029 = vmatmul.mubr.f32.gmra.mrb[0].mxu0 %v6812
  %v7030 = vpop.f32.mrb[0].mxu0
  %v7031 = vadd.f32 0.0, %v7030
  %v7032 = vpop.f32.mrb[0].mxu0
  %7033 = vmatprep.mubr.f32.mxu0 0.0
  %7034 = vmatmul.mubr.f32.gmra.mrb[0].mxu0 %v6813
  %v7035 = vpop.f32.mrb[0].mxu0
  %v7036 = vadd.f32 0.0, %v7035
  %v7037 = vpop.f32.mrb[0].mxu0
  %7038 = vdwg.mxu0
  %7071 = vrot.lane.b32.xlu0 %v6881, 127
  %v7072 = vpop.permute.xlu0 %7071
  %7073 = vrot.lane.b32.xlu0 %v6886, 127
  %v7074 = vpop.permute.xlu0 %7073
  %7075 = vrot.lane.b32.xlu0 %v6891, 127
  %v7076 = vpop.permute.xlu0 %7075
  %7077 = vrot.lane.b32.xlu0 %v6896, 127
  %v7078 = vpop.permute.xlu0 %7077
  %7079 = vrot.lane.b32.xlu0 %v6901, 127
  %v7080 = vpop.permute.xlu0 %7079
  %7081 = vrot.lane.b32.xlu0 %v6906, 127
  %v7082 = vpop.permute.xlu0 %7081
  %7083 = vrot.lane.b32.xlu0 %v6911, 127
  %v7084 = vpop.permute.xlu0 %7083
  %7085 = vrot.lane.b32.xlu0 %v6916, 127
  %v7086 = vpop.permute.xlu0 %7085
  %7087 = vrot.lane.b32.xlu0 %v6921, 127
  %v7088 = vpop.permute.xlu0 %7087
  %7089 = vrot.lane.b32.xlu0 %v6926, 127
  %v7090 = vpop.permute.xlu0 %7089
  %7091 = vrot.lane.b32.xlu0 %v6931, 127
  %v7092 = vpop.permute.xlu0 %7091
  %7093 = vrot.lane.b32.xlu0 %v6936, 127
  %v7094 = vpop.permute.xlu0 %7093
  %7095 = vrot.lane.b32.xlu0 %v6941, 127
  %v7096 = vpop.permute.xlu0 %7095
  %7097 = vrot.lane.b32.xlu0 %v6946, 127
  %v7098 = vpop.permute.xlu0 %7097
  %7099 = vrot.lane.b32.xlu0 %v6951, 127
  %v7100 = vpop.permute.xlu0 %7099
  %7101 = vrot.lane.b32.xlu0 %v6956, 127
  %v7102 = vpop.permute.xlu0 %7101
  %7103 = vrot.lane.b32.xlu0 %v6961, 127
  %v7104 = vpop.permute.xlu0 %7103
  %7105 = vrot.lane.b32.xlu0 %v6966, 127
  %v7106 = vpop.permute.xlu0 %7105
  %7107 = vrot.lane.b32.xlu0 %v6971, 127
  %v7108 = vpop.permute.xlu0 %7107
  %7109 = vrot.lane.b32.xlu0 %v6976, 127
  %v7110 = vpop.permute.xlu0 %7109
  %7111 = vrot.lane.b32.xlu0 %v6981, 127
  %v7112 = vpop.permute.xlu0 %7111
  %7113 = vrot.lane.b32.xlu0 %v6986, 127
  %v7114 = vpop.permute.xlu0 %7113
  %7115 = vrot.lane.b32.xlu0 %v6991, 127
  %v7116 = vpop.permute.xlu0 %7115
  %7117 = vrot.lane.b32.xlu0 %v6996, 127
  %v7118 = vpop.permute.xlu0 %7117
  %7119 = vrot.lane.b32.xlu0 %v7001, 127
  %v7120 = vpop.permute.xlu0 %7119
  %7121 = vrot.lane.b32.xlu0 %v7006, 127
  %v7122 = vpop.permute.xlu0 %7121
  %7123 = vrot.lane.b32.xlu0 %v7011, 127
  %v7124 = vpop.permute.xlu0 %7123
  %7125 = vrot.lane.b32.xlu0 %v7016, 127
  %v7126 = vpop.permute.xlu0 %7125
  %7127 = vrot.lane.b32.xlu0 %v7021, 127
  %v7128 = vpop.permute.xlu0 %7127
  %7129 = vrot.lane.b32.xlu0 %v7026, 127
  %v7130 = vpop.permute.xlu0 %7129
  %7131 = vrot.lane.b32.xlu0 %v7031, 127
  %v7132 = vpop.permute.xlu0 %7131
  %7133 = vrot.lane.b32.xlu0 %v7036, 127
  %v7134 = vpop.permute.xlu0 %7133
  %v7167 = vadd.f32 %v6624, %v7072
  %v7168 = vadd.f32 %v6629, %v7074
  %v7169 = vadd.f32 %v6634, %v7076
  %v7170 = vadd.f32 %v6639, %v7078
  %v7171 = vadd.f32 %v6644, %v7080
  %v7172 = vadd.f32 %v6649, %v7082
  %v7173 = vadd.f32 %v6654, %v7084
  %v7174 = vadd.f32 %v6659, %v7086
  %v7175 = vadd.f32 %v6664, %v7088
  %v7176 = vadd.f32 %v6669, %v7090
  %v7177 = vadd.f32 %v6674, %v7092
  %v7178 = vadd.f32 %v6679, %v7094
  %v7179 = vadd.f32 %v6684, %v7096
  %v7180 = vadd.f32 %v6689, %v7098
  %v7181 = vadd.f32 %v6694, %v7100
  %v7182 = vadd.f32 %v6699, %v7102
  %v7183 = vadd.f32 %v6704, %v7104
  %v7184 = vadd.f32 %v6709, %v7106
  %v7185 = vadd.f32 %v6714, %v7108
  %v7186 = vadd.f32 %v6719, %v7110
  %v7187 = vadd.f32 %v6724, %v7112
  %v7188 = vadd.f32 %v6729, %v7114
  %v7189 = vadd.f32 %v6734, %v7116
  %v7190 = vadd.f32 %v6739, %v7118
  %v7191 = vadd.f32 %v6744, %v7120
  %v7192 = vadd.f32 %v6749, %v7122
  %v7193 = vadd.f32 %v6754, %v7124
  %v7194 = vadd.f32 %v6759, %v7126
  %v7195 = vadd.f32 %v6764, %v7128
  %v7196 = vadd.f32 %v6769, %v7130
  %v7197 = vadd.f32 %v6774, %v7132
  %v7198 = vadd.f32 %v6779, %v7134
  %v7199 = vld [vmem:[%s77] sm:$0xff]
  %v7200 = vld [vmem:[%s77 + $0x8] sm:$0xff]
  %v7201 = vld [vmem:[%s77 + $0x10] sm:$0xff]
  %v7202 = vld [vmem:[%s77 + $0x18] sm:$0xff]
  %v7203 = vld [vmem:[%s77 + $0x20] sm:$0xff]
  %v7204 = vld [vmem:[%s77 + $0x28] sm:$0xff]
  %v7205 = vld [vmem:[%s77 + $0x30] sm:$0xff]
  %v7206 = vld [vmem:[%s77 + $0x38] sm:$0xff]
  %v7207 = vld [vmem:[%s77 + $0x40] sm:$0xff]
  %v7208 = vld [vmem:[%s77 + $0x48] sm:$0xff]
  %v7209 = vld [vmem:[%s77 + $0x50] sm:$0xff]
  %v7210 = vld [vmem:[%s77 + $0x58] sm:$0xff]
  %v7211 = vld [vmem:[%s77 + $0x60] sm:$0xff]
  %v7212 = vld [vmem:[%s77 + $0x68] sm:$0xff]
  %v7213 = vld [vmem:[%s77 + $0x70] sm:$0xff]
  %v7214 = vld [vmem:[%s77 + $0x78] sm:$0xff]
  %v7215 = vld [vmem:[%s77 + $0x80] sm:$0xff]
  %v7216 = vld [vmem:[%s77 + $0x88] sm:$0xff]
  %v7217 = vld [vmem:[%s77 + $0x90] sm:$0xff]
  %v7218 = vld [vmem:[%s77 + $0x98] sm:$0xff]
  %v7219 = vld [vmem:[%s77 + $0xa0] sm:$0xff]
  %v7220 = vld [vmem:[%s77 + $0xa8] sm:$0xff]
  %v7221 = vld [vmem:[%s77 + $0xb0] sm:$0xff]
  %v7222 = vld [vmem:[%s77 + $0xb8] sm:$0xff]
  %v7223 = vld [vmem:[%s77 + $0xc0] sm:$0xff]
  %v7224 = vld [vmem:[%s77 + $0xc8] sm:$0xff]
  %v7225 = vld [vmem:[%s77 + $0xd0] sm:$0xff]
  %v7226 = vld [vmem:[%s77 + $0xd8] sm:$0xff]
  %v7227 = vld [vmem:[%s77 + $0xe0] sm:$0xff]
  %v7228 = vld [vmem:[%s77 + $0xe8] sm:$0xff]
  %v7229 = vld [vmem:[%s77 + $0xf0] sm:$0xff]
  %v7230 = vld [vmem:[%s77 + $0xf8] sm:$0xff]
  %v7231 = vadd.f32 %v7167, %v7199
  %v7232 = vadd.f32 %v7168, %v7200
  %v7233 = vadd.f32 %v7169, %v7201
  %v7234 = vadd.f32 %v7170, %v7202
  %v7235 = vadd.f32 %v7171, %v7203
  %v7236 = vadd.f32 %v7172, %v7204
  %v7237 = vadd.f32 %v7173, %v7205
  %v7238 = vadd.f32 %v7174, %v7206
  %v7239 = vadd.f32 %v7175, %v7207
  %v7240 = vadd.f32 %v7176, %v7208
  %v7241 = vadd.f32 %v7177, %v7209
  %v7242 = vadd.f32 %v7178, %v7210
  %v7243 = vadd.f32 %v7179, %v7211
  %v7244 = vadd.f32 %v7180, %v7212
  %v7245 = vadd.f32 %v7181, %v7213
  %v7246 = vadd.f32 %v7182, %v7214
  %v7247 = vadd.f32 %v7183, %v7215
  %v7248 = vadd.f32 %v7184, %v7216
  %v7249 = vadd.f32 %v7185, %v7217
  %v7250 = vadd.f32 %v7186, %v7218
  %v7251 = vadd.f32 %v7187, %v7219
  %v7252 = vadd.f32 %v7188, %v7220
  %v7253 = vadd.f32 %v7189, %v7221
  %v7254 = vadd.f32 %v7190, %v7222
  %v7255 = vadd.f32 %v7191, %v7223
  %v7256 = vadd.f32 %v7192, %v7224
  %v7257 = vadd.f32 %v7193, %v7225
  %v7258 = vadd.f32 %v7194, %v7226
  %v7259 = vadd.f32 %v7195, %v7227
  %v7260 = vadd.f32 %v7196, %v7228
  %v7261 = vadd.f32 %v7197, %v7229
  %v7262 = vadd.f32 %v7198, %v7230
  %v7263 = vmax.f32 %v7231, 0.0
  %v7264 = vmax.f32 %v7232, 0.0
  %v7265 = vmax.f32 %v7233, 0.0
  %v7266 = vmax.f32 %v7234, 0.0
  %v7267 = vmax.f32 %v7235, 0.0
  %v7268 = vmax.f32 %v7236, 0.0
  %v7269 = vmax.f32 %v7237, 0.0
  %v7270 = vmax.f32 %v7238, 0.0
  %v7271 = vmax.f32 %v7239, 0.0
  %v7272 = vmax.f32 %v7240, 0.0
  %v7273 = vmax.f32 %v7241, 0.0
  %v7274 = vmax.f32 %v7242, 0.0
  %v7275 = vmax.f32 %v7243, 0.0
  %v7276 = vmax.f32 %v7244, 0.0
  %v7277 = vmax.f32 %v7245, 0.0
  %v7278 = vmax.f32 %v7246, 0.0
  %v7279 = vmax.f32 %v7247, 0.0
  %v7280 = vmax.f32 %v7248, 0.0
  %v7281 = vmax.f32 %v7249, 0.0
  %v7282 = vmax.f32 %v7250, 0.0
  %v7283 = vmax.f32 %v7251, 0.0
  %v7284 = vmax.f32 %v7252, 0.0
  %v7285 = vmax.f32 %v7253, 0.0
  %v7286 = vmax.f32 %v7254, 0.0
  %v7287 = vmax.f32 %v7255, 0.0
  %v7288 = vmax.f32 %v7256, 0.0
  %v7289 = vmax.f32 %v7257, 0.0
  %v7290 = vmax.f32 %v7258, 0.0
  %v7291 = vmax.f32 %v7259, 0.0
  %v7292 = vmax.f32 %v7260, 0.0
  %v7293 = vmax.f32 %v7261, 0.0
  %v7294 = vmax.f32 %v7262, 0.0
  %v7295 = vld [vmem:[%s79] sm:$0xff]
  %v7296 = vld [vmem:[%s81] sm:$0xf]
  %v7298 = vcombine.high %v7295, %v7295
  %7300 = vmatprep.subr.mxu0 0.0
  %7301 = vmatpush1.msra.mxu0 %v7263
  %7302 = vmatprep.subr.mxu0 0.0
  %7303 = vmatpush1.msra.mxu0 %v7264
  %7304 = vmatprep.subr.mxu0 0.0
  %7305 = vmatpush1.msra.mxu0 %v7265
  %7306 = vmatprep.subr.mxu0 0.0
  %7307 = vmatpush1.msra.mxu0 %v7266
  %7308 = vmatprep.subr.mxu0 0.0
  %7309 = vmatpush1.msra.mxu0 %v7267
  %7310 = vmatprep.subr.mxu0 0.0
  %7311 = vmatpush1.msra.mxu0 %v7268
  %7312 = vmatprep.subr.mxu0 0.0
  %7313 = vmatpush1.msra.mxu0 %v7269
  %7314 = vmatprep.subr.mxu0 0.0
  %7315 = vmatpush1.msra.mxu0 %v7270
  %7316 = vmatprep.subr.mxu0 0.0
  %7317 = vmatpush1.msra.mxu0 %v7271
  %7318 = vmatprep.subr.mxu0 0.0
  %7319 = vmatpush1.msra.mxu0 %v7272
  %7320 = vmatprep.subr.mxu0 0.0
  %7321 = vmatpush1.msra.mxu0 %v7273
  %7322 = vmatprep.subr.mxu0 0.0
  %7323 = vmatpush1.msra.mxu0 %v7274
  %7324 = vmatprep.subr.mxu0 0.0
  %7325 = vmatpush1.msra.mxu0 %v7275
  %7326 = vmatprep.subr.mxu0 0.0
  %7327 = vmatpush1.msra.mxu0 %v7276
  %7328 = vmatprep.subr.mxu0 0.0
  %7329 = vmatpush1.msra.mxu0 %v7277
  %7330 = vmatprep.subr.mxu0 0.0
  %7331 = vmatpush1.msra.mxu0 %v7278
  %7332 = vmatprep.subr.mxu0 0.0
  %7333 = vmatpush1.msra.mxu0 %v7279
  %7334 = vmatprep.subr.mxu0 0.0
  %7335 = vmatpush1.msra.mxu0 %v7280
  %7336 = vmatprep.subr.mxu0 0.0
  %7337 = vmatpush1.msra.mxu0 %v7281
  %7338 = vmatprep.subr.mxu0 0.0
  %7339 = vmatpush1.msra.mxu0 %v7282
  %7340 = vmatprep.subr.mxu0 0.0
  %7341 = vmatpush1.msra.mxu0 %v7283
  %7342 = vmatprep.subr.mxu0 0.0
  %7343 = vmatpush1.msra.mxu0 %v7284
  %7344 = vmatprep.subr.mxu0 0.0
  %7345 = vmatpush1.msra.mxu0 %v7285
  %7346 = vmatprep.subr.mxu0 0.0
  %7347 = vmatpush1.msra.mxu0 %v7286
  %7348 = vmatprep.subr.mxu0 0.0
  %7349 = vmatpush1.msra.mxu0 %v7287
  %7350 = vmatprep.subr.mxu0 0.0
  %7351 = vmatpush1.msra.mxu0 %v7288
  %7352 = vmatprep.subr.mxu0 0.0
  %7353 = vmatpush1.msra.mxu0 %v7289
  %7354 = vmatprep.subr.mxu0 0.0
  %7355 = vmatpush1.msra.mxu0 %v7290
  %7356 = vmatprep.subr.mxu0 0.0
  %7357 = vmatpush1.msra.mxu0 %v7291
  %7358 = vmatprep.subr.mxu0 0.0
  %7359 = vmatpush1.msra.mxu0 %v7292
  %7360 = vmatprep.subr.mxu0 0.0
  %7361 = vmatpush1.msra.mxu0 %v7293
  %7362 = vmatprep.subr.mxu0 0.0
  %7363 = vmatpush1.msra.mxu0 %v7294
  %7364 = vmatprep.mubr.f32.mxu0 %v7298
  %7365 = vmatmul.mubr.f32.gmra.mrb[0].mxu0 %v7295
  %v7366 = vpop.f32.mrb[0].mxu0
  %v7367 = vadd.f32 %v7296, %v7366
  %v7368 = vpop.f32.mrb[0].mxu0
  %7369 = vdwg.mxu0
  %vm7370 = vcmask 3072
  %7371 = vst.msk [vmem:[%s83] sm:$0xf] %vm7370, %v7367
  // Predicated region
  $region166: #{forward.1} parent=0 // pred_check
    _
  $region167: #{forward.1} parent=0 // pred_check_branch
    %7373 = sbr.rel (0) target = $region169
  $region168: #{forward.1} parent=0 // pred_region
    _
  $region169: #{forward.1} parent=0 // pred_fallthru
    _
  // Predicated region
  $region170: #{forward.1} parent=0 // pred_check
    _
  $region171: #{forward.1} parent=0 // pred_check_branch
    %7375 = sbr.rel (0) target = $region173
  $region172: #{forward.1} parent=0 // pred_region
    _
  $region173: #{forward.1} parent=0 // pred_fallthru
    _

</llo_original>
